<compile_context>
chip_gen: v6e
topology: v6e:2x2x1
jax: 0.10.0
libtpu: 0.0.40
codegen_flags: <defaults>
</compile_context>

<pallas_src>
import functools

import numpy as np
import jax
import jax.numpy as jnp
from jax.experimental import pallas as pl
from jax.experimental.pallas import tpu as pltpu

NUM_REDUCE = 256
SPATIAL_HW = 4
NUM_POOL = SPATIAL_HW * SPATIAL_HW          # 16
HIDDEN = 512
ROTY_CH = 81
TRANSX_CH = 51
TRANSZ_CH = 51
ROTY_RANGE = (-0.4, 0.4)
TRANSX_RANGE = (-0.25, 0.25)
TRANSZ_RANGE = (-0.4, 0.05)

# Fused head layout: each head lives in its own 128-lane tile.
HEAD_TILE = 128
HEAD_OFFS = (0, HEAD_TILE, 2 * HEAD_TILE)
HEAD_SIZES = (ROTY_CH, TRANSX_CH, TRANSZ_CH)
HEAD_W = 3 * HEAD_TILE                      # 384
NEG_BIG = -1e30

# Images per grid step.  16 keeps every in-kernel slice aligned to both the
# f32 (8-row) and bf16 (16-row) sublane packing, and gives the FC/head matmuls
# M=16 instead of M=8.
BATCH_TILE = 16


def _adaptive_pool_windows(h, w, out_hw):
    """Static windows of nn.AdaptiveAvgPool2d([out_hw, out_hw]).

    Returns a tuple (one per output cell s = oh*out_hw + ow) of tuples of flat
    input positions p = ih*w + iw; within a window the pool weight is uniform
    (1/len(window)), exactly matching PyTorch's adaptive average pool.
    """
    wins = []
    for oh in range(out_hw):
        hs, he = (oh * h) // out_hw, -(-((oh + 1) * h) // out_hw)
        for ow in range(out_hw):
            ws, we = (ow * w) // out_hw, -(-((ow + 1) * w) // out_hw)
            wins.append(tuple(ih * w + iw
                              for ih in range(hs, he) for iw in range(ws, we)))
    return tuple(wins)


def _adaptive_avg_pool_matrix(h, w, out_hw):
    """(16, HW) pooling matrix -- used only by the pure-JAX reference."""
    P = np.zeros((out_hw * out_hw, h * w), dtype=np.float32)
    for s, win in enumerate(_adaptive_pool_windows(h, w, out_hw)):
        for p in win:
            P[s, p] = 1.0 / len(win)
    return P


def _decoder_kernel(feat_ref, w1_ref, b1_ref, w2_ref, b2_ref, w3_ref, b3_ref,
                    wfc_ref, bfc_ref, wh_ref, bh_ref, planes_ref, out_ref,
                    *, pool_windows):
    HW, TB, C = feat_ref.shape
    cdt = w1_ref.dtype                       # matmul-input dtype (f32 or bf16)
    f32 = jnp.float32

    # Spatial-major feature block: row = p*TB + b.  TB is a multiple of the
    # sublane pack, so this reshape is layout-preserving (no relayout copy).
    x = feat_ref[...].reshape(HW * TB, C)

    # reduce: three 1x1 convs (row-independent matmuls) + ReLU, f32 accum.
    h = jnp.dot(x, w1_ref[...], preferred_element_type=f32) + b1_ref[...]
    h = jnp.maximum(h, 0.0).astype(cdt)
    h = jnp.dot(h, w2_ref[...], preferred_element_type=f32) + b2_ref[...]
    h = jnp.maximum(h, 0.0).astype(cdt)
    h = jnp.dot(h, w3_ref[...], preferred_element_type=f32) + b3_ref[...]
    h = jnp.maximum(h, 0.0)                  # (HW*TB, 256) f32; f32 pooling

    # AdaptiveAvgPool2d([4,4]) + Linear(4096 -> 512), fused without a pool
    # matrix or a lane concat:
    #   pooled_s  = mean of the window's (TB, 256) row blocks   (VPU, aligned)
    #   hid      += pooled_s @ wfc[s]                            (MXU, f32 acc)
    hid = jnp.zeros((TB, HIDDEN), f32)
    for s, win in enumerate(pool_windows):
        acc = h[win[0] * TB:(win[0] + 1) * TB, :]
        for p in win[1:]:
            acc = acc + h[p * TB:(p + 1) * TB, :]
        pooled_s = (acc * (1.0 / len(win))).astype(cdt)           # (TB, 256)
        hid = hid + jnp.dot(pooled_s, wfc_ref[s], preferred_element_type=f32)
    hid = jnp.maximum(hid + bfc_ref[...], 0.0).astype(cdt)        # (TB, 512)

    # Three softmax-expectation heads fused into one (512, 384) matmul; each
    # head owns one 128-lane tile, pad lanes carry bias -1e30 so exp() -> 0 and
    # they vanish from numerator and denominator.
    logits = jnp.dot(hid, wh_ref[...], preferred_element_type=f32) + bh_ref[...]

    def head_expectation(off):
        l = logits[:, off:off + HEAD_TILE]
        m = jnp.max(l, axis=-1, keepdims=True)
        e = jnp.exp(l - m)
        num = jnp.sum(e * planes_ref[:, off:off + HEAD_TILE], axis=-1, keepdims=True)
        den = jnp.sum(e, axis=-1, keepdims=True)
        return num / den                                          # (TB, 1)

    ry = head_expectation(HEAD_OFFS[0])
    tx = head_expectation(HEAD_OFFS[1])
    tz = head_expectation(HEAD_OFFS[2])

    out_ref[...] = jnp.concatenate(
        [ry, tx, tz, jnp.zeros((TB, 5), f32)], axis=-1)           # (TB, 8)


def _const_spec(arr):
    """BlockSpec for a grid-invariant operand: constant index map, and a single
    pipeline buffer (the second buffer of the default double-buffering would be
    pure VMEM waste since the block never changes)."""
    nd = arr.ndim
    idx = lambda b, _nd=nd: (0,) * _nd
    if hasattr(pl, "Buffered"):
        try:
            return pl.BlockSpec(arr.shape, idx, pipeline_mode=pl.Buffered(1))
        except TypeError:
            pass
    return pl.BlockSpec(arr.shape, idx)


@functools.partial(jax.jit, static_argnames=("weight_dtype",))
def class_pose_decoder(feat_nchw, params, *, weight_dtype=jnp.bfloat16):
    """Forward pass.  feat_nchw: (B, C_in, H, W) f32 -> (rotv (B,3), trans (B,3))."""
    B, C, H, W = feat_nchw.shape
    HW = H * W
    f32 = jnp.float32

    TB = BATCH_TILE
    Bpad = -(-B // TB) * TB
    num_tiles = Bpad // TB

    # Spatial-major layout (HW, Bpad, C): the 1x1 convs are row-independent and
    # the adaptive pool becomes sums of whole (TB, C) row blocks in the kernel.
    feat = jnp.transpose(feat_nchw, (2, 3, 0, 1)).reshape(HW, B, C)
    if Bpad != B:
        feat = jnp.pad(feat, ((0, 0), (0, Bpad - B), (0, 0)))
    feat = feat.astype(weight_dtype)

    # 1x1 conv weights: PyTorch (out, in) -> (in, out).  Biases stay f32.
    w1, b1 = params["w1"].T.astype(weight_dtype), params["b1"][None, :].astype(f32)
    w2, b2 = params["w2"].T.astype(weight_dtype), params["b2"][None, :].astype(f32)
    w3, b3 = params["w3"].T.astype(weight_dtype), params["b3"][None, :].astype(f32)

    # FC weight as (16, 256, 512): wfc3[s, c, j] = Wfc[j, c*16 + s] (PyTorch
    # NCHW flatten order is c*16 + s).  The kernel accumulates pooled_s @ wfc3[s].
    wfc3 = jnp.transpose(
        params["wfc"].reshape(HIDDEN, NUM_REDUCE, NUM_POOL), (2, 1, 0)
    ).astype(weight_dtype)
    bfc = params["bfc"][None, :].astype(f32)

    # Fused head weight / bias / plane values, one 128-lane tile per head.
    wh = jnp.zeros((HIDDEN, HEAD_W), f32)
    bh = jnp.full((HEAD_W,), NEG_BIG, f32)
    pv = jnp.zeros((HEAD_W,), f32)
    planes_all = (
        jnp.linspace(ROTY_RANGE[0], ROTY_RANGE[1], ROTY_CH, dtype=f32),
        jnp.linspace(TRANSX_RANGE[0], TRANSX_RANGE[1], TRANSX_CH, dtype=f32),
        jnp.linspace(TRANSZ_RANGE[0], TRANSZ_RANGE[1], TRANSZ_CH, dtype=f32),
    )
    head_params = ((params["wry"], params["bry"]),
                   (params["wtx"], params["btx"]),
                   (params["wtz"], params["btz"]))
    for off, size, (w_h, b_h), planes_h in zip(HEAD_OFFS, HEAD_SIZES,
                                               head_params, planes_all):
        wh = wh.at[:, off:off + size].set(w_h.T.astype(f32))
        bh = bh.at[off:off + size].set(b_h.astype(f32))
        pv = pv.at[off:off + size].set(planes_h)
    wh = wh.astype(weight_dtype)
    bh = bh[None, :]      # stays f32 (pad-lane -1e30 must not be narrowed)
    pv = pv[None, :]

    args = (feat, w1, b1, w2, b2, w3, b3, wfc3, bfc, wh, bh, pv)

    in_specs = [pl.BlockSpec((HW, TB, C), lambda b: (0, b, 0))]
    in_specs += [_const_spec(a) for a in args[1:]]
    out_specs = pl.BlockSpec((TB, 8), lambda b: (b, 0))
    out_shape = jax.ShapeDtypeStruct((Bpad, 8), f32)

    # Honest cost hint: the kernel is weight-DMA bound and only a few us long,
    # so let XLA schedule/overlap it with its neighbours.
    flops = Bpad * (2 * HW * (C * NUM_REDUCE + 2 * NUM_REDUCE * NUM_REDUCE)
                    + HW * NUM_REDUCE
                    + 2 * NUM_POOL * NUM_REDUCE * HIDDEN
                    + 2 * HIDDEN * HEAD_W)
    bytes_accessed = int(sum(int(np.prod(a.shape)) * a.dtype.itemsize for a in args)
                         + Bpad * 8 * 4)
    cost = pl.CostEstimate(flops=int(flops), transcendentals=int(Bpad * HEAD_W),
                           bytes_accessed=bytes_accessed)

    # Only split the grid across TensorCores (v7x megacore) when there are
    # enough batch tiles to amortize the duplicated per-core weight fetch.
    dim_sem = ("parallel",) if num_tiles >= 4 else ("arbitrary",)

    kernel = functools.partial(
        _decoder_kernel, pool_windows=_adaptive_pool_windows(H, W, SPATIAL_HW))

    packed = pl.pallas_call(
        kernel,
        out_shape=out_shape,
        grid_spec=pltpu.PrefetchScalarGridSpec(
            num_scalar_prefetch=0,
            grid=(num_tiles,),
            in_specs=in_specs,
            out_specs=out_specs),
        compiler_params=pltpu.CompilerParams(
            dimension_semantics=dim_sem,
            vmem_limit_bytes=32 * 1024 * 1024),
        cost_estimate=cost,
    )(*args)

    packed = packed[:B]
    ry, tx, tz = packed[:, 0:1], packed[:, 1:2], packed[:, 2:3]
    rotv = ry * jnp.array([[0.0, 1.0, 0.0]], f32)
    trans = tx * jnp.array([[1.0, 0.0, 0.0]], f32) + tz * jnp.array([[0.0, 0.0, 1.0]], f32)
    return rotv, trans


def init_params(key, c_in):
    """Deterministic synthetic parameters (PyTorch weight conventions: (out, in))."""
    keys = jax.random.split(key, 7)

    def lin(k, out_f, in_f):
        bound = 1.0 / np.sqrt(in_f)
        kw, kb = jax.random.split(k)
        W = jax.random.uniform(kw, (out_f, in_f), jnp.float32, -bound, bound)
        b = jax.random.uniform(kb, (out_f,), jnp.float32, -bound, bound)
        return W, b

    p = {}
    p["w1"], p["b1"] = lin(keys[0], NUM_REDUCE, c_in)
    p["w2"], p["b2"] = lin(keys[1], NUM_REDUCE, NUM_REDUCE)
    p["w3"], p["b3"] = lin(keys[2], NUM_REDUCE, NUM_REDUCE)
    p["wfc"], p["bfc"] = lin(keys[3], HIDDEN, NUM_REDUCE * NUM_POOL)
    p["wry"], p["bry"] = lin(keys[4], ROTY_CH, HIDDEN)
    p["wtx"], p["btx"] = lin(keys[5], TRANSX_CH, HIDDEN)
    p["wtz"], p["btz"] = lin(keys[6], TRANSZ_CH, HIDDEN)
    return p


def reference(feat_nchw, params):
    """Pure-JAX f32 reference reproducing the PyTorch forward exactly."""
    B, C, H, W = feat_nchw.shape
    x = jnp.transpose(feat_nchw, (0, 2, 3, 1)).reshape(B, H * W, C)
    h = jax.nn.relu(x @ params["w1"].T + params["b1"])
    h = jax.nn.relu(h @ params["w2"].T + params["b2"])
    h = jax.nn.relu(h @ params["w3"].T + params["b3"])               # (B, HW, 256)
    P = jnp.asarray(_adaptive_avg_pool_matrix(H, W, SPATIAL_HW))
    pooled = jnp.einsum("sp,bpc->bsc", P, h)                         # (B, 16, 256)
    fc_in = jnp.transpose(pooled, (0, 2, 1)).reshape(B, -1)          # NCHW flatten
    hid = jax.nn.relu(fc_in @ params["wfc"].T + params["bfc"])

    def head(Wt, bt, planes):
        p = jax.nn.softmax(hid @ Wt.T + bt, axis=1)
        return jnp.sum(p * planes[None, :], axis=1, keepdims=True)

    ry = head(params["wry"], params["bry"],
              jnp.linspace(ROTY_RANGE[0], ROTY_RANGE[1], ROTY_CH))
    tx = head(params["wtx"], params["btx"],
              jnp.linspace(TRANSX_RANGE[0], TRANSX_RANGE[1], TRANSX_CH))
    tz = head(params["wtz"], params["btz"],
              jnp.linspace(TRANSZ_RANGE[0], TRANSZ_RANGE[1], TRANSZ_CH))
    rot_axis = jnp.array([[0.0, 1.0, 0.0]])
    x_dir = jnp.array([[1.0, 0.0, 0.0]])
    z_dir = jnp.array([[0.0, 0.0, 1.0]])
    return ry * rot_axis, tx * x_dir + tz * z_dir


if __name__ == "__main__":
    key = jax.random.PRNGKey(0)
    kf, kp = jax.random.split(key)
    B, C_in, H, W = 4, 64, 8, 8
    feat = jax.random.normal(kf, (B, C_in, H, W), jnp.float32)
    params = init_params(kp, C_in)

    rotv_ref, trans_ref = reference(feat, params)

    # Exact path (f32 weights) -- faithful to the PyTorch forward.
    rotv32, trans32 = class_pose_decoder(feat, params, weight_dtype=jnp.float32)
    jax.block_until_ready((rotv32, trans32))
    assert rotv32.shape == (B, 3) and trans32.shape == (B, 3)
    assert jnp.allclose(rotv32, rotv_ref, atol=1e-4, rtol=1e-3), (rotv32, rotv_ref)
    assert jnp.allclose(trans32, trans_ref, atol=1e-4, rtol=1e-3), (trans32, trans_ref)

    # Optimized path (bf16 weights/features, f32 accumulation): looser tolerance.
    rotv16, trans16 = class_pose_decoder(feat, params, weight_dtype=jnp.bfloat16)
    jax.block_until_ready((rotv16, trans16))
    assert jnp.allclose(rotv16, rotv_ref, atol=3e-2, rtol=0.0), (rotv16, rotv_ref)
    assert jnp.allclose(trans16, trans_ref, atol=3e-2, rtol=0.0), (trans16, trans_ref)

    print("KERNEL_OK")
</pallas_src>

<mosaic_0001>
module attributes {stable_mosaic.version = 11 : i64} {
  func.func @_decoder_kernel(%arg0: i32, %arg1: memref<64x16x64xf32, #tpu.memory_space<vmem>>, %arg2: memref<64x256xf32, #tpu.memory_space<vmem>>, %arg3: memref<1x256xf32, #tpu.memory_space<vmem>>, %arg4: memref<256x256xf32, #tpu.memory_space<vmem>>, %arg5: memref<1x256xf32, #tpu.memory_space<vmem>>, %arg6: memref<256x256xf32, #tpu.memory_space<vmem>>, %arg7: memref<1x256xf32, #tpu.memory_space<vmem>>, %arg8: memref<16x256x512xf32, #tpu.memory_space<vmem>>, %arg9: memref<1x512xf32, #tpu.memory_space<vmem>>, %arg10: memref<512x384xf32, #tpu.memory_space<vmem>>, %arg11: memref<1x384xf32, #tpu.memory_space<vmem>>, %arg12: memref<1x384xf32, #tpu.memory_space<vmem>>, %arg13: memref<16x8xf32, #tpu.memory_space<vmem>>) attributes {dimension_semantics = [#tpu.dimension_semantics<arbitrary>], iteration_bounds = array<i64: 1>, scalar_prefetch = 0 : i64, scratch_operands = 0 : i64, tpu.core_type = #tpu.core_type<tc>, window_params = [{transform_indices = @transform_0, window_bounds = array<i64: 64, 16, 64>}, {pipeline_mode = #tpu.pipeline_mode<synchronous>, transform_indices = @transform_1, window_bounds = array<i64: 64, 256>}, {pipeline_mode = #tpu.pipeline_mode<synchronous>, transform_indices = @transform_2, window_bounds = array<i64: 1, 256>}, {pipeline_mode = #tpu.pipeline_mode<synchronous>, transform_indices = @transform_3, window_bounds = array<i64: 256, 256>}, {pipeline_mode = #tpu.pipeline_mode<synchronous>, transform_indices = @transform_4, window_bounds = array<i64: 1, 256>}, {pipeline_mode = #tpu.pipeline_mode<synchronous>, transform_indices = @transform_5, window_bounds = array<i64: 256, 256>}, {pipeline_mode = #tpu.pipeline_mode<synchronous>, transform_indices = @transform_6, window_bounds = array<i64: 1, 256>}, {pipeline_mode = #tpu.pipeline_mode<synchronous>, transform_indices = @transform_7, window_bounds = array<i64: 16, 256, 512>}, {pipeline_mode = #tpu.pipeline_mode<synchronous>, transform_indices = @transform_8, window_bounds = array<i64: 1, 512>}, {pipeline_mode = #tpu.pipeline_mode<synchronous>, transform_indices = @transform_9, window_bounds = array<i64: 512, 384>}, {pipeline_mode = #tpu.pipeline_mode<synchronous>, transform_indices = @transform_10, window_bounds = array<i64: 1, 384>}, {pipeline_mode = #tpu.pipeline_mode<synchronous>, transform_indices = @transform_11, window_bounds = array<i64: 1, 384>}, {transform_indices = @transform_12, window_bounds = array<i64: 16, 8>}]} {
    %c0 = arith.constant 0 : index
    %c0_0 = arith.constant 0 : index
    %c0_1 = arith.constant 0 : index
    %0 = vector.load %arg1[%c0, %c0_0, %c0_1] : memref<64x16x64xf32, #tpu.memory_space<vmem>>, vector<64x16x64xf32>
    %1 = vector.shape_cast %0 : vector<64x16x64xf32> to vector<1024x64xf32>
    %c0_2 = arith.constant 0 : index
    %c0_3 = arith.constant 0 : index
    %2 = vector.load %arg2[%c0_2, %c0_3] : memref<64x256xf32, #tpu.memory_space<vmem>>, vector<64x256xf32>
    %cst = arith.constant dense<0.000000e+00> : vector<1024x256xf32>
    %3 = tpu.matmul %1, %2, %cst {dimension_numbers = #tpu.dot_dimension_numbers<[1], [0], [0], [1], [0, 0, 1, 1], [], []>} : vector<1024x64xf32>, vector<64x256xf32>, vector<1024x256xf32> -> vector<1024x256xf32>
    %c0_4 = arith.constant 0 : index
    %c0_5 = arith.constant 0 : index
    %4 = vector.load %arg3[%c0_4, %c0_5] : memref<1x256xf32, #tpu.memory_space<vmem>>, vector<1x256xf32>
    %5 = vector.broadcast %4 : vector<1x256xf32> to vector<1024x256xf32>
    %6 = arith.addf %3, %5 : vector<1024x256xf32>
    %cst_6 = arith.constant 0.000000e+00 : f32
    %7 = vector.broadcast %cst_6 : f32 to vector<1024x256xf32>
    %8 = arith.maximumf %6, %7 : vector<1024x256xf32>
    %c0_7 = arith.constant 0 : index
    %c0_8 = arith.constant 0 : index
    %9 = vector.load %arg4[%c0_7, %c0_8] : memref<256x256xf32, #tpu.memory_space<vmem>>, vector<256x256xf32>
    %cst_9 = arith.constant dense<0.000000e+00> : vector<1024x256xf32>
    %10 = tpu.matmul %8, %9, %cst_9 {dimension_numbers = #tpu.dot_dimension_numbers<[1], [0], [0], [1], [0, 0, 1, 1], [], []>} : vector<1024x256xf32>, vector<256x256xf32>, vector<1024x256xf32> -> vector<1024x256xf32>
    %c0_10 = arith.constant 0 : index
    %c0_11 = arith.constant 0 : index
    %11 = vector.load %arg5[%c0_10, %c0_11] : memref<1x256xf32, #tpu.memory_space<vmem>>, vector<1x256xf32>
    %12 = vector.broadcast %11 : vector<1x256xf32> to vector<1024x256xf32>
    %13 = arith.addf %10, %12 : vector<1024x256xf32>
    %cst_12 = arith.constant 0.000000e+00 : f32
    %14 = vector.broadcast %cst_12 : f32 to vector<1024x256xf32>
    %15 = arith.maximumf %13, %14 : vector<1024x256xf32>
    %c0_13 = arith.constant 0 : index
    %c0_14 = arith.constant 0 : index
    %16 = vector.load %arg6[%c0_13, %c0_14] : memref<256x256xf32, #tpu.memory_space<vmem>>, vector<256x256xf32>
    %cst_15 = arith.constant dense<0.000000e+00> : vector<1024x256xf32>
    %17 = tpu.matmul %15, %16, %cst_15 {dimension_numbers = #tpu.dot_dimension_numbers<[1], [0], [0], [1], [0, 0, 1, 1], [], []>} : vector<1024x256xf32>, vector<256x256xf32>, vector<1024x256xf32> -> vector<1024x256xf32>
    %c0_16 = arith.constant 0 : index
    %c0_17 = arith.constant 0 : index
    %18 = vector.load %arg7[%c0_16, %c0_17] : memref<1x256xf32, #tpu.memory_space<vmem>>, vector<1x256xf32>
    %19 = vector.broadcast %18 : vector<1x256xf32> to vector<1024x256xf32>
    %20 = arith.addf %17, %19 : vector<1024x256xf32>
    %cst_18 = arith.constant 0.000000e+00 : f32
    %21 = vector.broadcast %cst_18 : f32 to vector<1024x256xf32>
    %22 = arith.maximumf %20, %21 : vector<1024x256xf32>
    %cst_19 = arith.constant 0.000000e+00 : f32
    %23 = vector.broadcast %cst_19 : f32 to vector<16x512xf32>
    %24 = vector.extract_strided_slice %22 {offsets = [0, 0], sizes = [16, 256], strides = [1, 1]} : vector<1024x256xf32> to vector<16x256xf32>
    %25 = vector.extract_strided_slice %22 {offsets = [16, 0], sizes = [16, 256], strides = [1, 1]} : vector<1024x256xf32> to vector<16x256xf32>
    %26 = arith.addf %24, %25 : vector<16x256xf32>
    %27 = vector.extract_strided_slice %22 {offsets = [128, 0], sizes = [16, 256], strides = [1, 1]} : vector<1024x256xf32> to vector<16x256xf32>
    %28 = arith.addf %26, %27 : vector<16x256xf32>
    %29 = vector.extract_strided_slice %22 {offsets = [144, 0], sizes = [16, 256], strides = [1, 1]} : vector<1024x256xf32> to vector<16x256xf32>
    %30 = arith.addf %28, %29 : vector<16x256xf32>
    %cst_20 = arith.constant 2.500000e-01 : f32
    %31 = vector.broadcast %cst_20 : f32 to vector<16x256xf32>
    %32 = arith.mulf %30, %31 : vector<16x256xf32>
    %c0_21 = arith.constant 0 : index
    %c0_22 = arith.constant 0 : index
    %c0_23 = arith.constant 0 : index
    %33 = vector.load %arg8[%c0_21, %c0_22, %c0_23] : memref<16x256x512xf32, #tpu.memory_space<vmem>>, vector<1x256x512xf32>
    %34 = vector.shape_cast %33 : vector<1x256x512xf32> to vector<256x512xf32>
    %cst_24 = arith.constant dense<0.000000e+00> : vector<16x512xf32>
    %35 = tpu.matmul %32, %34, %cst_24 {dimension_numbers = #tpu.dot_dimension_numbers<[1], [0], [0], [1], [0, 0, 1, 1], [], []>} : vector<16x256xf32>, vector<256x512xf32>, vector<16x512xf32> -> vector<16x512xf32>
    %36 = arith.addf %23, %35 : vector<16x512xf32>
    %37 = vector.extract_strided_slice %22 {offsets = [32, 0], sizes = [16, 256], strides = [1, 1]} : vector<1024x256xf32> to vector<16x256xf32>
    %38 = vector.extract_strided_slice %22 {offsets = [48, 0], sizes = [16, 256], strides = [1, 1]} : vector<1024x256xf32> to vector<16x256xf32>
    %39 = arith.addf %37, %38 : vector<16x256xf32>
    %40 = vector.extract_strided_slice %22 {offsets = [160, 0], sizes = [16, 256], strides = [1, 1]} : vector<1024x256xf32> to vector<16x256xf32>
    %41 = arith.addf %39, %40 : vector<16x256xf32>
    %42 = vector.extract_strided_slice %22 {offsets = [176, 0], sizes = [16, 256], strides = [1, 1]} : vector<1024x256xf32> to vector<16x256xf32>
    %43 = arith.addf %41, %42 : vector<16x256xf32>
    %cst_25 = arith.constant 2.500000e-01 : f32
    %44 = vector.broadcast %cst_25 : f32 to vector<16x256xf32>
    %45 = arith.mulf %43, %44 : vector<16x256xf32>
    %c1 = arith.constant 1 : index
    %c0_26 = arith.constant 0 : index
    %c0_27 = arith.constant 0 : index
    %46 = vector.load %arg8[%c1, %c0_26, %c0_27] : memref<16x256x512xf32, #tpu.memory_space<vmem>>, vector<1x256x512xf32>
    %47 = vector.shape_cast %46 : vector<1x256x512xf32> to vector<256x512xf32>
    %cst_28 = arith.constant dense<0.000000e+00> : vector<16x512xf32>
    %48 = tpu.matmul %45, %47, %cst_28 {dimension_numbers = #tpu.dot_dimension_numbers<[1], [0], [0], [1], [0, 0, 1, 1], [], []>} : vector<16x256xf32>, vector<256x512xf32>, vector<16x512xf32> -> vector<16x512xf32>
    %49 = arith.addf %36, %48 : vector<16x512xf32>
    %50 = vector.extract_strided_slice %22 {offsets = [64, 0], sizes = [16, 256], strides = [1, 1]} : vector<1024x256xf32> to vector<16x256xf32>
    %51 = vector.extract_strided_slice %22 {offsets = [80, 0], sizes = [16, 256], strides = [1, 1]} : vector<1024x256xf32> to vector<16x256xf32>
    %52 = arith.addf %50, %51 : vector<16x256xf32>
    %53 = vector.extract_strided_slice %22 {offsets = [192, 0], sizes = [16, 256], strides = [1, 1]} : vector<1024x256xf32> to vector<16x256xf32>
    %54 = arith.addf %52, %53 : vector<16x256xf32>
    %55 = vector.extract_strided_slice %22 {offsets = [208, 0], sizes = [16, 256], strides = [1, 1]} : vector<1024x256xf32> to vector<16x256xf32>
    %56 = arith.addf %54, %55 : vector<16x256xf32>
    %cst_29 = arith.constant 2.500000e-01 : f32
    %57 = vector.broadcast %cst_29 : f32 to vector<16x256xf32>
    %58 = arith.mulf %56, %57 : vector<16x256xf32>
    %c2 = arith.constant 2 : index
    %c0_30 = arith.constant 0 : index
    %c0_31 = arith.constant 0 : index
    %59 = vector.load %arg8[%c2, %c0_30, %c0_31] : memref<16x256x512xf32, #tpu.memory_space<vmem>>, vector<1x256x512xf32>
    %60 = vector.shape_cast %59 : vector<1x256x512xf32> to vector<256x512xf32>
    %cst_32 = arith.constant dense<0.000000e+00> : vector<16x512xf32>
    %61 = tpu.matmul %58, %60, %cst_32 {dimension_numbers = #tpu.dot_dimension_numbers<[1], [0], [0], [1], [0, 0, 1, 1], [], []>} : vector<16x256xf32>, vector<256x512xf32>, vector<16x512xf32> -> vector<16x512xf32>
    %62 = arith.addf %49, %61 : vector<16x512xf32>
    %63 = vector.extract_strided_slice %22 {offsets = [96, 0], sizes = [16, 256], strides = [1, 1]} : vector<1024x256xf32> to vector<16x256xf32>
    %64 = vector.extract_strided_slice %22 {offsets = [112, 0], sizes = [16, 256], strides = [1, 1]} : vector<1024x256xf32> to vector<16x256xf32>
    %65 = arith.addf %63, %64 : vector<16x256xf32>
    %66 = vector.extract_strided_slice %22 {offsets = [224, 0], sizes = [16, 256], strides = [1, 1]} : vector<1024x256xf32> to vector<16x256xf32>
    %67 = arith.addf %65, %66 : vector<16x256xf32>
    %68 = vector.extract_strided_slice %22 {offsets = [240, 0], sizes = [16, 256], strides = [1, 1]} : vector<1024x256xf32> to vector<16x256xf32>
    %69 = arith.addf %67, %68 : vector<16x256xf32>
    %cst_33 = arith.constant 2.500000e-01 : f32
    %70 = vector.broadcast %cst_33 : f32 to vector<16x256xf32>
    %71 = arith.mulf %69, %70 : vector<16x256xf32>
    %c3 = arith.constant 3 : index
    %c0_34 = arith.constant 0 : index
    %c0_35 = arith.constant 0 : index
    %72 = vector.load %arg8[%c3, %c0_34, %c0_35] : memref<16x256x512xf32, #tpu.memory_space<vmem>>, vector<1x256x512xf32>
    %73 = vector.shape_cast %72 : vector<1x256x512xf32> to vector<256x512xf32>
    %cst_36 = arith.constant dense<0.000000e+00> : vector<16x512xf32>
    %74 = tpu.matmul %71, %73, %cst_36 {dimension_numbers = #tpu.dot_dimension_numbers<[1], [0], [0], [1], [0, 0, 1, 1], [], []>} : vector<16x256xf32>, vector<256x512xf32>, vector<16x512xf32> -> vector<16x512xf32>
    %75 = arith.addf %62, %74 : vector<16x512xf32>
    %76 = vector.extract_strided_slice %22 {offsets = [256, 0], sizes = [16, 256], strides = [1, 1]} : vector<1024x256xf32> to vector<16x256xf32>
    %77 = vector.extract_strided_slice %22 {offsets = [272, 0], sizes = [16, 256], strides = [1, 1]} : vector<1024x256xf32> to vector<16x256xf32>
    %78 = arith.addf %76, %77 : vector<16x256xf32>
    %79 = vector.extract_strided_slice %22 {offsets = [384, 0], sizes = [16, 256], strides = [1, 1]} : vector<1024x256xf32> to vector<16x256xf32>
    %80 = arith.addf %78, %79 : vector<16x256xf32>
    %81 = vector.extract_strided_slice %22 {offsets = [400, 0], sizes = [16, 256], strides = [1, 1]} : vector<1024x256xf32> to vector<16x256xf32>
    %82 = arith.addf %80, %81 : vector<16x256xf32>
    %cst_37 = arith.constant 2.500000e-01 : f32
    %83 = vector.broadcast %cst_37 : f32 to vector<16x256xf32>
    %84 = arith.mulf %82, %83 : vector<16x256xf32>
    %c4 = arith.constant 4 : index
    %c0_38 = arith.constant 0 : index
    %c0_39 = arith.constant 0 : index
    %85 = vector.load %arg8[%c4, %c0_38, %c0_39] : memref<16x256x512xf32, #tpu.memory_space<vmem>>, vector<1x256x512xf32>
    %86 = vector.shape_cast %85 : vector<1x256x512xf32> to vector<256x512xf32>
    %cst_40 = arith.constant dense<0.000000e+00> : vector<16x512xf32>
    %87 = tpu.matmul %84, %86, %cst_40 {dimension_numbers = #tpu.dot_dimension_numbers<[1], [0], [0], [1], [0, 0, 1, 1], [], []>} : vector<16x256xf32>, vector<256x512xf32>, vector<16x512xf32> -> vector<16x512xf32>
    %88 = arith.addf %75, %87 : vector<16x512xf32>
    %89 = vector.extract_strided_slice %22 {offsets = [288, 0], sizes = [16, 256], strides = [1, 1]} : vector<1024x256xf32> to vector<16x256xf32>
    %90 = vector.extract_strided_slice %22 {offsets = [304, 0], sizes = [16, 256], strides = [1, 1]} : vector<1024x256xf32> to vector<16x256xf32>
    %91 = arith.addf %89, %90 : vector<16x256xf32>
    %92 = vector.extract_strided_slice %22 {offsets = [416, 0], sizes = [16, 256], strides = [1, 1]} : vector<1024x256xf32> to vector<16x256xf32>
    %93 = arith.addf %91, %92 : vector<16x256xf32>
    %94 = vector.extract_strided_slice %22 {offsets = [432, 0], sizes = [16, 256], strides = [1, 1]} : vector<1024x256xf32> to vector<16x256xf32>
    %95 = arith.addf %93, %94 : vector<16x256xf32>
    %cst_41 = arith.constant 2.500000e-01 : f32
    %96 = vector.broadcast %cst_41 : f32 to vector<16x256xf32>
    %97 = arith.mulf %95, %96 : vector<16x256xf32>
    %c5 = arith.constant 5 : index
    %c0_42 = arith.constant 0 : index
    %c0_43 = arith.constant 0 : index
    %98 = vector.load %arg8[%c5, %c0_42, %c0_43] : memref<16x256x512xf32, #tpu.memory_space<vmem>>, vector<1x256x512xf32>
    %99 = vector.shape_cast %98 : vector<1x256x512xf32> to vector<256x512xf32>
    %cst_44 = arith.constant dense<0.000000e+00> : vector<16x512xf32>
    %100 = tpu.matmul %97, %99, %cst_44 {dimension_numbers = #tpu.dot_dimension_numbers<[1], [0], [0], [1], [0, 0, 1, 1], [], []>} : vector<16x256xf32>, vector<256x512xf32>, vector<16x512xf32> -> vector<16x512xf32>
    %101 = arith.addf %88, %100 : vector<16x512xf32>
    %102 = vector.extract_strided_slice %22 {offsets = [320, 0], sizes = [16, 256], strides = [1, 1]} : vector<1024x256xf32> to vector<16x256xf32>
    %103 = vector.extract_strided_slice %22 {offsets = [336, 0], sizes = [16, 256], strides = [1, 1]} : vector<1024x256xf32> to vector<16x256xf32>
    %104 = arith.addf %102, %103 : vector<16x256xf32>
    %105 = vector.extract_strided_slice %22 {offsets = [448, 0], sizes = [16, 256], strides = [1, 1]} : vector<1024x256xf32> to vector<16x256xf32>
    %106 = arith.addf %104, %105 : vector<16x256xf32>
    %107 = vector.extract_strided_slice %22 {offsets = [464, 0], sizes = [16, 256], strides = [1, 1]} : vector<1024x256xf32> to vector<16x256xf32>
    %108 = arith.addf %106, %107 : vector<16x256xf32>
    %cst_45 = arith.constant 2.500000e-01 : f32
    %109 = vector.broadcast %cst_45 : f32 to vector<16x256xf32>
    %110 = arith.mulf %108, %109 : vector<16x256xf32>
    %c6 = arith.constant 6 : index
    %c0_46 = arith.constant 0 : index
    %c0_47 = arith.constant 0 : index
    %111 = vector.load %arg8[%c6, %c0_46, %c0_47] : memref<16x256x512xf32, #tpu.memory_space<vmem>>, vector<1x256x512xf32>
    %112 = vector.shape_cast %111 : vector<1x256x512xf32> to vector<256x512xf32>
    %cst_48 = arith.constant dense<0.000000e+00> : vector<16x512xf32>
    %113 = tpu.matmul %110, %112, %cst_48 {dimension_numbers = #tpu.dot_dimension_numbers<[1], [0], [0], [1], [0, 0, 1, 1], [], []>} : vector<16x256xf32>, vector<256x512xf32>, vector<16x512xf32> -> vector<16x512xf32>
    %114 = arith.addf %101, %113 : vector<16x512xf32>
    %115 = vector.extract_strided_slice %22 {offsets = [352, 0], sizes = [16, 256], strides = [1, 1]} : vector<1024x256xf32> to vector<16x256xf32>
    %116 = vector.extract_strided_slice %22 {offsets = [368, 0], sizes = [16, 256], strides = [1, 1]} : vector<1024x256xf32> to vector<16x256xf32>
    %117 = arith.addf %115, %116 : vector<16x256xf32>
    %118 = vector.extract_strided_slice %22 {offsets = [480, 0], sizes = [16, 256], strides = [1, 1]} : vector<1024x256xf32> to vector<16x256xf32>
    %119 = arith.addf %117, %118 : vector<16x256xf32>
    %120 = vector.extract_strided_slice %22 {offsets = [496, 0], sizes = [16, 256], strides = [1, 1]} : vector<1024x256xf32> to vector<16x256xf32>
    %121 = arith.addf %119, %120 : vector<16x256xf32>
    %cst_49 = arith.constant 2.500000e-01 : f32
    %122 = vector.broadcast %cst_49 : f32 to vector<16x256xf32>
    %123 = arith.mulf %121, %122 : vector<16x256xf32>
    %c7 = arith.constant 7 : index
    %c0_50 = arith.constant 0 : index
    %c0_51 = arith.constant 0 : index
    %124 = vector.load %arg8[%c7, %c0_50, %c0_51] : memref<16x256x512xf32, #tpu.memory_space<vmem>>, vector<1x256x512xf32>
    %125 = vector.shape_cast %124 : vector<1x256x512xf32> to vector<256x512xf32>
    %cst_52 = arith.constant dense<0.000000e+00> : vector<16x512xf32>
    %126 = tpu.matmul %123, %125, %cst_52 {dimension_numbers = #tpu.dot_dimension_numbers<[1], [0], [0], [1], [0, 0, 1, 1], [], []>} : vector<16x256xf32>, vector<256x512xf32>, vector<16x512xf32> -> vector<16x512xf32>
    %127 = arith.addf %114, %126 : vector<16x512xf32>
    %128 = vector.extract_strided_slice %22 {offsets = [512, 0], sizes = [16, 256], strides = [1, 1]} : vector<1024x256xf32> to vector<16x256xf32>
    %129 = vector.extract_strided_slice %22 {offsets = [528, 0], sizes = [16, 256], strides = [1, 1]} : vector<1024x256xf32> to vector<16x256xf32>
    %130 = arith.addf %128, %129 : vector<16x256xf32>
    %131 = vector.extract_strided_slice %22 {offsets = [640, 0], sizes = [16, 256], strides = [1, 1]} : vector<1024x256xf32> to vector<16x256xf32>
    %132 = arith.addf %130, %131 : vector<16x256xf32>
    %133 = vector.extract_strided_slice %22 {offsets = [656, 0], sizes = [16, 256], strides = [1, 1]} : vector<1024x256xf32> to vector<16x256xf32>
    %134 = arith.addf %132, %133 : vector<16x256xf32>
    %cst_53 = arith.constant 2.500000e-01 : f32
    %135 = vector.broadcast %cst_53 : f32 to vector<16x256xf32>
    %136 = arith.mulf %134, %135 : vector<16x256xf32>
    %c8 = arith.constant 8 : index
    %c0_54 = arith.constant 0 : index
    %c0_55 = arith.constant 0 : index
    %137 = vector.load %arg8[%c8, %c0_54, %c0_55] : memref<16x256x512xf32, #tpu.memory_space<vmem>>, vector<1x256x512xf32>
    %138 = vector.shape_cast %137 : vector<1x256x512xf32> to vector<256x512xf32>
    %cst_56 = arith.constant dense<0.000000e+00> : vector<16x512xf32>
    %139 = tpu.matmul %136, %138, %cst_56 {dimension_numbers = #tpu.dot_dimension_numbers<[1], [0], [0], [1], [0, 0, 1, 1], [], []>} : vector<16x256xf32>, vector<256x512xf32>, vector<16x512xf32> -> vector<16x512xf32>
    %140 = arith.addf %127, %139 : vector<16x512xf32>
    %141 = vector.extract_strided_slice %22 {offsets = [544, 0], sizes = [16, 256], strides = [1, 1]} : vector<1024x256xf32> to vector<16x256xf32>
    %142 = vector.extract_strided_slice %22 {offsets = [560, 0], sizes = [16, 256], strides = [1, 1]} : vector<1024x256xf32> to vector<16x256xf32>
    %143 = arith.addf %141, %142 : vector<16x256xf32>
    %144 = vector.extract_strided_slice %22 {offsets = [672, 0], sizes = [16, 256], strides = [1, 1]} : vector<1024x256xf32> to vector<16x256xf32>
    %145 = arith.addf %143, %144 : vector<16x256xf32>
    %146 = vector.extract_strided_slice %22 {offsets = [688, 0], sizes = [16, 256], strides = [1, 1]} : vector<1024x256xf32> to vector<16x256xf32>
    %147 = arith.addf %145, %146 : vector<16x256xf32>
    %cst_57 = arith.constant 2.500000e-01 : f32
    %148 = vector.broadcast %cst_57 : f32 to vector<16x256xf32>
    %149 = arith.mulf %147, %148 : vector<16x256xf32>
    %c9 = arith.constant 9 : index
    %c0_58 = arith.constant 0 : index
    %c0_59 = arith.constant 0 : index
    %150 = vector.load %arg8[%c9, %c0_58, %c0_59] : memref<16x256x512xf32, #tpu.memory_space<vmem>>, vector<1x256x512xf32>
    %151 = vector.shape_cast %150 : vector<1x256x512xf32> to vector<256x512xf32>
    %cst_60 = arith.constant dense<0.000000e+00> : vector<16x512xf32>
    %152 = tpu.matmul %149, %151, %cst_60 {dimension_numbers = #tpu.dot_dimension_numbers<[1], [0], [0], [1], [0, 0, 1, 1], [], []>} : vector<16x256xf32>, vector<256x512xf32>, vector<16x512xf32> -> vector<16x512xf32>
    %153 = arith.addf %140, %152 : vector<16x512xf32>
    %154 = vector.extract_strided_slice %22 {offsets = [576, 0], sizes = [16, 256], strides = [1, 1]} : vector<1024x256xf32> to vector<16x256xf32>
    %155 = vector.extract_strided_slice %22 {offsets = [592, 0], sizes = [16, 256], strides = [1, 1]} : vector<1024x256xf32> to vector<16x256xf32>
    %156 = arith.addf %154, %155 : vector<16x256xf32>
    %157 = vector.extract_strided_slice %22 {offsets = [704, 0], sizes = [16, 256], strides = [1, 1]} : vector<1024x256xf32> to vector<16x256xf32>
    %158 = arith.addf %156, %157 : vector<16x256xf32>
    %159 = vector.extract_strided_slice %22 {offsets = [720, 0], sizes = [16, 256], strides = [1, 1]} : vector<1024x256xf32> to vector<16x256xf32>
    %160 = arith.addf %158, %159 : vector<16x256xf32>
    %cst_61 = arith.constant 2.500000e-01 : f32
    %161 = vector.broadcast %cst_61 : f32 to vector<16x256xf32>
    %162 = arith.mulf %160, %161 : vector<16x256xf32>
    %c10 = arith.constant 10 : index
    %c0_62 = arith.constant 0 : index
    %c0_63 = arith.constant 0 : index
    %163 = vector.load %arg8[%c10, %c0_62, %c0_63] : memref<16x256x512xf32, #tpu.memory_space<vmem>>, vector<1x256x512xf32>
    %164 = vector.shape_cast %163 : vector<1x256x512xf32> to vector<256x512xf32>
    %cst_64 = arith.constant dense<0.000000e+00> : vector<16x512xf32>
    %165 = tpu.matmul %162, %164, %cst_64 {dimension_numbers = #tpu.dot_dimension_numbers<[1], [0], [0], [1], [0, 0, 1, 1], [], []>} : vector<16x256xf32>, vector<256x512xf32>, vector<16x512xf32> -> vector<16x512xf32>
    %166 = arith.addf %153, %165 : vector<16x512xf32>
    %167 = vector.extract_strided_slice %22 {offsets = [608, 0], sizes = [16, 256], strides = [1, 1]} : vector<1024x256xf32> to vector<16x256xf32>
    %168 = vector.extract_strided_slice %22 {offsets = [624, 0], sizes = [16, 256], strides = [1, 1]} : vector<1024x256xf32> to vector<16x256xf32>
    %169 = arith.addf %167, %168 : vector<16x256xf32>
    %170 = vector.extract_strided_slice %22 {offsets = [736, 0], sizes = [16, 256], strides = [1, 1]} : vector<1024x256xf32> to vector<16x256xf32>
    %171 = arith.addf %169, %170 : vector<16x256xf32>
    %172 = vector.extract_strided_slice %22 {offsets = [752, 0], sizes = [16, 256], strides = [1, 1]} : vector<1024x256xf32> to vector<16x256xf32>
    %173 = arith.addf %171, %172 : vector<16x256xf32>
    %cst_65 = arith.constant 2.500000e-01 : f32
    %174 = vector.broadcast %cst_65 : f32 to vector<16x256xf32>
    %175 = arith.mulf %173, %174 : vector<16x256xf32>
    %c11 = arith.constant 11 : index
    %c0_66 = arith.constant 0 : index
    %c0_67 = arith.constant 0 : index
    %176 = vector.load %arg8[%c11, %c0_66, %c0_67] : memref<16x256x512xf32, #tpu.memory_space<vmem>>, vector<1x256x512xf32>
    %177 = vector.shape_cast %176 : vector<1x256x512xf32> to vector<256x512xf32>
    %cst_68 = arith.constant dense<0.000000e+00> : vector<16x512xf32>
    %178 = tpu.matmul %175, %177, %cst_68 {dimension_numbers = #tpu.dot_dimension_numbers<[1], [0], [0], [1], [0, 0, 1, 1], [], []>} : vector<16x256xf32>, vector<256x512xf32>, vector<16x512xf32> -> vector<16x512xf32>
    %179 = arith.addf %166, %178 : vector<16x512xf32>
    %180 = vector.extract_strided_slice %22 {offsets = [768, 0], sizes = [16, 256], strides = [1, 1]} : vector<1024x256xf32> to vector<16x256xf32>
    %181 = vector.extract_strided_slice %22 {offsets = [784, 0], sizes = [16, 256], strides = [1, 1]} : vector<1024x256xf32> to vector<16x256xf32>
    %182 = arith.addf %180, %181 : vector<16x256xf32>
    %183 = vector.extract_strided_slice %22 {offsets = [896, 0], sizes = [16, 256], strides = [1, 1]} : vector<1024x256xf32> to vector<16x256xf32>
    %184 = arith.addf %182, %183 : vector<16x256xf32>
    %185 = vector.extract_strided_slice %22 {offsets = [912, 0], sizes = [16, 256], strides = [1, 1]} : vector<1024x256xf32> to vector<16x256xf32>
    %186 = arith.addf %184, %185 : vector<16x256xf32>
    %cst_69 = arith.constant 2.500000e-01 : f32
    %187 = vector.broadcast %cst_69 : f32 to vector<16x256xf32>
    %188 = arith.mulf %186, %187 : vector<16x256xf32>
    %c12 = arith.constant 12 : index
    %c0_70 = arith.constant 0 : index
    %c0_71 = arith.constant 0 : index
    %189 = vector.load %arg8[%c12, %c0_70, %c0_71] : memref<16x256x512xf32, #tpu.memory_space<vmem>>, vector<1x256x512xf32>
    %190 = vector.shape_cast %189 : vector<1x256x512xf32> to vector<256x512xf32>
    %cst_72 = arith.constant dense<0.000000e+00> : vector<16x512xf32>
    %191 = tpu.matmul %188, %190, %cst_72 {dimension_numbers = #tpu.dot_dimension_numbers<[1], [0], [0], [1], [0, 0, 1, 1], [], []>} : vector<16x256xf32>, vector<256x512xf32>, vector<16x512xf32> -> vector<16x512xf32>
    %192 = arith.addf %179, %191 : vector<16x512xf32>
    %193 = vector.extract_strided_slice %22 {offsets = [800, 0], sizes = [16, 256], strides = [1, 1]} : vector<1024x256xf32> to vector<16x256xf32>
    %194 = vector.extract_strided_slice %22 {offsets = [816, 0], sizes = [16, 256], strides = [1, 1]} : vector<1024x256xf32> to vector<16x256xf32>
    %195 = arith.addf %193, %194 : vector<16x256xf32>
    %196 = vector.extract_strided_slice %22 {offsets = [928, 0], sizes = [16, 256], strides = [1, 1]} : vector<1024x256xf32> to vector<16x256xf32>
    %197 = arith.addf %195, %196 : vector<16x256xf32>
    %198 = vector.extract_strided_slice %22 {offsets = [944, 0], sizes = [16, 256], strides = [1, 1]} : vector<1024x256xf32> to vector<16x256xf32>
    %199 = arith.addf %197, %198 : vector<16x256xf32>
    %cst_73 = arith.constant 2.500000e-01 : f32
    %200 = vector.broadcast %cst_73 : f32 to vector<16x256xf32>
    %201 = arith.mulf %199, %200 : vector<16x256xf32>
    %c13 = arith.constant 13 : index
    %c0_74 = arith.constant 0 : index
    %c0_75 = arith.constant 0 : index
    %202 = vector.load %arg8[%c13, %c0_74, %c0_75] : memref<16x256x512xf32, #tpu.memory_space<vmem>>, vector<1x256x512xf32>
    %203 = vector.shape_cast %202 : vector<1x256x512xf32> to vector<256x512xf32>
    %cst_76 = arith.constant dense<0.000000e+00> : vector<16x512xf32>
    %204 = tpu.matmul %201, %203, %cst_76 {dimension_numbers = #tpu.dot_dimension_numbers<[1], [0], [0], [1], [0, 0, 1, 1], [], []>} : vector<16x256xf32>, vector<256x512xf32>, vector<16x512xf32> -> vector<16x512xf32>
    %205 = arith.addf %192, %204 : vector<16x512xf32>
    %206 = vector.extract_strided_slice %22 {offsets = [832, 0], sizes = [16, 256], strides = [1, 1]} : vector<1024x256xf32> to vector<16x256xf32>
    %207 = vector.extract_strided_slice %22 {offsets = [848, 0], sizes = [16, 256], strides = [1, 1]} : vector<1024x256xf32> to vector<16x256xf32>
    %208 = arith.addf %206, %207 : vector<16x256xf32>
    %209 = vector.extract_strided_slice %22 {offsets = [960, 0], sizes = [16, 256], strides = [1, 1]} : vector<1024x256xf32> to vector<16x256xf32>
    %210 = arith.addf %208, %209 : vector<16x256xf32>
    %211 = vector.extract_strided_slice %22 {offsets = [976, 0], sizes = [16, 256], strides = [1, 1]} : vector<1024x256xf32> to vector<16x256xf32>
    %212 = arith.addf %210, %211 : vector<16x256xf32>
    %cst_77 = arith.constant 2.500000e-01 : f32
    %213 = vector.broadcast %cst_77 : f32 to vector<16x256xf32>
    %214 = arith.mulf %212, %213 : vector<16x256xf32>
    %c14 = arith.constant 14 : index
    %c0_78 = arith.constant 0 : index
    %c0_79 = arith.constant 0 : index
    %215 = vector.load %arg8[%c14, %c0_78, %c0_79] : memref<16x256x512xf32, #tpu.memory_space<vmem>>, vector<1x256x512xf32>
    %216 = vector.shape_cast %215 : vector<1x256x512xf32> to vector<256x512xf32>
    %cst_80 = arith.constant dense<0.000000e+00> : vector<16x512xf32>
    %217 = tpu.matmul %214, %216, %cst_80 {dimension_numbers = #tpu.dot_dimension_numbers<[1], [0], [0], [1], [0, 0, 1, 1], [], []>} : vector<16x256xf32>, vector<256x512xf32>, vector<16x512xf32> -> vector<16x512xf32>
    %218 = arith.addf %205, %217 : vector<16x512xf32>
    %219 = vector.extract_strided_slice %22 {offsets = [864, 0], sizes = [16, 256], strides = [1, 1]} : vector<1024x256xf32> to vector<16x256xf32>
    %220 = vector.extract_strided_slice %22 {offsets = [880, 0], sizes = [16, 256], strides = [1, 1]} : vector<1024x256xf32> to vector<16x256xf32>
    %221 = arith.addf %219, %220 : vector<16x256xf32>
    %222 = vector.extract_strided_slice %22 {offsets = [992, 0], sizes = [16, 256], strides = [1, 1]} : vector<1024x256xf32> to vector<16x256xf32>
    %223 = arith.addf %221, %222 : vector<16x256xf32>
    %224 = vector.extract_strided_slice %22 {offsets = [1008, 0], sizes = [16, 256], strides = [1, 1]} : vector<1024x256xf32> to vector<16x256xf32>
    %225 = arith.addf %223, %224 : vector<16x256xf32>
    %cst_81 = arith.constant 2.500000e-01 : f32
    %226 = vector.broadcast %cst_81 : f32 to vector<16x256xf32>
    %227 = arith.mulf %225, %226 : vector<16x256xf32>
    %c15 = arith.constant 15 : index
    %c0_82 = arith.constant 0 : index
    %c0_83 = arith.constant 0 : index
    %228 = vector.load %arg8[%c15, %c0_82, %c0_83] : memref<16x256x512xf32, #tpu.memory_space<vmem>>, vector<1x256x512xf32>
    %229 = vector.shape_cast %228 : vector<1x256x512xf32> to vector<256x512xf32>
    %cst_84 = arith.constant dense<0.000000e+00> : vector<16x512xf32>
    %230 = tpu.matmul %227, %229, %cst_84 {dimension_numbers = #tpu.dot_dimension_numbers<[1], [0], [0], [1], [0, 0, 1, 1], [], []>} : vector<16x256xf32>, vector<256x512xf32>, vector<16x512xf32> -> vector<16x512xf32>
    %231 = arith.addf %218, %230 : vector<16x512xf32>
    %c0_85 = arith.constant 0 : index
    %c0_86 = arith.constant 0 : index
    %232 = vector.load %arg9[%c0_85, %c0_86] : memref<1x512xf32, #tpu.memory_space<vmem>>, vector<1x512xf32>
    %233 = vector.broadcast %232 : vector<1x512xf32> to vector<16x512xf32>
    %234 = arith.addf %231, %233 : vector<16x512xf32>
    %cst_87 = arith.constant 0.000000e+00 : f32
    %235 = vector.broadcast %cst_87 : f32 to vector<16x512xf32>
    %236 = arith.maximumf %234, %235 : vector<16x512xf32>
    %c0_88 = arith.constant 0 : index
    %c0_89 = arith.constant 0 : index
    %237 = vector.load %arg10[%c0_88, %c0_89] : memref<512x384xf32, #tpu.memory_space<vmem>>, vector<512x384xf32>
    %cst_90 = arith.constant dense<0.000000e+00> : vector<16x384xf32>
    %238 = tpu.matmul %236, %237, %cst_90 {dimension_numbers = #tpu.dot_dimension_numbers<[1], [0], [0], [1], [0, 0, 1, 1], [], []>} : vector<16x512xf32>, vector<512x384xf32>, vector<16x384xf32> -> vector<16x384xf32>
    %c0_91 = arith.constant 0 : index
    %c0_92 = arith.constant 0 : index
    %239 = vector.load %arg11[%c0_91, %c0_92] : memref<1x384xf32, #tpu.memory_space<vmem>>, vector<1x384xf32>
    %240 = vector.broadcast %239 : vector<1x384xf32> to vector<16x384xf32>
    %241 = arith.addf %238, %240 : vector<16x384xf32>
    %242 = vector.extract_strided_slice %241 {offsets = [0, 0], sizes = [16, 128], strides = [1, 1]} : vector<16x384xf32> to vector<16x128xf32>
    %cst_93 = arith.constant dense<0xFF800000> : vector<16xf32>
    %243 = vector.multi_reduction <maximumf>, %242, %cst_93 [1] : vector<16x128xf32> to vector<16xf32>
    %244 = vector.shape_cast %243 : vector<16xf32> to vector<16x1xf32>
    %245 = vector.broadcast %244 : vector<16x1xf32> to vector<16x128xf32>
    %246 = arith.subf %242, %245 : vector<16x128xf32>
    %247 = math.exp %246 : vector<16x128xf32>
    %c0_94 = arith.constant 0 : index
    %c0_95 = arith.constant 0 : index
    %248 = vector.load %arg12[%c0_94, %c0_95] : memref<1x384xf32, #tpu.memory_space<vmem>>, vector<1x128xf32>
    %249 = vector.broadcast %248 : vector<1x128xf32> to vector<16x128xf32>
    %250 = arith.mulf %247, %249 : vector<16x128xf32>
    %cst_96 = arith.constant dense<0.000000e+00> : vector<16xf32>
    %251 = vector.multi_reduction <add>, %250, %cst_96 [1] : vector<16x128xf32> to vector<16xf32>
    %252 = vector.shape_cast %251 : vector<16xf32> to vector<16x1xf32>
    %cst_97 = arith.constant dense<0.000000e+00> : vector<16xf32>
    %253 = vector.multi_reduction <add>, %247, %cst_97 [1] : vector<16x128xf32> to vector<16xf32>
    %254 = vector.shape_cast %253 : vector<16xf32> to vector<16x1xf32>
    %255 = arith.divf %252, %254 : vector<16x1xf32>
    %256 = vector.extract_strided_slice %241 {offsets = [0, 128], sizes = [16, 128], strides = [1, 1]} : vector<16x384xf32> to vector<16x128xf32>
    %cst_98 = arith.constant dense<0xFF800000> : vector<16xf32>
    %257 = vector.multi_reduction <maximumf>, %256, %cst_98 [1] : vector<16x128xf32> to vector<16xf32>
    %258 = vector.shape_cast %257 : vector<16xf32> to vector<16x1xf32>
    %259 = vector.broadcast %258 : vector<16x1xf32> to vector<16x128xf32>
    %260 = arith.subf %256, %259 : vector<16x128xf32>
    %261 = math.exp %260 : vector<16x128xf32>
    %c0_99 = arith.constant 0 : index
    %c128 = arith.constant 128 : index
    %262 = vector.load %arg12[%c0_99, %c128] : memref<1x384xf32, #tpu.memory_space<vmem>>, vector<1x128xf32>
    %263 = vector.broadcast %262 : vector<1x128xf32> to vector<16x128xf32>
    %264 = arith.mulf %261, %263 : vector<16x128xf32>
    %cst_100 = arith.constant dense<0.000000e+00> : vector<16xf32>
    %265 = vector.multi_reduction <add>, %264, %cst_100 [1] : vector<16x128xf32> to vector<16xf32>
    %266 = vector.shape_cast %265 : vector<16xf32> to vector<16x1xf32>
    %cst_101 = arith.constant dense<0.000000e+00> : vector<16xf32>
    %267 = vector.multi_reduction <add>, %261, %cst_101 [1] : vector<16x128xf32> to vector<16xf32>
    %268 = vector.shape_cast %267 : vector<16xf32> to vector<16x1xf32>
    %269 = arith.divf %266, %268 : vector<16x1xf32>
    %270 = vector.extract_strided_slice %241 {offsets = [0, 256], sizes = [16, 128], strides = [1, 1]} : vector<16x384xf32> to vector<16x128xf32>
    %cst_102 = arith.constant dense<0xFF800000> : vector<16xf32>
    %271 = vector.multi_reduction <maximumf>, %270, %cst_102 [1] : vector<16x128xf32> to vector<16xf32>
    %272 = vector.shape_cast %271 : vector<16xf32> to vector<16x1xf32>
    %273 = vector.broadcast %272 : vector<16x1xf32> to vector<16x128xf32>
    %274 = arith.subf %270, %273 : vector<16x128xf32>
    %275 = math.exp %274 : vector<16x128xf32>
    %c0_103 = arith.constant 0 : index
    %c256 = arith.constant 256 : index
    %276 = vector.load %arg12[%c0_103, %c256] : memref<1x384xf32, #tpu.memory_space<vmem>>, vector<1x128xf32>
    %277 = vector.broadcast %276 : vector<1x128xf32> to vector<16x128xf32>
    %278 = arith.mulf %275, %277 : vector<16x128xf32>
    %cst_104 = arith.constant dense<0.000000e+00> : vector<16xf32>
    %279 = vector.multi_reduction <add>, %278, %cst_104 [1] : vector<16x128xf32> to vector<16xf32>
    %280 = vector.shape_cast %279 : vector<16xf32> to vector<16x1xf32>
    %cst_105 = arith.constant dense<0.000000e+00> : vector<16xf32>
    %281 = vector.multi_reduction <add>, %275, %cst_105 [1] : vector<16x128xf32> to vector<16xf32>
    %282 = vector.shape_cast %281 : vector<16xf32> to vector<16x1xf32>
    %283 = arith.divf %280, %282 : vector<16x1xf32>
    %cst_106 = arith.constant 0.000000e+00 : f32
    %284 = vector.broadcast %cst_106 : f32 to vector<16x5xf32>
    %285 = tpu.concatenate %255, %269, %283, %284 in 1 : vector<16x1xf32>, vector<16x1xf32>, vector<16x1xf32>, vector<16x5xf32> -> vector<16x8xf32>
    %c0_107 = arith.constant 0 : index
    %c0_108 = arith.constant 0 : index
    %286 = vector.load %arg13[%c0_107, %c0_108] : memref<16x8xf32, #tpu.memory_space<vmem>>, vector<16x8xf32>
    tpu.vector_store %arg13[%c0_107, %c0_108], %285 {strides = array<i32>} : memref<16x8xf32, #tpu.memory_space<vmem>>, vector<16x8xf32>,
    return
  }
  func.func @transform_0(%arg0: i32) -> (i32, i32, i32) {
    %c0_i32 = arith.constant 0 : i32
    %c0_i32_0 = arith.constant 0 : i32
    %c0_i32_1 = arith.constant 0 : i32
    return %c0_i32, %arg0, %c0_i32_0 : i32, i32, i32
  }
  func.func @transform_1(%arg0: i32) -> (i32, i32) {
    %c0_i32 = arith.constant 0 : i32
    %c0_i32_0 = arith.constant 0 : i32
    %c0_i32_1 = arith.constant 0 : i32
    return %c0_i32, %c0_i32_0 : i32, i32
  }
  func.func @transform_2(%arg0: i32) -> (i32, i32) {
    %c0_i32 = arith.constant 0 : i32
    %c0_i32_0 = arith.constant 0 : i32
    %c0_i32_1 = arith.constant 0 : i32
    return %c0_i32, %c0_i32_0 : i32, i32
  }
  func.func @transform_3(%arg0: i32) -> (i32, i32) {
    %c0_i32 = arith.constant 0 : i32
    %c0_i32_0 = arith.constant 0 : i32
    %c0_i32_1 = arith.constant 0 : i32
    return %c0_i32, %c0_i32_0 : i32, i32
  }
  func.func @transform_4(%arg0: i32) -> (i32, i32) {
    %c0_i32 = arith.constant 0 : i32
    %c0_i32_0 = arith.constant 0 : i32
    %c0_i32_1 = arith.constant 0 : i32
    return %c0_i32, %c0_i32_0 : i32, i32
  }
  func.func @transform_5(%arg0: i32) -> (i32, i32) {
    %c0_i32 = arith.constant 0 : i32
    %c0_i32_0 = arith.constant 0 : i32
    %c0_i32_1 = arith.constant 0 : i32
    return %c0_i32, %c0_i32_0 : i32, i32
  }
  func.func @transform_6(%arg0: i32) -> (i32, i32) {
    %c0_i32 = arith.constant 0 : i32
    %c0_i32_0 = arith.constant 0 : i32
    %c0_i32_1 = arith.constant 0 : i32
    return %c0_i32, %c0_i32_0 : i32, i32
  }
  func.func @transform_7(%arg0: i32) -> (i32, i32, i32) {
    %c0_i32 = arith.constant 0 : i32
    %c0_i32_0 = arith.constant 0 : i32
    %c0_i32_1 = arith.constant 0 : i32
    %c0_i32_2 = arith.constant 0 : i32
    return %c0_i32, %c0_i32_0, %c0_i32_1 : i32, i32, i32
  }
  func.func @transform_8(%arg0: i32) -> (i32, i32) {
    %c0_i32 = arith.constant 0 : i32
    %c0_i32_0 = arith.constant 0 : i32
    %c0_i32_1 = arith.constant 0 : i32
    return %c0_i32, %c0_i32_0 : i32, i32
  }
  func.func @transform_9(%arg0: i32) -> (i32, i32) {
    %c0_i32 = arith.constant 0 : i32
    %c0_i32_0 = arith.constant 0 : i32
    %c0_i32_1 = arith.constant 0 : i32
    return %c0_i32, %c0_i32_0 : i32, i32
  }
  func.func @transform_10(%arg0: i32) -> (i32, i32) {
    %c0_i32 = arith.constant 0 : i32
    %c0_i32_0 = arith.constant 0 : i32
    %c0_i32_1 = arith.constant 0 : i32
    return %c0_i32, %c0_i32_0 : i32, i32
  }
  func.func @transform_11(%arg0: i32) -> (i32, i32) {
    %c0_i32 = arith.constant 0 : i32
    %c0_i32_0 = arith.constant 0 : i32
    %c0_i32_1 = arith.constant 0 : i32
    return %c0_i32, %c0_i32_0 : i32, i32
  }
  func.func @transform_12(%arg0: i32) -> (i32, i32) {
    %c0_i32 = arith.constant 0 : i32
    %c0_i32_0 = arith.constant 0 : i32
    return %arg0, %c0_i32 : i32, i32
  }
}

</mosaic_0001>

<llo_original>
// kernel: class_pose_decoder.1
$region0: #{class_pose_decoder.1}
  #allocation0 [shape = 'u32[]', space=smem, size = 0x4, offset = 0x4, fixed_abs, tag = 'smem constant byte address 0x4 - core index']
  #allocation1 [shape = 'u32[144,128]{1,0:T(1,128)}', space=vmem, size = 0x12000, scoped, tag = 'internal scratch']
  %s0 = inlined_call_operand.vmem [shape: f32[64,16,64], index: 0, kind: input, shape index: {}]
  %s1 = inlined_call_operand.vmem [shape: f32[64,256], index: 1, kind: input, shape index: {}]
  %s2 = inlined_call_operand.vmem [shape: f32[1,256], index: 2, kind: input, shape index: {}]
  %s3 = inlined_call_operand.vmem [shape: f32[256,256], index: 3, kind: input, shape index: {}]
  %s4 = inlined_call_operand.vmem [shape: f32[1,256], index: 4, kind: input, shape index: {}]
  %s5 = inlined_call_operand.vmem [shape: f32[256,256], index: 5, kind: input, shape index: {}]
  %s6 = inlined_call_operand.vmem [shape: f32[1,256], index: 6, kind: input, shape index: {}]
  %s7 = inlined_call_operand.vmem [shape: f32[16,256,512], index: 7, kind: input, shape index: {}]
  %s8 = inlined_call_operand.vmem [shape: f32[1,512], index: 8, kind: input, shape index: {}]
  %s9 = inlined_call_operand.vmem [shape: f32[512,384], index: 9, kind: input, shape index: {}]
  %s10 = inlined_call_operand.vmem [shape: f32[1,384], index: 10, kind: input, shape index: {}]
  %s11 = inlined_call_operand.vmem [shape: f32[1,384], index: 11, kind: input, shape index: {}]
  %s12 = inlined_call_operand.vmem [shape: f32[16,8], index: 12, kind: output, shape index: {}]
  %s13 = sld [smem:[#allocation0]]
  $region58: #{class_pose_decoder.1} parent=0
    _
  %s15 = ssub.s32 1, %s13
  %s16 = scalar_select 0, %s15, %s13
  // Predicated region
  $region2: #{class_pose_decoder.1} parent=0 // pred_check
    _
  $region3: #{class_pose_decoder.1} parent=0 // pred_check_branch
    %18 = sbr.rel (0) target = $region5
  $region4: #{class_pose_decoder.1} parent=0 // pred_region
    _
  $region5: #{class_pose_decoder.1} parent=0 // pred_fallthru
    _
  // Predicated region
  $region6: #{class_pose_decoder.1} parent=0 // pred_check
    _
  $region7: #{class_pose_decoder.1} parent=0 // pred_check_branch
    %20 = sbr.rel (0) target = $region9
  $region8: #{class_pose_decoder.1} parent=0 // pred_region
    _
  $region9: #{class_pose_decoder.1} parent=0 // pred_fallthru
    _
  // Predicated region
  $region10: #{class_pose_decoder.1} parent=0 // pred_check
    _
  $region11: #{class_pose_decoder.1} parent=0 // pred_check_branch
    %22 = sbr.rel (0) target = $region13
  $region12: #{class_pose_decoder.1} parent=0 // pred_region
    _
  $region13: #{class_pose_decoder.1} parent=0 // pred_fallthru
    _
  // Predicated region
  $region14: #{class_pose_decoder.1} parent=0 // pred_check
    _
  $region15: #{class_pose_decoder.1} parent=0 // pred_check_branch
    %24 = sbr.rel (0) target = $region17
  $region16: #{class_pose_decoder.1} parent=0 // pred_region
    _
  $region17: #{class_pose_decoder.1} parent=0 // pred_fallthru
    _
  // Predicated region
  $region18: #{class_pose_decoder.1} parent=0 // pred_check
    _
  $region19: #{class_pose_decoder.1} parent=0 // pred_check_branch
    %26 = sbr.rel (0) target = $region21
  $region20: #{class_pose_decoder.1} parent=0 // pred_region
    _
  $region21: #{class_pose_decoder.1} parent=0 // pred_fallthru
    _
  // Predicated region
  $region22: #{class_pose_decoder.1} parent=0 // pred_check
    _
  $region23: #{class_pose_decoder.1} parent=0 // pred_check_branch
    %28 = sbr.rel (0) target = $region25
  $region24: #{class_pose_decoder.1} parent=0 // pred_region
    _
  $region25: #{class_pose_decoder.1} parent=0 // pred_fallthru
    _
  // Predicated region
  $region26: #{class_pose_decoder.1} parent=0 // pred_check
    _
  $region27: #{class_pose_decoder.1} parent=0 // pred_check_branch
    %30 = sbr.rel (0) target = $region29
  $region28: #{class_pose_decoder.1} parent=0 // pred_region
    _
  $region29: #{class_pose_decoder.1} parent=0 // pred_fallthru
    _
  // Predicated region
  $region30: #{class_pose_decoder.1} parent=0 // pred_check
    _
  $region31: #{class_pose_decoder.1} parent=0 // pred_check_branch
    %32 = sbr.rel (0) target = $region33
  $region32: #{class_pose_decoder.1} parent=0 // pred_region
    _
  $region33: #{class_pose_decoder.1} parent=0 // pred_fallthru
    _
  // Predicated region
  $region34: #{class_pose_decoder.1} parent=0 // pred_check
    _
  $region35: #{class_pose_decoder.1} parent=0 // pred_check_branch
    %34 = sbr.rel (0) target = $region37
  $region36: #{class_pose_decoder.1} parent=0 // pred_region
    _
  $region37: #{class_pose_decoder.1} parent=0 // pred_fallthru
    _
  // Predicated region
  $region38: #{class_pose_decoder.1} parent=0 // pred_check
    _
  $region39: #{class_pose_decoder.1} parent=0 // pred_check_branch
    %36 = sbr.rel (0) target = $region41
  $region40: #{class_pose_decoder.1} parent=0 // pred_region
    _
  $region41: #{class_pose_decoder.1} parent=0 // pred_fallthru
    _
  // Predicated region
  $region42: #{class_pose_decoder.1} parent=0 // pred_check
    _
  $region43: #{class_pose_decoder.1} parent=0 // pred_check_branch
    %38 = sbr.rel (0) target = $region45
  $region44: #{class_pose_decoder.1} parent=0 // pred_region
    _
  $region45: #{class_pose_decoder.1} parent=0 // pred_fallthru
    _
  // Predicated region
  $region46: #{class_pose_decoder.1} parent=0 // pred_check
    _
  $region47: #{class_pose_decoder.1} parent=0 // pred_check_branch
    %40 = sbr.rel (0) target = $region49
  $region48: #{class_pose_decoder.1} parent=0 // pred_region
    _
  $region49: #{class_pose_decoder.1} parent=0 // pred_fallthru
    _
  %v41 = vld [vmem:[%s0] sm:$0xff]
  %v42 = vld [vmem:[%s0 + $0x8] sm:$0xff]
  %v43 = vld [vmem:[%s0 + $0x10] sm:$0xff]
  %v44 = vld [vmem:[%s0 + $0x18] sm:$0xff]
  %v45 = vld [vmem:[%s0 + $0x20] sm:$0xff]
  %v46 = vld [vmem:[%s0 + $0x28] sm:$0xff]
  %v47 = vld [vmem:[%s0 + $0x30] sm:$0xff]
  %v48 = vld [vmem:[%s0 + $0x38] sm:$0xff]
  %v49 = vld [vmem:[%s0 + $0x40] sm:$0xff]
  %v50 = vld [vmem:[%s0 + $0x48] sm:$0xff]
  %v51 = vld [vmem:[%s0 + $0x50] sm:$0xff]
  %v52 = vld [vmem:[%s0 + $0x58] sm:$0xff]
  %v53 = vld [vmem:[%s0 + $0x60] sm:$0xff]
  %v54 = vld [vmem:[%s0 + $0x68] sm:$0xff]
  %v55 = vld [vmem:[%s0 + $0x70] sm:$0xff]
  %v56 = vld [vmem:[%s0 + $0x78] sm:$0xff]
  %v57 = vld [vmem:[%s0 + $0x80] sm:$0xff]
  %v58 = vld [vmem:[%s0 + $0x88] sm:$0xff]
  %v59 = vld [vmem:[%s0 + $0x90] sm:$0xff]
  %v60 = vld [vmem:[%s0 + $0x98] sm:$0xff]
  %v61 = vld [vmem:[%s0 + $0xa0] sm:$0xff]
  %v62 = vld [vmem:[%s0 + $0xa8] sm:$0xff]
  %v63 = vld [vmem:[%s0 + $0xb0] sm:$0xff]
  %v64 = vld [vmem:[%s0 + $0xb8] sm:$0xff]
  %v65 = vld [vmem:[%s0 + $0xc0] sm:$0xff]
  %v66 = vld [vmem:[%s0 + $0xc8] sm:$0xff]
  %v67 = vld [vmem:[%s0 + $0xd0] sm:$0xff]
  %v68 = vld [vmem:[%s0 + $0xd8] sm:$0xff]
  %v69 = vld [vmem:[%s0 + $0xe0] sm:$0xff]
  %v70 = vld [vmem:[%s0 + $0xe8] sm:$0xff]
  %v71 = vld [vmem:[%s0 + $0xf0] sm:$0xff]
  %v72 = vld [vmem:[%s0 + $0xf8] sm:$0xff]
  %v73 = vld [vmem:[%s0 + $0x100] sm:$0xff]
  %v74 = vld [vmem:[%s0 + $0x108] sm:$0xff]
  %v75 = vld [vmem:[%s0 + $0x110] sm:$0xff]
  %v76 = vld [vmem:[%s0 + $0x118] sm:$0xff]
  %v77 = vld [vmem:[%s0 + $0x120] sm:$0xff]
  %v78 = vld [vmem:[%s0 + $0x128] sm:$0xff]
  %v79 = vld [vmem:[%s0 + $0x130] sm:$0xff]
  %v80 = vld [vmem:[%s0 + $0x138] sm:$0xff]
  %v81 = vld [vmem:[%s0 + $0x140] sm:$0xff]
  %v82 = vld [vmem:[%s0 + $0x148] sm:$0xff]
  %v83 = vld [vmem:[%s0 + $0x150] sm:$0xff]
  %v84 = vld [vmem:[%s0 + $0x158] sm:$0xff]
  %v85 = vld [vmem:[%s0 + $0x160] sm:$0xff]
  %v86 = vld [vmem:[%s0 + $0x168] sm:$0xff]
  %v87 = vld [vmem:[%s0 + $0x170] sm:$0xff]
  %v88 = vld [vmem:[%s0 + $0x178] sm:$0xff]
  %v89 = vld [vmem:[%s0 + $0x180] sm:$0xff]
  %v90 = vld [vmem:[%s0 + $0x188] sm:$0xff]
  %v91 = vld [vmem:[%s0 + $0x190] sm:$0xff]
  %v92 = vld [vmem:[%s0 + $0x198] sm:$0xff]
  %v93 = vld [vmem:[%s0 + $0x1a0] sm:$0xff]
  %v94 = vld [vmem:[%s0 + $0x1a8] sm:$0xff]
  %v95 = vld [vmem:[%s0 + $0x1b0] sm:$0xff]
  %v96 = vld [vmem:[%s0 + $0x1b8] sm:$0xff]
  %v97 = vld [vmem:[%s0 + $0x1c0] sm:$0xff]
  %v98 = vld [vmem:[%s0 + $0x1c8] sm:$0xff]
  %v99 = vld [vmem:[%s0 + $0x1d0] sm:$0xff]
  %v100 = vld [vmem:[%s0 + $0x1d8] sm:$0xff]
  %v101 = vld [vmem:[%s0 + $0x1e0] sm:$0xff]
  %v102 = vld [vmem:[%s0 + $0x1e8] sm:$0xff]
  %v103 = vld [vmem:[%s0 + $0x1f0] sm:$0xff]
  %v104 = vld [vmem:[%s0 + $0x1f8] sm:$0xff]
  %v105 = vld [vmem:[%s0 + $0x200] sm:$0xff]
  %v106 = vld [vmem:[%s0 + $0x208] sm:$0xff]
  %v107 = vld [vmem:[%s0 + $0x210] sm:$0xff]
  %v108 = vld [vmem:[%s0 + $0x218] sm:$0xff]
  %v109 = vld [vmem:[%s0 + $0x220] sm:$0xff]
  %v110 = vld [vmem:[%s0 + $0x228] sm:$0xff]
  %v111 = vld [vmem:[%s0 + $0x230] sm:$0xff]
  %v112 = vld [vmem:[%s0 + $0x238] sm:$0xff]
  %v113 = vld [vmem:[%s0 + $0x240] sm:$0xff]
  %v114 = vld [vmem:[%s0 + $0x248] sm:$0xff]
  %v115 = vld [vmem:[%s0 + $0x250] sm:$0xff]
  %v116 = vld [vmem:[%s0 + $0x258] sm:$0xff]
  %v117 = vld [vmem:[%s0 + $0x260] sm:$0xff]
  %v118 = vld [vmem:[%s0 + $0x268] sm:$0xff]
  %v119 = vld [vmem:[%s0 + $0x270] sm:$0xff]
  %v120 = vld [vmem:[%s0 + $0x278] sm:$0xff]
  %v121 = vld [vmem:[%s0 + $0x280] sm:$0xff]
  %v122 = vld [vmem:[%s0 + $0x288] sm:$0xff]
  %v123 = vld [vmem:[%s0 + $0x290] sm:$0xff]
  %v124 = vld [vmem:[%s0 + $0x298] sm:$0xff]
  %v125 = vld [vmem:[%s0 + $0x2a0] sm:$0xff]
  %v126 = vld [vmem:[%s0 + $0x2a8] sm:$0xff]
  %v127 = vld [vmem:[%s0 + $0x2b0] sm:$0xff]
  %v128 = vld [vmem:[%s0 + $0x2b8] sm:$0xff]
  %v129 = vld [vmem:[%s0 + $0x2c0] sm:$0xff]
  %v130 = vld [vmem:[%s0 + $0x2c8] sm:$0xff]
  %v131 = vld [vmem:[%s0 + $0x2d0] sm:$0xff]
  %v132 = vld [vmem:[%s0 + $0x2d8] sm:$0xff]
  %v133 = vld [vmem:[%s0 + $0x2e0] sm:$0xff]
  %v134 = vld [vmem:[%s0 + $0x2e8] sm:$0xff]
  %v135 = vld [vmem:[%s0 + $0x2f0] sm:$0xff]
  %v136 = vld [vmem:[%s0 + $0x2f8] sm:$0xff]
  %v137 = vld [vmem:[%s0 + $0x300] sm:$0xff]
  %v138 = vld [vmem:[%s0 + $0x308] sm:$0xff]
  %v139 = vld [vmem:[%s0 + $0x310] sm:$0xff]
  %v140 = vld [vmem:[%s0 + $0x318] sm:$0xff]
  %v141 = vld [vmem:[%s0 + $0x320] sm:$0xff]
  %v142 = vld [vmem:[%s0 + $0x328] sm:$0xff]
  %v143 = vld [vmem:[%s0 + $0x330] sm:$0xff]
  %v144 = vld [vmem:[%s0 + $0x338] sm:$0xff]
  %v145 = vld [vmem:[%s0 + $0x340] sm:$0xff]
  %v146 = vld [vmem:[%s0 + $0x348] sm:$0xff]
  %v147 = vld [vmem:[%s0 + $0x350] sm:$0xff]
  %v148 = vld [vmem:[%s0 + $0x358] sm:$0xff]
  %v149 = vld [vmem:[%s0 + $0x360] sm:$0xff]
  %v150 = vld [vmem:[%s0 + $0x368] sm:$0xff]
  %v151 = vld [vmem:[%s0 + $0x370] sm:$0xff]
  %v152 = vld [vmem:[%s0 + $0x378] sm:$0xff]
  %v153 = vld [vmem:[%s0 + $0x380] sm:$0xff]
  %v154 = vld [vmem:[%s0 + $0x388] sm:$0xff]
  %v155 = vld [vmem:[%s0 + $0x390] sm:$0xff]
  %v156 = vld [vmem:[%s0 + $0x398] sm:$0xff]
  %v157 = vld [vmem:[%s0 + $0x3a0] sm:$0xff]
  %v158 = vld [vmem:[%s0 + $0x3a8] sm:$0xff]
  %v159 = vld [vmem:[%s0 + $0x3b0] sm:$0xff]
  %v160 = vld [vmem:[%s0 + $0x3b8] sm:$0xff]
  %v161 = vld [vmem:[%s0 + $0x3c0] sm:$0xff]
  %v162 = vld [vmem:[%s0 + $0x3c8] sm:$0xff]
  %v163 = vld [vmem:[%s0 + $0x3d0] sm:$0xff]
  %v164 = vld [vmem:[%s0 + $0x3d8] sm:$0xff]
  %v165 = vld [vmem:[%s0 + $0x3e0] sm:$0xff]
  %v166 = vld [vmem:[%s0 + $0x3e8] sm:$0xff]
  %v167 = vld [vmem:[%s0 + $0x3f0] sm:$0xff]
  %v168 = vld [vmem:[%s0 + $0x3f8] sm:$0xff]
  %v169 = vld [vmem:[%s1] sm:$0xff]
  %v170 = vld [vmem:[%s1 + $0x8] sm:$0xff]
  %v171 = vld [vmem:[%s1 + $0x10] sm:$0xff]
  %v172 = vld [vmem:[%s1 + $0x18] sm:$0xff]
  %v173 = vld [vmem:[%s1 + $0x20] sm:$0xff]
  %v174 = vld [vmem:[%s1 + $0x28] sm:$0xff]
  %v175 = vld [vmem:[%s1 + $0x30] sm:$0xff]
  %v176 = vld [vmem:[%s1 + $0x38] sm:$0xff]
  %v177 = vld [vmem:[%s1 + $0x40] sm:$0xff]
  %v178 = vld [vmem:[%s1 + $0x48] sm:$0xff]
  %v179 = vld [vmem:[%s1 + $0x50] sm:$0xff]
  %v180 = vld [vmem:[%s1 + $0x58] sm:$0xff]
  %v181 = vld [vmem:[%s1 + $0x60] sm:$0xff]
  %v182 = vld [vmem:[%s1 + $0x68] sm:$0xff]
  %v183 = vld [vmem:[%s1 + $0x70] sm:$0xff]
  %v184 = vld [vmem:[%s1 + $0x78] sm:$0xff]
  %v185 = vld [vmem:[%s2] sm:$0x3]
  %v187 = vlaneseq
  %v188 = vshrl.u32 %v187, 7
  %v189 = vsub.s32 0, %v188
  %v190 = vrot.slane %v185, %v189
  %v191 = vlaneseq
  %v192 = vshrl.u32 %v191, 7
  %v193 = vsub.s32 1, %v192
  %v194 = vrot.slane %v185, %v193
  %vm197 = vcmask 523264
  %v199 = vsel %vm197, %v41, 0
  %v202 = vsel %vm197, %v42, 0
  %v205 = vsel %vm197, %v43, 0
  %v208 = vsel %vm197, %v44, 0
  %v211 = vsel %vm197, %v45, 0
  %v214 = vsel %vm197, %v46, 0
  %v217 = vsel %vm197, %v47, 0
  %v220 = vsel %vm197, %v48, 0
  %v223 = vsel %vm197, %v49, 0
  %v226 = vsel %vm197, %v50, 0
  %v229 = vsel %vm197, %v51, 0
  %v232 = vsel %vm197, %v52, 0
  %v235 = vsel %vm197, %v53, 0
  %v238 = vsel %vm197, %v54, 0
  %v241 = vsel %vm197, %v55, 0
  %v244 = vsel %vm197, %v56, 0
  %v247 = vsel %vm197, %v57, 0
  %v250 = vsel %vm197, %v58, 0
  %v253 = vsel %vm197, %v59, 0
  %v256 = vsel %vm197, %v60, 0
  %v259 = vsel %vm197, %v61, 0
  %v262 = vsel %vm197, %v62, 0
  %v265 = vsel %vm197, %v63, 0
  %v268 = vsel %vm197, %v64, 0
  %v271 = vsel %vm197, %v65, 0
  %v274 = vsel %vm197, %v66, 0
  %v277 = vsel %vm197, %v67, 0
  %v280 = vsel %vm197, %v68, 0
  %v283 = vsel %vm197, %v69, 0
  %v286 = vsel %vm197, %v70, 0
  %v289 = vsel %vm197, %v71, 0
  %v292 = vsel %vm197, %v72, 0
  %v295 = vsel %vm197, %v73, 0
  %v298 = vsel %vm197, %v74, 0
  %v301 = vsel %vm197, %v75, 0
  %v304 = vsel %vm197, %v76, 0
  %v307 = vsel %vm197, %v77, 0
  %v310 = vsel %vm197, %v78, 0
  %v313 = vsel %vm197, %v79, 0
  %v316 = vsel %vm197, %v80, 0
  %v319 = vsel %vm197, %v81, 0
  %v322 = vsel %vm197, %v82, 0
  %v325 = vsel %vm197, %v83, 0
  %v328 = vsel %vm197, %v84, 0
  %v331 = vsel %vm197, %v85, 0
  %v334 = vsel %vm197, %v86, 0
  %v337 = vsel %vm197, %v87, 0
  %v340 = vsel %vm197, %v88, 0
  %v343 = vsel %vm197, %v89, 0
  %v346 = vsel %vm197, %v90, 0
  %v349 = vsel %vm197, %v91, 0
  %v352 = vsel %vm197, %v92, 0
  %v355 = vsel %vm197, %v93, 0
  %v358 = vsel %vm197, %v94, 0
  %v361 = vsel %vm197, %v95, 0
  %v364 = vsel %vm197, %v96, 0
  %v367 = vsel %vm197, %v97, 0
  %v370 = vsel %vm197, %v98, 0
  %v373 = vsel %vm197, %v99, 0
  %v376 = vsel %vm197, %v100, 0
  %v379 = vsel %vm197, %v101, 0
  %v382 = vsel %vm197, %v102, 0
  %v385 = vsel %vm197, %v103, 0
  %v388 = vsel %vm197, %v104, 0
  %v391 = vsel %vm197, %v105, 0
  %v394 = vsel %vm197, %v106, 0
  %v397 = vsel %vm197, %v107, 0
  %v400 = vsel %vm197, %v108, 0
  %v403 = vsel %vm197, %v109, 0
  %v406 = vsel %vm197, %v110, 0
  %v409 = vsel %vm197, %v111, 0
  %v412 = vsel %vm197, %v112, 0
  %v415 = vsel %vm197, %v113, 0
  %v418 = vsel %vm197, %v114, 0
  %v421 = vsel %vm197, %v115, 0
  %v424 = vsel %vm197, %v116, 0
  %v427 = vsel %vm197, %v117, 0
  %v430 = vsel %vm197, %v118, 0
  %v433 = vsel %vm197, %v119, 0
  %v436 = vsel %vm197, %v120, 0
  %v439 = vsel %vm197, %v121, 0
  %v442 = vsel %vm197, %v122, 0
  %v445 = vsel %vm197, %v123, 0
  %v448 = vsel %vm197, %v124, 0
  %v451 = vsel %vm197, %v125, 0
  %v454 = vsel %vm197, %v126, 0
  %v457 = vsel %vm197, %v127, 0
  %v460 = vsel %vm197, %v128, 0
  %v463 = vsel %vm197, %v129, 0
  %v466 = vsel %vm197, %v130, 0
  %v469 = vsel %vm197, %v131, 0
  %v472 = vsel %vm197, %v132, 0
  %v475 = vsel %vm197, %v133, 0
  %v478 = vsel %vm197, %v134, 0
  %v481 = vsel %vm197, %v135, 0
  %v484 = vsel %vm197, %v136, 0
  %v487 = vsel %vm197, %v137, 0
  %v490 = vsel %vm197, %v138, 0
  %v493 = vsel %vm197, %v139, 0
  %v496 = vsel %vm197, %v140, 0
  %v499 = vsel %vm197, %v141, 0
  %v502 = vsel %vm197, %v142, 0
  %v505 = vsel %vm197, %v143, 0
  %v508 = vsel %vm197, %v144, 0
  %v511 = vsel %vm197, %v145, 0
  %v514 = vsel %vm197, %v146, 0
  %v517 = vsel %vm197, %v147, 0
  %v520 = vsel %vm197, %v148, 0
  %v523 = vsel %vm197, %v149, 0
  %v526 = vsel %vm197, %v150, 0
  %v529 = vsel %vm197, %v151, 0
  %v532 = vsel %vm197, %v152, 0
  %v535 = vsel %vm197, %v153, 0
  %v538 = vsel %vm197, %v154, 0
  %v541 = vsel %vm197, %v155, 0
  %v544 = vsel %vm197, %v156, 0
  %v547 = vsel %vm197, %v157, 0
  %v550 = vsel %vm197, %v158, 0
  %v553 = vsel %vm197, %v159, 0
  %v556 = vsel %vm197, %v160, 0
  %v559 = vsel %vm197, %v161, 0
  %v562 = vsel %vm197, %v162, 0
  %v565 = vsel %vm197, %v163, 0
  %v568 = vsel %vm197, %v164, 0
  %v571 = vsel %vm197, %v165, 0
  %v574 = vsel %vm197, %v166, 0
  %v577 = vsel %vm197, %v167, 0
  %v580 = vsel %vm197, %v168, 0
  %582 = vmatprep.subr.mxu0 0.0
  %583 = vmatpush1.msra.mxu0 0.0
  %584 = vmatprep.subr.mxu0 0.0
  %585 = vmatpush1.msra.mxu0 0.0
  %586 = vmatprep.subr.mxu0 0.0
  %587 = vmatpush1.msra.mxu0 0.0
  %588 = vmatprep.subr.mxu0 0.0
  %589 = vmatpush1.msra.mxu0 0.0
  %590 = vmatprep.subr.mxu0 0.0
  %591 = vmatpush1.msra.mxu0 0.0
  %592 = vmatprep.subr.mxu0 0.0
  %593 = vmatpush1.msra.mxu0 0.0
  %594 = vmatprep.subr.mxu0 0.0
  %595 = vmatpush1.msra.mxu0 0.0
  %596 = vmatprep.subr.mxu0 0.0
  %597 = vmatpush1.msra.mxu0 0.0
  %598 = vmatprep.subr.mxu0 %v184
  %599 = vmatpush1.msra.mxu0 %v183
  %600 = vmatprep.subr.mxu0 %v182
  %601 = vmatpush1.msra.mxu0 %v181
  %602 = vmatprep.subr.mxu0 %v180
  %603 = vmatpush1.msra.mxu0 %v179
  %604 = vmatprep.subr.mxu0 %v178
  %605 = vmatpush1.msra.mxu0 %v177
  %606 = vmatprep.subr.mxu0 %v176
  %607 = vmatpush1.msra.mxu0 %v175
  %608 = vmatprep.subr.mxu0 %v174
  %609 = vmatpush1.msra.mxu0 %v173
  %610 = vmatprep.subr.mxu0 %v172
  %611 = vmatpush1.msra.mxu0 %v171
  %612 = vmatprep.subr.mxu0 %v170
  %613 = vmatpush1.msra.mxu0 %v169
  %614 = vmatprep.subr.mxu0 0.0
  %615 = vmatpush2.msra.mxu0 0.0
  %616 = vmatprep.subr.mxu0 0.0
  %617 = vmatpush2.msra.mxu0 0.0
  %618 = vmatprep.subr.mxu0 0.0
  %619 = vmatpush2.msra.mxu0 0.0
  %620 = vmatprep.subr.mxu0 0.0
  %621 = vmatpush2.msra.mxu0 0.0
  %622 = vmatprep.subr.mxu0 0.0
  %623 = vmatpush2.msra.mxu0 0.0
  %624 = vmatprep.subr.mxu0 0.0
  %625 = vmatpush2.msra.mxu0 0.0
  %626 = vmatprep.subr.mxu0 0.0
  %627 = vmatpush2.msra.mxu0 0.0
  %628 = vmatprep.subr.mxu0 0.0
  %629 = vmatpush2.msra.mxu0 0.0
  %630 = vmatprep.subr.mxu0 0.0
  %631 = vmatpush2.msra.mxu0 0.0
  %632 = vmatprep.subr.mxu0 0.0
  %633 = vmatpush2.msra.mxu0 0.0
  %634 = vmatprep.subr.mxu0 0.0
  %635 = vmatpush2.msra.mxu0 0.0
  %636 = vmatprep.subr.mxu0 0.0
  %637 = vmatpush2.msra.mxu0 0.0
  %638 = vmatprep.subr.mxu0 0.0
  %639 = vmatpush2.msra.mxu0 0.0
  %640 = vmatprep.subr.mxu0 0.0
  %641 = vmatpush2.msra.mxu0 0.0
  %642 = vmatprep.subr.mxu0 0.0
  %643 = vmatpush2.msra.mxu0 0.0
  %644 = vmatprep.subr.mxu0 0.0
  %645 = vmatpush2.msra.mxu0 0.0
  %646 = vmatprep.mubr.f32.mxu0 0.0
  %647 = vmatmul.mubr.f32.gmra.mxu0 %v199
  %v648 = vpop.f32.mrf.mxu0
  %v649 = vadd.f32 %v190, %v648
  %v650 = vpop.f32.mrf.mxu0
  %v651 = vadd.f32 %v194, %v650
  %652 = vmatprep.mubr.f32.mxu0 0.0
  %653 = vmatmul.mubr.f32.gmra.mxu0 %v202
  %v654 = vpop.f32.mrf.mxu0
  %v655 = vadd.f32 %v190, %v654
  %v656 = vpop.f32.mrf.mxu0
  %v657 = vadd.f32 %v194, %v656
  %658 = vmatprep.mubr.f32.mxu0 0.0
  %659 = vmatmul.mubr.f32.gmra.mxu0 %v205
  %v660 = vpop.f32.mrf.mxu0
  %v661 = vadd.f32 %v190, %v660
  %v662 = vpop.f32.mrf.mxu0
  %v663 = vadd.f32 %v194, %v662
  %664 = vmatprep.mubr.f32.mxu0 0.0
  %665 = vmatmul.mubr.f32.gmra.mxu0 %v208
  %v666 = vpop.f32.mrf.mxu0
  %v667 = vadd.f32 %v190, %v666
  %v668 = vpop.f32.mrf.mxu0
  %v669 = vadd.f32 %v194, %v668
  %670 = vmatprep.mubr.f32.mxu0 0.0
  %671 = vmatmul.mubr.f32.gmra.mxu0 %v211
  %v672 = vpop.f32.mrf.mxu0
  %v673 = vadd.f32 %v190, %v672
  %v674 = vpop.f32.mrf.mxu0
  %v675 = vadd.f32 %v194, %v674
  %676 = vmatprep.mubr.f32.mxu0 0.0
  %677 = vmatmul.mubr.f32.gmra.mxu0 %v214
  %v678 = vpop.f32.mrf.mxu0
  %v679 = vadd.f32 %v190, %v678
  %v680 = vpop.f32.mrf.mxu0
  %v681 = vadd.f32 %v194, %v680
  %682 = vmatprep.mubr.f32.mxu0 0.0
  %683 = vmatmul.mubr.f32.gmra.mxu0 %v217
  %v684 = vpop.f32.mrf.mxu0
  %v685 = vadd.f32 %v190, %v684
  %v686 = vpop.f32.mrf.mxu0
  %v687 = vadd.f32 %v194, %v686
  %688 = vmatprep.mubr.f32.mxu0 0.0
  %689 = vmatmul.mubr.f32.gmra.mxu0 %v220
  %v690 = vpop.f32.mrf.mxu0
  %v691 = vadd.f32 %v190, %v690
  %v692 = vpop.f32.mrf.mxu0
  %v693 = vadd.f32 %v194, %v692
  %694 = vmatprep.mubr.f32.mxu0 0.0
  %695 = vmatmul.mubr.f32.gmra.mxu0 %v223
  %v696 = vpop.f32.mrf.mxu0
  %v697 = vadd.f32 %v190, %v696
  %v698 = vpop.f32.mrf.mxu0
  %v699 = vadd.f32 %v194, %v698
  %700 = vmatprep.mubr.f32.mxu0 0.0
  %701 = vmatmul.mubr.f32.gmra.mxu0 %v226
  %v702 = vpop.f32.mrf.mxu0
  %v703 = vadd.f32 %v190, %v702
  %v704 = vpop.f32.mrf.mxu0
  %v705 = vadd.f32 %v194, %v704
  %706 = vmatprep.mubr.f32.mxu0 0.0
  %707 = vmatmul.mubr.f32.gmra.mxu0 %v229
  %v708 = vpop.f32.mrf.mxu0
  %v709 = vadd.f32 %v190, %v708
  %v710 = vpop.f32.mrf.mxu0
  %v711 = vadd.f32 %v194, %v710
  %712 = vmatprep.mubr.f32.mxu0 0.0
  %713 = vmatmul.mubr.f32.gmra.mxu0 %v232
  %v714 = vpop.f32.mrf.mxu0
  %v715 = vadd.f32 %v190, %v714
  %v716 = vpop.f32.mrf.mxu0
  %v717 = vadd.f32 %v194, %v716
  %718 = vmatprep.mubr.f32.mxu0 0.0
  %719 = vmatmul.mubr.f32.gmra.mxu0 %v235
  %v720 = vpop.f32.mrf.mxu0
  %v721 = vadd.f32 %v190, %v720
  %v722 = vpop.f32.mrf.mxu0
  %v723 = vadd.f32 %v194, %v722
  %724 = vmatprep.mubr.f32.mxu0 0.0
  %725 = vmatmul.mubr.f32.gmra.mxu0 %v238
  %v726 = vpop.f32.mrf.mxu0
  %v727 = vadd.f32 %v190, %v726
  %v728 = vpop.f32.mrf.mxu0
  %v729 = vadd.f32 %v194, %v728
  %730 = vmatprep.mubr.f32.mxu0 0.0
  %731 = vmatmul.mubr.f32.gmra.mxu0 %v241
  %v732 = vpop.f32.mrf.mxu0
  %v733 = vadd.f32 %v190, %v732
  %v734 = vpop.f32.mrf.mxu0
  %v735 = vadd.f32 %v194, %v734
  %736 = vmatprep.mubr.f32.mxu0 0.0
  %737 = vmatmul.mubr.f32.gmra.mxu0 %v244
  %v738 = vpop.f32.mrf.mxu0
  %v739 = vadd.f32 %v190, %v738
  %v740 = vpop.f32.mrf.mxu0
  %v741 = vadd.f32 %v194, %v740
  %742 = vmatprep.mubr.f32.mxu0 0.0
  %743 = vmatmul.mubr.f32.gmra.mxu0 %v247
  %v744 = vpop.f32.mrf.mxu0
  %v745 = vadd.f32 %v190, %v744
  %v746 = vpop.f32.mrf.mxu0
  %v747 = vadd.f32 %v194, %v746
  %748 = vmatprep.mubr.f32.mxu0 0.0
  %749 = vmatmul.mubr.f32.gmra.mxu0 %v250
  %v750 = vpop.f32.mrf.mxu0
  %v751 = vadd.f32 %v190, %v750
  %v752 = vpop.f32.mrf.mxu0
  %v753 = vadd.f32 %v194, %v752
  %754 = vmatprep.mubr.f32.mxu0 0.0
  %755 = vmatmul.mubr.f32.gmra.mxu0 %v253
  %v756 = vpop.f32.mrf.mxu0
  %v757 = vadd.f32 %v190, %v756
  %v758 = vpop.f32.mrf.mxu0
  %v759 = vadd.f32 %v194, %v758
  %760 = vmatprep.mubr.f32.mxu0 0.0
  %761 = vmatmul.mubr.f32.gmra.mxu0 %v256
  %v762 = vpop.f32.mrf.mxu0
  %v763 = vadd.f32 %v190, %v762
  %v764 = vpop.f32.mrf.mxu0
  %v765 = vadd.f32 %v194, %v764
  %766 = vmatprep.mubr.f32.mxu0 0.0
  %767 = vmatmul.mubr.f32.gmra.mxu0 %v259
  %v768 = vpop.f32.mrf.mxu0
  %v769 = vadd.f32 %v190, %v768
  %v770 = vpop.f32.mrf.mxu0
  %v771 = vadd.f32 %v194, %v770
  %772 = vmatprep.mubr.f32.mxu0 0.0
  %773 = vmatmul.mubr.f32.gmra.mxu0 %v262
  %v774 = vpop.f32.mrf.mxu0
  %v775 = vadd.f32 %v190, %v774
  %v776 = vpop.f32.mrf.mxu0
  %v777 = vadd.f32 %v194, %v776
  %778 = vmatprep.mubr.f32.mxu0 0.0
  %779 = vmatmul.mubr.f32.gmra.mxu0 %v265
  %v780 = vpop.f32.mrf.mxu0
  %v781 = vadd.f32 %v190, %v780
  %v782 = vpop.f32.mrf.mxu0
  %v783 = vadd.f32 %v194, %v782
  %784 = vmatprep.mubr.f32.mxu0 0.0
  %785 = vmatmul.mubr.f32.gmra.mxu0 %v268
  %v786 = vpop.f32.mrf.mxu0
  %v787 = vadd.f32 %v190, %v786
  %v788 = vpop.f32.mrf.mxu0
  %v789 = vadd.f32 %v194, %v788
  %790 = vmatprep.mubr.f32.mxu0 0.0
  %791 = vmatmul.mubr.f32.gmra.mxu0 %v271
  %v792 = vpop.f32.mrf.mxu0
  %v793 = vadd.f32 %v190, %v792
  %v794 = vpop.f32.mrf.mxu0
  %v795 = vadd.f32 %v194, %v794
  %796 = vmatprep.mubr.f32.mxu0 0.0
  %797 = vmatmul.mubr.f32.gmra.mxu0 %v274
  %v798 = vpop.f32.mrf.mxu0
  %v799 = vadd.f32 %v190, %v798
  %v800 = vpop.f32.mrf.mxu0
  %v801 = vadd.f32 %v194, %v800
  %802 = vmatprep.mubr.f32.mxu0 0.0
  %803 = vmatmul.mubr.f32.gmra.mxu0 %v277
  %v804 = vpop.f32.mrf.mxu0
  %v805 = vadd.f32 %v190, %v804
  %v806 = vpop.f32.mrf.mxu0
  %v807 = vadd.f32 %v194, %v806
  %808 = vmatprep.mubr.f32.mxu0 0.0
  %809 = vmatmul.mubr.f32.gmra.mxu0 %v280
  %v810 = vpop.f32.mrf.mxu0
  %v811 = vadd.f32 %v190, %v810
  %v812 = vpop.f32.mrf.mxu0
  %v813 = vadd.f32 %v194, %v812
  %814 = vmatprep.mubr.f32.mxu0 0.0
  %815 = vmatmul.mubr.f32.gmra.mxu0 %v283
  %v816 = vpop.f32.mrf.mxu0
  %v817 = vadd.f32 %v190, %v816
  %v818 = vpop.f32.mrf.mxu0
  %v819 = vadd.f32 %v194, %v818
  %820 = vmatprep.mubr.f32.mxu0 0.0
  %821 = vmatmul.mubr.f32.gmra.mxu0 %v286
  %v822 = vpop.f32.mrf.mxu0
  %v823 = vadd.f32 %v190, %v822
  %v824 = vpop.f32.mrf.mxu0
  %v825 = vadd.f32 %v194, %v824
  %826 = vmatprep.mubr.f32.mxu0 0.0
  %827 = vmatmul.mubr.f32.gmra.mxu0 %v289
  %v828 = vpop.f32.mrf.mxu0
  %v829 = vadd.f32 %v190, %v828
  %v830 = vpop.f32.mrf.mxu0
  %v831 = vadd.f32 %v194, %v830
  %832 = vmatprep.mubr.f32.mxu0 0.0
  %833 = vmatmul.mubr.f32.gmra.mxu0 %v292
  %v834 = vpop.f32.mrf.mxu0
  %v835 = vadd.f32 %v190, %v834
  %v836 = vpop.f32.mrf.mxu0
  %v837 = vadd.f32 %v194, %v836
  %838 = vmatprep.mubr.f32.mxu0 0.0
  %839 = vmatmul.mubr.f32.gmra.mxu0 %v295
  %v840 = vpop.f32.mrf.mxu0
  %v841 = vadd.f32 %v190, %v840
  %v842 = vpop.f32.mrf.mxu0
  %v843 = vadd.f32 %v194, %v842
  %844 = vmatprep.mubr.f32.mxu0 0.0
  %845 = vmatmul.mubr.f32.gmra.mxu0 %v298
  %v846 = vpop.f32.mrf.mxu0
  %v847 = vadd.f32 %v190, %v846
  %v848 = vpop.f32.mrf.mxu0
  %v849 = vadd.f32 %v194, %v848
  %850 = vmatprep.mubr.f32.mxu0 0.0
  %851 = vmatmul.mubr.f32.gmra.mxu0 %v301
  %v852 = vpop.f32.mrf.mxu0
  %v853 = vadd.f32 %v190, %v852
  %v854 = vpop.f32.mrf.mxu0
  %v855 = vadd.f32 %v194, %v854
  %856 = vmatprep.mubr.f32.mxu0 0.0
  %857 = vmatmul.mubr.f32.gmra.mxu0 %v304
  %v858 = vpop.f32.mrf.mxu0
  %v859 = vadd.f32 %v190, %v858
  %v860 = vpop.f32.mrf.mxu0
  %v861 = vadd.f32 %v194, %v860
  %862 = vmatprep.mubr.f32.mxu0 0.0
  %863 = vmatmul.mubr.f32.gmra.mxu0 %v307
  %v864 = vpop.f32.mrf.mxu0
  %v865 = vadd.f32 %v190, %v864
  %v866 = vpop.f32.mrf.mxu0
  %v867 = vadd.f32 %v194, %v866
  %868 = vmatprep.mubr.f32.mxu0 0.0
  %869 = vmatmul.mubr.f32.gmra.mxu0 %v310
  %v870 = vpop.f32.mrf.mxu0
  %v871 = vadd.f32 %v190, %v870
  %v872 = vpop.f32.mrf.mxu0
  %v873 = vadd.f32 %v194, %v872
  %874 = vmatprep.mubr.f32.mxu0 0.0
  %875 = vmatmul.mubr.f32.gmra.mxu0 %v313
  %v876 = vpop.f32.mrf.mxu0
  %v877 = vadd.f32 %v190, %v876
  %v878 = vpop.f32.mrf.mxu0
  %v879 = vadd.f32 %v194, %v878
  %880 = vmatprep.mubr.f32.mxu0 0.0
  %881 = vmatmul.mubr.f32.gmra.mxu0 %v316
  %v882 = vpop.f32.mrf.mxu0
  %v883 = vadd.f32 %v190, %v882
  %v884 = vpop.f32.mrf.mxu0
  %v885 = vadd.f32 %v194, %v884
  %886 = vmatprep.mubr.f32.mxu0 0.0
  %887 = vmatmul.mubr.f32.gmra.mxu0 %v319
  %v888 = vpop.f32.mrf.mxu0
  %v889 = vadd.f32 %v190, %v888
  %v890 = vpop.f32.mrf.mxu0
  %v891 = vadd.f32 %v194, %v890
  %892 = vmatprep.mubr.f32.mxu0 0.0
  %893 = vmatmul.mubr.f32.gmra.mxu0 %v322
  %v894 = vpop.f32.mrf.mxu0
  %v895 = vadd.f32 %v190, %v894
  %v896 = vpop.f32.mrf.mxu0
  %v897 = vadd.f32 %v194, %v896
  %898 = vmatprep.mubr.f32.mxu0 0.0
  %899 = vmatmul.mubr.f32.gmra.mxu0 %v325
  %v900 = vpop.f32.mrf.mxu0
  %v901 = vadd.f32 %v190, %v900
  %v902 = vpop.f32.mrf.mxu0
  %v903 = vadd.f32 %v194, %v902
  %904 = vmatprep.mubr.f32.mxu0 0.0
  %905 = vmatmul.mubr.f32.gmra.mxu0 %v328
  %v906 = vpop.f32.mrf.mxu0
  %v907 = vadd.f32 %v190, %v906
  %v908 = vpop.f32.mrf.mxu0
  %v909 = vadd.f32 %v194, %v908
  %910 = vmatprep.mubr.f32.mxu0 0.0
  %911 = vmatmul.mubr.f32.gmra.mxu0 %v331
  %v912 = vpop.f32.mrf.mxu0
  %v913 = vadd.f32 %v190, %v912
  %v914 = vpop.f32.mrf.mxu0
  %v915 = vadd.f32 %v194, %v914
  %916 = vmatprep.mubr.f32.mxu0 0.0
  %917 = vmatmul.mubr.f32.gmra.mxu0 %v334
  %v918 = vpop.f32.mrf.mxu0
  %v919 = vadd.f32 %v190, %v918
  %v920 = vpop.f32.mrf.mxu0
  %v921 = vadd.f32 %v194, %v920
  %922 = vmatprep.mubr.f32.mxu0 0.0
  %923 = vmatmul.mubr.f32.gmra.mxu0 %v337
  %v924 = vpop.f32.mrf.mxu0
  %v925 = vadd.f32 %v190, %v924
  %v926 = vpop.f32.mrf.mxu0
  %v927 = vadd.f32 %v194, %v926
  %928 = vmatprep.mubr.f32.mxu0 0.0
  %929 = vmatmul.mubr.f32.gmra.mxu0 %v340
  %v930 = vpop.f32.mrf.mxu0
  %v931 = vadd.f32 %v190, %v930
  %v932 = vpop.f32.mrf.mxu0
  %v933 = vadd.f32 %v194, %v932
  %934 = vmatprep.mubr.f32.mxu0 0.0
  %935 = vmatmul.mubr.f32.gmra.mxu0 %v343
  %v936 = vpop.f32.mrf.mxu0
  %v937 = vadd.f32 %v190, %v936
  %v938 = vpop.f32.mrf.mxu0
  %v939 = vadd.f32 %v194, %v938
  %940 = vmatprep.mubr.f32.mxu0 0.0
  %941 = vmatmul.mubr.f32.gmra.mxu0 %v346
  %v942 = vpop.f32.mrf.mxu0
  %v943 = vadd.f32 %v190, %v942
  %v944 = vpop.f32.mrf.mxu0
  %v945 = vadd.f32 %v194, %v944
  %946 = vmatprep.mubr.f32.mxu0 0.0
  %947 = vmatmul.mubr.f32.gmra.mxu0 %v349
  %v948 = vpop.f32.mrf.mxu0
  %v949 = vadd.f32 %v190, %v948
  %v950 = vpop.f32.mrf.mxu0
  %v951 = vadd.f32 %v194, %v950
  %952 = vmatprep.mubr.f32.mxu0 0.0
  %953 = vmatmul.mubr.f32.gmra.mxu0 %v352
  %v954 = vpop.f32.mrf.mxu0
  %v955 = vadd.f32 %v190, %v954
  %v956 = vpop.f32.mrf.mxu0
  %v957 = vadd.f32 %v194, %v956
  %958 = vmatprep.mubr.f32.mxu0 0.0
  %959 = vmatmul.mubr.f32.gmra.mxu0 %v355
  %v960 = vpop.f32.mrf.mxu0
  %v961 = vadd.f32 %v190, %v960
  %v962 = vpop.f32.mrf.mxu0
  %v963 = vadd.f32 %v194, %v962
  %964 = vmatprep.mubr.f32.mxu0 0.0
  %965 = vmatmul.mubr.f32.gmra.mxu0 %v358
  %v966 = vpop.f32.mrf.mxu0
  %v967 = vadd.f32 %v190, %v966
  %v968 = vpop.f32.mrf.mxu0
  %v969 = vadd.f32 %v194, %v968
  %970 = vmatprep.mubr.f32.mxu0 0.0
  %971 = vmatmul.mubr.f32.gmra.mxu0 %v361
  %v972 = vpop.f32.mrf.mxu0
  %v973 = vadd.f32 %v190, %v972
  %v974 = vpop.f32.mrf.mxu0
  %v975 = vadd.f32 %v194, %v974
  %976 = vmatprep.mubr.f32.mxu0 0.0
  %977 = vmatmul.mubr.f32.gmra.mxu0 %v364
  %v978 = vpop.f32.mrf.mxu0
  %v979 = vadd.f32 %v190, %v978
  %v980 = vpop.f32.mrf.mxu0
  %v981 = vadd.f32 %v194, %v980
  %982 = vmatprep.mubr.f32.mxu0 0.0
  %983 = vmatmul.mubr.f32.gmra.mxu0 %v367
  %v984 = vpop.f32.mrf.mxu0
  %v985 = vadd.f32 %v190, %v984
  %v986 = vpop.f32.mrf.mxu0
  %v987 = vadd.f32 %v194, %v986
  %988 = vmatprep.mubr.f32.mxu0 0.0
  %989 = vmatmul.mubr.f32.gmra.mxu0 %v370
  %v990 = vpop.f32.mrf.mxu0
  %v991 = vadd.f32 %v190, %v990
  %v992 = vpop.f32.mrf.mxu0
  %v993 = vadd.f32 %v194, %v992
  %994 = vmatprep.mubr.f32.mxu0 0.0
  %995 = vmatmul.mubr.f32.gmra.mxu0 %v373
  %v996 = vpop.f32.mrf.mxu0
  %v997 = vadd.f32 %v190, %v996
  %v998 = vpop.f32.mrf.mxu0
  %v999 = vadd.f32 %v194, %v998
  %1000 = vmatprep.mubr.f32.mxu0 0.0
  %1001 = vmatmul.mubr.f32.gmra.mxu0 %v376
  %v1002 = vpop.f32.mrf.mxu0
  %v1003 = vadd.f32 %v190, %v1002
  %v1004 = vpop.f32.mrf.mxu0
  %v1005 = vadd.f32 %v194, %v1004
  %1006 = vmatprep.mubr.f32.mxu0 0.0
  %1007 = vmatmul.mubr.f32.gmra.mxu0 %v379
  %v1008 = vpop.f32.mrf.mxu0
  %v1009 = vadd.f32 %v190, %v1008
  %v1010 = vpop.f32.mrf.mxu0
  %v1011 = vadd.f32 %v194, %v1010
  %1012 = vmatprep.mubr.f32.mxu0 0.0
  %1013 = vmatmul.mubr.f32.gmra.mxu0 %v382
  %v1014 = vpop.f32.mrf.mxu0
  %v1015 = vadd.f32 %v190, %v1014
  %v1016 = vpop.f32.mrf.mxu0
  %v1017 = vadd.f32 %v194, %v1016
  %1018 = vmatprep.mubr.f32.mxu0 0.0
  %1019 = vmatmul.mubr.f32.gmra.mxu0 %v385
  %v1020 = vpop.f32.mrf.mxu0
  %v1021 = vadd.f32 %v190, %v1020
  %v1022 = vpop.f32.mrf.mxu0
  %v1023 = vadd.f32 %v194, %v1022
  %1024 = vmatprep.mubr.f32.mxu0 0.0
  %1025 = vmatmul.mubr.f32.gmra.mxu0 %v388
  %v1026 = vpop.f32.mrf.mxu0
  %v1027 = vadd.f32 %v190, %v1026
  %v1028 = vpop.f32.mrf.mxu0
  %v1029 = vadd.f32 %v194, %v1028
  %1030 = vmatprep.mubr.f32.mxu0 0.0
  %1031 = vmatmul.mubr.f32.gmra.mxu0 %v391
  %v1032 = vpop.f32.mrf.mxu0
  %v1033 = vadd.f32 %v190, %v1032
  %v1034 = vpop.f32.mrf.mxu0
  %v1035 = vadd.f32 %v194, %v1034
  %1036 = vmatprep.mubr.f32.mxu0 0.0
  %1037 = vmatmul.mubr.f32.gmra.mxu0 %v394
  %v1038 = vpop.f32.mrf.mxu0
  %v1039 = vadd.f32 %v190, %v1038
  %v1040 = vpop.f32.mrf.mxu0
  %v1041 = vadd.f32 %v194, %v1040
  %1042 = vmatprep.mubr.f32.mxu0 0.0
  %1043 = vmatmul.mubr.f32.gmra.mxu0 %v397
  %v1044 = vpop.f32.mrf.mxu0
  %v1045 = vadd.f32 %v190, %v1044
  %v1046 = vpop.f32.mrf.mxu0
  %v1047 = vadd.f32 %v194, %v1046
  %1048 = vmatprep.mubr.f32.mxu0 0.0
  %1049 = vmatmul.mubr.f32.gmra.mxu0 %v400
  %v1050 = vpop.f32.mrf.mxu0
  %v1051 = vadd.f32 %v190, %v1050
  %v1052 = vpop.f32.mrf.mxu0
  %v1053 = vadd.f32 %v194, %v1052
  %1054 = vmatprep.mubr.f32.mxu0 0.0
  %1055 = vmatmul.mubr.f32.gmra.mxu0 %v403
  %v1056 = vpop.f32.mrf.mxu0
  %v1057 = vadd.f32 %v190, %v1056
  %v1058 = vpop.f32.mrf.mxu0
  %v1059 = vadd.f32 %v194, %v1058
  %1060 = vmatprep.mubr.f32.mxu0 0.0
  %1061 = vmatmul.mubr.f32.gmra.mxu0 %v406
  %v1062 = vpop.f32.mrf.mxu0
  %v1063 = vadd.f32 %v190, %v1062
  %v1064 = vpop.f32.mrf.mxu0
  %v1065 = vadd.f32 %v194, %v1064
  %1066 = vmatprep.mubr.f32.mxu0 0.0
  %1067 = vmatmul.mubr.f32.gmra.mxu0 %v409
  %v1068 = vpop.f32.mrf.mxu0
  %v1069 = vadd.f32 %v190, %v1068
  %v1070 = vpop.f32.mrf.mxu0
  %v1071 = vadd.f32 %v194, %v1070
  %1072 = vmatprep.mubr.f32.mxu0 0.0
  %1073 = vmatmul.mubr.f32.gmra.mxu0 %v412
  %v1074 = vpop.f32.mrf.mxu0
  %v1075 = vadd.f32 %v190, %v1074
  %v1076 = vpop.f32.mrf.mxu0
  %v1077 = vadd.f32 %v194, %v1076
  %1078 = vmatprep.mubr.f32.mxu0 0.0
  %1079 = vmatmul.mubr.f32.gmra.mxu0 %v415
  %v1080 = vpop.f32.mrf.mxu0
  %v1081 = vadd.f32 %v190, %v1080
  %v1082 = vpop.f32.mrf.mxu0
  %v1083 = vadd.f32 %v194, %v1082
  %1084 = vmatprep.mubr.f32.mxu0 0.0
  %1085 = vmatmul.mubr.f32.gmra.mxu0 %v418
  %v1086 = vpop.f32.mrf.mxu0
  %v1087 = vadd.f32 %v190, %v1086
  %v1088 = vpop.f32.mrf.mxu0
  %v1089 = vadd.f32 %v194, %v1088
  %1090 = vmatprep.mubr.f32.mxu0 0.0
  %1091 = vmatmul.mubr.f32.gmra.mxu0 %v421
  %v1092 = vpop.f32.mrf.mxu0
  %v1093 = vadd.f32 %v190, %v1092
  %v1094 = vpop.f32.mrf.mxu0
  %v1095 = vadd.f32 %v194, %v1094
  %1096 = vmatprep.mubr.f32.mxu0 0.0
  %1097 = vmatmul.mubr.f32.gmra.mxu0 %v424
  %v1098 = vpop.f32.mrf.mxu0
  %v1099 = vadd.f32 %v190, %v1098
  %v1100 = vpop.f32.mrf.mxu0
  %v1101 = vadd.f32 %v194, %v1100
  %1102 = vmatprep.mubr.f32.mxu0 0.0
  %1103 = vmatmul.mubr.f32.gmra.mxu0 %v427
  %v1104 = vpop.f32.mrf.mxu0
  %v1105 = vadd.f32 %v190, %v1104
  %v1106 = vpop.f32.mrf.mxu0
  %v1107 = vadd.f32 %v194, %v1106
  %1108 = vmatprep.mubr.f32.mxu0 0.0
  %1109 = vmatmul.mubr.f32.gmra.mxu0 %v430
  %v1110 = vpop.f32.mrf.mxu0
  %v1111 = vadd.f32 %v190, %v1110
  %v1112 = vpop.f32.mrf.mxu0
  %v1113 = vadd.f32 %v194, %v1112
  %1114 = vmatprep.mubr.f32.mxu0 0.0
  %1115 = vmatmul.mubr.f32.gmra.mxu0 %v433
  %v1116 = vpop.f32.mrf.mxu0
  %v1117 = vadd.f32 %v190, %v1116
  %v1118 = vpop.f32.mrf.mxu0
  %v1119 = vadd.f32 %v194, %v1118
  %1120 = vmatprep.mubr.f32.mxu0 0.0
  %1121 = vmatmul.mubr.f32.gmra.mxu0 %v436
  %v1122 = vpop.f32.mrf.mxu0
  %v1123 = vadd.f32 %v190, %v1122
  %v1124 = vpop.f32.mrf.mxu0
  %v1125 = vadd.f32 %v194, %v1124
  %1126 = vmatprep.mubr.f32.mxu0 0.0
  %1127 = vmatmul.mubr.f32.gmra.mxu0 %v439
  %v1128 = vpop.f32.mrf.mxu0
  %v1129 = vadd.f32 %v190, %v1128
  %v1130 = vpop.f32.mrf.mxu0
  %v1131 = vadd.f32 %v194, %v1130
  %1132 = vmatprep.mubr.f32.mxu0 0.0
  %1133 = vmatmul.mubr.f32.gmra.mxu0 %v442
  %v1134 = vpop.f32.mrf.mxu0
  %v1135 = vadd.f32 %v190, %v1134
  %v1136 = vpop.f32.mrf.mxu0
  %v1137 = vadd.f32 %v194, %v1136
  %1138 = vmatprep.mubr.f32.mxu0 0.0
  %1139 = vmatmul.mubr.f32.gmra.mxu0 %v445
  %v1140 = vpop.f32.mrf.mxu0
  %v1141 = vadd.f32 %v190, %v1140
  %v1142 = vpop.f32.mrf.mxu0
  %v1143 = vadd.f32 %v194, %v1142
  %1144 = vmatprep.mubr.f32.mxu0 0.0
  %1145 = vmatmul.mubr.f32.gmra.mxu0 %v448
  %v1146 = vpop.f32.mrf.mxu0
  %v1147 = vadd.f32 %v190, %v1146
  %v1148 = vpop.f32.mrf.mxu0
  %v1149 = vadd.f32 %v194, %v1148
  %1150 = vmatprep.mubr.f32.mxu0 0.0
  %1151 = vmatmul.mubr.f32.gmra.mxu0 %v451
  %v1152 = vpop.f32.mrf.mxu0
  %v1153 = vadd.f32 %v190, %v1152
  %v1154 = vpop.f32.mrf.mxu0
  %v1155 = vadd.f32 %v194, %v1154
  %1156 = vmatprep.mubr.f32.mxu0 0.0
  %1157 = vmatmul.mubr.f32.gmra.mxu0 %v454
  %v1158 = vpop.f32.mrf.mxu0
  %v1159 = vadd.f32 %v190, %v1158
  %v1160 = vpop.f32.mrf.mxu0
  %v1161 = vadd.f32 %v194, %v1160
  %1162 = vmatprep.mubr.f32.mxu0 0.0
  %1163 = vmatmul.mubr.f32.gmra.mxu0 %v457
  %v1164 = vpop.f32.mrf.mxu0
  %v1165 = vadd.f32 %v190, %v1164
  %v1166 = vpop.f32.mrf.mxu0
  %v1167 = vadd.f32 %v194, %v1166
  %1168 = vmatprep.mubr.f32.mxu0 0.0
  %1169 = vmatmul.mubr.f32.gmra.mxu0 %v460
  %v1170 = vpop.f32.mrf.mxu0
  %v1171 = vadd.f32 %v190, %v1170
  %v1172 = vpop.f32.mrf.mxu0
  %v1173 = vadd.f32 %v194, %v1172
  %1174 = vmatprep.mubr.f32.mxu0 0.0
  %1175 = vmatmul.mubr.f32.gmra.mxu0 %v463
  %v1176 = vpop.f32.mrf.mxu0
  %v1177 = vadd.f32 %v190, %v1176
  %v1178 = vpop.f32.mrf.mxu0
  %v1179 = vadd.f32 %v194, %v1178
  %1180 = vmatprep.mubr.f32.mxu0 0.0
  %1181 = vmatmul.mubr.f32.gmra.mxu0 %v466
  %v1182 = vpop.f32.mrf.mxu0
  %v1183 = vadd.f32 %v190, %v1182
  %v1184 = vpop.f32.mrf.mxu0
  %v1185 = vadd.f32 %v194, %v1184
  %1186 = vmatprep.mubr.f32.mxu0 0.0
  %1187 = vmatmul.mubr.f32.gmra.mxu0 %v469
  %v1188 = vpop.f32.mrf.mxu0
  %v1189 = vadd.f32 %v190, %v1188
  %v1190 = vpop.f32.mrf.mxu0
  %v1191 = vadd.f32 %v194, %v1190
  %1192 = vmatprep.mubr.f32.mxu0 0.0
  %1193 = vmatmul.mubr.f32.gmra.mxu0 %v472
  %v1194 = vpop.f32.mrf.mxu0
  %v1195 = vadd.f32 %v190, %v1194
  %v1196 = vpop.f32.mrf.mxu0
  %v1197 = vadd.f32 %v194, %v1196
  %1198 = vmatprep.mubr.f32.mxu0 0.0
  %1199 = vmatmul.mubr.f32.gmra.mxu0 %v475
  %v1200 = vpop.f32.mrf.mxu0
  %v1201 = vadd.f32 %v190, %v1200
  %v1202 = vpop.f32.mrf.mxu0
  %v1203 = vadd.f32 %v194, %v1202
  %1204 = vmatprep.mubr.f32.mxu0 0.0
  %1205 = vmatmul.mubr.f32.gmra.mxu0 %v478
  %v1206 = vpop.f32.mrf.mxu0
  %v1207 = vadd.f32 %v190, %v1206
  %v1208 = vpop.f32.mrf.mxu0
  %v1209 = vadd.f32 %v194, %v1208
  %1210 = vmatprep.mubr.f32.mxu0 0.0
  %1211 = vmatmul.mubr.f32.gmra.mxu0 %v481
  %v1212 = vpop.f32.mrf.mxu0
  %v1213 = vadd.f32 %v190, %v1212
  %v1214 = vpop.f32.mrf.mxu0
  %v1215 = vadd.f32 %v194, %v1214
  %1216 = vmatprep.mubr.f32.mxu0 0.0
  %1217 = vmatmul.mubr.f32.gmra.mxu0 %v484
  %v1218 = vpop.f32.mrf.mxu0
  %v1219 = vadd.f32 %v190, %v1218
  %v1220 = vpop.f32.mrf.mxu0
  %v1221 = vadd.f32 %v194, %v1220
  %1222 = vmatprep.mubr.f32.mxu0 0.0
  %1223 = vmatmul.mubr.f32.gmra.mxu0 %v487
  %v1224 = vpop.f32.mrf.mxu0
  %v1225 = vadd.f32 %v190, %v1224
  %v1226 = vpop.f32.mrf.mxu0
  %v1227 = vadd.f32 %v194, %v1226
  %1228 = vmatprep.mubr.f32.mxu0 0.0
  %1229 = vmatmul.mubr.f32.gmra.mxu0 %v490
  %v1230 = vpop.f32.mrf.mxu0
  %v1231 = vadd.f32 %v190, %v1230
  %v1232 = vpop.f32.mrf.mxu0
  %v1233 = vadd.f32 %v194, %v1232
  %1234 = vmatprep.mubr.f32.mxu0 0.0
  %1235 = vmatmul.mubr.f32.gmra.mxu0 %v493
  %v1236 = vpop.f32.mrf.mxu0
  %v1237 = vadd.f32 %v190, %v1236
  %v1238 = vpop.f32.mrf.mxu0
  %v1239 = vadd.f32 %v194, %v1238
  %1240 = vmatprep.mubr.f32.mxu0 0.0
  %1241 = vmatmul.mubr.f32.gmra.mxu0 %v496
  %v1242 = vpop.f32.mrf.mxu0
  %v1243 = vadd.f32 %v190, %v1242
  %v1244 = vpop.f32.mrf.mxu0
  %v1245 = vadd.f32 %v194, %v1244
  %1246 = vmatprep.mubr.f32.mxu0 0.0
  %1247 = vmatmul.mubr.f32.gmra.mxu0 %v499
  %v1248 = vpop.f32.mrf.mxu0
  %v1249 = vadd.f32 %v190, %v1248
  %v1250 = vpop.f32.mrf.mxu0
  %v1251 = vadd.f32 %v194, %v1250
  %1252 = vmatprep.mubr.f32.mxu0 0.0
  %1253 = vmatmul.mubr.f32.gmra.mxu0 %v502
  %v1254 = vpop.f32.mrf.mxu0
  %v1255 = vadd.f32 %v190, %v1254
  %v1256 = vpop.f32.mrf.mxu0
  %v1257 = vadd.f32 %v194, %v1256
  %1258 = vmatprep.mubr.f32.mxu0 0.0
  %1259 = vmatmul.mubr.f32.gmra.mxu0 %v505
  %v1260 = vpop.f32.mrf.mxu0
  %v1261 = vadd.f32 %v190, %v1260
  %v1262 = vpop.f32.mrf.mxu0
  %v1263 = vadd.f32 %v194, %v1262
  %1264 = vmatprep.mubr.f32.mxu0 0.0
  %1265 = vmatmul.mubr.f32.gmra.mxu0 %v508
  %v1266 = vpop.f32.mrf.mxu0
  %v1267 = vadd.f32 %v190, %v1266
  %v1268 = vpop.f32.mrf.mxu0
  %v1269 = vadd.f32 %v194, %v1268
  %1270 = vmatprep.mubr.f32.mxu0 0.0
  %1271 = vmatmul.mubr.f32.gmra.mxu0 %v511
  %v1272 = vpop.f32.mrf.mxu0
  %v1273 = vadd.f32 %v190, %v1272
  %v1274 = vpop.f32.mrf.mxu0
  %v1275 = vadd.f32 %v194, %v1274
  %1276 = vmatprep.mubr.f32.mxu0 0.0
  %1277 = vmatmul.mubr.f32.gmra.mxu0 %v514
  %v1278 = vpop.f32.mrf.mxu0
  %v1279 = vadd.f32 %v190, %v1278
  %v1280 = vpop.f32.mrf.mxu0
  %v1281 = vadd.f32 %v194, %v1280
  %1282 = vmatprep.mubr.f32.mxu0 0.0
  %1283 = vmatmul.mubr.f32.gmra.mxu0 %v517
  %v1284 = vpop.f32.mrf.mxu0
  %v1285 = vadd.f32 %v190, %v1284
  %v1286 = vpop.f32.mrf.mxu0
  %v1287 = vadd.f32 %v194, %v1286
  %1288 = vmatprep.mubr.f32.mxu0 0.0
  %1289 = vmatmul.mubr.f32.gmra.mxu0 %v520
  %v1290 = vpop.f32.mrf.mxu0
  %v1291 = vadd.f32 %v190, %v1290
  %v1292 = vpop.f32.mrf.mxu0
  %v1293 = vadd.f32 %v194, %v1292
  %1294 = vmatprep.mubr.f32.mxu0 0.0
  %1295 = vmatmul.mubr.f32.gmra.mxu0 %v523
  %v1296 = vpop.f32.mrf.mxu0
  %v1297 = vadd.f32 %v190, %v1296
  %v1298 = vpop.f32.mrf.mxu0
  %v1299 = vadd.f32 %v194, %v1298
  %1300 = vmatprep.mubr.f32.mxu0 0.0
  %1301 = vmatmul.mubr.f32.gmra.mxu0 %v526
  %v1302 = vpop.f32.mrf.mxu0
  %v1303 = vadd.f32 %v190, %v1302
  %v1304 = vpop.f32.mrf.mxu0
  %v1305 = vadd.f32 %v194, %v1304
  %1306 = vmatprep.mubr.f32.mxu0 0.0
  %1307 = vmatmul.mubr.f32.gmra.mxu0 %v529
  %v1308 = vpop.f32.mrf.mxu0
  %v1309 = vadd.f32 %v190, %v1308
  %v1310 = vpop.f32.mrf.mxu0
  %v1311 = vadd.f32 %v194, %v1310
  %1312 = vmatprep.mubr.f32.mxu0 0.0
  %1313 = vmatmul.mubr.f32.gmra.mxu0 %v532
  %v1314 = vpop.f32.mrf.mxu0
  %v1315 = vadd.f32 %v190, %v1314
  %v1316 = vpop.f32.mrf.mxu0
  %v1317 = vadd.f32 %v194, %v1316
  %1318 = vmatprep.mubr.f32.mxu0 0.0
  %1319 = vmatmul.mubr.f32.gmra.mxu0 %v535
  %v1320 = vpop.f32.mrf.mxu0
  %v1321 = vadd.f32 %v190, %v1320
  %v1322 = vpop.f32.mrf.mxu0
  %v1323 = vadd.f32 %v194, %v1322
  %1324 = vmatprep.mubr.f32.mxu0 0.0
  %1325 = vmatmul.mubr.f32.gmra.mxu0 %v538
  %v1326 = vpop.f32.mrf.mxu0
  %v1327 = vadd.f32 %v190, %v1326
  %v1328 = vpop.f32.mrf.mxu0
  %v1329 = vadd.f32 %v194, %v1328
  %1330 = vmatprep.mubr.f32.mxu0 0.0
  %1331 = vmatmul.mubr.f32.gmra.mxu0 %v541
  %v1332 = vpop.f32.mrf.mxu0
  %v1333 = vadd.f32 %v190, %v1332
  %v1334 = vpop.f32.mrf.mxu0
  %v1335 = vadd.f32 %v194, %v1334
  %1336 = vmatprep.mubr.f32.mxu0 0.0
  %1337 = vmatmul.mubr.f32.gmra.mxu0 %v544
  %v1338 = vpop.f32.mrf.mxu0
  %v1339 = vadd.f32 %v190, %v1338
  %v1340 = vpop.f32.mrf.mxu0
  %v1341 = vadd.f32 %v194, %v1340
  %1342 = vmatprep.mubr.f32.mxu0 0.0
  %1343 = vmatmul.mubr.f32.gmra.mxu0 %v547
  %v1344 = vpop.f32.mrf.mxu0
  %v1345 = vadd.f32 %v190, %v1344
  %v1346 = vpop.f32.mrf.mxu0
  %v1347 = vadd.f32 %v194, %v1346
  %1348 = vmatprep.mubr.f32.mxu0 0.0
  %1349 = vmatmul.mubr.f32.gmra.mxu0 %v550
  %v1350 = vpop.f32.mrf.mxu0
  %v1351 = vadd.f32 %v190, %v1350
  %v1352 = vpop.f32.mrf.mxu0
  %v1353 = vadd.f32 %v194, %v1352
  %1354 = vmatprep.mubr.f32.mxu0 0.0
  %1355 = vmatmul.mubr.f32.gmra.mxu0 %v553
  %v1356 = vpop.f32.mrf.mxu0
  %v1357 = vadd.f32 %v190, %v1356
  %v1358 = vpop.f32.mrf.mxu0
  %v1359 = vadd.f32 %v194, %v1358
  %1360 = vmatprep.mubr.f32.mxu0 0.0
  %1361 = vmatmul.mubr.f32.gmra.mxu0 %v556
  %v1362 = vpop.f32.mrf.mxu0
  %v1363 = vadd.f32 %v190, %v1362
  %v1364 = vpop.f32.mrf.mxu0
  %v1365 = vadd.f32 %v194, %v1364
  %1366 = vmatprep.mubr.f32.mxu0 0.0
  %1367 = vmatmul.mubr.f32.gmra.mxu0 %v559
  %v1368 = vpop.f32.mrf.mxu0
  %v1369 = vadd.f32 %v190, %v1368
  %v1370 = vpop.f32.mrf.mxu0
  %v1371 = vadd.f32 %v194, %v1370
  %1372 = vmatprep.mubr.f32.mxu0 0.0
  %1373 = vmatmul.mubr.f32.gmra.mxu0 %v562
  %v1374 = vpop.f32.mrf.mxu0
  %v1375 = vadd.f32 %v190, %v1374
  %v1376 = vpop.f32.mrf.mxu0
  %v1377 = vadd.f32 %v194, %v1376
  %1378 = vmatprep.mubr.f32.mxu0 0.0
  %1379 = vmatmul.mubr.f32.gmra.mxu0 %v565
  %v1380 = vpop.f32.mrf.mxu0
  %v1381 = vadd.f32 %v190, %v1380
  %v1382 = vpop.f32.mrf.mxu0
  %v1383 = vadd.f32 %v194, %v1382
  %1384 = vmatprep.mubr.f32.mxu0 0.0
  %1385 = vmatmul.mubr.f32.gmra.mxu0 %v568
  %v1386 = vpop.f32.mrf.mxu0
  %v1387 = vadd.f32 %v190, %v1386
  %v1388 = vpop.f32.mrf.mxu0
  %v1389 = vadd.f32 %v194, %v1388
  %1390 = vmatprep.mubr.f32.mxu0 0.0
  %1391 = vmatmul.mubr.f32.gmra.mxu0 %v571
  %v1392 = vpop.f32.mrf.mxu0
  %v1393 = vadd.f32 %v190, %v1392
  %v1394 = vpop.f32.mrf.mxu0
  %v1395 = vadd.f32 %v194, %v1394
  %1396 = vmatprep.mubr.f32.mxu0 0.0
  %1397 = vmatmul.mubr.f32.gmra.mxu0 %v574
  %v1398 = vpop.f32.mrf.mxu0
  %v1399 = vadd.f32 %v190, %v1398
  %v1400 = vpop.f32.mrf.mxu0
  %v1401 = vadd.f32 %v194, %v1400
  %1402 = vmatprep.mubr.f32.mxu0 0.0
  %1403 = vmatmul.mubr.f32.gmra.mxu0 %v577
  %v1404 = vpop.f32.mrf.mxu0
  %v1405 = vadd.f32 %v190, %v1404
  %v1406 = vpop.f32.mrf.mxu0
  %v1407 = vadd.f32 %v194, %v1406
  %1408 = vmatprep.mubr.f32.mxu0 0.0
  %1409 = vmatmul.mubr.f32.gmra.mxu0 %v580
  %v1410 = vpop.f32.mrf.mxu0
  %v1411 = vadd.f32 %v190, %v1410
  %v1412 = vpop.f32.mrf.mxu0
  %v1413 = vadd.f32 %v194, %v1412
  %1414 = vdwg.mxu0
  %v1415 = vmax.f32 %v649, 0.0
  %v1416 = vmax.f32 %v651, 0.0
  %v1417 = vmax.f32 %v655, 0.0
  %v1418 = vmax.f32 %v657, 0.0
  %v1419 = vmax.f32 %v661, 0.0
  %v1420 = vmax.f32 %v663, 0.0
  %v1421 = vmax.f32 %v667, 0.0
  %v1422 = vmax.f32 %v669, 0.0
  %v1423 = vmax.f32 %v673, 0.0
  %v1424 = vmax.f32 %v675, 0.0
  %v1425 = vmax.f32 %v679, 0.0
  %v1426 = vmax.f32 %v681, 0.0
  %v1427 = vmax.f32 %v685, 0.0
  %v1428 = vmax.f32 %v687, 0.0
  %v1429 = vmax.f32 %v691, 0.0
  %v1430 = vmax.f32 %v693, 0.0
  %v1431 = vmax.f32 %v697, 0.0
  %v1432 = vmax.f32 %v699, 0.0
  %v1433 = vmax.f32 %v703, 0.0
  %v1434 = vmax.f32 %v705, 0.0
  %v1435 = vmax.f32 %v709, 0.0
  %v1436 = vmax.f32 %v711, 0.0
  %v1437 = vmax.f32 %v715, 0.0
  %v1438 = vmax.f32 %v717, 0.0
  %v1439 = vmax.f32 %v721, 0.0
  %v1440 = vmax.f32 %v723, 0.0
  %v1441 = vmax.f32 %v727, 0.0
  %v1442 = vmax.f32 %v729, 0.0
  %v1443 = vmax.f32 %v733, 0.0
  %v1444 = vmax.f32 %v735, 0.0
  %v1445 = vmax.f32 %v739, 0.0
  %v1446 = vmax.f32 %v741, 0.0
  %v1447 = vmax.f32 %v745, 0.0
  %v1448 = vmax.f32 %v747, 0.0
  %v1449 = vmax.f32 %v751, 0.0
  %v1450 = vmax.f32 %v753, 0.0
  %v1451 = vmax.f32 %v757, 0.0
  %v1452 = vmax.f32 %v759, 0.0
  %v1453 = vmax.f32 %v763, 0.0
  %v1454 = vmax.f32 %v765, 0.0
  %v1455 = vmax.f32 %v769, 0.0
  %v1456 = vmax.f32 %v771, 0.0
  %v1457 = vmax.f32 %v775, 0.0
  %v1458 = vmax.f32 %v777, 0.0
  %v1459 = vmax.f32 %v781, 0.0
  %v1460 = vmax.f32 %v783, 0.0
  %v1461 = vmax.f32 %v787, 0.0
  %v1462 = vmax.f32 %v789, 0.0
  %v1463 = vmax.f32 %v793, 0.0
  %v1464 = vmax.f32 %v795, 0.0
  %v1465 = vmax.f32 %v799, 0.0
  %v1466 = vmax.f32 %v801, 0.0
  %v1467 = vmax.f32 %v805, 0.0
  %v1468 = vmax.f32 %v807, 0.0
  %v1469 = vmax.f32 %v811, 0.0
  %v1470 = vmax.f32 %v813, 0.0
  %v1471 = vmax.f32 %v817, 0.0
  %v1472 = vmax.f32 %v819, 0.0
  %v1473 = vmax.f32 %v823, 0.0
  %v1474 = vmax.f32 %v825, 0.0
  %v1475 = vmax.f32 %v829, 0.0
  %v1476 = vmax.f32 %v831, 0.0
  %v1477 = vmax.f32 %v835, 0.0
  %v1478 = vmax.f32 %v837, 0.0
  %v1479 = vmax.f32 %v841, 0.0
  %v1480 = vmax.f32 %v843, 0.0
  %v1481 = vmax.f32 %v847, 0.0
  %v1482 = vmax.f32 %v849, 0.0
  %v1483 = vmax.f32 %v853, 0.0
  %v1484 = vmax.f32 %v855, 0.0
  %v1485 = vmax.f32 %v859, 0.0
  %v1486 = vmax.f32 %v861, 0.0
  %v1487 = vmax.f32 %v865, 0.0
  %v1488 = vmax.f32 %v867, 0.0
  %v1489 = vmax.f32 %v871, 0.0
  %v1490 = vmax.f32 %v873, 0.0
  %v1491 = vmax.f32 %v877, 0.0
  %v1492 = vmax.f32 %v879, 0.0
  %v1493 = vmax.f32 %v883, 0.0
  %v1494 = vmax.f32 %v885, 0.0
  %v1495 = vmax.f32 %v889, 0.0
  %v1496 = vmax.f32 %v891, 0.0
  %v1497 = vmax.f32 %v895, 0.0
  %v1498 = vmax.f32 %v897, 0.0
  %v1499 = vmax.f32 %v901, 0.0
  %v1500 = vmax.f32 %v903, 0.0
  %v1501 = vmax.f32 %v907, 0.0
  %v1502 = vmax.f32 %v909, 0.0
  %v1503 = vmax.f32 %v913, 0.0
  %v1504 = vmax.f32 %v915, 0.0
  %v1505 = vmax.f32 %v919, 0.0
  %v1506 = vmax.f32 %v921, 0.0
  %v1507 = vmax.f32 %v925, 0.0
  %v1508 = vmax.f32 %v927, 0.0
  %v1509 = vmax.f32 %v931, 0.0
  %v1510 = vmax.f32 %v933, 0.0
  %v1511 = vmax.f32 %v937, 0.0
  %v1512 = vmax.f32 %v939, 0.0
  %v1513 = vmax.f32 %v943, 0.0
  %v1514 = vmax.f32 %v945, 0.0
  %v1515 = vmax.f32 %v949, 0.0
  %v1516 = vmax.f32 %v951, 0.0
  %v1517 = vmax.f32 %v955, 0.0
  %v1518 = vmax.f32 %v957, 0.0
  %v1519 = vmax.f32 %v961, 0.0
  %v1520 = vmax.f32 %v963, 0.0
  %v1521 = vmax.f32 %v967, 0.0
  %v1522 = vmax.f32 %v969, 0.0
  %v1523 = vmax.f32 %v973, 0.0
  %v1524 = vmax.f32 %v975, 0.0
  %v1525 = vmax.f32 %v979, 0.0
  %v1526 = vmax.f32 %v981, 0.0
  %v1527 = vmax.f32 %v985, 0.0
  %v1528 = vmax.f32 %v987, 0.0
  %v1529 = vmax.f32 %v991, 0.0
  %v1530 = vmax.f32 %v993, 0.0
  %v1531 = vmax.f32 %v997, 0.0
  %v1532 = vmax.f32 %v999, 0.0
  %v1533 = vmax.f32 %v1003, 0.0
  %v1534 = vmax.f32 %v1005, 0.0
  %v1535 = vmax.f32 %v1009, 0.0
  %v1536 = vmax.f32 %v1011, 0.0
  %v1537 = vmax.f32 %v1015, 0.0
  %v1538 = vmax.f32 %v1017, 0.0
  %v1539 = vmax.f32 %v1021, 0.0
  %v1540 = vmax.f32 %v1023, 0.0
  %v1541 = vmax.f32 %v1027, 0.0
  %v1542 = vmax.f32 %v1029, 0.0
  %v1543 = vmax.f32 %v1033, 0.0
  %v1544 = vmax.f32 %v1035, 0.0
  %v1545 = vmax.f32 %v1039, 0.0
  %v1546 = vmax.f32 %v1041, 0.0
  %v1547 = vmax.f32 %v1045, 0.0
  %v1548 = vmax.f32 %v1047, 0.0
  %v1549 = vmax.f32 %v1051, 0.0
  %v1550 = vmax.f32 %v1053, 0.0
  %v1551 = vmax.f32 %v1057, 0.0
  %v1552 = vmax.f32 %v1059, 0.0
  %v1553 = vmax.f32 %v1063, 0.0
  %v1554 = vmax.f32 %v1065, 0.0
  %v1555 = vmax.f32 %v1069, 0.0
  %v1556 = vmax.f32 %v1071, 0.0
  %v1557 = vmax.f32 %v1075, 0.0
  %v1558 = vmax.f32 %v1077, 0.0
  %v1559 = vmax.f32 %v1081, 0.0
  %v1560 = vmax.f32 %v1083, 0.0
  %v1561 = vmax.f32 %v1087, 0.0
  %v1562 = vmax.f32 %v1089, 0.0
  %v1563 = vmax.f32 %v1093, 0.0
  %v1564 = vmax.f32 %v1095, 0.0
  %v1565 = vmax.f32 %v1099, 0.0
  %v1566 = vmax.f32 %v1101, 0.0
  %v1567 = vmax.f32 %v1105, 0.0
  %v1568 = vmax.f32 %v1107, 0.0
  %v1569 = vmax.f32 %v1111, 0.0
  %v1570 = vmax.f32 %v1113, 0.0
  %v1571 = vmax.f32 %v1117, 0.0
  %v1572 = vmax.f32 %v1119, 0.0
  %v1573 = vmax.f32 %v1123, 0.0
  %v1574 = vmax.f32 %v1125, 0.0
  %v1575 = vmax.f32 %v1129, 0.0
  %v1576 = vmax.f32 %v1131, 0.0
  %v1577 = vmax.f32 %v1135, 0.0
  %v1578 = vmax.f32 %v1137, 0.0
  %v1579 = vmax.f32 %v1141, 0.0
  %v1580 = vmax.f32 %v1143, 0.0
  %v1581 = vmax.f32 %v1147, 0.0
  %v1582 = vmax.f32 %v1149, 0.0
  %v1583 = vmax.f32 %v1153, 0.0
  %v1584 = vmax.f32 %v1155, 0.0
  %v1585 = vmax.f32 %v1159, 0.0
  %v1586 = vmax.f32 %v1161, 0.0
  %v1587 = vmax.f32 %v1165, 0.0
  %v1588 = vmax.f32 %v1167, 0.0
  %v1589 = vmax.f32 %v1171, 0.0
  %v1590 = vmax.f32 %v1173, 0.0
  %v1591 = vmax.f32 %v1177, 0.0
  %v1592 = vmax.f32 %v1179, 0.0
  %v1593 = vmax.f32 %v1183, 0.0
  %v1594 = vmax.f32 %v1185, 0.0
  %v1595 = vmax.f32 %v1189, 0.0
  %v1596 = vmax.f32 %v1191, 0.0
  %v1597 = vmax.f32 %v1195, 0.0
  %v1598 = vmax.f32 %v1197, 0.0
  %v1599 = vmax.f32 %v1201, 0.0
  %v1600 = vmax.f32 %v1203, 0.0
  %v1601 = vmax.f32 %v1207, 0.0
  %v1602 = vmax.f32 %v1209, 0.0
  %v1603 = vmax.f32 %v1213, 0.0
  %v1604 = vmax.f32 %v1215, 0.0
  %v1605 = vmax.f32 %v1219, 0.0
  %v1606 = vmax.f32 %v1221, 0.0
  %v1607 = vmax.f32 %v1225, 0.0
  %v1608 = vmax.f32 %v1227, 0.0
  %v1609 = vmax.f32 %v1231, 0.0
  %v1610 = vmax.f32 %v1233, 0.0
  %v1611 = vmax.f32 %v1237, 0.0
  %v1612 = vmax.f32 %v1239, 0.0
  %v1613 = vmax.f32 %v1243, 0.0
  %v1614 = vmax.f32 %v1245, 0.0
  %v1615 = vmax.f32 %v1249, 0.0
  %v1616 = vmax.f32 %v1251, 0.0
  %v1617 = vmax.f32 %v1255, 0.0
  %v1618 = vmax.f32 %v1257, 0.0
  %v1619 = vmax.f32 %v1261, 0.0
  %v1620 = vmax.f32 %v1263, 0.0
  %v1621 = vmax.f32 %v1267, 0.0
  %v1622 = vmax.f32 %v1269, 0.0
  %v1623 = vmax.f32 %v1273, 0.0
  %v1624 = vmax.f32 %v1275, 0.0
  %v1625 = vmax.f32 %v1279, 0.0
  %v1626 = vmax.f32 %v1281, 0.0
  %v1627 = vmax.f32 %v1285, 0.0
  %v1628 = vmax.f32 %v1287, 0.0
  %v1629 = vmax.f32 %v1291, 0.0
  %v1630 = vmax.f32 %v1293, 0.0
  %v1631 = vmax.f32 %v1297, 0.0
  %v1632 = vmax.f32 %v1299, 0.0
  %v1633 = vmax.f32 %v1303, 0.0
  %v1634 = vmax.f32 %v1305, 0.0
  %v1635 = vmax.f32 %v1309, 0.0
  %v1636 = vmax.f32 %v1311, 0.0
  %v1637 = vmax.f32 %v1315, 0.0
  %v1638 = vmax.f32 %v1317, 0.0
  %v1639 = vmax.f32 %v1321, 0.0
  %v1640 = vmax.f32 %v1323, 0.0
  %v1641 = vmax.f32 %v1327, 0.0
  %v1642 = vmax.f32 %v1329, 0.0
  %v1643 = vmax.f32 %v1333, 0.0
  %v1644 = vmax.f32 %v1335, 0.0
  %v1645 = vmax.f32 %v1339, 0.0
  %v1646 = vmax.f32 %v1341, 0.0
  %v1647 = vmax.f32 %v1345, 0.0
  %v1648 = vmax.f32 %v1347, 0.0
  %v1649 = vmax.f32 %v1351, 0.0
  %v1650 = vmax.f32 %v1353, 0.0
  %v1651 = vmax.f32 %v1357, 0.0
  %v1652 = vmax.f32 %v1359, 0.0
  %v1653 = vmax.f32 %v1363, 0.0
  %v1654 = vmax.f32 %v1365, 0.0
  %v1655 = vmax.f32 %v1369, 0.0
  %v1656 = vmax.f32 %v1371, 0.0
  %v1657 = vmax.f32 %v1375, 0.0
  %v1658 = vmax.f32 %v1377, 0.0
  %v1659 = vmax.f32 %v1381, 0.0
  %v1660 = vmax.f32 %v1383, 0.0
  %v1661 = vmax.f32 %v1387, 0.0
  %v1662 = vmax.f32 %v1389, 0.0
  %v1663 = vmax.f32 %v1393, 0.0
  %v1664 = vmax.f32 %v1395, 0.0
  %v1665 = vmax.f32 %v1399, 0.0
  %v1666 = vmax.f32 %v1401, 0.0
  %v1667 = vmax.f32 %v1405, 0.0
  %v1668 = vmax.f32 %v1407, 0.0
  %v1669 = vmax.f32 %v1411, 0.0
  %v1670 = vmax.f32 %v1413, 0.0
  %v1671 = vld [vmem:[%s3] sm:$0xff]
  %v1672 = vld [vmem:[%s3 + $0x8] sm:$0xff]
  %v1673 = vld [vmem:[%s3 + $0x10] sm:$0xff]
  %v1674 = vld [vmem:[%s3 + $0x18] sm:$0xff]
  %v1675 = vld [vmem:[%s3 + $0x20] sm:$0xff]
  %v1676 = vld [vmem:[%s3 + $0x28] sm:$0xff]
  %v1677 = vld [vmem:[%s3 + $0x30] sm:$0xff]
  %v1678 = vld [vmem:[%s3 + $0x38] sm:$0xff]
  %v1679 = vld [vmem:[%s3 + $0x40] sm:$0xff]
  %v1680 = vld [vmem:[%s3 + $0x48] sm:$0xff]
  %v1681 = vld [vmem:[%s3 + $0x50] sm:$0xff]
  %v1682 = vld [vmem:[%s3 + $0x58] sm:$0xff]
  %v1683 = vld [vmem:[%s3 + $0x60] sm:$0xff]
  %v1684 = vld [vmem:[%s3 + $0x68] sm:$0xff]
  %v1685 = vld [vmem:[%s3 + $0x70] sm:$0xff]
  %v1686 = vld [vmem:[%s3 + $0x78] sm:$0xff]
  %v1687 = vld [vmem:[%s3 + $0x80] sm:$0xff]
  %v1688 = vld [vmem:[%s3 + $0x88] sm:$0xff]
  %v1689 = vld [vmem:[%s3 + $0x90] sm:$0xff]
  %v1690 = vld [vmem:[%s3 + $0x98] sm:$0xff]
  %v1691 = vld [vmem:[%s3 + $0xa0] sm:$0xff]
  %v1692 = vld [vmem:[%s3 + $0xa8] sm:$0xff]
  %v1693 = vld [vmem:[%s3 + $0xb0] sm:$0xff]
  %v1694 = vld [vmem:[%s3 + $0xb8] sm:$0xff]
  %v1695 = vld [vmem:[%s3 + $0xc0] sm:$0xff]
  %v1696 = vld [vmem:[%s3 + $0xc8] sm:$0xff]
  %v1697 = vld [vmem:[%s3 + $0xd0] sm:$0xff]
  %v1698 = vld [vmem:[%s3 + $0xd8] sm:$0xff]
  %v1699 = vld [vmem:[%s3 + $0xe0] sm:$0xff]
  %v1700 = vld [vmem:[%s3 + $0xe8] sm:$0xff]
  %v1701 = vld [vmem:[%s3 + $0xf0] sm:$0xff]
  %v1702 = vld [vmem:[%s3 + $0xf8] sm:$0xff]
  %v1703 = vld [vmem:[%s3 + $0x100] sm:$0xff]
  %v1704 = vld [vmem:[%s3 + $0x108] sm:$0xff]
  %v1705 = vld [vmem:[%s3 + $0x110] sm:$0xff]
  %v1706 = vld [vmem:[%s3 + $0x118] sm:$0xff]
  %v1707 = vld [vmem:[%s3 + $0x120] sm:$0xff]
  %v1708 = vld [vmem:[%s3 + $0x128] sm:$0xff]
  %v1709 = vld [vmem:[%s3 + $0x130] sm:$0xff]
  %v1710 = vld [vmem:[%s3 + $0x138] sm:$0xff]
  %v1711 = vld [vmem:[%s3 + $0x140] sm:$0xff]
  %v1712 = vld [vmem:[%s3 + $0x148] sm:$0xff]
  %v1713 = vld [vmem:[%s3 + $0x150] sm:$0xff]
  %v1714 = vld [vmem:[%s3 + $0x158] sm:$0xff]
  %v1715 = vld [vmem:[%s3 + $0x160] sm:$0xff]
  %v1716 = vld [vmem:[%s3 + $0x168] sm:$0xff]
  %v1717 = vld [vmem:[%s3 + $0x170] sm:$0xff]
  %v1718 = vld [vmem:[%s3 + $0x178] sm:$0xff]
  %v1719 = vld [vmem:[%s3 + $0x180] sm:$0xff]
  %v1720 = vld [vmem:[%s3 + $0x188] sm:$0xff]
  %v1721 = vld [vmem:[%s3 + $0x190] sm:$0xff]
  %v1722 = vld [vmem:[%s3 + $0x198] sm:$0xff]
  %v1723 = vld [vmem:[%s3 + $0x1a0] sm:$0xff]
  %v1724 = vld [vmem:[%s3 + $0x1a8] sm:$0xff]
  %v1725 = vld [vmem:[%s3 + $0x1b0] sm:$0xff]
  %v1726 = vld [vmem:[%s3 + $0x1b8] sm:$0xff]
  %v1727 = vld [vmem:[%s3 + $0x1c0] sm:$0xff]
  %v1728 = vld [vmem:[%s3 + $0x1c8] sm:$0xff]
  %v1729 = vld [vmem:[%s3 + $0x1d0] sm:$0xff]
  %v1730 = vld [vmem:[%s3 + $0x1d8] sm:$0xff]
  %v1731 = vld [vmem:[%s3 + $0x1e0] sm:$0xff]
  %v1732 = vld [vmem:[%s3 + $0x1e8] sm:$0xff]
  %v1733 = vld [vmem:[%s3 + $0x1f0] sm:$0xff]
  %v1734 = vld [vmem:[%s3 + $0x1f8] sm:$0xff]
  %v1735 = vld [vmem:[%s4] sm:$0x3]
  %v1737 = vlaneseq
  %v1738 = vshrl.u32 %v1737, 7
  %v1739 = vsub.s32 0, %v1738
  %v1740 = vrot.slane %v1735, %v1739
  %v1741 = vlaneseq
  %v1742 = vshrl.u32 %v1741, 7
  %v1743 = vsub.s32 1, %v1742
  %v1744 = vrot.slane %v1735, %v1743
  %1747 = vmatprep.subr.mxu0 %v1702
  %1748 = vmatpush1.msra.mxu0 %v1701
  %1749 = vmatprep.subr.mxu0 %v1700
  %1750 = vmatpush1.msra.mxu0 %v1699
  %1751 = vmatprep.subr.mxu0 %v1698
  %1752 = vmatpush1.msra.mxu0 %v1697
  %1753 = vmatprep.subr.mxu0 %v1696
  %1754 = vmatpush1.msra.mxu0 %v1695
  %1755 = vmatprep.subr.mxu0 %v1694
  %1756 = vmatpush1.msra.mxu0 %v1693
  %1757 = vmatprep.subr.mxu0 %v1692
  %1758 = vmatpush1.msra.mxu0 %v1691
  %1759 = vmatprep.subr.mxu0 %v1690
  %1760 = vmatpush1.msra.mxu0 %v1689
  %1761 = vmatprep.subr.mxu0 %v1688
  %1762 = vmatpush1.msra.mxu0 %v1687
  %1763 = vmatprep.subr.mxu0 %v1686
  %1764 = vmatpush1.msra.mxu0 %v1685
  %1765 = vmatprep.subr.mxu0 %v1684
  %1766 = vmatpush1.msra.mxu0 %v1683
  %1767 = vmatprep.subr.mxu0 %v1682
  %1768 = vmatpush1.msra.mxu0 %v1681
  %1769 = vmatprep.subr.mxu0 %v1680
  %1770 = vmatpush1.msra.mxu0 %v1679
  %1771 = vmatprep.subr.mxu0 %v1678
  %1772 = vmatpush1.msra.mxu0 %v1677
  %1773 = vmatprep.subr.mxu0 %v1676
  %1774 = vmatpush1.msra.mxu0 %v1675
  %1775 = vmatprep.subr.mxu0 %v1674
  %1776 = vmatpush1.msra.mxu0 %v1673
  %1777 = vmatprep.subr.mxu0 %v1672
  %1778 = vmatpush1.msra.mxu0 %v1671
  %1779 = vmatprep.subr.mxu0 %v1734
  %1780 = vmatpush2.msra.mxu0 %v1733
  %1781 = vmatprep.subr.mxu0 %v1732
  %1782 = vmatpush2.msra.mxu0 %v1731
  %1783 = vmatprep.subr.mxu0 %v1730
  %1784 = vmatpush2.msra.mxu0 %v1729
  %1785 = vmatprep.subr.mxu0 %v1728
  %1786 = vmatpush2.msra.mxu0 %v1727
  %1787 = vmatprep.subr.mxu0 %v1726
  %1788 = vmatpush2.msra.mxu0 %v1725
  %1789 = vmatprep.subr.mxu0 %v1724
  %1790 = vmatpush2.msra.mxu0 %v1723
  %1791 = vmatprep.subr.mxu0 %v1722
  %1792 = vmatpush2.msra.mxu0 %v1721
  %1793 = vmatprep.subr.mxu0 %v1720
  %1794 = vmatpush2.msra.mxu0 %v1719
  %1795 = vmatprep.subr.mxu0 %v1718
  %1796 = vmatpush2.msra.mxu0 %v1717
  %1797 = vmatprep.subr.mxu0 %v1716
  %1798 = vmatpush2.msra.mxu0 %v1715
  %1799 = vmatprep.subr.mxu0 %v1714
  %1800 = vmatpush2.msra.mxu0 %v1713
  %1801 = vmatprep.subr.mxu0 %v1712
  %1802 = vmatpush2.msra.mxu0 %v1711
  %1803 = vmatprep.subr.mxu0 %v1710
  %1804 = vmatpush2.msra.mxu0 %v1709
  %1805 = vmatprep.subr.mxu0 %v1708
  %1806 = vmatpush2.msra.mxu0 %v1707
  %1807 = vmatprep.subr.mxu0 %v1706
  %1808 = vmatpush2.msra.mxu0 %v1705
  %1809 = vmatprep.subr.mxu0 %v1704
  %1810 = vmatpush2.msra.mxu0 %v1703
  %1811 = vmatprep.mubr.f32.mxu0 %v1416
  %1812 = vmatmul.mubr.f32.gmra.mxu0 %v1415
  %v1813 = vpop.f32.mrf.mxu0
  %v1814 = vadd.f32 %v1740, %v1813
  %v1815 = vpop.f32.mrf.mxu0
  %v1816 = vadd.f32 %v1744, %v1815
  %1817 = vmatprep.mubr.f32.mxu0 %v1418
  %1818 = vmatmul.mubr.f32.gmra.mxu0 %v1417
  %v1819 = vpop.f32.mrf.mxu0
  %v1820 = vadd.f32 %v1740, %v1819
  %v1821 = vpop.f32.mrf.mxu0
  %v1822 = vadd.f32 %v1744, %v1821
  %1823 = vmatprep.mubr.f32.mxu0 %v1420
  %1824 = vmatmul.mubr.f32.gmra.mxu0 %v1419
  %v1825 = vpop.f32.mrf.mxu0
  %v1826 = vadd.f32 %v1740, %v1825
  %v1827 = vpop.f32.mrf.mxu0
  %v1828 = vadd.f32 %v1744, %v1827
  %1829 = vmatprep.mubr.f32.mxu0 %v1422
  %1830 = vmatmul.mubr.f32.gmra.mxu0 %v1421
  %v1831 = vpop.f32.mrf.mxu0
  %v1832 = vadd.f32 %v1740, %v1831
  %v1833 = vpop.f32.mrf.mxu0
  %v1834 = vadd.f32 %v1744, %v1833
  %1835 = vmatprep.mubr.f32.mxu0 %v1424
  %1836 = vmatmul.mubr.f32.gmra.mxu0 %v1423
  %v1837 = vpop.f32.mrf.mxu0
  %v1838 = vadd.f32 %v1740, %v1837
  %v1839 = vpop.f32.mrf.mxu0
  %v1840 = vadd.f32 %v1744, %v1839
  %1841 = vmatprep.mubr.f32.mxu0 %v1426
  %1842 = vmatmul.mubr.f32.gmra.mxu0 %v1425
  %v1843 = vpop.f32.mrf.mxu0
  %v1844 = vadd.f32 %v1740, %v1843
  %v1845 = vpop.f32.mrf.mxu0
  %v1846 = vadd.f32 %v1744, %v1845
  %1847 = vmatprep.mubr.f32.mxu0 %v1428
  %1848 = vmatmul.mubr.f32.gmra.mxu0 %v1427
  %v1849 = vpop.f32.mrf.mxu0
  %v1850 = vadd.f32 %v1740, %v1849
  %v1851 = vpop.f32.mrf.mxu0
  %v1852 = vadd.f32 %v1744, %v1851
  %1853 = vmatprep.mubr.f32.mxu0 %v1430
  %1854 = vmatmul.mubr.f32.gmra.mxu0 %v1429
  %v1855 = vpop.f32.mrf.mxu0
  %v1856 = vadd.f32 %v1740, %v1855
  %v1857 = vpop.f32.mrf.mxu0
  %v1858 = vadd.f32 %v1744, %v1857
  %1859 = vmatprep.mubr.f32.mxu0 %v1432
  %1860 = vmatmul.mubr.f32.gmra.mxu0 %v1431
  %v1861 = vpop.f32.mrf.mxu0
  %v1862 = vadd.f32 %v1740, %v1861
  %v1863 = vpop.f32.mrf.mxu0
  %v1864 = vadd.f32 %v1744, %v1863
  %1865 = vmatprep.mubr.f32.mxu0 %v1434
  %1866 = vmatmul.mubr.f32.gmra.mxu0 %v1433
  %v1867 = vpop.f32.mrf.mxu0
  %v1868 = vadd.f32 %v1740, %v1867
  %v1869 = vpop.f32.mrf.mxu0
  %v1870 = vadd.f32 %v1744, %v1869
  %1871 = vmatprep.mubr.f32.mxu0 %v1436
  %1872 = vmatmul.mubr.f32.gmra.mxu0 %v1435
  %v1873 = vpop.f32.mrf.mxu0
  %v1874 = vadd.f32 %v1740, %v1873
  %v1875 = vpop.f32.mrf.mxu0
  %v1876 = vadd.f32 %v1744, %v1875
  %1877 = vmatprep.mubr.f32.mxu0 %v1438
  %1878 = vmatmul.mubr.f32.gmra.mxu0 %v1437
  %v1879 = vpop.f32.mrf.mxu0
  %v1880 = vadd.f32 %v1740, %v1879
  %v1881 = vpop.f32.mrf.mxu0
  %v1882 = vadd.f32 %v1744, %v1881
  %1883 = vmatprep.mubr.f32.mxu0 %v1440
  %1884 = vmatmul.mubr.f32.gmra.mxu0 %v1439
  %v1885 = vpop.f32.mrf.mxu0
  %v1886 = vadd.f32 %v1740, %v1885
  %v1887 = vpop.f32.mrf.mxu0
  %v1888 = vadd.f32 %v1744, %v1887
  %1889 = vmatprep.mubr.f32.mxu0 %v1442
  %1890 = vmatmul.mubr.f32.gmra.mxu0 %v1441
  %v1891 = vpop.f32.mrf.mxu0
  %v1892 = vadd.f32 %v1740, %v1891
  %v1893 = vpop.f32.mrf.mxu0
  %v1894 = vadd.f32 %v1744, %v1893
  %1895 = vmatprep.mubr.f32.mxu0 %v1444
  %1896 = vmatmul.mubr.f32.gmra.mxu0 %v1443
  %v1897 = vpop.f32.mrf.mxu0
  %v1898 = vadd.f32 %v1740, %v1897
  %v1899 = vpop.f32.mrf.mxu0
  %v1900 = vadd.f32 %v1744, %v1899
  %1901 = vmatprep.mubr.f32.mxu0 %v1446
  %1902 = vmatmul.mubr.f32.gmra.mxu0 %v1445
  %v1903 = vpop.f32.mrf.mxu0
  %v1904 = vadd.f32 %v1740, %v1903
  %v1905 = vpop.f32.mrf.mxu0
  %v1906 = vadd.f32 %v1744, %v1905
  %1907 = vmatprep.mubr.f32.mxu0 %v1448
  %1908 = vmatmul.mubr.f32.gmra.mxu0 %v1447
  %v1909 = vpop.f32.mrf.mxu0
  %v1910 = vadd.f32 %v1740, %v1909
  %v1911 = vpop.f32.mrf.mxu0
  %v1912 = vadd.f32 %v1744, %v1911
  %1913 = vmatprep.mubr.f32.mxu0 %v1450
  %1914 = vmatmul.mubr.f32.gmra.mxu0 %v1449
  %v1915 = vpop.f32.mrf.mxu0
  %v1916 = vadd.f32 %v1740, %v1915
  %v1917 = vpop.f32.mrf.mxu0
  %v1918 = vadd.f32 %v1744, %v1917
  %1919 = vmatprep.mubr.f32.mxu0 %v1452
  %1920 = vmatmul.mubr.f32.gmra.mxu0 %v1451
  %v1921 = vpop.f32.mrf.mxu0
  %v1922 = vadd.f32 %v1740, %v1921
  %v1923 = vpop.f32.mrf.mxu0
  %v1924 = vadd.f32 %v1744, %v1923
  %1925 = vmatprep.mubr.f32.mxu0 %v1454
  %1926 = vmatmul.mubr.f32.gmra.mxu0 %v1453
  %v1927 = vpop.f32.mrf.mxu0
  %v1928 = vadd.f32 %v1740, %v1927
  %v1929 = vpop.f32.mrf.mxu0
  %v1930 = vadd.f32 %v1744, %v1929
  %1931 = vmatprep.mubr.f32.mxu0 %v1456
  %1932 = vmatmul.mubr.f32.gmra.mxu0 %v1455
  %v1933 = vpop.f32.mrf.mxu0
  %v1934 = vadd.f32 %v1740, %v1933
  %v1935 = vpop.f32.mrf.mxu0
  %v1936 = vadd.f32 %v1744, %v1935
  %1937 = vmatprep.mubr.f32.mxu0 %v1458
  %1938 = vmatmul.mubr.f32.gmra.mxu0 %v1457
  %v1939 = vpop.f32.mrf.mxu0
  %v1940 = vadd.f32 %v1740, %v1939
  %v1941 = vpop.f32.mrf.mxu0
  %v1942 = vadd.f32 %v1744, %v1941
  %1943 = vmatprep.mubr.f32.mxu0 %v1460
  %1944 = vmatmul.mubr.f32.gmra.mxu0 %v1459
  %v1945 = vpop.f32.mrf.mxu0
  %v1946 = vadd.f32 %v1740, %v1945
  %v1947 = vpop.f32.mrf.mxu0
  %v1948 = vadd.f32 %v1744, %v1947
  %1949 = vmatprep.mubr.f32.mxu0 %v1462
  %1950 = vmatmul.mubr.f32.gmra.mxu0 %v1461
  %v1951 = vpop.f32.mrf.mxu0
  %v1952 = vadd.f32 %v1740, %v1951
  %v1953 = vpop.f32.mrf.mxu0
  %v1954 = vadd.f32 %v1744, %v1953
  %1955 = vmatprep.mubr.f32.mxu0 %v1464
  %1956 = vmatmul.mubr.f32.gmra.mxu0 %v1463
  %v1957 = vpop.f32.mrf.mxu0
  %v1958 = vadd.f32 %v1740, %v1957
  %v1959 = vpop.f32.mrf.mxu0
  %v1960 = vadd.f32 %v1744, %v1959
  %1961 = vmatprep.mubr.f32.mxu0 %v1466
  %1962 = vmatmul.mubr.f32.gmra.mxu0 %v1465
  %v1963 = vpop.f32.mrf.mxu0
  %v1964 = vadd.f32 %v1740, %v1963
  %v1965 = vpop.f32.mrf.mxu0
  %v1966 = vadd.f32 %v1744, %v1965
  %1967 = vmatprep.mubr.f32.mxu0 %v1468
  %1968 = vmatmul.mubr.f32.gmra.mxu0 %v1467
  %v1969 = vpop.f32.mrf.mxu0
  %v1970 = vadd.f32 %v1740, %v1969
  %v1971 = vpop.f32.mrf.mxu0
  %v1972 = vadd.f32 %v1744, %v1971
  %1973 = vmatprep.mubr.f32.mxu0 %v1470
  %1974 = vmatmul.mubr.f32.gmra.mxu0 %v1469
  %v1975 = vpop.f32.mrf.mxu0
  %v1976 = vadd.f32 %v1740, %v1975
  %v1977 = vpop.f32.mrf.mxu0
  %v1978 = vadd.f32 %v1744, %v1977
  %1979 = vmatprep.mubr.f32.mxu0 %v1472
  %1980 = vmatmul.mubr.f32.gmra.mxu0 %v1471
  %v1981 = vpop.f32.mrf.mxu0
  %v1982 = vadd.f32 %v1740, %v1981
  %v1983 = vpop.f32.mrf.mxu0
  %v1984 = vadd.f32 %v1744, %v1983
  %1985 = vmatprep.mubr.f32.mxu0 %v1474
  %1986 = vmatmul.mubr.f32.gmra.mxu0 %v1473
  %v1987 = vpop.f32.mrf.mxu0
  %v1988 = vadd.f32 %v1740, %v1987
  %v1989 = vpop.f32.mrf.mxu0
  %v1990 = vadd.f32 %v1744, %v1989
  %1991 = vmatprep.mubr.f32.mxu0 %v1476
  %1992 = vmatmul.mubr.f32.gmra.mxu0 %v1475
  %v1993 = vpop.f32.mrf.mxu0
  %v1994 = vadd.f32 %v1740, %v1993
  %v1995 = vpop.f32.mrf.mxu0
  %v1996 = vadd.f32 %v1744, %v1995
  %1997 = vmatprep.mubr.f32.mxu0 %v1478
  %1998 = vmatmul.mubr.f32.gmra.mxu0 %v1477
  %v1999 = vpop.f32.mrf.mxu0
  %v2000 = vadd.f32 %v1740, %v1999
  %v2001 = vpop.f32.mrf.mxu0
  %v2002 = vadd.f32 %v1744, %v2001
  %2003 = vmatprep.mubr.f32.mxu0 %v1480
  %2004 = vmatmul.mubr.f32.gmra.mxu0 %v1479
  %v2005 = vpop.f32.mrf.mxu0
  %v2006 = vadd.f32 %v1740, %v2005
  %v2007 = vpop.f32.mrf.mxu0
  %v2008 = vadd.f32 %v1744, %v2007
  %2009 = vmatprep.mubr.f32.mxu0 %v1482
  %2010 = vmatmul.mubr.f32.gmra.mxu0 %v1481
  %v2011 = vpop.f32.mrf.mxu0
  %v2012 = vadd.f32 %v1740, %v2011
  %v2013 = vpop.f32.mrf.mxu0
  %v2014 = vadd.f32 %v1744, %v2013
  %2015 = vmatprep.mubr.f32.mxu0 %v1484
  %2016 = vmatmul.mubr.f32.gmra.mxu0 %v1483
  %v2017 = vpop.f32.mrf.mxu0
  %v2018 = vadd.f32 %v1740, %v2017
  %v2019 = vpop.f32.mrf.mxu0
  %v2020 = vadd.f32 %v1744, %v2019
  %2021 = vmatprep.mubr.f32.mxu0 %v1486
  %2022 = vmatmul.mubr.f32.gmra.mxu0 %v1485
  %v2023 = vpop.f32.mrf.mxu0
  %v2024 = vadd.f32 %v1740, %v2023
  %v2025 = vpop.f32.mrf.mxu0
  %v2026 = vadd.f32 %v1744, %v2025
  %2027 = vmatprep.mubr.f32.mxu0 %v1488
  %2028 = vmatmul.mubr.f32.gmra.mxu0 %v1487
  %v2029 = vpop.f32.mrf.mxu0
  %v2030 = vadd.f32 %v1740, %v2029
  %v2031 = vpop.f32.mrf.mxu0
  %v2032 = vadd.f32 %v1744, %v2031
  %2033 = vmatprep.mubr.f32.mxu0 %v1490
  %2034 = vmatmul.mubr.f32.gmra.mxu0 %v1489
  %v2035 = vpop.f32.mrf.mxu0
  %v2036 = vadd.f32 %v1740, %v2035
  %v2037 = vpop.f32.mrf.mxu0
  %v2038 = vadd.f32 %v1744, %v2037
  %2039 = vmatprep.mubr.f32.mxu0 %v1492
  %2040 = vmatmul.mubr.f32.gmra.mxu0 %v1491
  %v2041 = vpop.f32.mrf.mxu0
  %v2042 = vadd.f32 %v1740, %v2041
  %v2043 = vpop.f32.mrf.mxu0
  %v2044 = vadd.f32 %v1744, %v2043
  %2045 = vmatprep.mubr.f32.mxu0 %v1494
  %2046 = vmatmul.mubr.f32.gmra.mxu0 %v1493
  %v2047 = vpop.f32.mrf.mxu0
  %v2048 = vadd.f32 %v1740, %v2047
  %v2049 = vpop.f32.mrf.mxu0
  %v2050 = vadd.f32 %v1744, %v2049
  %2051 = vmatprep.mubr.f32.mxu0 %v1496
  %2052 = vmatmul.mubr.f32.gmra.mxu0 %v1495
  %v2053 = vpop.f32.mrf.mxu0
  %v2054 = vadd.f32 %v1740, %v2053
  %v2055 = vpop.f32.mrf.mxu0
  %v2056 = vadd.f32 %v1744, %v2055
  %2057 = vmatprep.mubr.f32.mxu0 %v1498
  %2058 = vmatmul.mubr.f32.gmra.mxu0 %v1497
  %v2059 = vpop.f32.mrf.mxu0
  %v2060 = vadd.f32 %v1740, %v2059
  %v2061 = vpop.f32.mrf.mxu0
  %v2062 = vadd.f32 %v1744, %v2061
  %2063 = vmatprep.mubr.f32.mxu0 %v1500
  %2064 = vmatmul.mubr.f32.gmra.mxu0 %v1499
  %v2065 = vpop.f32.mrf.mxu0
  %v2066 = vadd.f32 %v1740, %v2065
  %v2067 = vpop.f32.mrf.mxu0
  %v2068 = vadd.f32 %v1744, %v2067
  %2069 = vmatprep.mubr.f32.mxu0 %v1502
  %2070 = vmatmul.mubr.f32.gmra.mxu0 %v1501
  %v2071 = vpop.f32.mrf.mxu0
  %v2072 = vadd.f32 %v1740, %v2071
  %v2073 = vpop.f32.mrf.mxu0
  %v2074 = vadd.f32 %v1744, %v2073
  %2075 = vmatprep.mubr.f32.mxu0 %v1504
  %2076 = vmatmul.mubr.f32.gmra.mxu0 %v1503
  %v2077 = vpop.f32.mrf.mxu0
  %v2078 = vadd.f32 %v1740, %v2077
  %v2079 = vpop.f32.mrf.mxu0
  %v2080 = vadd.f32 %v1744, %v2079
  %2081 = vmatprep.mubr.f32.mxu0 %v1506
  %2082 = vmatmul.mubr.f32.gmra.mxu0 %v1505
  %v2083 = vpop.f32.mrf.mxu0
  %v2084 = vadd.f32 %v1740, %v2083
  %v2085 = vpop.f32.mrf.mxu0
  %v2086 = vadd.f32 %v1744, %v2085
  %2087 = vmatprep.mubr.f32.mxu0 %v1508
  %2088 = vmatmul.mubr.f32.gmra.mxu0 %v1507
  %v2089 = vpop.f32.mrf.mxu0
  %v2090 = vadd.f32 %v1740, %v2089
  %v2091 = vpop.f32.mrf.mxu0
  %v2092 = vadd.f32 %v1744, %v2091
  %2093 = vmatprep.mubr.f32.mxu0 %v1510
  %2094 = vmatmul.mubr.f32.gmra.mxu0 %v1509
  %v2095 = vpop.f32.mrf.mxu0
  %v2096 = vadd.f32 %v1740, %v2095
  %v2097 = vpop.f32.mrf.mxu0
  %v2098 = vadd.f32 %v1744, %v2097
  %2099 = vmatprep.mubr.f32.mxu0 %v1512
  %2100 = vmatmul.mubr.f32.gmra.mxu0 %v1511
  %v2101 = vpop.f32.mrf.mxu0
  %v2102 = vadd.f32 %v1740, %v2101
  %v2103 = vpop.f32.mrf.mxu0
  %v2104 = vadd.f32 %v1744, %v2103
  %2105 = vmatprep.mubr.f32.mxu0 %v1514
  %2106 = vmatmul.mubr.f32.gmra.mxu0 %v1513
  %v2107 = vpop.f32.mrf.mxu0
  %v2108 = vadd.f32 %v1740, %v2107
  %v2109 = vpop.f32.mrf.mxu0
  %v2110 = vadd.f32 %v1744, %v2109
  %2111 = vmatprep.mubr.f32.mxu0 %v1516
  %2112 = vmatmul.mubr.f32.gmra.mxu0 %v1515
  %v2113 = vpop.f32.mrf.mxu0
  %v2114 = vadd.f32 %v1740, %v2113
  %v2115 = vpop.f32.mrf.mxu0
  %v2116 = vadd.f32 %v1744, %v2115
  %2117 = vmatprep.mubr.f32.mxu0 %v1518
  %2118 = vmatmul.mubr.f32.gmra.mxu0 %v1517
  %v2119 = vpop.f32.mrf.mxu0
  %v2120 = vadd.f32 %v1740, %v2119
  %v2121 = vpop.f32.mrf.mxu0
  %v2122 = vadd.f32 %v1744, %v2121
  %2123 = vmatprep.mubr.f32.mxu0 %v1520
  %2124 = vmatmul.mubr.f32.gmra.mxu0 %v1519
  %v2125 = vpop.f32.mrf.mxu0
  %v2126 = vadd.f32 %v1740, %v2125
  %v2127 = vpop.f32.mrf.mxu0
  %v2128 = vadd.f32 %v1744, %v2127
  %2129 = vmatprep.mubr.f32.mxu0 %v1522
  %2130 = vmatmul.mubr.f32.gmra.mxu0 %v1521
  %v2131 = vpop.f32.mrf.mxu0
  %v2132 = vadd.f32 %v1740, %v2131
  %v2133 = vpop.f32.mrf.mxu0
  %v2134 = vadd.f32 %v1744, %v2133
  %2135 = vmatprep.mubr.f32.mxu0 %v1524
  %2136 = vmatmul.mubr.f32.gmra.mxu0 %v1523
  %v2137 = vpop.f32.mrf.mxu0
  %v2138 = vadd.f32 %v1740, %v2137
  %v2139 = vpop.f32.mrf.mxu0
  %v2140 = vadd.f32 %v1744, %v2139
  %2141 = vmatprep.mubr.f32.mxu0 %v1526
  %2142 = vmatmul.mubr.f32.gmra.mxu0 %v1525
  %v2143 = vpop.f32.mrf.mxu0
  %v2144 = vadd.f32 %v1740, %v2143
  %v2145 = vpop.f32.mrf.mxu0
  %v2146 = vadd.f32 %v1744, %v2145
  %2147 = vmatprep.mubr.f32.mxu0 %v1528
  %2148 = vmatmul.mubr.f32.gmra.mxu0 %v1527
  %v2149 = vpop.f32.mrf.mxu0
  %v2150 = vadd.f32 %v1740, %v2149
  %v2151 = vpop.f32.mrf.mxu0
  %v2152 = vadd.f32 %v1744, %v2151
  %2153 = vmatprep.mubr.f32.mxu0 %v1530
  %2154 = vmatmul.mubr.f32.gmra.mxu0 %v1529
  %v2155 = vpop.f32.mrf.mxu0
  %v2156 = vadd.f32 %v1740, %v2155
  %v2157 = vpop.f32.mrf.mxu0
  %v2158 = vadd.f32 %v1744, %v2157
  %2159 = vmatprep.mubr.f32.mxu0 %v1532
  %2160 = vmatmul.mubr.f32.gmra.mxu0 %v1531
  %v2161 = vpop.f32.mrf.mxu0
  %v2162 = vadd.f32 %v1740, %v2161
  %v2163 = vpop.f32.mrf.mxu0
  %v2164 = vadd.f32 %v1744, %v2163
  %2165 = vmatprep.mubr.f32.mxu0 %v1534
  %2166 = vmatmul.mubr.f32.gmra.mxu0 %v1533
  %v2167 = vpop.f32.mrf.mxu0
  %v2168 = vadd.f32 %v1740, %v2167
  %v2169 = vpop.f32.mrf.mxu0
  %v2170 = vadd.f32 %v1744, %v2169
  %2171 = vmatprep.mubr.f32.mxu0 %v1536
  %2172 = vmatmul.mubr.f32.gmra.mxu0 %v1535
  %v2173 = vpop.f32.mrf.mxu0
  %v2174 = vadd.f32 %v1740, %v2173
  %v2175 = vpop.f32.mrf.mxu0
  %v2176 = vadd.f32 %v1744, %v2175
  %2177 = vmatprep.mubr.f32.mxu0 %v1538
  %2178 = vmatmul.mubr.f32.gmra.mxu0 %v1537
  %v2179 = vpop.f32.mrf.mxu0
  %v2180 = vadd.f32 %v1740, %v2179
  %v2181 = vpop.f32.mrf.mxu0
  %v2182 = vadd.f32 %v1744, %v2181
  %2183 = vmatprep.mubr.f32.mxu0 %v1540
  %2184 = vmatmul.mubr.f32.gmra.mxu0 %v1539
  %v2185 = vpop.f32.mrf.mxu0
  %v2186 = vadd.f32 %v1740, %v2185
  %v2187 = vpop.f32.mrf.mxu0
  %v2188 = vadd.f32 %v1744, %v2187
  %2189 = vmatprep.mubr.f32.mxu0 %v1542
  %2190 = vmatmul.mubr.f32.gmra.mxu0 %v1541
  %v2191 = vpop.f32.mrf.mxu0
  %v2192 = vadd.f32 %v1740, %v2191
  %v2193 = vpop.f32.mrf.mxu0
  %v2194 = vadd.f32 %v1744, %v2193
  %2195 = vmatprep.mubr.f32.mxu0 %v1544
  %2196 = vmatmul.mubr.f32.gmra.mxu0 %v1543
  %v2197 = vpop.f32.mrf.mxu0
  %v2198 = vadd.f32 %v1740, %v2197
  %v2199 = vpop.f32.mrf.mxu0
  %v2200 = vadd.f32 %v1744, %v2199
  %2201 = vmatprep.mubr.f32.mxu0 %v1546
  %2202 = vmatmul.mubr.f32.gmra.mxu0 %v1545
  %v2203 = vpop.f32.mrf.mxu0
  %v2204 = vadd.f32 %v1740, %v2203
  %v2205 = vpop.f32.mrf.mxu0
  %v2206 = vadd.f32 %v1744, %v2205
  %2207 = vmatprep.mubr.f32.mxu0 %v1548
  %2208 = vmatmul.mubr.f32.gmra.mxu0 %v1547
  %v2209 = vpop.f32.mrf.mxu0
  %v2210 = vadd.f32 %v1740, %v2209
  %v2211 = vpop.f32.mrf.mxu0
  %v2212 = vadd.f32 %v1744, %v2211
  %2213 = vmatprep.mubr.f32.mxu0 %v1550
  %2214 = vmatmul.mubr.f32.gmra.mxu0 %v1549
  %v2215 = vpop.f32.mrf.mxu0
  %v2216 = vadd.f32 %v1740, %v2215
  %v2217 = vpop.f32.mrf.mxu0
  %v2218 = vadd.f32 %v1744, %v2217
  %2219 = vmatprep.mubr.f32.mxu0 %v1552
  %2220 = vmatmul.mubr.f32.gmra.mxu0 %v1551
  %v2221 = vpop.f32.mrf.mxu0
  %v2222 = vadd.f32 %v1740, %v2221
  %v2223 = vpop.f32.mrf.mxu0
  %v2224 = vadd.f32 %v1744, %v2223
  %2225 = vmatprep.mubr.f32.mxu0 %v1554
  %2226 = vmatmul.mubr.f32.gmra.mxu0 %v1553
  %v2227 = vpop.f32.mrf.mxu0
  %v2228 = vadd.f32 %v1740, %v2227
  %v2229 = vpop.f32.mrf.mxu0
  %v2230 = vadd.f32 %v1744, %v2229
  %2231 = vmatprep.mubr.f32.mxu0 %v1556
  %2232 = vmatmul.mubr.f32.gmra.mxu0 %v1555
  %v2233 = vpop.f32.mrf.mxu0
  %v2234 = vadd.f32 %v1740, %v2233
  %v2235 = vpop.f32.mrf.mxu0
  %v2236 = vadd.f32 %v1744, %v2235
  %2237 = vmatprep.mubr.f32.mxu0 %v1558
  %2238 = vmatmul.mubr.f32.gmra.mxu0 %v1557
  %v2239 = vpop.f32.mrf.mxu0
  %v2240 = vadd.f32 %v1740, %v2239
  %v2241 = vpop.f32.mrf.mxu0
  %v2242 = vadd.f32 %v1744, %v2241
  %2243 = vmatprep.mubr.f32.mxu0 %v1560
  %2244 = vmatmul.mubr.f32.gmra.mxu0 %v1559
  %v2245 = vpop.f32.mrf.mxu0
  %v2246 = vadd.f32 %v1740, %v2245
  %v2247 = vpop.f32.mrf.mxu0
  %v2248 = vadd.f32 %v1744, %v2247
  %2249 = vmatprep.mubr.f32.mxu0 %v1562
  %2250 = vmatmul.mubr.f32.gmra.mxu0 %v1561
  %v2251 = vpop.f32.mrf.mxu0
  %v2252 = vadd.f32 %v1740, %v2251
  %v2253 = vpop.f32.mrf.mxu0
  %v2254 = vadd.f32 %v1744, %v2253
  %2255 = vmatprep.mubr.f32.mxu0 %v1564
  %2256 = vmatmul.mubr.f32.gmra.mxu0 %v1563
  %v2257 = vpop.f32.mrf.mxu0
  %v2258 = vadd.f32 %v1740, %v2257
  %v2259 = vpop.f32.mrf.mxu0
  %v2260 = vadd.f32 %v1744, %v2259
  %2261 = vmatprep.mubr.f32.mxu0 %v1566
  %2262 = vmatmul.mubr.f32.gmra.mxu0 %v1565
  %v2263 = vpop.f32.mrf.mxu0
  %v2264 = vadd.f32 %v1740, %v2263
  %v2265 = vpop.f32.mrf.mxu0
  %v2266 = vadd.f32 %v1744, %v2265
  %2267 = vmatprep.mubr.f32.mxu0 %v1568
  %2268 = vmatmul.mubr.f32.gmra.mxu0 %v1567
  %v2269 = vpop.f32.mrf.mxu0
  %v2270 = vadd.f32 %v1740, %v2269
  %v2271 = vpop.f32.mrf.mxu0
  %v2272 = vadd.f32 %v1744, %v2271
  %2273 = vmatprep.mubr.f32.mxu0 %v1570
  %2274 = vmatmul.mubr.f32.gmra.mxu0 %v1569
  %v2275 = vpop.f32.mrf.mxu0
  %v2276 = vadd.f32 %v1740, %v2275
  %v2277 = vpop.f32.mrf.mxu0
  %v2278 = vadd.f32 %v1744, %v2277
  %2279 = vmatprep.mubr.f32.mxu0 %v1572
  %2280 = vmatmul.mubr.f32.gmra.mxu0 %v1571
  %v2281 = vpop.f32.mrf.mxu0
  %v2282 = vadd.f32 %v1740, %v2281
  %v2283 = vpop.f32.mrf.mxu0
  %v2284 = vadd.f32 %v1744, %v2283
  %2285 = vmatprep.mubr.f32.mxu0 %v1574
  %2286 = vmatmul.mubr.f32.gmra.mxu0 %v1573
  %v2287 = vpop.f32.mrf.mxu0
  %v2288 = vadd.f32 %v1740, %v2287
  %v2289 = vpop.f32.mrf.mxu0
  %v2290 = vadd.f32 %v1744, %v2289
  %2291 = vmatprep.mubr.f32.mxu0 %v1576
  %2292 = vmatmul.mubr.f32.gmra.mxu0 %v1575
  %v2293 = vpop.f32.mrf.mxu0
  %v2294 = vadd.f32 %v1740, %v2293
  %v2295 = vpop.f32.mrf.mxu0
  %v2296 = vadd.f32 %v1744, %v2295
  %2297 = vmatprep.mubr.f32.mxu0 %v1578
  %2298 = vmatmul.mubr.f32.gmra.mxu0 %v1577
  %v2299 = vpop.f32.mrf.mxu0
  %v2300 = vadd.f32 %v1740, %v2299
  %v2301 = vpop.f32.mrf.mxu0
  %v2302 = vadd.f32 %v1744, %v2301
  %2303 = vmatprep.mubr.f32.mxu0 %v1580
  %2304 = vmatmul.mubr.f32.gmra.mxu0 %v1579
  %v2305 = vpop.f32.mrf.mxu0
  %v2306 = vadd.f32 %v1740, %v2305
  %v2307 = vpop.f32.mrf.mxu0
  %v2308 = vadd.f32 %v1744, %v2307
  %2309 = vmatprep.mubr.f32.mxu0 %v1582
  %2310 = vmatmul.mubr.f32.gmra.mxu0 %v1581
  %v2311 = vpop.f32.mrf.mxu0
  %v2312 = vadd.f32 %v1740, %v2311
  %v2313 = vpop.f32.mrf.mxu0
  %v2314 = vadd.f32 %v1744, %v2313
  %2315 = vmatprep.mubr.f32.mxu0 %v1584
  %2316 = vmatmul.mubr.f32.gmra.mxu0 %v1583
  %v2317 = vpop.f32.mrf.mxu0
  %v2318 = vadd.f32 %v1740, %v2317
  %v2319 = vpop.f32.mrf.mxu0
  %v2320 = vadd.f32 %v1744, %v2319
  %2321 = vmatprep.mubr.f32.mxu0 %v1586
  %2322 = vmatmul.mubr.f32.gmra.mxu0 %v1585
  %v2323 = vpop.f32.mrf.mxu0
  %v2324 = vadd.f32 %v1740, %v2323
  %v2325 = vpop.f32.mrf.mxu0
  %v2326 = vadd.f32 %v1744, %v2325
  %2327 = vmatprep.mubr.f32.mxu0 %v1588
  %2328 = vmatmul.mubr.f32.gmra.mxu0 %v1587
  %v2329 = vpop.f32.mrf.mxu0
  %v2330 = vadd.f32 %v1740, %v2329
  %v2331 = vpop.f32.mrf.mxu0
  %v2332 = vadd.f32 %v1744, %v2331
  %2333 = vmatprep.mubr.f32.mxu0 %v1590
  %2334 = vmatmul.mubr.f32.gmra.mxu0 %v1589
  %v2335 = vpop.f32.mrf.mxu0
  %v2336 = vadd.f32 %v1740, %v2335
  %v2337 = vpop.f32.mrf.mxu0
  %v2338 = vadd.f32 %v1744, %v2337
  %2339 = vmatprep.mubr.f32.mxu0 %v1592
  %2340 = vmatmul.mubr.f32.gmra.mxu0 %v1591
  %v2341 = vpop.f32.mrf.mxu0
  %v2342 = vadd.f32 %v1740, %v2341
  %v2343 = vpop.f32.mrf.mxu0
  %v2344 = vadd.f32 %v1744, %v2343
  %2345 = vmatprep.mubr.f32.mxu0 %v1594
  %2346 = vmatmul.mubr.f32.gmra.mxu0 %v1593
  %v2347 = vpop.f32.mrf.mxu0
  %v2348 = vadd.f32 %v1740, %v2347
  %v2349 = vpop.f32.mrf.mxu0
  %v2350 = vadd.f32 %v1744, %v2349
  %2351 = vmatprep.mubr.f32.mxu0 %v1596
  %2352 = vmatmul.mubr.f32.gmra.mxu0 %v1595
  %v2353 = vpop.f32.mrf.mxu0
  %v2354 = vadd.f32 %v1740, %v2353
  %v2355 = vpop.f32.mrf.mxu0
  %v2356 = vadd.f32 %v1744, %v2355
  %2357 = vmatprep.mubr.f32.mxu0 %v1598
  %2358 = vmatmul.mubr.f32.gmra.mxu0 %v1597
  %v2359 = vpop.f32.mrf.mxu0
  %v2360 = vadd.f32 %v1740, %v2359
  %v2361 = vpop.f32.mrf.mxu0
  %v2362 = vadd.f32 %v1744, %v2361
  %2363 = vmatprep.mubr.f32.mxu0 %v1600
  %2364 = vmatmul.mubr.f32.gmra.mxu0 %v1599
  %v2365 = vpop.f32.mrf.mxu0
  %v2366 = vadd.f32 %v1740, %v2365
  %v2367 = vpop.f32.mrf.mxu0
  %v2368 = vadd.f32 %v1744, %v2367
  %2369 = vmatprep.mubr.f32.mxu0 %v1602
  %2370 = vmatmul.mubr.f32.gmra.mxu0 %v1601
  %v2371 = vpop.f32.mrf.mxu0
  %v2372 = vadd.f32 %v1740, %v2371
  %v2373 = vpop.f32.mrf.mxu0
  %v2374 = vadd.f32 %v1744, %v2373
  %2375 = vmatprep.mubr.f32.mxu0 %v1604
  %2376 = vmatmul.mubr.f32.gmra.mxu0 %v1603
  %v2377 = vpop.f32.mrf.mxu0
  %v2378 = vadd.f32 %v1740, %v2377
  %v2379 = vpop.f32.mrf.mxu0
  %v2380 = vadd.f32 %v1744, %v2379
  %2381 = vmatprep.mubr.f32.mxu0 %v1606
  %2382 = vmatmul.mubr.f32.gmra.mxu0 %v1605
  %v2383 = vpop.f32.mrf.mxu0
  %v2384 = vadd.f32 %v1740, %v2383
  %v2385 = vpop.f32.mrf.mxu0
  %v2386 = vadd.f32 %v1744, %v2385
  %2387 = vmatprep.mubr.f32.mxu0 %v1608
  %2388 = vmatmul.mubr.f32.gmra.mxu0 %v1607
  %v2389 = vpop.f32.mrf.mxu0
  %v2390 = vadd.f32 %v1740, %v2389
  %v2391 = vpop.f32.mrf.mxu0
  %v2392 = vadd.f32 %v1744, %v2391
  %2393 = vmatprep.mubr.f32.mxu0 %v1610
  %2394 = vmatmul.mubr.f32.gmra.mxu0 %v1609
  %v2395 = vpop.f32.mrf.mxu0
  %v2396 = vadd.f32 %v1740, %v2395
  %v2397 = vpop.f32.mrf.mxu0
  %v2398 = vadd.f32 %v1744, %v2397
  %2399 = vmatprep.mubr.f32.mxu0 %v1612
  %2400 = vmatmul.mubr.f32.gmra.mxu0 %v1611
  %v2401 = vpop.f32.mrf.mxu0
  %v2402 = vadd.f32 %v1740, %v2401
  %v2403 = vpop.f32.mrf.mxu0
  %v2404 = vadd.f32 %v1744, %v2403
  %2405 = vmatprep.mubr.f32.mxu0 %v1614
  %2406 = vmatmul.mubr.f32.gmra.mxu0 %v1613
  %v2407 = vpop.f32.mrf.mxu0
  %v2408 = vadd.f32 %v1740, %v2407
  %v2409 = vpop.f32.mrf.mxu0
  %v2410 = vadd.f32 %v1744, %v2409
  %2411 = vmatprep.mubr.f32.mxu0 %v1616
  %2412 = vmatmul.mubr.f32.gmra.mxu0 %v1615
  %v2413 = vpop.f32.mrf.mxu0
  %v2414 = vadd.f32 %v1740, %v2413
  %v2415 = vpop.f32.mrf.mxu0
  %v2416 = vadd.f32 %v1744, %v2415
  %2417 = vmatprep.mubr.f32.mxu0 %v1618
  %2418 = vmatmul.mubr.f32.gmra.mxu0 %v1617
  %v2419 = vpop.f32.mrf.mxu0
  %v2420 = vadd.f32 %v1740, %v2419
  %v2421 = vpop.f32.mrf.mxu0
  %v2422 = vadd.f32 %v1744, %v2421
  %2423 = vmatprep.mubr.f32.mxu0 %v1620
  %2424 = vmatmul.mubr.f32.gmra.mxu0 %v1619
  %v2425 = vpop.f32.mrf.mxu0
  %v2426 = vadd.f32 %v1740, %v2425
  %v2427 = vpop.f32.mrf.mxu0
  %v2428 = vadd.f32 %v1744, %v2427
  %2429 = vmatprep.mubr.f32.mxu0 %v1622
  %2430 = vmatmul.mubr.f32.gmra.mxu0 %v1621
  %v2431 = vpop.f32.mrf.mxu0
  %v2432 = vadd.f32 %v1740, %v2431
  %v2433 = vpop.f32.mrf.mxu0
  %v2434 = vadd.f32 %v1744, %v2433
  %2435 = vmatprep.mubr.f32.mxu0 %v1624
  %2436 = vmatmul.mubr.f32.gmra.mxu0 %v1623
  %v2437 = vpop.f32.mrf.mxu0
  %v2438 = vadd.f32 %v1740, %v2437
  %v2439 = vpop.f32.mrf.mxu0
  %v2440 = vadd.f32 %v1744, %v2439
  %2441 = vmatprep.mubr.f32.mxu0 %v1626
  %2442 = vmatmul.mubr.f32.gmra.mxu0 %v1625
  %v2443 = vpop.f32.mrf.mxu0
  %v2444 = vadd.f32 %v1740, %v2443
  %v2445 = vpop.f32.mrf.mxu0
  %v2446 = vadd.f32 %v1744, %v2445
  %2447 = vmatprep.mubr.f32.mxu0 %v1628
  %2448 = vmatmul.mubr.f32.gmra.mxu0 %v1627
  %v2449 = vpop.f32.mrf.mxu0
  %v2450 = vadd.f32 %v1740, %v2449
  %v2451 = vpop.f32.mrf.mxu0
  %v2452 = vadd.f32 %v1744, %v2451
  %2453 = vmatprep.mubr.f32.mxu0 %v1630
  %2454 = vmatmul.mubr.f32.gmra.mxu0 %v1629
  %v2455 = vpop.f32.mrf.mxu0
  %v2456 = vadd.f32 %v1740, %v2455
  %v2457 = vpop.f32.mrf.mxu0
  %v2458 = vadd.f32 %v1744, %v2457
  %2459 = vmatprep.mubr.f32.mxu0 %v1632
  %2460 = vmatmul.mubr.f32.gmra.mxu0 %v1631
  %v2461 = vpop.f32.mrf.mxu0
  %v2462 = vadd.f32 %v1740, %v2461
  %v2463 = vpop.f32.mrf.mxu0
  %v2464 = vadd.f32 %v1744, %v2463
  %2465 = vmatprep.mubr.f32.mxu0 %v1634
  %2466 = vmatmul.mubr.f32.gmra.mxu0 %v1633
  %v2467 = vpop.f32.mrf.mxu0
  %v2468 = vadd.f32 %v1740, %v2467
  %v2469 = vpop.f32.mrf.mxu0
  %v2470 = vadd.f32 %v1744, %v2469
  %2471 = vmatprep.mubr.f32.mxu0 %v1636
  %2472 = vmatmul.mubr.f32.gmra.mxu0 %v1635
  %v2473 = vpop.f32.mrf.mxu0
  %v2474 = vadd.f32 %v1740, %v2473
  %v2475 = vpop.f32.mrf.mxu0
  %v2476 = vadd.f32 %v1744, %v2475
  %2477 = vmatprep.mubr.f32.mxu0 %v1638
  %2478 = vmatmul.mubr.f32.gmra.mxu0 %v1637
  %v2479 = vpop.f32.mrf.mxu0
  %v2480 = vadd.f32 %v1740, %v2479
  %v2481 = vpop.f32.mrf.mxu0
  %v2482 = vadd.f32 %v1744, %v2481
  %2483 = vmatprep.mubr.f32.mxu0 %v1640
  %2484 = vmatmul.mubr.f32.gmra.mxu0 %v1639
  %v2485 = vpop.f32.mrf.mxu0
  %v2486 = vadd.f32 %v1740, %v2485
  %v2487 = vpop.f32.mrf.mxu0
  %v2488 = vadd.f32 %v1744, %v2487
  %2489 = vmatprep.mubr.f32.mxu0 %v1642
  %2490 = vmatmul.mubr.f32.gmra.mxu0 %v1641
  %v2491 = vpop.f32.mrf.mxu0
  %v2492 = vadd.f32 %v1740, %v2491
  %v2493 = vpop.f32.mrf.mxu0
  %v2494 = vadd.f32 %v1744, %v2493
  %2495 = vmatprep.mubr.f32.mxu0 %v1644
  %2496 = vmatmul.mubr.f32.gmra.mxu0 %v1643
  %v2497 = vpop.f32.mrf.mxu0
  %v2498 = vadd.f32 %v1740, %v2497
  %v2499 = vpop.f32.mrf.mxu0
  %v2500 = vadd.f32 %v1744, %v2499
  %2501 = vmatprep.mubr.f32.mxu0 %v1646
  %2502 = vmatmul.mubr.f32.gmra.mxu0 %v1645
  %v2503 = vpop.f32.mrf.mxu0
  %v2504 = vadd.f32 %v1740, %v2503
  %v2505 = vpop.f32.mrf.mxu0
  %v2506 = vadd.f32 %v1744, %v2505
  %2507 = vmatprep.mubr.f32.mxu0 %v1648
  %2508 = vmatmul.mubr.f32.gmra.mxu0 %v1647
  %v2509 = vpop.f32.mrf.mxu0
  %v2510 = vadd.f32 %v1740, %v2509
  %v2511 = vpop.f32.mrf.mxu0
  %v2512 = vadd.f32 %v1744, %v2511
  %2513 = vmatprep.mubr.f32.mxu0 %v1650
  %2514 = vmatmul.mubr.f32.gmra.mxu0 %v1649
  %v2515 = vpop.f32.mrf.mxu0
  %v2516 = vadd.f32 %v1740, %v2515
  %v2517 = vpop.f32.mrf.mxu0
  %v2518 = vadd.f32 %v1744, %v2517
  %2519 = vmatprep.mubr.f32.mxu0 %v1652
  %2520 = vmatmul.mubr.f32.gmra.mxu0 %v1651
  %v2521 = vpop.f32.mrf.mxu0
  %v2522 = vadd.f32 %v1740, %v2521
  %v2523 = vpop.f32.mrf.mxu0
  %v2524 = vadd.f32 %v1744, %v2523
  %2525 = vmatprep.mubr.f32.mxu0 %v1654
  %2526 = vmatmul.mubr.f32.gmra.mxu0 %v1653
  %v2527 = vpop.f32.mrf.mxu0
  %v2528 = vadd.f32 %v1740, %v2527
  %v2529 = vpop.f32.mrf.mxu0
  %v2530 = vadd.f32 %v1744, %v2529
  %2531 = vmatprep.mubr.f32.mxu0 %v1656
  %2532 = vmatmul.mubr.f32.gmra.mxu0 %v1655
  %v2533 = vpop.f32.mrf.mxu0
  %v2534 = vadd.f32 %v1740, %v2533
  %v2535 = vpop.f32.mrf.mxu0
  %v2536 = vadd.f32 %v1744, %v2535
  %2537 = vmatprep.mubr.f32.mxu0 %v1658
  %2538 = vmatmul.mubr.f32.gmra.mxu0 %v1657
  %v2539 = vpop.f32.mrf.mxu0
  %v2540 = vadd.f32 %v1740, %v2539
  %v2541 = vpop.f32.mrf.mxu0
  %v2542 = vadd.f32 %v1744, %v2541
  %2543 = vmatprep.mubr.f32.mxu0 %v1660
  %2544 = vmatmul.mubr.f32.gmra.mxu0 %v1659
  %v2545 = vpop.f32.mrf.mxu0
  %v2546 = vadd.f32 %v1740, %v2545
  %v2547 = vpop.f32.mrf.mxu0
  %v2548 = vadd.f32 %v1744, %v2547
  %2549 = vmatprep.mubr.f32.mxu0 %v1662
  %2550 = vmatmul.mubr.f32.gmra.mxu0 %v1661
  %v2551 = vpop.f32.mrf.mxu0
  %v2552 = vadd.f32 %v1740, %v2551
  %v2553 = vpop.f32.mrf.mxu0
  %v2554 = vadd.f32 %v1744, %v2553
  %2555 = vmatprep.mubr.f32.mxu0 %v1664
  %2556 = vmatmul.mubr.f32.gmra.mxu0 %v1663
  %v2557 = vpop.f32.mrf.mxu0
  %v2558 = vadd.f32 %v1740, %v2557
  %v2559 = vpop.f32.mrf.mxu0
  %v2560 = vadd.f32 %v1744, %v2559
  %2561 = vmatprep.mubr.f32.mxu0 %v1666
  %2562 = vmatmul.mubr.f32.gmra.mxu0 %v1665
  %v2563 = vpop.f32.mrf.mxu0
  %v2564 = vadd.f32 %v1740, %v2563
  %v2565 = vpop.f32.mrf.mxu0
  %v2566 = vadd.f32 %v1744, %v2565
  %2567 = vmatprep.mubr.f32.mxu0 %v1668
  %2568 = vmatmul.mubr.f32.gmra.mxu0 %v1667
  %v2569 = vpop.f32.mrf.mxu0
  %v2570 = vadd.f32 %v1740, %v2569
  %v2571 = vpop.f32.mrf.mxu0
  %v2572 = vadd.f32 %v1744, %v2571
  %2573 = vmatprep.mubr.f32.mxu0 %v1670
  %2574 = vmatmul.mubr.f32.gmra.mxu0 %v1669
  %v2575 = vpop.f32.mrf.mxu0
  %v2576 = vadd.f32 %v1740, %v2575
  %v2577 = vpop.f32.mrf.mxu0
  %v2578 = vadd.f32 %v1744, %v2577
  %2579 = vdwg.mxu0
  %v2580 = vmax.f32 %v1814, 0.0
  %v2581 = vmax.f32 %v1816, 0.0
  %v2582 = vmax.f32 %v1820, 0.0
  %v2583 = vmax.f32 %v1822, 0.0
  %v2584 = vmax.f32 %v1826, 0.0
  %v2585 = vmax.f32 %v1828, 0.0
  %v2586 = vmax.f32 %v1832, 0.0
  %v2587 = vmax.f32 %v1834, 0.0
  %v2588 = vmax.f32 %v1838, 0.0
  %v2589 = vmax.f32 %v1840, 0.0
  %v2590 = vmax.f32 %v1844, 0.0
  %v2591 = vmax.f32 %v1846, 0.0
  %v2592 = vmax.f32 %v1850, 0.0
  %v2593 = vmax.f32 %v1852, 0.0
  %v2594 = vmax.f32 %v1856, 0.0
  %v2595 = vmax.f32 %v1858, 0.0
  %v2596 = vmax.f32 %v1862, 0.0
  %v2597 = vmax.f32 %v1864, 0.0
  %v2598 = vmax.f32 %v1868, 0.0
  %v2599 = vmax.f32 %v1870, 0.0
  %v2600 = vmax.f32 %v1874, 0.0
  %v2601 = vmax.f32 %v1876, 0.0
  %v2602 = vmax.f32 %v1880, 0.0
  %v2603 = vmax.f32 %v1882, 0.0
  %v2604 = vmax.f32 %v1886, 0.0
  %v2605 = vmax.f32 %v1888, 0.0
  %v2606 = vmax.f32 %v1892, 0.0
  %v2607 = vmax.f32 %v1894, 0.0
  %v2608 = vmax.f32 %v1898, 0.0
  %v2609 = vmax.f32 %v1900, 0.0
  %v2610 = vmax.f32 %v1904, 0.0
  %v2611 = vmax.f32 %v1906, 0.0
  %v2612 = vmax.f32 %v1910, 0.0
  %v2613 = vmax.f32 %v1912, 0.0
  %v2614 = vmax.f32 %v1916, 0.0
  %v2615 = vmax.f32 %v1918, 0.0
  %v2616 = vmax.f32 %v1922, 0.0
  %v2617 = vmax.f32 %v1924, 0.0
  %v2618 = vmax.f32 %v1928, 0.0
  %v2619 = vmax.f32 %v1930, 0.0
  %v2620 = vmax.f32 %v1934, 0.0
  %v2621 = vmax.f32 %v1936, 0.0
  %v2622 = vmax.f32 %v1940, 0.0
  %v2623 = vmax.f32 %v1942, 0.0
  %v2624 = vmax.f32 %v1946, 0.0
  %v2625 = vmax.f32 %v1948, 0.0
  %v2626 = vmax.f32 %v1952, 0.0
  %v2627 = vmax.f32 %v1954, 0.0
  %v2628 = vmax.f32 %v1958, 0.0
  %v2629 = vmax.f32 %v1960, 0.0
  %v2630 = vmax.f32 %v1964, 0.0
  %v2631 = vmax.f32 %v1966, 0.0
  %v2632 = vmax.f32 %v1970, 0.0
  %v2633 = vmax.f32 %v1972, 0.0
  %v2634 = vmax.f32 %v1976, 0.0
  %v2635 = vmax.f32 %v1978, 0.0
  %v2636 = vmax.f32 %v1982, 0.0
  %v2637 = vmax.f32 %v1984, 0.0
  %v2638 = vmax.f32 %v1988, 0.0
  %v2639 = vmax.f32 %v1990, 0.0
  %v2640 = vmax.f32 %v1994, 0.0
  %v2641 = vmax.f32 %v1996, 0.0
  %v2642 = vmax.f32 %v2000, 0.0
  %v2643 = vmax.f32 %v2002, 0.0
  %v2644 = vmax.f32 %v2006, 0.0
  %v2645 = vmax.f32 %v2008, 0.0
  %v2646 = vmax.f32 %v2012, 0.0
  %v2647 = vmax.f32 %v2014, 0.0
  %v2648 = vmax.f32 %v2018, 0.0
  %v2649 = vmax.f32 %v2020, 0.0
  %v2650 = vmax.f32 %v2024, 0.0
  %v2651 = vmax.f32 %v2026, 0.0
  %v2652 = vmax.f32 %v2030, 0.0
  %v2653 = vmax.f32 %v2032, 0.0
  %v2654 = vmax.f32 %v2036, 0.0
  %v2655 = vmax.f32 %v2038, 0.0
  %v2656 = vmax.f32 %v2042, 0.0
  %v2657 = vmax.f32 %v2044, 0.0
  %v2658 = vmax.f32 %v2048, 0.0
  %v2659 = vmax.f32 %v2050, 0.0
  %v2660 = vmax.f32 %v2054, 0.0
  %v2661 = vmax.f32 %v2056, 0.0
  %v2662 = vmax.f32 %v2060, 0.0
  %v2663 = vmax.f32 %v2062, 0.0
  %v2664 = vmax.f32 %v2066, 0.0
  %v2665 = vmax.f32 %v2068, 0.0
  %v2666 = vmax.f32 %v2072, 0.0
  %v2667 = vmax.f32 %v2074, 0.0
  %v2668 = vmax.f32 %v2078, 0.0
  %v2669 = vmax.f32 %v2080, 0.0
  %v2670 = vmax.f32 %v2084, 0.0
  %v2671 = vmax.f32 %v2086, 0.0
  %v2672 = vmax.f32 %v2090, 0.0
  %v2673 = vmax.f32 %v2092, 0.0
  %v2674 = vmax.f32 %v2096, 0.0
  %v2675 = vmax.f32 %v2098, 0.0
  %v2676 = vmax.f32 %v2102, 0.0
  %v2677 = vmax.f32 %v2104, 0.0
  %v2678 = vmax.f32 %v2108, 0.0
  %v2679 = vmax.f32 %v2110, 0.0
  %v2680 = vmax.f32 %v2114, 0.0
  %v2681 = vmax.f32 %v2116, 0.0
  %v2682 = vmax.f32 %v2120, 0.0
  %v2683 = vmax.f32 %v2122, 0.0
  %v2684 = vmax.f32 %v2126, 0.0
  %v2685 = vmax.f32 %v2128, 0.0
  %v2686 = vmax.f32 %v2132, 0.0
  %v2687 = vmax.f32 %v2134, 0.0
  %v2688 = vmax.f32 %v2138, 0.0
  %v2689 = vmax.f32 %v2140, 0.0
  %v2690 = vmax.f32 %v2144, 0.0
  %v2691 = vmax.f32 %v2146, 0.0
  %v2692 = vmax.f32 %v2150, 0.0
  %v2693 = vmax.f32 %v2152, 0.0
  %v2694 = vmax.f32 %v2156, 0.0
  %v2695 = vmax.f32 %v2158, 0.0
  %v2696 = vmax.f32 %v2162, 0.0
  %v2697 = vmax.f32 %v2164, 0.0
  %v2698 = vmax.f32 %v2168, 0.0
  %v2699 = vmax.f32 %v2170, 0.0
  %v2700 = vmax.f32 %v2174, 0.0
  %v2701 = vmax.f32 %v2176, 0.0
  %v2702 = vmax.f32 %v2180, 0.0
  %v2703 = vmax.f32 %v2182, 0.0
  %v2704 = vmax.f32 %v2186, 0.0
  %v2705 = vmax.f32 %v2188, 0.0
  %v2706 = vmax.f32 %v2192, 0.0
  %v2707 = vmax.f32 %v2194, 0.0
  %v2708 = vmax.f32 %v2198, 0.0
  %v2709 = vmax.f32 %v2200, 0.0
  %v2710 = vmax.f32 %v2204, 0.0
  %v2711 = vmax.f32 %v2206, 0.0
  %v2712 = vmax.f32 %v2210, 0.0
  %v2713 = vmax.f32 %v2212, 0.0
  %v2714 = vmax.f32 %v2216, 0.0
  %v2715 = vmax.f32 %v2218, 0.0
  %v2716 = vmax.f32 %v2222, 0.0
  %v2717 = vmax.f32 %v2224, 0.0
  %v2718 = vmax.f32 %v2228, 0.0
  %v2719 = vmax.f32 %v2230, 0.0
  %v2720 = vmax.f32 %v2234, 0.0
  %v2721 = vmax.f32 %v2236, 0.0
  %v2722 = vmax.f32 %v2240, 0.0
  %v2723 = vmax.f32 %v2242, 0.0
  %v2724 = vmax.f32 %v2246, 0.0
  %v2725 = vmax.f32 %v2248, 0.0
  %v2726 = vmax.f32 %v2252, 0.0
  %v2727 = vmax.f32 %v2254, 0.0
  %v2728 = vmax.f32 %v2258, 0.0
  %v2729 = vmax.f32 %v2260, 0.0
  %v2730 = vmax.f32 %v2264, 0.0
  %v2731 = vmax.f32 %v2266, 0.0
  %v2732 = vmax.f32 %v2270, 0.0
  %v2733 = vmax.f32 %v2272, 0.0
  %v2734 = vmax.f32 %v2276, 0.0
  %v2735 = vmax.f32 %v2278, 0.0
  %v2736 = vmax.f32 %v2282, 0.0
  %v2737 = vmax.f32 %v2284, 0.0
  %v2738 = vmax.f32 %v2288, 0.0
  %v2739 = vmax.f32 %v2290, 0.0
  %v2740 = vmax.f32 %v2294, 0.0
  %v2741 = vmax.f32 %v2296, 0.0
  %v2742 = vmax.f32 %v2300, 0.0
  %v2743 = vmax.f32 %v2302, 0.0
  %v2744 = vmax.f32 %v2306, 0.0
  %v2745 = vmax.f32 %v2308, 0.0
  %v2746 = vmax.f32 %v2312, 0.0
  %v2747 = vmax.f32 %v2314, 0.0
  %v2748 = vmax.f32 %v2318, 0.0
  %v2749 = vmax.f32 %v2320, 0.0
  %v2750 = vmax.f32 %v2324, 0.0
  %v2751 = vmax.f32 %v2326, 0.0
  %v2752 = vmax.f32 %v2330, 0.0
  %v2753 = vmax.f32 %v2332, 0.0
  %v2754 = vmax.f32 %v2336, 0.0
  %v2755 = vmax.f32 %v2338, 0.0
  %v2756 = vmax.f32 %v2342, 0.0
  %v2757 = vmax.f32 %v2344, 0.0
  %v2758 = vmax.f32 %v2348, 0.0
  %v2759 = vmax.f32 %v2350, 0.0
  %v2760 = vmax.f32 %v2354, 0.0
  %v2761 = vmax.f32 %v2356, 0.0
  %v2762 = vmax.f32 %v2360, 0.0
  %v2763 = vmax.f32 %v2362, 0.0
  %v2764 = vmax.f32 %v2366, 0.0
  %v2765 = vmax.f32 %v2368, 0.0
  %v2766 = vmax.f32 %v2372, 0.0
  %v2767 = vmax.f32 %v2374, 0.0
  %v2768 = vmax.f32 %v2378, 0.0
  %v2769 = vmax.f32 %v2380, 0.0
  %v2770 = vmax.f32 %v2384, 0.0
  %v2771 = vmax.f32 %v2386, 0.0
  %v2772 = vmax.f32 %v2390, 0.0
  %v2773 = vmax.f32 %v2392, 0.0
  %v2774 = vmax.f32 %v2396, 0.0
  %v2775 = vmax.f32 %v2398, 0.0
  %v2776 = vmax.f32 %v2402, 0.0
  %v2777 = vmax.f32 %v2404, 0.0
  %v2778 = vmax.f32 %v2408, 0.0
  %v2779 = vmax.f32 %v2410, 0.0
  %v2780 = vmax.f32 %v2414, 0.0
  %v2781 = vmax.f32 %v2416, 0.0
  %v2782 = vmax.f32 %v2420, 0.0
  %v2783 = vmax.f32 %v2422, 0.0
  %v2784 = vmax.f32 %v2426, 0.0
  %v2785 = vmax.f32 %v2428, 0.0
  %v2786 = vmax.f32 %v2432, 0.0
  %v2787 = vmax.f32 %v2434, 0.0
  %v2788 = vmax.f32 %v2438, 0.0
  %v2789 = vmax.f32 %v2440, 0.0
  %v2790 = vmax.f32 %v2444, 0.0
  %v2791 = vmax.f32 %v2446, 0.0
  %v2792 = vmax.f32 %v2450, 0.0
  %v2793 = vmax.f32 %v2452, 0.0
  %v2794 = vmax.f32 %v2456, 0.0
  %v2795 = vmax.f32 %v2458, 0.0
  %v2796 = vmax.f32 %v2462, 0.0
  %v2797 = vmax.f32 %v2464, 0.0
  %v2798 = vmax.f32 %v2468, 0.0
  %v2799 = vmax.f32 %v2470, 0.0
  %v2800 = vmax.f32 %v2474, 0.0
  %v2801 = vmax.f32 %v2476, 0.0
  %v2802 = vmax.f32 %v2480, 0.0
  %v2803 = vmax.f32 %v2482, 0.0
  %v2804 = vmax.f32 %v2486, 0.0
  %v2805 = vmax.f32 %v2488, 0.0
  %v2806 = vmax.f32 %v2492, 0.0
  %v2807 = vmax.f32 %v2494, 0.0
  %v2808 = vmax.f32 %v2498, 0.0
  %v2809 = vmax.f32 %v2500, 0.0
  %v2810 = vmax.f32 %v2504, 0.0
  %v2811 = vmax.f32 %v2506, 0.0
  %v2812 = vmax.f32 %v2510, 0.0
  %v2813 = vmax.f32 %v2512, 0.0
  %v2814 = vmax.f32 %v2516, 0.0
  %v2815 = vmax.f32 %v2518, 0.0
  %v2816 = vmax.f32 %v2522, 0.0
  %v2817 = vmax.f32 %v2524, 0.0
  %v2818 = vmax.f32 %v2528, 0.0
  %v2819 = vmax.f32 %v2530, 0.0
  %v2820 = vmax.f32 %v2534, 0.0
  %v2821 = vmax.f32 %v2536, 0.0
  %v2822 = vmax.f32 %v2540, 0.0
  %v2823 = vmax.f32 %v2542, 0.0
  %v2824 = vmax.f32 %v2546, 0.0
  %v2825 = vmax.f32 %v2548, 0.0
  %v2826 = vmax.f32 %v2552, 0.0
  %v2827 = vmax.f32 %v2554, 0.0
  %v2828 = vmax.f32 %v2558, 0.0
  %v2829 = vmax.f32 %v2560, 0.0
  %v2830 = vmax.f32 %v2564, 0.0
  %v2831 = vmax.f32 %v2566, 0.0
  %v2832 = vmax.f32 %v2570, 0.0
  %v2833 = vmax.f32 %v2572, 0.0
  %v2834 = vmax.f32 %v2576, 0.0
  %v2835 = vmax.f32 %v2578, 0.0
  %v2836 = vld [vmem:[%s5] sm:$0xff]
  %v2837 = vld [vmem:[%s5 + $0x8] sm:$0xff]
  %v2838 = vld [vmem:[%s5 + $0x10] sm:$0xff]
  %v2839 = vld [vmem:[%s5 + $0x18] sm:$0xff]
  %v2840 = vld [vmem:[%s5 + $0x20] sm:$0xff]
  %v2841 = vld [vmem:[%s5 + $0x28] sm:$0xff]
  %v2842 = vld [vmem:[%s5 + $0x30] sm:$0xff]
  %v2843 = vld [vmem:[%s5 + $0x38] sm:$0xff]
  %v2844 = vld [vmem:[%s5 + $0x40] sm:$0xff]
  %v2845 = vld [vmem:[%s5 + $0x48] sm:$0xff]
  %v2846 = vld [vmem:[%s5 + $0x50] sm:$0xff]
  %v2847 = vld [vmem:[%s5 + $0x58] sm:$0xff]
  %v2848 = vld [vmem:[%s5 + $0x60] sm:$0xff]
  %v2849 = vld [vmem:[%s5 + $0x68] sm:$0xff]
  %v2850 = vld [vmem:[%s5 + $0x70] sm:$0xff]
  %v2851 = vld [vmem:[%s5 + $0x78] sm:$0xff]
  %v2852 = vld [vmem:[%s5 + $0x80] sm:$0xff]
  %v2853 = vld [vmem:[%s5 + $0x88] sm:$0xff]
  %v2854 = vld [vmem:[%s5 + $0x90] sm:$0xff]
  %v2855 = vld [vmem:[%s5 + $0x98] sm:$0xff]
  %v2856 = vld [vmem:[%s5 + $0xa0] sm:$0xff]
  %v2857 = vld [vmem:[%s5 + $0xa8] sm:$0xff]
  %v2858 = vld [vmem:[%s5 + $0xb0] sm:$0xff]
  %v2859 = vld [vmem:[%s5 + $0xb8] sm:$0xff]
  %v2860 = vld [vmem:[%s5 + $0xc0] sm:$0xff]
  %v2861 = vld [vmem:[%s5 + $0xc8] sm:$0xff]
  %v2862 = vld [vmem:[%s5 + $0xd0] sm:$0xff]
  %v2863 = vld [vmem:[%s5 + $0xd8] sm:$0xff]
  %v2864 = vld [vmem:[%s5 + $0xe0] sm:$0xff]
  %v2865 = vld [vmem:[%s5 + $0xe8] sm:$0xff]
  %v2866 = vld [vmem:[%s5 + $0xf0] sm:$0xff]
  %v2867 = vld [vmem:[%s5 + $0xf8] sm:$0xff]
  %v2868 = vld [vmem:[%s5 + $0x100] sm:$0xff]
  %v2869 = vld [vmem:[%s5 + $0x108] sm:$0xff]
  %v2870 = vld [vmem:[%s5 + $0x110] sm:$0xff]
  %v2871 = vld [vmem:[%s5 + $0x118] sm:$0xff]
  %v2872 = vld [vmem:[%s5 + $0x120] sm:$0xff]
  %v2873 = vld [vmem:[%s5 + $0x128] sm:$0xff]
  %v2874 = vld [vmem:[%s5 + $0x130] sm:$0xff]
  %v2875 = vld [vmem:[%s5 + $0x138] sm:$0xff]
  %v2876 = vld [vmem:[%s5 + $0x140] sm:$0xff]
  %v2877 = vld [vmem:[%s5 + $0x148] sm:$0xff]
  %v2878 = vld [vmem:[%s5 + $0x150] sm:$0xff]
  %v2879 = vld [vmem:[%s5 + $0x158] sm:$0xff]
  %v2880 = vld [vmem:[%s5 + $0x160] sm:$0xff]
  %v2881 = vld [vmem:[%s5 + $0x168] sm:$0xff]
  %v2882 = vld [vmem:[%s5 + $0x170] sm:$0xff]
  %v2883 = vld [vmem:[%s5 + $0x178] sm:$0xff]
  %v2884 = vld [vmem:[%s5 + $0x180] sm:$0xff]
  %v2885 = vld [vmem:[%s5 + $0x188] sm:$0xff]
  %v2886 = vld [vmem:[%s5 + $0x190] sm:$0xff]
  %v2887 = vld [vmem:[%s5 + $0x198] sm:$0xff]
  %v2888 = vld [vmem:[%s5 + $0x1a0] sm:$0xff]
  %v2889 = vld [vmem:[%s5 + $0x1a8] sm:$0xff]
  %v2890 = vld [vmem:[%s5 + $0x1b0] sm:$0xff]
  %v2891 = vld [vmem:[%s5 + $0x1b8] sm:$0xff]
  %v2892 = vld [vmem:[%s5 + $0x1c0] sm:$0xff]
  %v2893 = vld [vmem:[%s5 + $0x1c8] sm:$0xff]
  %v2894 = vld [vmem:[%s5 + $0x1d0] sm:$0xff]
  %v2895 = vld [vmem:[%s5 + $0x1d8] sm:$0xff]
  %v2896 = vld [vmem:[%s5 + $0x1e0] sm:$0xff]
  %v2897 = vld [vmem:[%s5 + $0x1e8] sm:$0xff]
  %v2898 = vld [vmem:[%s5 + $0x1f0] sm:$0xff]
  %v2899 = vld [vmem:[%s5 + $0x1f8] sm:$0xff]
  %v2900 = vld [vmem:[%s6] sm:$0x3]
  %v2902 = vlaneseq
  %v2903 = vshrl.u32 %v2902, 7
  %v2904 = vsub.s32 0, %v2903
  %v2905 = vrot.slane %v2900, %v2904
  %v2906 = vlaneseq
  %v2907 = vshrl.u32 %v2906, 7
  %v2908 = vsub.s32 1, %v2907
  %v2909 = vrot.slane %v2900, %v2908
  %2912 = vmatprep.subr.mxu0 %v2867
  %2913 = vmatpush1.msra.mxu0 %v2866
  %2914 = vmatprep.subr.mxu0 %v2865
  %2915 = vmatpush1.msra.mxu0 %v2864
  %2916 = vmatprep.subr.mxu0 %v2863
  %2917 = vmatpush1.msra.mxu0 %v2862
  %2918 = vmatprep.subr.mxu0 %v2861
  %2919 = vmatpush1.msra.mxu0 %v2860
  %2920 = vmatprep.subr.mxu0 %v2859
  %2921 = vmatpush1.msra.mxu0 %v2858
  %2922 = vmatprep.subr.mxu0 %v2857
  %2923 = vmatpush1.msra.mxu0 %v2856
  %2924 = vmatprep.subr.mxu0 %v2855
  %2925 = vmatpush1.msra.mxu0 %v2854
  %2926 = vmatprep.subr.mxu0 %v2853
  %2927 = vmatpush1.msra.mxu0 %v2852
  %2928 = vmatprep.subr.mxu0 %v2851
  %2929 = vmatpush1.msra.mxu0 %v2850
  %2930 = vmatprep.subr.mxu0 %v2849
  %2931 = vmatpush1.msra.mxu0 %v2848
  %2932 = vmatprep.subr.mxu0 %v2847
  %2933 = vmatpush1.msra.mxu0 %v2846
  %2934 = vmatprep.subr.mxu0 %v2845
  %2935 = vmatpush1.msra.mxu0 %v2844
  %2936 = vmatprep.subr.mxu0 %v2843
  %2937 = vmatpush1.msra.mxu0 %v2842
  %2938 = vmatprep.subr.mxu0 %v2841
  %2939 = vmatpush1.msra.mxu0 %v2840
  %2940 = vmatprep.subr.mxu0 %v2839
  %2941 = vmatpush1.msra.mxu0 %v2838
  %2942 = vmatprep.subr.mxu0 %v2837
  %2943 = vmatpush1.msra.mxu0 %v2836
  %2944 = vmatprep.subr.mxu0 %v2899
  %2945 = vmatpush2.msra.mxu0 %v2898
  %2946 = vmatprep.subr.mxu0 %v2897
  %2947 = vmatpush2.msra.mxu0 %v2896
  %2948 = vmatprep.subr.mxu0 %v2895
  %2949 = vmatpush2.msra.mxu0 %v2894
  %2950 = vmatprep.subr.mxu0 %v2893
  %2951 = vmatpush2.msra.mxu0 %v2892
  %2952 = vmatprep.subr.mxu0 %v2891
  %2953 = vmatpush2.msra.mxu0 %v2890
  %2954 = vmatprep.subr.mxu0 %v2889
  %2955 = vmatpush2.msra.mxu0 %v2888
  %2956 = vmatprep.subr.mxu0 %v2887
  %2957 = vmatpush2.msra.mxu0 %v2886
  %2958 = vmatprep.subr.mxu0 %v2885
  %2959 = vmatpush2.msra.mxu0 %v2884
  %2960 = vmatprep.subr.mxu0 %v2883
  %2961 = vmatpush2.msra.mxu0 %v2882
  %2962 = vmatprep.subr.mxu0 %v2881
  %2963 = vmatpush2.msra.mxu0 %v2880
  %2964 = vmatprep.subr.mxu0 %v2879
  %2965 = vmatpush2.msra.mxu0 %v2878
  %2966 = vmatprep.subr.mxu0 %v2877
  %2967 = vmatpush2.msra.mxu0 %v2876
  %2968 = vmatprep.subr.mxu0 %v2875
  %2969 = vmatpush2.msra.mxu0 %v2874
  %2970 = vmatprep.subr.mxu0 %v2873
  %2971 = vmatpush2.msra.mxu0 %v2872
  %2972 = vmatprep.subr.mxu0 %v2871
  %2973 = vmatpush2.msra.mxu0 %v2870
  %2974 = vmatprep.subr.mxu0 %v2869
  %2975 = vmatpush2.msra.mxu0 %v2868
  %2976 = vmatprep.mubr.f32.mxu0 %v2581
  %2977 = vmatmul.mubr.f32.gmra.mxu0 %v2580
  %v2978 = vpop.f32.mrf.mxu0
  %v2979 = vadd.f32 %v2905, %v2978
  %v2980 = vpop.f32.mrf.mxu0
  %v2981 = vadd.f32 %v2909, %v2980
  %2982 = vmatprep.mubr.f32.mxu0 %v2583
  %2983 = vmatmul.mubr.f32.gmra.mxu0 %v2582
  %v2984 = vpop.f32.mrf.mxu0
  %v2985 = vadd.f32 %v2905, %v2984
  %v2986 = vpop.f32.mrf.mxu0
  %v2987 = vadd.f32 %v2909, %v2986
  %2988 = vmatprep.mubr.f32.mxu0 %v2585
  %2989 = vmatmul.mubr.f32.gmra.mxu0 %v2584
  %v2990 = vpop.f32.mrf.mxu0
  %v2991 = vadd.f32 %v2905, %v2990
  %v2992 = vpop.f32.mrf.mxu0
  %v2993 = vadd.f32 %v2909, %v2992
  %2994 = vmatprep.mubr.f32.mxu0 %v2587
  %2995 = vmatmul.mubr.f32.gmra.mxu0 %v2586
  %v2996 = vpop.f32.mrf.mxu0
  %v2997 = vadd.f32 %v2905, %v2996
  %v2998 = vpop.f32.mrf.mxu0
  %v2999 = vadd.f32 %v2909, %v2998
  %3000 = vmatprep.mubr.f32.mxu0 %v2589
  %3001 = vmatmul.mubr.f32.gmra.mxu0 %v2588
  %v3002 = vpop.f32.mrf.mxu0
  %v3003 = vadd.f32 %v2905, %v3002
  %v3004 = vpop.f32.mrf.mxu0
  %v3005 = vadd.f32 %v2909, %v3004
  %3006 = vmatprep.mubr.f32.mxu0 %v2591
  %3007 = vmatmul.mubr.f32.gmra.mxu0 %v2590
  %v3008 = vpop.f32.mrf.mxu0
  %v3009 = vadd.f32 %v2905, %v3008
  %v3010 = vpop.f32.mrf.mxu0
  %v3011 = vadd.f32 %v2909, %v3010
  %3012 = vmatprep.mubr.f32.mxu0 %v2593
  %3013 = vmatmul.mubr.f32.gmra.mxu0 %v2592
  %v3014 = vpop.f32.mrf.mxu0
  %v3015 = vadd.f32 %v2905, %v3014
  %v3016 = vpop.f32.mrf.mxu0
  %v3017 = vadd.f32 %v2909, %v3016
  %3018 = vmatprep.mubr.f32.mxu0 %v2595
  %3019 = vmatmul.mubr.f32.gmra.mxu0 %v2594
  %v3020 = vpop.f32.mrf.mxu0
  %v3021 = vadd.f32 %v2905, %v3020
  %v3022 = vpop.f32.mrf.mxu0
  %v3023 = vadd.f32 %v2909, %v3022
  %3024 = vmatprep.mubr.f32.mxu0 %v2597
  %3025 = vmatmul.mubr.f32.gmra.mxu0 %v2596
  %v3026 = vpop.f32.mrf.mxu0
  %v3027 = vadd.f32 %v2905, %v3026
  %v3028 = vpop.f32.mrf.mxu0
  %v3029 = vadd.f32 %v2909, %v3028
  %3030 = vmatprep.mubr.f32.mxu0 %v2599
  %3031 = vmatmul.mubr.f32.gmra.mxu0 %v2598
  %v3032 = vpop.f32.mrf.mxu0
  %v3033 = vadd.f32 %v2905, %v3032
  %v3034 = vpop.f32.mrf.mxu0
  %v3035 = vadd.f32 %v2909, %v3034
  %3036 = vmatprep.mubr.f32.mxu0 %v2601
  %3037 = vmatmul.mubr.f32.gmra.mxu0 %v2600
  %v3038 = vpop.f32.mrf.mxu0
  %v3039 = vadd.f32 %v2905, %v3038
  %v3040 = vpop.f32.mrf.mxu0
  %v3041 = vadd.f32 %v2909, %v3040
  %3042 = vmatprep.mubr.f32.mxu0 %v2603
  %3043 = vmatmul.mubr.f32.gmra.mxu0 %v2602
  %v3044 = vpop.f32.mrf.mxu0
  %v3045 = vadd.f32 %v2905, %v3044
  %v3046 = vpop.f32.mrf.mxu0
  %v3047 = vadd.f32 %v2909, %v3046
  %3048 = vmatprep.mubr.f32.mxu0 %v2605
  %3049 = vmatmul.mubr.f32.gmra.mxu0 %v2604
  %v3050 = vpop.f32.mrf.mxu0
  %v3051 = vadd.f32 %v2905, %v3050
  %v3052 = vpop.f32.mrf.mxu0
  %v3053 = vadd.f32 %v2909, %v3052
  %3054 = vmatprep.mubr.f32.mxu0 %v2607
  %3055 = vmatmul.mubr.f32.gmra.mxu0 %v2606
  %v3056 = vpop.f32.mrf.mxu0
  %v3057 = vadd.f32 %v2905, %v3056
  %v3058 = vpop.f32.mrf.mxu0
  %v3059 = vadd.f32 %v2909, %v3058
  %3060 = vmatprep.mubr.f32.mxu0 %v2609
  %3061 = vmatmul.mubr.f32.gmra.mxu0 %v2608
  %v3062 = vpop.f32.mrf.mxu0
  %v3063 = vadd.f32 %v2905, %v3062
  %v3064 = vpop.f32.mrf.mxu0
  %v3065 = vadd.f32 %v2909, %v3064
  %3066 = vmatprep.mubr.f32.mxu0 %v2611
  %3067 = vmatmul.mubr.f32.gmra.mxu0 %v2610
  %v3068 = vpop.f32.mrf.mxu0
  %v3069 = vadd.f32 %v2905, %v3068
  %v3070 = vpop.f32.mrf.mxu0
  %v3071 = vadd.f32 %v2909, %v3070
  %3072 = vmatprep.mubr.f32.mxu0 %v2613
  %3073 = vmatmul.mubr.f32.gmra.mxu0 %v2612
  %v3074 = vpop.f32.mrf.mxu0
  %v3075 = vadd.f32 %v2905, %v3074
  %v3076 = vpop.f32.mrf.mxu0
  %v3077 = vadd.f32 %v2909, %v3076
  %3078 = vmatprep.mubr.f32.mxu0 %v2615
  %3079 = vmatmul.mubr.f32.gmra.mxu0 %v2614
  %v3080 = vpop.f32.mrf.mxu0
  %v3081 = vadd.f32 %v2905, %v3080
  %v3082 = vpop.f32.mrf.mxu0
  %v3083 = vadd.f32 %v2909, %v3082
  %3084 = vmatprep.mubr.f32.mxu0 %v2617
  %3085 = vmatmul.mubr.f32.gmra.mxu0 %v2616
  %v3086 = vpop.f32.mrf.mxu0
  %v3087 = vadd.f32 %v2905, %v3086
  %v3088 = vpop.f32.mrf.mxu0
  %v3089 = vadd.f32 %v2909, %v3088
  %3090 = vmatprep.mubr.f32.mxu0 %v2619
  %3091 = vmatmul.mubr.f32.gmra.mxu0 %v2618
  %v3092 = vpop.f32.mrf.mxu0
  %v3093 = vadd.f32 %v2905, %v3092
  %v3094 = vpop.f32.mrf.mxu0
  %v3095 = vadd.f32 %v2909, %v3094
  %3096 = vmatprep.mubr.f32.mxu0 %v2621
  %3097 = vmatmul.mubr.f32.gmra.mxu0 %v2620
  %v3098 = vpop.f32.mrf.mxu0
  %v3099 = vadd.f32 %v2905, %v3098
  %v3100 = vpop.f32.mrf.mxu0
  %v3101 = vadd.f32 %v2909, %v3100
  %3102 = vmatprep.mubr.f32.mxu0 %v2623
  %3103 = vmatmul.mubr.f32.gmra.mxu0 %v2622
  %v3104 = vpop.f32.mrf.mxu0
  %v3105 = vadd.f32 %v2905, %v3104
  %v3106 = vpop.f32.mrf.mxu0
  %v3107 = vadd.f32 %v2909, %v3106
  %3108 = vmatprep.mubr.f32.mxu0 %v2625
  %3109 = vmatmul.mubr.f32.gmra.mxu0 %v2624
  %v3110 = vpop.f32.mrf.mxu0
  %v3111 = vadd.f32 %v2905, %v3110
  %v3112 = vpop.f32.mrf.mxu0
  %v3113 = vadd.f32 %v2909, %v3112
  %3114 = vmatprep.mubr.f32.mxu0 %v2627
  %3115 = vmatmul.mubr.f32.gmra.mxu0 %v2626
  %v3116 = vpop.f32.mrf.mxu0
  %v3117 = vadd.f32 %v2905, %v3116
  %v3118 = vpop.f32.mrf.mxu0
  %v3119 = vadd.f32 %v2909, %v3118
  %3120 = vmatprep.mubr.f32.mxu0 %v2629
  %3121 = vmatmul.mubr.f32.gmra.mxu0 %v2628
  %v3122 = vpop.f32.mrf.mxu0
  %v3123 = vadd.f32 %v2905, %v3122
  %v3124 = vpop.f32.mrf.mxu0
  %v3125 = vadd.f32 %v2909, %v3124
  %3126 = vmatprep.mubr.f32.mxu0 %v2631
  %3127 = vmatmul.mubr.f32.gmra.mxu0 %v2630
  %v3128 = vpop.f32.mrf.mxu0
  %v3129 = vadd.f32 %v2905, %v3128
  %v3130 = vpop.f32.mrf.mxu0
  %v3131 = vadd.f32 %v2909, %v3130
  %3132 = vmatprep.mubr.f32.mxu0 %v2633
  %3133 = vmatmul.mubr.f32.gmra.mxu0 %v2632
  %v3134 = vpop.f32.mrf.mxu0
  %v3135 = vadd.f32 %v2905, %v3134
  %v3136 = vpop.f32.mrf.mxu0
  %v3137 = vadd.f32 %v2909, %v3136
  %3138 = vmatprep.mubr.f32.mxu0 %v2635
  %3139 = vmatmul.mubr.f32.gmra.mxu0 %v2634
  %v3140 = vpop.f32.mrf.mxu0
  %v3141 = vadd.f32 %v2905, %v3140
  %v3142 = vpop.f32.mrf.mxu0
  %v3143 = vadd.f32 %v2909, %v3142
  %3144 = vmatprep.mubr.f32.mxu0 %v2637
  %3145 = vmatmul.mubr.f32.gmra.mxu0 %v2636
  %v3146 = vpop.f32.mrf.mxu0
  %v3147 = vadd.f32 %v2905, %v3146
  %v3148 = vpop.f32.mrf.mxu0
  %v3149 = vadd.f32 %v2909, %v3148
  %3150 = vmatprep.mubr.f32.mxu0 %v2639
  %3151 = vmatmul.mubr.f32.gmra.mxu0 %v2638
  %v3152 = vpop.f32.mrf.mxu0
  %v3153 = vadd.f32 %v2905, %v3152
  %v3154 = vpop.f32.mrf.mxu0
  %v3155 = vadd.f32 %v2909, %v3154
  %3156 = vmatprep.mubr.f32.mxu0 %v2641
  %3157 = vmatmul.mubr.f32.gmra.mxu0 %v2640
  %v3158 = vpop.f32.mrf.mxu0
  %v3159 = vadd.f32 %v2905, %v3158
  %v3160 = vpop.f32.mrf.mxu0
  %v3161 = vadd.f32 %v2909, %v3160
  %3162 = vmatprep.mubr.f32.mxu0 %v2643
  %3163 = vmatmul.mubr.f32.gmra.mxu0 %v2642
  %v3164 = vpop.f32.mrf.mxu0
  %v3165 = vadd.f32 %v2905, %v3164
  %v3166 = vpop.f32.mrf.mxu0
  %v3167 = vadd.f32 %v2909, %v3166
  %3168 = vmatprep.mubr.f32.mxu0 %v2645
  %3169 = vmatmul.mubr.f32.gmra.mxu0 %v2644
  %v3170 = vpop.f32.mrf.mxu0
  %v3171 = vadd.f32 %v2905, %v3170
  %v3172 = vpop.f32.mrf.mxu0
  %v3173 = vadd.f32 %v2909, %v3172
  %3174 = vmatprep.mubr.f32.mxu0 %v2647
  %3175 = vmatmul.mubr.f32.gmra.mxu0 %v2646
  %v3176 = vpop.f32.mrf.mxu0
  %v3177 = vadd.f32 %v2905, %v3176
  %v3178 = vpop.f32.mrf.mxu0
  %v3179 = vadd.f32 %v2909, %v3178
  %3180 = vmatprep.mubr.f32.mxu0 %v2649
  %3181 = vmatmul.mubr.f32.gmra.mxu0 %v2648
  %v3182 = vpop.f32.mrf.mxu0
  %v3183 = vadd.f32 %v2905, %v3182
  %v3184 = vpop.f32.mrf.mxu0
  %v3185 = vadd.f32 %v2909, %v3184
  %3186 = vmatprep.mubr.f32.mxu0 %v2651
  %3187 = vmatmul.mubr.f32.gmra.mxu0 %v2650
  %v3188 = vpop.f32.mrf.mxu0
  %v3189 = vadd.f32 %v2905, %v3188
  %v3190 = vpop.f32.mrf.mxu0
  %v3191 = vadd.f32 %v2909, %v3190
  %3192 = vmatprep.mubr.f32.mxu0 %v2653
  %3193 = vmatmul.mubr.f32.gmra.mxu0 %v2652
  %v3194 = vpop.f32.mrf.mxu0
  %v3195 = vadd.f32 %v2905, %v3194
  %v3196 = vpop.f32.mrf.mxu0
  %v3197 = vadd.f32 %v2909, %v3196
  %3198 = vmatprep.mubr.f32.mxu0 %v2655
  %3199 = vmatmul.mubr.f32.gmra.mxu0 %v2654
  %v3200 = vpop.f32.mrf.mxu0
  %v3201 = vadd.f32 %v2905, %v3200
  %v3202 = vpop.f32.mrf.mxu0
  %v3203 = vadd.f32 %v2909, %v3202
  %3204 = vmatprep.mubr.f32.mxu0 %v2657
  %3205 = vmatmul.mubr.f32.gmra.mxu0 %v2656
  %v3206 = vpop.f32.mrf.mxu0
  %v3207 = vadd.f32 %v2905, %v3206
  %v3208 = vpop.f32.mrf.mxu0
  %v3209 = vadd.f32 %v2909, %v3208
  %3210 = vmatprep.mubr.f32.mxu0 %v2659
  %3211 = vmatmul.mubr.f32.gmra.mxu0 %v2658
  %v3212 = vpop.f32.mrf.mxu0
  %v3213 = vadd.f32 %v2905, %v3212
  %v3214 = vpop.f32.mrf.mxu0
  %v3215 = vadd.f32 %v2909, %v3214
  %3216 = vmatprep.mubr.f32.mxu0 %v2661
  %3217 = vmatmul.mubr.f32.gmra.mxu0 %v2660
  %v3218 = vpop.f32.mrf.mxu0
  %v3219 = vadd.f32 %v2905, %v3218
  %v3220 = vpop.f32.mrf.mxu0
  %v3221 = vadd.f32 %v2909, %v3220
  %3222 = vmatprep.mubr.f32.mxu0 %v2663
  %3223 = vmatmul.mubr.f32.gmra.mxu0 %v2662
  %v3224 = vpop.f32.mrf.mxu0
  %v3225 = vadd.f32 %v2905, %v3224
  %v3226 = vpop.f32.mrf.mxu0
  %v3227 = vadd.f32 %v2909, %v3226
  %3228 = vmatprep.mubr.f32.mxu0 %v2665
  %3229 = vmatmul.mubr.f32.gmra.mxu0 %v2664
  %v3230 = vpop.f32.mrf.mxu0
  %v3231 = vadd.f32 %v2905, %v3230
  %v3232 = vpop.f32.mrf.mxu0
  %v3233 = vadd.f32 %v2909, %v3232
  %3234 = vmatprep.mubr.f32.mxu0 %v2667
  %3235 = vmatmul.mubr.f32.gmra.mxu0 %v2666
  %v3236 = vpop.f32.mrf.mxu0
  %v3237 = vadd.f32 %v2905, %v3236
  %v3238 = vpop.f32.mrf.mxu0
  %v3239 = vadd.f32 %v2909, %v3238
  %3240 = vmatprep.mubr.f32.mxu0 %v2669
  %3241 = vmatmul.mubr.f32.gmra.mxu0 %v2668
  %v3242 = vpop.f32.mrf.mxu0
  %v3243 = vadd.f32 %v2905, %v3242
  %v3244 = vpop.f32.mrf.mxu0
  %v3245 = vadd.f32 %v2909, %v3244
  %3246 = vmatprep.mubr.f32.mxu0 %v2671
  %3247 = vmatmul.mubr.f32.gmra.mxu0 %v2670
  %v3248 = vpop.f32.mrf.mxu0
  %v3249 = vadd.f32 %v2905, %v3248
  %v3250 = vpop.f32.mrf.mxu0
  %v3251 = vadd.f32 %v2909, %v3250
  %3252 = vmatprep.mubr.f32.mxu0 %v2673
  %3253 = vmatmul.mubr.f32.gmra.mxu0 %v2672
  %v3254 = vpop.f32.mrf.mxu0
  %v3255 = vadd.f32 %v2905, %v3254
  %v3256 = vpop.f32.mrf.mxu0
  %v3257 = vadd.f32 %v2909, %v3256
  %3258 = vmatprep.mubr.f32.mxu0 %v2675
  %3259 = vmatmul.mubr.f32.gmra.mxu0 %v2674
  %v3260 = vpop.f32.mrf.mxu0
  %v3261 = vadd.f32 %v2905, %v3260
  %v3262 = vpop.f32.mrf.mxu0
  %v3263 = vadd.f32 %v2909, %v3262
  %3264 = vmatprep.mubr.f32.mxu0 %v2677
  %3265 = vmatmul.mubr.f32.gmra.mxu0 %v2676
  %v3266 = vpop.f32.mrf.mxu0
  %v3267 = vadd.f32 %v2905, %v3266
  %v3268 = vpop.f32.mrf.mxu0
  %v3269 = vadd.f32 %v2909, %v3268
  %3270 = vmatprep.mubr.f32.mxu0 %v2679
  %3271 = vmatmul.mubr.f32.gmra.mxu0 %v2678
  %v3272 = vpop.f32.mrf.mxu0
  %v3273 = vadd.f32 %v2905, %v3272
  %v3274 = vpop.f32.mrf.mxu0
  %v3275 = vadd.f32 %v2909, %v3274
  %3276 = vmatprep.mubr.f32.mxu0 %v2681
  %3277 = vmatmul.mubr.f32.gmra.mxu0 %v2680
  %v3278 = vpop.f32.mrf.mxu0
  %v3279 = vadd.f32 %v2905, %v3278
  %v3280 = vpop.f32.mrf.mxu0
  %v3281 = vadd.f32 %v2909, %v3280
  %3282 = vmatprep.mubr.f32.mxu0 %v2683
  %3283 = vmatmul.mubr.f32.gmra.mxu0 %v2682
  %v3284 = vpop.f32.mrf.mxu0
  %v3285 = vadd.f32 %v2905, %v3284
  %v3286 = vpop.f32.mrf.mxu0
  %v3287 = vadd.f32 %v2909, %v3286
  %3288 = vmatprep.mubr.f32.mxu0 %v2685
  %3289 = vmatmul.mubr.f32.gmra.mxu0 %v2684
  %v3290 = vpop.f32.mrf.mxu0
  %v3291 = vadd.f32 %v2905, %v3290
  %v3292 = vpop.f32.mrf.mxu0
  %v3293 = vadd.f32 %v2909, %v3292
  %3294 = vmatprep.mubr.f32.mxu0 %v2687
  %3295 = vmatmul.mubr.f32.gmra.mxu0 %v2686
  %v3296 = vpop.f32.mrf.mxu0
  %v3297 = vadd.f32 %v2905, %v3296
  %v3298 = vpop.f32.mrf.mxu0
  %v3299 = vadd.f32 %v2909, %v3298
  %3300 = vmatprep.mubr.f32.mxu0 %v2689
  %3301 = vmatmul.mubr.f32.gmra.mxu0 %v2688
  %v3302 = vpop.f32.mrf.mxu0
  %v3303 = vadd.f32 %v2905, %v3302
  %v3304 = vpop.f32.mrf.mxu0
  %v3305 = vadd.f32 %v2909, %v3304
  %3306 = vmatprep.mubr.f32.mxu0 %v2691
  %3307 = vmatmul.mubr.f32.gmra.mxu0 %v2690
  %v3308 = vpop.f32.mrf.mxu0
  %v3309 = vadd.f32 %v2905, %v3308
  %v3310 = vpop.f32.mrf.mxu0
  %v3311 = vadd.f32 %v2909, %v3310
  %3312 = vmatprep.mubr.f32.mxu0 %v2693
  %3313 = vmatmul.mubr.f32.gmra.mxu0 %v2692
  %v3314 = vpop.f32.mrf.mxu0
  %v3315 = vadd.f32 %v2905, %v3314
  %v3316 = vpop.f32.mrf.mxu0
  %v3317 = vadd.f32 %v2909, %v3316
  %3318 = vmatprep.mubr.f32.mxu0 %v2695
  %3319 = vmatmul.mubr.f32.gmra.mxu0 %v2694
  %v3320 = vpop.f32.mrf.mxu0
  %v3321 = vadd.f32 %v2905, %v3320
  %v3322 = vpop.f32.mrf.mxu0
  %v3323 = vadd.f32 %v2909, %v3322
  %3324 = vmatprep.mubr.f32.mxu0 %v2697
  %3325 = vmatmul.mubr.f32.gmra.mxu0 %v2696
  %v3326 = vpop.f32.mrf.mxu0
  %v3327 = vadd.f32 %v2905, %v3326
  %v3328 = vpop.f32.mrf.mxu0
  %v3329 = vadd.f32 %v2909, %v3328
  %3330 = vmatprep.mubr.f32.mxu0 %v2699
  %3331 = vmatmul.mubr.f32.gmra.mxu0 %v2698
  %v3332 = vpop.f32.mrf.mxu0
  %v3333 = vadd.f32 %v2905, %v3332
  %v3334 = vpop.f32.mrf.mxu0
  %v3335 = vadd.f32 %v2909, %v3334
  %3336 = vmatprep.mubr.f32.mxu0 %v2701
  %3337 = vmatmul.mubr.f32.gmra.mxu0 %v2700
  %v3338 = vpop.f32.mrf.mxu0
  %v3339 = vadd.f32 %v2905, %v3338
  %v3340 = vpop.f32.mrf.mxu0
  %v3341 = vadd.f32 %v2909, %v3340
  %3342 = vmatprep.mubr.f32.mxu0 %v2703
  %3343 = vmatmul.mubr.f32.gmra.mxu0 %v2702
  %v3344 = vpop.f32.mrf.mxu0
  %v3345 = vadd.f32 %v2905, %v3344
  %v3346 = vpop.f32.mrf.mxu0
  %v3347 = vadd.f32 %v2909, %v3346
  %3348 = vmatprep.mubr.f32.mxu0 %v2705
  %3349 = vmatmul.mubr.f32.gmra.mxu0 %v2704
  %v3350 = vpop.f32.mrf.mxu0
  %v3351 = vadd.f32 %v2905, %v3350
  %v3352 = vpop.f32.mrf.mxu0
  %v3353 = vadd.f32 %v2909, %v3352
  %3354 = vmatprep.mubr.f32.mxu0 %v2707
  %3355 = vmatmul.mubr.f32.gmra.mxu0 %v2706
  %v3356 = vpop.f32.mrf.mxu0
  %v3357 = vadd.f32 %v2905, %v3356
  %v3358 = vpop.f32.mrf.mxu0
  %v3359 = vadd.f32 %v2909, %v3358
  %3360 = vmatprep.mubr.f32.mxu0 %v2709
  %3361 = vmatmul.mubr.f32.gmra.mxu0 %v2708
  %v3362 = vpop.f32.mrf.mxu0
  %v3363 = vadd.f32 %v2905, %v3362
  %v3364 = vpop.f32.mrf.mxu0
  %v3365 = vadd.f32 %v2909, %v3364
  %3366 = vmatprep.mubr.f32.mxu0 %v2711
  %3367 = vmatmul.mubr.f32.gmra.mxu0 %v2710
  %v3368 = vpop.f32.mrf.mxu0
  %v3369 = vadd.f32 %v2905, %v3368
  %v3370 = vpop.f32.mrf.mxu0
  %v3371 = vadd.f32 %v2909, %v3370
  %3372 = vmatprep.mubr.f32.mxu0 %v2713
  %3373 = vmatmul.mubr.f32.gmra.mxu0 %v2712
  %v3374 = vpop.f32.mrf.mxu0
  %v3375 = vadd.f32 %v2905, %v3374
  %v3376 = vpop.f32.mrf.mxu0
  %v3377 = vadd.f32 %v2909, %v3376
  %3378 = vmatprep.mubr.f32.mxu0 %v2715
  %3379 = vmatmul.mubr.f32.gmra.mxu0 %v2714
  %v3380 = vpop.f32.mrf.mxu0
  %v3381 = vadd.f32 %v2905, %v3380
  %v3382 = vpop.f32.mrf.mxu0
  %v3383 = vadd.f32 %v2909, %v3382
  %3384 = vmatprep.mubr.f32.mxu0 %v2717
  %3385 = vmatmul.mubr.f32.gmra.mxu0 %v2716
  %v3386 = vpop.f32.mrf.mxu0
  %v3387 = vadd.f32 %v2905, %v3386
  %v3388 = vpop.f32.mrf.mxu0
  %v3389 = vadd.f32 %v2909, %v3388
  %3390 = vmatprep.mubr.f32.mxu0 %v2719
  %3391 = vmatmul.mubr.f32.gmra.mxu0 %v2718
  %v3392 = vpop.f32.mrf.mxu0
  %v3393 = vadd.f32 %v2905, %v3392
  %v3394 = vpop.f32.mrf.mxu0
  %v3395 = vadd.f32 %v2909, %v3394
  %3396 = vmatprep.mubr.f32.mxu0 %v2721
  %3397 = vmatmul.mubr.f32.gmra.mxu0 %v2720
  %v3398 = vpop.f32.mrf.mxu0
  %v3399 = vadd.f32 %v2905, %v3398
  %v3400 = vpop.f32.mrf.mxu0
  %v3401 = vadd.f32 %v2909, %v3400
  %3402 = vmatprep.mubr.f32.mxu0 %v2723
  %3403 = vmatmul.mubr.f32.gmra.mxu0 %v2722
  %v3404 = vpop.f32.mrf.mxu0
  %v3405 = vadd.f32 %v2905, %v3404
  %v3406 = vpop.f32.mrf.mxu0
  %v3407 = vadd.f32 %v2909, %v3406
  %3408 = vmatprep.mubr.f32.mxu0 %v2725
  %3409 = vmatmul.mubr.f32.gmra.mxu0 %v2724
  %v3410 = vpop.f32.mrf.mxu0
  %v3411 = vadd.f32 %v2905, %v3410
  %v3412 = vpop.f32.mrf.mxu0
  %v3413 = vadd.f32 %v2909, %v3412
  %3414 = vmatprep.mubr.f32.mxu0 %v2727
  %3415 = vmatmul.mubr.f32.gmra.mxu0 %v2726
  %v3416 = vpop.f32.mrf.mxu0
  %v3417 = vadd.f32 %v2905, %v3416
  %v3418 = vpop.f32.mrf.mxu0
  %v3419 = vadd.f32 %v2909, %v3418
  %3420 = vmatprep.mubr.f32.mxu0 %v2729
  %3421 = vmatmul.mubr.f32.gmra.mxu0 %v2728
  %v3422 = vpop.f32.mrf.mxu0
  %v3423 = vadd.f32 %v2905, %v3422
  %v3424 = vpop.f32.mrf.mxu0
  %v3425 = vadd.f32 %v2909, %v3424
  %3426 = vmatprep.mubr.f32.mxu0 %v2731
  %3427 = vmatmul.mubr.f32.gmra.mxu0 %v2730
  %v3428 = vpop.f32.mrf.mxu0
  %v3429 = vadd.f32 %v2905, %v3428
  %v3430 = vpop.f32.mrf.mxu0
  %v3431 = vadd.f32 %v2909, %v3430
  %3432 = vmatprep.mubr.f32.mxu0 %v2733
  %3433 = vmatmul.mubr.f32.gmra.mxu0 %v2732
  %v3434 = vpop.f32.mrf.mxu0
  %v3435 = vadd.f32 %v2905, %v3434
  %v3436 = vpop.f32.mrf.mxu0
  %v3437 = vadd.f32 %v2909, %v3436
  %3438 = vmatprep.mubr.f32.mxu0 %v2735
  %3439 = vmatmul.mubr.f32.gmra.mxu0 %v2734
  %v3440 = vpop.f32.mrf.mxu0
  %v3441 = vadd.f32 %v2905, %v3440
  %v3442 = vpop.f32.mrf.mxu0
  %v3443 = vadd.f32 %v2909, %v3442
  %3444 = vmatprep.mubr.f32.mxu0 %v2737
  %3445 = vmatmul.mubr.f32.gmra.mxu0 %v2736
  %v3446 = vpop.f32.mrf.mxu0
  %v3447 = vadd.f32 %v2905, %v3446
  %v3448 = vpop.f32.mrf.mxu0
  %v3449 = vadd.f32 %v2909, %v3448
  %3450 = vmatprep.mubr.f32.mxu0 %v2739
  %3451 = vmatmul.mubr.f32.gmra.mxu0 %v2738
  %v3452 = vpop.f32.mrf.mxu0
  %v3453 = vadd.f32 %v2905, %v3452
  %v3454 = vpop.f32.mrf.mxu0
  %v3455 = vadd.f32 %v2909, %v3454
  %3456 = vmatprep.mubr.f32.mxu0 %v2741
  %3457 = vmatmul.mubr.f32.gmra.mxu0 %v2740
  %v3458 = vpop.f32.mrf.mxu0
  %v3459 = vadd.f32 %v2905, %v3458
  %v3460 = vpop.f32.mrf.mxu0
  %v3461 = vadd.f32 %v2909, %v3460
  %3462 = vmatprep.mubr.f32.mxu0 %v2743
  %3463 = vmatmul.mubr.f32.gmra.mxu0 %v2742
  %v3464 = vpop.f32.mrf.mxu0
  %v3465 = vadd.f32 %v2905, %v3464
  %v3466 = vpop.f32.mrf.mxu0
  %v3467 = vadd.f32 %v2909, %v3466
  %3468 = vmatprep.mubr.f32.mxu0 %v2745
  %3469 = vmatmul.mubr.f32.gmra.mxu0 %v2744
  %v3470 = vpop.f32.mrf.mxu0
  %v3471 = vadd.f32 %v2905, %v3470
  %v3472 = vpop.f32.mrf.mxu0
  %v3473 = vadd.f32 %v2909, %v3472
  %3474 = vmatprep.mubr.f32.mxu0 %v2747
  %3475 = vmatmul.mubr.f32.gmra.mxu0 %v2746
  %v3476 = vpop.f32.mrf.mxu0
  %v3477 = vadd.f32 %v2905, %v3476
  %v3478 = vpop.f32.mrf.mxu0
  %v3479 = vadd.f32 %v2909, %v3478
  %3480 = vmatprep.mubr.f32.mxu0 %v2749
  %3481 = vmatmul.mubr.f32.gmra.mxu0 %v2748
  %v3482 = vpop.f32.mrf.mxu0
  %v3483 = vadd.f32 %v2905, %v3482
  %v3484 = vpop.f32.mrf.mxu0
  %v3485 = vadd.f32 %v2909, %v3484
  %3486 = vmatprep.mubr.f32.mxu0 %v2751
  %3487 = vmatmul.mubr.f32.gmra.mxu0 %v2750
  %v3488 = vpop.f32.mrf.mxu0
  %v3489 = vadd.f32 %v2905, %v3488
  %v3490 = vpop.f32.mrf.mxu0
  %v3491 = vadd.f32 %v2909, %v3490
  %3492 = vmatprep.mubr.f32.mxu0 %v2753
  %3493 = vmatmul.mubr.f32.gmra.mxu0 %v2752
  %v3494 = vpop.f32.mrf.mxu0
  %v3495 = vadd.f32 %v2905, %v3494
  %v3496 = vpop.f32.mrf.mxu0
  %v3497 = vadd.f32 %v2909, %v3496
  %3498 = vmatprep.mubr.f32.mxu0 %v2755
  %3499 = vmatmul.mubr.f32.gmra.mxu0 %v2754
  %v3500 = vpop.f32.mrf.mxu0
  %v3501 = vadd.f32 %v2905, %v3500
  %v3502 = vpop.f32.mrf.mxu0
  %v3503 = vadd.f32 %v2909, %v3502
  %3504 = vmatprep.mubr.f32.mxu0 %v2757
  %3505 = vmatmul.mubr.f32.gmra.mxu0 %v2756
  %v3506 = vpop.f32.mrf.mxu0
  %v3507 = vadd.f32 %v2905, %v3506
  %v3508 = vpop.f32.mrf.mxu0
  %v3509 = vadd.f32 %v2909, %v3508
  %3510 = vmatprep.mubr.f32.mxu0 %v2759
  %3511 = vmatmul.mubr.f32.gmra.mxu0 %v2758
  %v3512 = vpop.f32.mrf.mxu0
  %v3513 = vadd.f32 %v2905, %v3512
  %v3514 = vpop.f32.mrf.mxu0
  %v3515 = vadd.f32 %v2909, %v3514
  %3516 = vmatprep.mubr.f32.mxu0 %v2761
  %3517 = vmatmul.mubr.f32.gmra.mxu0 %v2760
  %v3518 = vpop.f32.mrf.mxu0
  %v3519 = vadd.f32 %v2905, %v3518
  %v3520 = vpop.f32.mrf.mxu0
  %v3521 = vadd.f32 %v2909, %v3520
  %3522 = vmatprep.mubr.f32.mxu0 %v2763
  %3523 = vmatmul.mubr.f32.gmra.mxu0 %v2762
  %v3524 = vpop.f32.mrf.mxu0
  %v3525 = vadd.f32 %v2905, %v3524
  %v3526 = vpop.f32.mrf.mxu0
  %v3527 = vadd.f32 %v2909, %v3526
  %3528 = vmatprep.mubr.f32.mxu0 %v2765
  %3529 = vmatmul.mubr.f32.gmra.mxu0 %v2764
  %v3530 = vpop.f32.mrf.mxu0
  %v3531 = vadd.f32 %v2905, %v3530
  %v3532 = vpop.f32.mrf.mxu0
  %v3533 = vadd.f32 %v2909, %v3532
  %3534 = vmatprep.mubr.f32.mxu0 %v2767
  %3535 = vmatmul.mubr.f32.gmra.mxu0 %v2766
  %v3536 = vpop.f32.mrf.mxu0
  %v3537 = vadd.f32 %v2905, %v3536
  %v3538 = vpop.f32.mrf.mxu0
  %v3539 = vadd.f32 %v2909, %v3538
  %3540 = vmatprep.mubr.f32.mxu0 %v2769
  %3541 = vmatmul.mubr.f32.gmra.mxu0 %v2768
  %v3542 = vpop.f32.mrf.mxu0
  %v3543 = vadd.f32 %v2905, %v3542
  %v3544 = vpop.f32.mrf.mxu0
  %v3545 = vadd.f32 %v2909, %v3544
  %3546 = vmatprep.mubr.f32.mxu0 %v2771
  %3547 = vmatmul.mubr.f32.gmra.mxu0 %v2770
  %v3548 = vpop.f32.mrf.mxu0
  %v3549 = vadd.f32 %v2905, %v3548
  %v3550 = vpop.f32.mrf.mxu0
  %v3551 = vadd.f32 %v2909, %v3550
  %3552 = vmatprep.mubr.f32.mxu0 %v2773
  %3553 = vmatmul.mubr.f32.gmra.mxu0 %v2772
  %v3554 = vpop.f32.mrf.mxu0
  %v3555 = vadd.f32 %v2905, %v3554
  %v3556 = vpop.f32.mrf.mxu0
  %v3557 = vadd.f32 %v2909, %v3556
  %3558 = vmatprep.mubr.f32.mxu0 %v2775
  %3559 = vmatmul.mubr.f32.gmra.mxu0 %v2774
  %v3560 = vpop.f32.mrf.mxu0
  %v3561 = vadd.f32 %v2905, %v3560
  %v3562 = vpop.f32.mrf.mxu0
  %v3563 = vadd.f32 %v2909, %v3562
  %3564 = vmatprep.mubr.f32.mxu0 %v2777
  %3565 = vmatmul.mubr.f32.gmra.mxu0 %v2776
  %v3566 = vpop.f32.mrf.mxu0
  %v3567 = vadd.f32 %v2905, %v3566
  %v3568 = vpop.f32.mrf.mxu0
  %v3569 = vadd.f32 %v2909, %v3568
  %3570 = vmatprep.mubr.f32.mxu0 %v2779
  %3571 = vmatmul.mubr.f32.gmra.mxu0 %v2778
  %v3572 = vpop.f32.mrf.mxu0
  %v3573 = vadd.f32 %v2905, %v3572
  %v3574 = vpop.f32.mrf.mxu0
  %v3575 = vadd.f32 %v2909, %v3574
  %3576 = vmatprep.mubr.f32.mxu0 %v2781
  %3577 = vmatmul.mubr.f32.gmra.mxu0 %v2780
  %v3578 = vpop.f32.mrf.mxu0
  %v3579 = vadd.f32 %v2905, %v3578
  %v3580 = vpop.f32.mrf.mxu0
  %v3581 = vadd.f32 %v2909, %v3580
  %3582 = vmatprep.mubr.f32.mxu0 %v2783
  %3583 = vmatmul.mubr.f32.gmra.mxu0 %v2782
  %v3584 = vpop.f32.mrf.mxu0
  %v3585 = vadd.f32 %v2905, %v3584
  %v3586 = vpop.f32.mrf.mxu0
  %v3587 = vadd.f32 %v2909, %v3586
  %3588 = vmatprep.mubr.f32.mxu0 %v2785
  %3589 = vmatmul.mubr.f32.gmra.mxu0 %v2784
  %v3590 = vpop.f32.mrf.mxu0
  %v3591 = vadd.f32 %v2905, %v3590
  %v3592 = vpop.f32.mrf.mxu0
  %v3593 = vadd.f32 %v2909, %v3592
  %3594 = vmatprep.mubr.f32.mxu0 %v2787
  %3595 = vmatmul.mubr.f32.gmra.mxu0 %v2786
  %v3596 = vpop.f32.mrf.mxu0
  %v3597 = vadd.f32 %v2905, %v3596
  %v3598 = vpop.f32.mrf.mxu0
  %v3599 = vadd.f32 %v2909, %v3598
  %3600 = vmatprep.mubr.f32.mxu0 %v2789
  %3601 = vmatmul.mubr.f32.gmra.mxu0 %v2788
  %v3602 = vpop.f32.mrf.mxu0
  %v3603 = vadd.f32 %v2905, %v3602
  %v3604 = vpop.f32.mrf.mxu0
  %v3605 = vadd.f32 %v2909, %v3604
  %3606 = vmatprep.mubr.f32.mxu0 %v2791
  %3607 = vmatmul.mubr.f32.gmra.mxu0 %v2790
  %v3608 = vpop.f32.mrf.mxu0
  %v3609 = vadd.f32 %v2905, %v3608
  %v3610 = vpop.f32.mrf.mxu0
  %v3611 = vadd.f32 %v2909, %v3610
  %3612 = vmatprep.mubr.f32.mxu0 %v2793
  %3613 = vmatmul.mubr.f32.gmra.mxu0 %v2792
  %v3614 = vpop.f32.mrf.mxu0
  %v3615 = vadd.f32 %v2905, %v3614
  %v3616 = vpop.f32.mrf.mxu0
  %v3617 = vadd.f32 %v2909, %v3616
  %3618 = vmatprep.mubr.f32.mxu0 %v2795
  %3619 = vmatmul.mubr.f32.gmra.mxu0 %v2794
  %v3620 = vpop.f32.mrf.mxu0
  %v3621 = vadd.f32 %v2905, %v3620
  %v3622 = vpop.f32.mrf.mxu0
  %v3623 = vadd.f32 %v2909, %v3622
  %3624 = vmatprep.mubr.f32.mxu0 %v2797
  %3625 = vmatmul.mubr.f32.gmra.mxu0 %v2796
  %v3626 = vpop.f32.mrf.mxu0
  %v3627 = vadd.f32 %v2905, %v3626
  %v3628 = vpop.f32.mrf.mxu0
  %v3629 = vadd.f32 %v2909, %v3628
  %3630 = vmatprep.mubr.f32.mxu0 %v2799
  %3631 = vmatmul.mubr.f32.gmra.mxu0 %v2798
  %v3632 = vpop.f32.mrf.mxu0
  %v3633 = vadd.f32 %v2905, %v3632
  %v3634 = vpop.f32.mrf.mxu0
  %v3635 = vadd.f32 %v2909, %v3634
  %3636 = vmatprep.mubr.f32.mxu0 %v2801
  %3637 = vmatmul.mubr.f32.gmra.mxu0 %v2800
  %v3638 = vpop.f32.mrf.mxu0
  %v3639 = vadd.f32 %v2905, %v3638
  %v3640 = vpop.f32.mrf.mxu0
  %v3641 = vadd.f32 %v2909, %v3640
  %3642 = vmatprep.mubr.f32.mxu0 %v2803
  %3643 = vmatmul.mubr.f32.gmra.mxu0 %v2802
  %v3644 = vpop.f32.mrf.mxu0
  %v3645 = vadd.f32 %v2905, %v3644
  %v3646 = vpop.f32.mrf.mxu0
  %v3647 = vadd.f32 %v2909, %v3646
  %3648 = vmatprep.mubr.f32.mxu0 %v2805
  %3649 = vmatmul.mubr.f32.gmra.mxu0 %v2804
  %v3650 = vpop.f32.mrf.mxu0
  %v3651 = vadd.f32 %v2905, %v3650
  %v3652 = vpop.f32.mrf.mxu0
  %v3653 = vadd.f32 %v2909, %v3652
  %3654 = vmatprep.mubr.f32.mxu0 %v2807
  %3655 = vmatmul.mubr.f32.gmra.mxu0 %v2806
  %v3656 = vpop.f32.mrf.mxu0
  %v3657 = vadd.f32 %v2905, %v3656
  %v3658 = vpop.f32.mrf.mxu0
  %v3659 = vadd.f32 %v2909, %v3658
  %3660 = vmatprep.mubr.f32.mxu0 %v2809
  %3661 = vmatmul.mubr.f32.gmra.mxu0 %v2808
  %v3662 = vpop.f32.mrf.mxu0
  %v3663 = vadd.f32 %v2905, %v3662
  %v3664 = vpop.f32.mrf.mxu0
  %v3665 = vadd.f32 %v2909, %v3664
  %3666 = vmatprep.mubr.f32.mxu0 %v2811
  %3667 = vmatmul.mubr.f32.gmra.mxu0 %v2810
  %v3668 = vpop.f32.mrf.mxu0
  %v3669 = vadd.f32 %v2905, %v3668
  %v3670 = vpop.f32.mrf.mxu0
  %v3671 = vadd.f32 %v2909, %v3670
  %3672 = vmatprep.mubr.f32.mxu0 %v2813
  %3673 = vmatmul.mubr.f32.gmra.mxu0 %v2812
  %v3674 = vpop.f32.mrf.mxu0
  %v3675 = vadd.f32 %v2905, %v3674
  %v3676 = vpop.f32.mrf.mxu0
  %v3677 = vadd.f32 %v2909, %v3676
  %3678 = vmatprep.mubr.f32.mxu0 %v2815
  %3679 = vmatmul.mubr.f32.gmra.mxu0 %v2814
  %v3680 = vpop.f32.mrf.mxu0
  %v3681 = vadd.f32 %v2905, %v3680
  %v3682 = vpop.f32.mrf.mxu0
  %v3683 = vadd.f32 %v2909, %v3682
  %3684 = vmatprep.mubr.f32.mxu0 %v2817
  %3685 = vmatmul.mubr.f32.gmra.mxu0 %v2816
  %v3686 = vpop.f32.mrf.mxu0
  %v3687 = vadd.f32 %v2905, %v3686
  %v3688 = vpop.f32.mrf.mxu0
  %v3689 = vadd.f32 %v2909, %v3688
  %3690 = vmatprep.mubr.f32.mxu0 %v2819
  %3691 = vmatmul.mubr.f32.gmra.mxu0 %v2818
  %v3692 = vpop.f32.mrf.mxu0
  %v3693 = vadd.f32 %v2905, %v3692
  %v3694 = vpop.f32.mrf.mxu0
  %v3695 = vadd.f32 %v2909, %v3694
  %3696 = vmatprep.mubr.f32.mxu0 %v2821
  %3697 = vmatmul.mubr.f32.gmra.mxu0 %v2820
  %v3698 = vpop.f32.mrf.mxu0
  %v3699 = vadd.f32 %v2905, %v3698
  %v3700 = vpop.f32.mrf.mxu0
  %v3701 = vadd.f32 %v2909, %v3700
  %3702 = vmatprep.mubr.f32.mxu0 %v2823
  %3703 = vmatmul.mubr.f32.gmra.mxu0 %v2822
  %v3704 = vpop.f32.mrf.mxu0
  %v3705 = vadd.f32 %v2905, %v3704
  %v3706 = vpop.f32.mrf.mxu0
  %v3707 = vadd.f32 %v2909, %v3706
  %3708 = vmatprep.mubr.f32.mxu0 %v2825
  %3709 = vmatmul.mubr.f32.gmra.mxu0 %v2824
  %v3710 = vpop.f32.mrf.mxu0
  %v3711 = vadd.f32 %v2905, %v3710
  %v3712 = vpop.f32.mrf.mxu0
  %v3713 = vadd.f32 %v2909, %v3712
  %3714 = vmatprep.mubr.f32.mxu0 %v2827
  %3715 = vmatmul.mubr.f32.gmra.mxu0 %v2826
  %v3716 = vpop.f32.mrf.mxu0
  %v3717 = vadd.f32 %v2905, %v3716
  %v3718 = vpop.f32.mrf.mxu0
  %v3719 = vadd.f32 %v2909, %v3718
  %3720 = vmatprep.mubr.f32.mxu0 %v2829
  %3721 = vmatmul.mubr.f32.gmra.mxu0 %v2828
  %v3722 = vpop.f32.mrf.mxu0
  %v3723 = vadd.f32 %v2905, %v3722
  %v3724 = vpop.f32.mrf.mxu0
  %v3725 = vadd.f32 %v2909, %v3724
  %3726 = vmatprep.mubr.f32.mxu0 %v2831
  %3727 = vmatmul.mubr.f32.gmra.mxu0 %v2830
  %v3728 = vpop.f32.mrf.mxu0
  %v3729 = vadd.f32 %v2905, %v3728
  %v3730 = vpop.f32.mrf.mxu0
  %v3731 = vadd.f32 %v2909, %v3730
  %3732 = vmatprep.mubr.f32.mxu0 %v2833
  %3733 = vmatmul.mubr.f32.gmra.mxu0 %v2832
  %v3734 = vpop.f32.mrf.mxu0
  %v3735 = vadd.f32 %v2905, %v3734
  %v3736 = vpop.f32.mrf.mxu0
  %v3737 = vadd.f32 %v2909, %v3736
  %3738 = vmatprep.mubr.f32.mxu0 %v2835
  %3739 = vmatmul.mubr.f32.gmra.mxu0 %v2834
  %v3740 = vpop.f32.mrf.mxu0
  %v3741 = vadd.f32 %v2905, %v3740
  %v3742 = vpop.f32.mrf.mxu0
  %v3743 = vadd.f32 %v2909, %v3742
  %3744 = vdwg.mxu0
  %v3745 = vmax.f32 %v2979, 0.0
  %v3746 = vmax.f32 %v2981, 0.0
  %v3747 = vmax.f32 %v2985, 0.0
  %v3748 = vmax.f32 %v2987, 0.0
  %v3749 = vmax.f32 %v2991, 0.0
  %v3750 = vmax.f32 %v2993, 0.0
  %v3751 = vmax.f32 %v2997, 0.0
  %v3752 = vmax.f32 %v2999, 0.0
  %v3753 = vmax.f32 %v3003, 0.0
  %v3754 = vmax.f32 %v3005, 0.0
  %v3755 = vmax.f32 %v3009, 0.0
  %v3756 = vmax.f32 %v3011, 0.0
  %v3757 = vmax.f32 %v3015, 0.0
  %v3758 = vmax.f32 %v3017, 0.0
  %v3759 = vmax.f32 %v3021, 0.0
  %v3760 = vmax.f32 %v3023, 0.0
  %v3761 = vmax.f32 %v3027, 0.0
  %v3762 = vmax.f32 %v3029, 0.0
  %v3763 = vmax.f32 %v3033, 0.0
  %v3764 = vmax.f32 %v3035, 0.0
  %v3765 = vmax.f32 %v3039, 0.0
  %v3766 = vmax.f32 %v3041, 0.0
  %v3767 = vmax.f32 %v3045, 0.0
  %v3768 = vmax.f32 %v3047, 0.0
  %v3769 = vmax.f32 %v3051, 0.0
  %v3770 = vmax.f32 %v3053, 0.0
  %v3771 = vmax.f32 %v3057, 0.0
  %v3772 = vmax.f32 %v3059, 0.0
  %v3773 = vmax.f32 %v3063, 0.0
  %v3774 = vmax.f32 %v3065, 0.0
  %v3775 = vmax.f32 %v3069, 0.0
  %v3776 = vmax.f32 %v3071, 0.0
  %v3777 = vmax.f32 %v3075, 0.0
  %v3778 = vmax.f32 %v3077, 0.0
  %v3779 = vmax.f32 %v3081, 0.0
  %v3780 = vmax.f32 %v3083, 0.0
  %v3781 = vmax.f32 %v3087, 0.0
  %v3782 = vmax.f32 %v3089, 0.0
  %v3783 = vmax.f32 %v3093, 0.0
  %v3784 = vmax.f32 %v3095, 0.0
  %v3785 = vmax.f32 %v3099, 0.0
  %v3786 = vmax.f32 %v3101, 0.0
  %v3787 = vmax.f32 %v3105, 0.0
  %v3788 = vmax.f32 %v3107, 0.0
  %v3789 = vmax.f32 %v3111, 0.0
  %v3790 = vmax.f32 %v3113, 0.0
  %v3791 = vmax.f32 %v3117, 0.0
  %v3792 = vmax.f32 %v3119, 0.0
  %v3793 = vmax.f32 %v3123, 0.0
  %v3794 = vmax.f32 %v3125, 0.0
  %v3795 = vmax.f32 %v3129, 0.0
  %v3796 = vmax.f32 %v3131, 0.0
  %v3797 = vmax.f32 %v3135, 0.0
  %v3798 = vmax.f32 %v3137, 0.0
  %v3799 = vmax.f32 %v3141, 0.0
  %v3800 = vmax.f32 %v3143, 0.0
  %v3801 = vmax.f32 %v3147, 0.0
  %v3802 = vmax.f32 %v3149, 0.0
  %v3803 = vmax.f32 %v3153, 0.0
  %v3804 = vmax.f32 %v3155, 0.0
  %v3805 = vmax.f32 %v3159, 0.0
  %v3806 = vmax.f32 %v3161, 0.0
  %v3807 = vmax.f32 %v3165, 0.0
  %v3808 = vmax.f32 %v3167, 0.0
  %v3809 = vmax.f32 %v3171, 0.0
  %v3810 = vmax.f32 %v3173, 0.0
  %v3811 = vmax.f32 %v3177, 0.0
  %v3812 = vmax.f32 %v3179, 0.0
  %v3813 = vmax.f32 %v3183, 0.0
  %v3814 = vmax.f32 %v3185, 0.0
  %v3815 = vmax.f32 %v3189, 0.0
  %v3816 = vmax.f32 %v3191, 0.0
  %v3817 = vmax.f32 %v3195, 0.0
  %v3818 = vmax.f32 %v3197, 0.0
  %v3819 = vmax.f32 %v3201, 0.0
  %v3820 = vmax.f32 %v3203, 0.0
  %v3821 = vmax.f32 %v3207, 0.0
  %v3822 = vmax.f32 %v3209, 0.0
  %v3823 = vmax.f32 %v3213, 0.0
  %v3824 = vmax.f32 %v3215, 0.0
  %v3825 = vmax.f32 %v3219, 0.0
  %v3826 = vmax.f32 %v3221, 0.0
  %v3827 = vmax.f32 %v3225, 0.0
  %v3828 = vmax.f32 %v3227, 0.0
  %v3829 = vmax.f32 %v3231, 0.0
  %v3830 = vmax.f32 %v3233, 0.0
  %v3831 = vmax.f32 %v3237, 0.0
  %v3832 = vmax.f32 %v3239, 0.0
  %v3833 = vmax.f32 %v3243, 0.0
  %v3834 = vmax.f32 %v3245, 0.0
  %v3835 = vmax.f32 %v3249, 0.0
  %v3836 = vmax.f32 %v3251, 0.0
  %v3837 = vmax.f32 %v3255, 0.0
  %v3838 = vmax.f32 %v3257, 0.0
  %v3839 = vmax.f32 %v3261, 0.0
  %v3840 = vmax.f32 %v3263, 0.0
  %v3841 = vmax.f32 %v3267, 0.0
  %v3842 = vmax.f32 %v3269, 0.0
  %v3843 = vmax.f32 %v3273, 0.0
  %v3844 = vmax.f32 %v3275, 0.0
  %v3845 = vmax.f32 %v3279, 0.0
  %v3846 = vmax.f32 %v3281, 0.0
  %v3847 = vmax.f32 %v3285, 0.0
  %v3848 = vmax.f32 %v3287, 0.0
  %v3849 = vmax.f32 %v3291, 0.0
  %v3850 = vmax.f32 %v3293, 0.0
  %v3851 = vmax.f32 %v3297, 0.0
  %v3852 = vmax.f32 %v3299, 0.0
  %v3853 = vmax.f32 %v3303, 0.0
  %v3854 = vmax.f32 %v3305, 0.0
  %v3855 = vmax.f32 %v3309, 0.0
  %v3856 = vmax.f32 %v3311, 0.0
  %v3857 = vmax.f32 %v3315, 0.0
  %v3858 = vmax.f32 %v3317, 0.0
  %v3859 = vmax.f32 %v3321, 0.0
  %v3860 = vmax.f32 %v3323, 0.0
  %v3861 = vmax.f32 %v3327, 0.0
  %v3862 = vmax.f32 %v3329, 0.0
  %v3863 = vmax.f32 %v3333, 0.0
  %v3864 = vmax.f32 %v3335, 0.0
  %v3865 = vmax.f32 %v3339, 0.0
  %v3866 = vmax.f32 %v3341, 0.0
  %v3867 = vmax.f32 %v3345, 0.0
  %v3868 = vmax.f32 %v3347, 0.0
  %v3869 = vmax.f32 %v3351, 0.0
  %v3870 = vmax.f32 %v3353, 0.0
  %v3871 = vmax.f32 %v3357, 0.0
  %v3872 = vmax.f32 %v3359, 0.0
  %v3873 = vmax.f32 %v3363, 0.0
  %v3874 = vmax.f32 %v3365, 0.0
  %v3875 = vmax.f32 %v3369, 0.0
  %v3876 = vmax.f32 %v3371, 0.0
  %v3877 = vmax.f32 %v3375, 0.0
  %v3878 = vmax.f32 %v3377, 0.0
  %v3879 = vmax.f32 %v3381, 0.0
  %v3880 = vmax.f32 %v3383, 0.0
  %v3881 = vmax.f32 %v3387, 0.0
  %v3882 = vmax.f32 %v3389, 0.0
  %v3883 = vmax.f32 %v3393, 0.0
  %v3884 = vmax.f32 %v3395, 0.0
  %v3885 = vmax.f32 %v3399, 0.0
  %v3886 = vmax.f32 %v3401, 0.0
  %v3887 = vmax.f32 %v3405, 0.0
  %v3888 = vmax.f32 %v3407, 0.0
  %v3889 = vmax.f32 %v3411, 0.0
  %v3890 = vmax.f32 %v3413, 0.0
  %v3891 = vmax.f32 %v3417, 0.0
  %v3892 = vmax.f32 %v3419, 0.0
  %v3893 = vmax.f32 %v3423, 0.0
  %v3894 = vmax.f32 %v3425, 0.0
  %v3895 = vmax.f32 %v3429, 0.0
  %v3896 = vmax.f32 %v3431, 0.0
  %v3897 = vmax.f32 %v3435, 0.0
  %v3898 = vmax.f32 %v3437, 0.0
  %v3899 = vmax.f32 %v3441, 0.0
  %v3900 = vmax.f32 %v3443, 0.0
  %v3901 = vmax.f32 %v3447, 0.0
  %v3902 = vmax.f32 %v3449, 0.0
  %v3903 = vmax.f32 %v3453, 0.0
  %v3904 = vmax.f32 %v3455, 0.0
  %v3905 = vmax.f32 %v3459, 0.0
  %v3906 = vmax.f32 %v3461, 0.0
  %v3907 = vmax.f32 %v3465, 0.0
  %v3908 = vmax.f32 %v3467, 0.0
  %v3909 = vmax.f32 %v3471, 0.0
  %v3910 = vmax.f32 %v3473, 0.0
  %v3911 = vmax.f32 %v3477, 0.0
  %v3912 = vmax.f32 %v3479, 0.0
  %v3913 = vmax.f32 %v3483, 0.0
  %v3914 = vmax.f32 %v3485, 0.0
  %v3915 = vmax.f32 %v3489, 0.0
  %v3916 = vmax.f32 %v3491, 0.0
  %v3917 = vmax.f32 %v3495, 0.0
  %v3918 = vmax.f32 %v3497, 0.0
  %v3919 = vmax.f32 %v3501, 0.0
  %v3920 = vmax.f32 %v3503, 0.0
  %v3921 = vmax.f32 %v3507, 0.0
  %v3922 = vmax.f32 %v3509, 0.0
  %v3923 = vmax.f32 %v3513, 0.0
  %v3924 = vmax.f32 %v3515, 0.0
  %v3925 = vmax.f32 %v3519, 0.0
  %v3926 = vmax.f32 %v3521, 0.0
  %v3927 = vmax.f32 %v3525, 0.0
  %v3928 = vmax.f32 %v3527, 0.0
  %v3929 = vmax.f32 %v3531, 0.0
  %v3930 = vmax.f32 %v3533, 0.0
  %v3931 = vmax.f32 %v3537, 0.0
  %v3932 = vmax.f32 %v3539, 0.0
  %v3933 = vmax.f32 %v3543, 0.0
  %v3934 = vmax.f32 %v3545, 0.0
  %v3935 = vmax.f32 %v3549, 0.0
  %v3936 = vmax.f32 %v3551, 0.0
  %v3937 = vmax.f32 %v3555, 0.0
  %v3938 = vmax.f32 %v3557, 0.0
  %v3939 = vmax.f32 %v3561, 0.0
  %v3940 = vmax.f32 %v3563, 0.0
  %v3941 = vmax.f32 %v3567, 0.0
  %v3942 = vmax.f32 %v3569, 0.0
  %v3943 = vmax.f32 %v3573, 0.0
  %v3944 = vmax.f32 %v3575, 0.0
  %v3945 = vmax.f32 %v3579, 0.0
  %v3946 = vmax.f32 %v3581, 0.0
  %v3947 = vmax.f32 %v3585, 0.0
  %v3948 = vmax.f32 %v3587, 0.0
  %v3949 = vmax.f32 %v3591, 0.0
  %v3950 = vmax.f32 %v3593, 0.0
  %v3951 = vmax.f32 %v3597, 0.0
  %v3952 = vmax.f32 %v3599, 0.0
  %v3953 = vmax.f32 %v3603, 0.0
  %v3954 = vmax.f32 %v3605, 0.0
  %v3955 = vmax.f32 %v3609, 0.0
  %v3956 = vmax.f32 %v3611, 0.0
  %v3957 = vmax.f32 %v3615, 0.0
  %v3958 = vmax.f32 %v3617, 0.0
  %v3959 = vmax.f32 %v3621, 0.0
  %v3960 = vmax.f32 %v3623, 0.0
  %v3961 = vmax.f32 %v3627, 0.0
  %v3962 = vmax.f32 %v3629, 0.0
  %v3963 = vmax.f32 %v3633, 0.0
  %v3964 = vmax.f32 %v3635, 0.0
  %v3965 = vmax.f32 %v3639, 0.0
  %v3966 = vmax.f32 %v3641, 0.0
  %v3967 = vmax.f32 %v3645, 0.0
  %v3968 = vmax.f32 %v3647, 0.0
  %v3969 = vmax.f32 %v3651, 0.0
  %v3970 = vmax.f32 %v3653, 0.0
  %v3971 = vmax.f32 %v3657, 0.0
  %v3972 = vmax.f32 %v3659, 0.0
  %v3973 = vmax.f32 %v3663, 0.0
  %v3974 = vmax.f32 %v3665, 0.0
  %v3975 = vmax.f32 %v3669, 0.0
  %v3976 = vmax.f32 %v3671, 0.0
  %v3977 = vmax.f32 %v3675, 0.0
  %v3978 = vmax.f32 %v3677, 0.0
  %v3979 = vmax.f32 %v3681, 0.0
  %v3980 = vmax.f32 %v3683, 0.0
  %v3981 = vmax.f32 %v3687, 0.0
  %v3982 = vmax.f32 %v3689, 0.0
  %v3983 = vmax.f32 %v3693, 0.0
  %v3984 = vmax.f32 %v3695, 0.0
  %v3985 = vmax.f32 %v3699, 0.0
  %v3986 = vmax.f32 %v3701, 0.0
  %v3987 = vmax.f32 %v3705, 0.0
  %v3988 = vmax.f32 %v3707, 0.0
  %v3989 = vmax.f32 %v3711, 0.0
  %v3990 = vmax.f32 %v3713, 0.0
  %v3991 = vmax.f32 %v3717, 0.0
  %v3992 = vmax.f32 %v3719, 0.0
  %v3993 = vmax.f32 %v3723, 0.0
  %v3994 = vmax.f32 %v3725, 0.0
  %v3995 = vmax.f32 %v3729, 0.0
  %v3996 = vmax.f32 %v3731, 0.0
  %v3997 = vmax.f32 %v3735, 0.0
  %v3998 = vmax.f32 %v3737, 0.0
  %v3999 = vmax.f32 %v3741, 0.0
  %v4000 = vmax.f32 %v3743, 0.0
  %v4001 = vadd.f32 %v3745, %v3749
  %v4002 = vadd.f32 %v3746, %v3750
  %v4003 = vadd.f32 %v3747, %v3751
  %v4004 = vadd.f32 %v3748, %v3752
  %v4005 = vadd.f32 %v4001, %v3777
  %v4006 = vadd.f32 %v4002, %v3778
  %v4007 = vadd.f32 %v4003, %v3779
  %v4008 = vadd.f32 %v4004, %v3780
  %v4009 = vadd.f32 %v4005, %v3781
  %v4010 = vadd.f32 %v4006, %v3782
  %v4011 = vadd.f32 %v4007, %v3783
  %v4012 = vadd.f32 %v4008, %v3784
  %v4013 = vmul.f32 %v4009, 0.25
  %v4014 = vmul.f32 %v4010, 0.25
  %v4015 = vmul.f32 %v4011, 0.25
  %v4016 = vmul.f32 %v4012, 0.25
  %v4017 = vld [vmem:[%s7] sm:$0xff]
  %v4018 = vld [vmem:[%s7 + $0x8] sm:$0xff]
  %v4019 = vld [vmem:[%s7 + $0x10] sm:$0xff]
  %v4020 = vld [vmem:[%s7 + $0x18] sm:$0xff]
  %v4021 = vld [vmem:[%s7 + $0x20] sm:$0xff]
  %v4022 = vld [vmem:[%s7 + $0x28] sm:$0xff]
  %v4023 = vld [vmem:[%s7 + $0x30] sm:$0xff]
  %v4024 = vld [vmem:[%s7 + $0x38] sm:$0xff]
  %v4025 = vld [vmem:[%s7 + $0x40] sm:$0xff]
  %v4026 = vld [vmem:[%s7 + $0x48] sm:$0xff]
  %v4027 = vld [vmem:[%s7 + $0x50] sm:$0xff]
  %v4028 = vld [vmem:[%s7 + $0x58] sm:$0xff]
  %v4029 = vld [vmem:[%s7 + $0x60] sm:$0xff]
  %v4030 = vld [vmem:[%s7 + $0x68] sm:$0xff]
  %v4031 = vld [vmem:[%s7 + $0x70] sm:$0xff]
  %v4032 = vld [vmem:[%s7 + $0x78] sm:$0xff]
  %v4033 = vld [vmem:[%s7 + $0x80] sm:$0xff]
  %v4034 = vld [vmem:[%s7 + $0x88] sm:$0xff]
  %v4035 = vld [vmem:[%s7 + $0x90] sm:$0xff]
  %v4036 = vld [vmem:[%s7 + $0x98] sm:$0xff]
  %v4037 = vld [vmem:[%s7 + $0xa0] sm:$0xff]
  %v4038 = vld [vmem:[%s7 + $0xa8] sm:$0xff]
  %v4039 = vld [vmem:[%s7 + $0xb0] sm:$0xff]
  %v4040 = vld [vmem:[%s7 + $0xb8] sm:$0xff]
  %v4041 = vld [vmem:[%s7 + $0xc0] sm:$0xff]
  %v4042 = vld [vmem:[%s7 + $0xc8] sm:$0xff]
  %v4043 = vld [vmem:[%s7 + $0xd0] sm:$0xff]
  %v4044 = vld [vmem:[%s7 + $0xd8] sm:$0xff]
  %v4045 = vld [vmem:[%s7 + $0xe0] sm:$0xff]
  %v4046 = vld [vmem:[%s7 + $0xe8] sm:$0xff]
  %v4047 = vld [vmem:[%s7 + $0xf0] sm:$0xff]
  %v4048 = vld [vmem:[%s7 + $0xf8] sm:$0xff]
  %v4049 = vld [vmem:[%s7 + $0x100] sm:$0xff]
  %v4050 = vld [vmem:[%s7 + $0x108] sm:$0xff]
  %v4051 = vld [vmem:[%s7 + $0x110] sm:$0xff]
  %v4052 = vld [vmem:[%s7 + $0x118] sm:$0xff]
  %v4053 = vld [vmem:[%s7 + $0x120] sm:$0xff]
  %v4054 = vld [vmem:[%s7 + $0x128] sm:$0xff]
  %v4055 = vld [vmem:[%s7 + $0x130] sm:$0xff]
  %v4056 = vld [vmem:[%s7 + $0x138] sm:$0xff]
  %v4057 = vld [vmem:[%s7 + $0x140] sm:$0xff]
  %v4058 = vld [vmem:[%s7 + $0x148] sm:$0xff]
  %v4059 = vld [vmem:[%s7 + $0x150] sm:$0xff]
  %v4060 = vld [vmem:[%s7 + $0x158] sm:$0xff]
  %v4061 = vld [vmem:[%s7 + $0x160] sm:$0xff]
  %v4062 = vld [vmem:[%s7 + $0x168] sm:$0xff]
  %v4063 = vld [vmem:[%s7 + $0x170] sm:$0xff]
  %v4064 = vld [vmem:[%s7 + $0x178] sm:$0xff]
  %v4065 = vld [vmem:[%s7 + $0x180] sm:$0xff]
  %v4066 = vld [vmem:[%s7 + $0x188] sm:$0xff]
  %v4067 = vld [vmem:[%s7 + $0x190] sm:$0xff]
  %v4068 = vld [vmem:[%s7 + $0x198] sm:$0xff]
  %v4069 = vld [vmem:[%s7 + $0x1a0] sm:$0xff]
  %v4070 = vld [vmem:[%s7 + $0x1a8] sm:$0xff]
  %v4071 = vld [vmem:[%s7 + $0x1b0] sm:$0xff]
  %v4072 = vld [vmem:[%s7 + $0x1b8] sm:$0xff]
  %v4073 = vld [vmem:[%s7 + $0x1c0] sm:$0xff]
  %v4074 = vld [vmem:[%s7 + $0x1c8] sm:$0xff]
  %v4075 = vld [vmem:[%s7 + $0x1d0] sm:$0xff]
  %v4076 = vld [vmem:[%s7 + $0x1d8] sm:$0xff]
  %v4077 = vld [vmem:[%s7 + $0x1e0] sm:$0xff]
  %v4078 = vld [vmem:[%s7 + $0x1e8] sm:$0xff]
  %v4079 = vld [vmem:[%s7 + $0x1f0] sm:$0xff]
  %v4080 = vld [vmem:[%s7 + $0x1f8] sm:$0xff]
  %v4081 = vld [vmem:[%s7 + $0x200] sm:$0xff]
  %v4082 = vld [vmem:[%s7 + $0x208] sm:$0xff]
  %v4083 = vld [vmem:[%s7 + $0x210] sm:$0xff]
  %v4084 = vld [vmem:[%s7 + $0x218] sm:$0xff]
  %v4085 = vld [vmem:[%s7 + $0x220] sm:$0xff]
  %v4086 = vld [vmem:[%s7 + $0x228] sm:$0xff]
  %v4087 = vld [vmem:[%s7 + $0x230] sm:$0xff]
  %v4088 = vld [vmem:[%s7 + $0x238] sm:$0xff]
  %v4089 = vld [vmem:[%s7 + $0x240] sm:$0xff]
  %v4090 = vld [vmem:[%s7 + $0x248] sm:$0xff]
  %v4091 = vld [vmem:[%s7 + $0x250] sm:$0xff]
  %v4092 = vld [vmem:[%s7 + $0x258] sm:$0xff]
  %v4093 = vld [vmem:[%s7 + $0x260] sm:$0xff]
  %v4094 = vld [vmem:[%s7 + $0x268] sm:$0xff]
  %v4095 = vld [vmem:[%s7 + $0x270] sm:$0xff]
  %v4096 = vld [vmem:[%s7 + $0x278] sm:$0xff]
  %v4097 = vld [vmem:[%s7 + $0x280] sm:$0xff]
  %v4098 = vld [vmem:[%s7 + $0x288] sm:$0xff]
  %v4099 = vld [vmem:[%s7 + $0x290] sm:$0xff]
  %v4100 = vld [vmem:[%s7 + $0x298] sm:$0xff]
  %v4101 = vld [vmem:[%s7 + $0x2a0] sm:$0xff]
  %v4102 = vld [vmem:[%s7 + $0x2a8] sm:$0xff]
  %v4103 = vld [vmem:[%s7 + $0x2b0] sm:$0xff]
  %v4104 = vld [vmem:[%s7 + $0x2b8] sm:$0xff]
  %v4105 = vld [vmem:[%s7 + $0x2c0] sm:$0xff]
  %v4106 = vld [vmem:[%s7 + $0x2c8] sm:$0xff]
  %v4107 = vld [vmem:[%s7 + $0x2d0] sm:$0xff]
  %v4108 = vld [vmem:[%s7 + $0x2d8] sm:$0xff]
  %v4109 = vld [vmem:[%s7 + $0x2e0] sm:$0xff]
  %v4110 = vld [vmem:[%s7 + $0x2e8] sm:$0xff]
  %v4111 = vld [vmem:[%s7 + $0x2f0] sm:$0xff]
  %v4112 = vld [vmem:[%s7 + $0x2f8] sm:$0xff]
  %v4113 = vld [vmem:[%s7 + $0x300] sm:$0xff]
  %v4114 = vld [vmem:[%s7 + $0x308] sm:$0xff]
  %v4115 = vld [vmem:[%s7 + $0x310] sm:$0xff]
  %v4116 = vld [vmem:[%s7 + $0x318] sm:$0xff]
  %v4117 = vld [vmem:[%s7 + $0x320] sm:$0xff]
  %v4118 = vld [vmem:[%s7 + $0x328] sm:$0xff]
  %v4119 = vld [vmem:[%s7 + $0x330] sm:$0xff]
  %v4120 = vld [vmem:[%s7 + $0x338] sm:$0xff]
  %v4121 = vld [vmem:[%s7 + $0x340] sm:$0xff]
  %v4122 = vld [vmem:[%s7 + $0x348] sm:$0xff]
  %v4123 = vld [vmem:[%s7 + $0x350] sm:$0xff]
  %v4124 = vld [vmem:[%s7 + $0x358] sm:$0xff]
  %v4125 = vld [vmem:[%s7 + $0x360] sm:$0xff]
  %v4126 = vld [vmem:[%s7 + $0x368] sm:$0xff]
  %v4127 = vld [vmem:[%s7 + $0x370] sm:$0xff]
  %v4128 = vld [vmem:[%s7 + $0x378] sm:$0xff]
  %v4129 = vld [vmem:[%s7 + $0x380] sm:$0xff]
  %v4130 = vld [vmem:[%s7 + $0x388] sm:$0xff]
  %v4131 = vld [vmem:[%s7 + $0x390] sm:$0xff]
  %v4132 = vld [vmem:[%s7 + $0x398] sm:$0xff]
  %v4133 = vld [vmem:[%s7 + $0x3a0] sm:$0xff]
  %v4134 = vld [vmem:[%s7 + $0x3a8] sm:$0xff]
  %v4135 = vld [vmem:[%s7 + $0x3b0] sm:$0xff]
  %v4136 = vld [vmem:[%s7 + $0x3b8] sm:$0xff]
  %v4137 = vld [vmem:[%s7 + $0x3c0] sm:$0xff]
  %v4138 = vld [vmem:[%s7 + $0x3c8] sm:$0xff]
  %v4139 = vld [vmem:[%s7 + $0x3d0] sm:$0xff]
  %v4140 = vld [vmem:[%s7 + $0x3d8] sm:$0xff]
  %v4141 = vld [vmem:[%s7 + $0x3e0] sm:$0xff]
  %v4142 = vld [vmem:[%s7 + $0x3e8] sm:$0xff]
  %v4143 = vld [vmem:[%s7 + $0x3f0] sm:$0xff]
  %v4144 = vld [vmem:[%s7 + $0x3f8] sm:$0xff]
  %v4145 = vadd.f32 %v3753, %v3757
  %v4146 = vadd.f32 %v3754, %v3758
  %v4147 = vadd.f32 %v3755, %v3759
  %v4148 = vadd.f32 %v3756, %v3760
  %v4149 = vadd.f32 %v4145, %v3785
  %v4150 = vadd.f32 %v4146, %v3786
  %v4151 = vadd.f32 %v4147, %v3787
  %v4152 = vadd.f32 %v4148, %v3788
  %v4153 = vadd.f32 %v4149, %v3789
  %v4154 = vadd.f32 %v4150, %v3790
  %v4155 = vadd.f32 %v4151, %v3791
  %v4156 = vadd.f32 %v4152, %v3792
  %v4157 = vmul.f32 %v4153, 0.25
  %v4158 = vmul.f32 %v4154, 0.25
  %v4159 = vmul.f32 %v4155, 0.25
  %v4160 = vmul.f32 %v4156, 0.25
  %s4161 = scalar_lea.vmem %s7, 1024
  %v4162 = vld [vmem:[%s4161] sm:$0xff]
  %v4163 = vld [vmem:[%s4161 + $0x8] sm:$0xff]
  %v4164 = vld [vmem:[%s4161 + $0x10] sm:$0xff]
  %v4165 = vld [vmem:[%s4161 + $0x18] sm:$0xff]
  %v4166 = vld [vmem:[%s4161 + $0x20] sm:$0xff]
  %v4167 = vld [vmem:[%s4161 + $0x28] sm:$0xff]
  %v4168 = vld [vmem:[%s4161 + $0x30] sm:$0xff]
  %v4169 = vld [vmem:[%s4161 + $0x38] sm:$0xff]
  %v4170 = vld [vmem:[%s4161 + $0x40] sm:$0xff]
  %v4171 = vld [vmem:[%s4161 + $0x48] sm:$0xff]
  %v4172 = vld [vmem:[%s4161 + $0x50] sm:$0xff]
  %v4173 = vld [vmem:[%s4161 + $0x58] sm:$0xff]
  %v4174 = vld [vmem:[%s4161 + $0x60] sm:$0xff]
  %v4175 = vld [vmem:[%s4161 + $0x68] sm:$0xff]
  %v4176 = vld [vmem:[%s4161 + $0x70] sm:$0xff]
  %v4177 = vld [vmem:[%s4161 + $0x78] sm:$0xff]
  %v4178 = vld [vmem:[%s4161 + $0x80] sm:$0xff]
  %v4179 = vld [vmem:[%s4161 + $0x88] sm:$0xff]
  %v4180 = vld [vmem:[%s4161 + $0x90] sm:$0xff]
  %v4181 = vld [vmem:[%s4161 + $0x98] sm:$0xff]
  %v4182 = vld [vmem:[%s4161 + $0xa0] sm:$0xff]
  %v4183 = vld [vmem:[%s4161 + $0xa8] sm:$0xff]
  %v4184 = vld [vmem:[%s4161 + $0xb0] sm:$0xff]
  %v4185 = vld [vmem:[%s4161 + $0xb8] sm:$0xff]
  %v4186 = vld [vmem:[%s4161 + $0xc0] sm:$0xff]
  %v4187 = vld [vmem:[%s4161 + $0xc8] sm:$0xff]
  %v4188 = vld [vmem:[%s4161 + $0xd0] sm:$0xff]
  %v4189 = vld [vmem:[%s4161 + $0xd8] sm:$0xff]
  %v4190 = vld [vmem:[%s4161 + $0xe0] sm:$0xff]
  %v4191 = vld [vmem:[%s4161 + $0xe8] sm:$0xff]
  %v4192 = vld [vmem:[%s4161 + $0xf0] sm:$0xff]
  %v4193 = vld [vmem:[%s4161 + $0xf8] sm:$0xff]
  %v4194 = vld [vmem:[%s4161 + $0x100] sm:$0xff]
  %v4195 = vld [vmem:[%s4161 + $0x108] sm:$0xff]
  %v4196 = vld [vmem:[%s4161 + $0x110] sm:$0xff]
  %v4197 = vld [vmem:[%s4161 + $0x118] sm:$0xff]
  %v4198 = vld [vmem:[%s4161 + $0x120] sm:$0xff]
  %v4199 = vld [vmem:[%s4161 + $0x128] sm:$0xff]
  %v4200 = vld [vmem:[%s4161 + $0x130] sm:$0xff]
  %v4201 = vld [vmem:[%s4161 + $0x138] sm:$0xff]
  %v4202 = vld [vmem:[%s4161 + $0x140] sm:$0xff]
  %v4203 = vld [vmem:[%s4161 + $0x148] sm:$0xff]
  %v4204 = vld [vmem:[%s4161 + $0x150] sm:$0xff]
  %v4205 = vld [vmem:[%s4161 + $0x158] sm:$0xff]
  %v4206 = vld [vmem:[%s4161 + $0x160] sm:$0xff]
  %v4207 = vld [vmem:[%s4161 + $0x168] sm:$0xff]
  %v4208 = vld [vmem:[%s4161 + $0x170] sm:$0xff]
  %v4209 = vld [vmem:[%s4161 + $0x178] sm:$0xff]
  %v4210 = vld [vmem:[%s4161 + $0x180] sm:$0xff]
  %v4211 = vld [vmem:[%s4161 + $0x188] sm:$0xff]
  %v4212 = vld [vmem:[%s4161 + $0x190] sm:$0xff]
  %v4213 = vld [vmem:[%s4161 + $0x198] sm:$0xff]
  %v4214 = vld [vmem:[%s4161 + $0x1a0] sm:$0xff]
  %v4215 = vld [vmem:[%s4161 + $0x1a8] sm:$0xff]
  %v4216 = vld [vmem:[%s4161 + $0x1b0] sm:$0xff]
  %v4217 = vld [vmem:[%s4161 + $0x1b8] sm:$0xff]
  %v4218 = vld [vmem:[%s4161 + $0x1c0] sm:$0xff]
  %v4219 = vld [vmem:[%s4161 + $0x1c8] sm:$0xff]
  %v4220 = vld [vmem:[%s4161 + $0x1d0] sm:$0xff]
  %v4221 = vld [vmem:[%s4161 + $0x1d8] sm:$0xff]
  %v4222 = vld [vmem:[%s4161 + $0x1e0] sm:$0xff]
  %v4223 = vld [vmem:[%s4161 + $0x1e8] sm:$0xff]
  %v4224 = vld [vmem:[%s4161 + $0x1f0] sm:$0xff]
  %v4225 = vld [vmem:[%s4161 + $0x1f8] sm:$0xff]
  %v4226 = vld [vmem:[%s4161 + $0x200] sm:$0xff]
  %v4227 = vld [vmem:[%s4161 + $0x208] sm:$0xff]
  %v4228 = vld [vmem:[%s4161 + $0x210] sm:$0xff]
  %v4229 = vld [vmem:[%s4161 + $0x218] sm:$0xff]
  %v4230 = vld [vmem:[%s4161 + $0x220] sm:$0xff]
  %v4231 = vld [vmem:[%s4161 + $0x228] sm:$0xff]
  %v4232 = vld [vmem:[%s4161 + $0x230] sm:$0xff]
  %v4233 = vld [vmem:[%s4161 + $0x238] sm:$0xff]
  %v4234 = vld [vmem:[%s4161 + $0x240] sm:$0xff]
  %v4235 = vld [vmem:[%s4161 + $0x248] sm:$0xff]
  %v4236 = vld [vmem:[%s4161 + $0x250] sm:$0xff]
  %v4237 = vld [vmem:[%s4161 + $0x258] sm:$0xff]
  %v4238 = vld [vmem:[%s4161 + $0x260] sm:$0xff]
  %v4239 = vld [vmem:[%s4161 + $0x268] sm:$0xff]
  %v4240 = vld [vmem:[%s4161 + $0x270] sm:$0xff]
  %v4241 = vld [vmem:[%s4161 + $0x278] sm:$0xff]
  %v4242 = vld [vmem:[%s4161 + $0x280] sm:$0xff]
  %v4243 = vld [vmem:[%s4161 + $0x288] sm:$0xff]
  %v4244 = vld [vmem:[%s4161 + $0x290] sm:$0xff]
  %v4245 = vld [vmem:[%s4161 + $0x298] sm:$0xff]
  %v4246 = vld [vmem:[%s4161 + $0x2a0] sm:$0xff]
  %v4247 = vld [vmem:[%s4161 + $0x2a8] sm:$0xff]
  %v4248 = vld [vmem:[%s4161 + $0x2b0] sm:$0xff]
  %v4249 = vld [vmem:[%s4161 + $0x2b8] sm:$0xff]
  %v4250 = vld [vmem:[%s4161 + $0x2c0] sm:$0xff]
  %v4251 = vld [vmem:[%s4161 + $0x2c8] sm:$0xff]
  %v4252 = vld [vmem:[%s4161 + $0x2d0] sm:$0xff]
  %v4253 = vld [vmem:[%s4161 + $0x2d8] sm:$0xff]
  %v4254 = vld [vmem:[%s4161 + $0x2e0] sm:$0xff]
  %v4255 = vld [vmem:[%s4161 + $0x2e8] sm:$0xff]
  %v4256 = vld [vmem:[%s4161 + $0x2f0] sm:$0xff]
  %v4257 = vld [vmem:[%s4161 + $0x2f8] sm:$0xff]
  %v4258 = vld [vmem:[%s4161 + $0x300] sm:$0xff]
  %v4259 = vld [vmem:[%s4161 + $0x308] sm:$0xff]
  %v4260 = vld [vmem:[%s4161 + $0x310] sm:$0xff]
  %v4261 = vld [vmem:[%s4161 + $0x318] sm:$0xff]
  %v4262 = vld [vmem:[%s4161 + $0x320] sm:$0xff]
  %v4263 = vld [vmem:[%s4161 + $0x328] sm:$0xff]
  %v4264 = vld [vmem:[%s4161 + $0x330] sm:$0xff]
  %v4265 = vld [vmem:[%s4161 + $0x338] sm:$0xff]
  %v4266 = vld [vmem:[%s4161 + $0x340] sm:$0xff]
  %v4267 = vld [vmem:[%s4161 + $0x348] sm:$0xff]
  %v4268 = vld [vmem:[%s4161 + $0x350] sm:$0xff]
  %v4269 = vld [vmem:[%s4161 + $0x358] sm:$0xff]
  %v4270 = vld [vmem:[%s4161 + $0x360] sm:$0xff]
  %v4271 = vld [vmem:[%s4161 + $0x368] sm:$0xff]
  %v4272 = vld [vmem:[%s4161 + $0x370] sm:$0xff]
  %v4273 = vld [vmem:[%s4161 + $0x378] sm:$0xff]
  %v4274 = vld [vmem:[%s4161 + $0x380] sm:$0xff]
  %v4275 = vld [vmem:[%s4161 + $0x388] sm:$0xff]
  %v4276 = vld [vmem:[%s4161 + $0x390] sm:$0xff]
  %v4277 = vld [vmem:[%s4161 + $0x398] sm:$0xff]
  %v4278 = vld [vmem:[%s4161 + $0x3a0] sm:$0xff]
  %v4279 = vld [vmem:[%s4161 + $0x3a8] sm:$0xff]
  %v4280 = vld [vmem:[%s4161 + $0x3b0] sm:$0xff]
  %v4281 = vld [vmem:[%s4161 + $0x3b8] sm:$0xff]
  %v4282 = vld [vmem:[%s4161 + $0x3c0] sm:$0xff]
  %v4283 = vld [vmem:[%s4161 + $0x3c8] sm:$0xff]
  %v4284 = vld [vmem:[%s4161 + $0x3d0] sm:$0xff]
  %v4285 = vld [vmem:[%s4161 + $0x3d8] sm:$0xff]
  %v4286 = vld [vmem:[%s4161 + $0x3e0] sm:$0xff]
  %v4287 = vld [vmem:[%s4161 + $0x3e8] sm:$0xff]
  %v4288 = vld [vmem:[%s4161 + $0x3f0] sm:$0xff]
  %v4289 = vld [vmem:[%s4161 + $0x3f8] sm:$0xff]
  %4290 = vmatprep.subr.mxu0 %v4223
  %4291 = vmatpush1.msra.mxu0 %v4222
  %4292 = vmatprep.subr.mxu0 %v4219
  %4293 = vmatpush1.msra.mxu0 %v4218
  %4294 = vmatprep.subr.mxu0 %v4215
  %4295 = vmatpush1.msra.mxu0 %v4214
  %4296 = vmatprep.subr.mxu0 %v4211
  %4297 = vmatpush1.msra.mxu0 %v4210
  %4298 = vmatprep.subr.mxu0 %v4207
  %4299 = vmatpush1.msra.mxu0 %v4206
  %4300 = vmatprep.subr.mxu0 %v4203
  %4301 = vmatpush1.msra.mxu0 %v4202
  %4302 = vmatprep.subr.mxu0 %v4199
  %4303 = vmatpush1.msra.mxu0 %v4198
  %4304 = vmatprep.subr.mxu0 %v4195
  %4305 = vmatpush1.msra.mxu0 %v4194
  %4306 = vmatprep.subr.mxu0 %v4191
  %4307 = vmatpush1.msra.mxu0 %v4190
  %4308 = vmatprep.subr.mxu0 %v4187
  %4309 = vmatpush1.msra.mxu0 %v4186
  %4310 = vmatprep.subr.mxu0 %v4183
  %4311 = vmatpush1.msra.mxu0 %v4182
  %4312 = vmatprep.subr.mxu0 %v4179
  %4313 = vmatpush1.msra.mxu0 %v4178
  %4314 = vmatprep.subr.mxu0 %v4175
  %4315 = vmatpush1.msra.mxu0 %v4174
  %4316 = vmatprep.subr.mxu0 %v4171
  %4317 = vmatpush1.msra.mxu0 %v4170
  %4318 = vmatprep.subr.mxu0 %v4167
  %4319 = vmatpush1.msra.mxu0 %v4166
  %4320 = vmatprep.subr.mxu0 %v4163
  %4321 = vmatpush1.msra.mxu0 %v4162
  %4322 = vmatprep.subr.mxu0 %v4287
  %4323 = vmatpush2.msra.mxu0 %v4286
  %4324 = vmatprep.subr.mxu0 %v4283
  %4325 = vmatpush2.msra.mxu0 %v4282
  %4326 = vmatprep.subr.mxu0 %v4279
  %4327 = vmatpush2.msra.mxu0 %v4278
  %4328 = vmatprep.subr.mxu0 %v4275
  %4329 = vmatpush2.msra.mxu0 %v4274
  %4330 = vmatprep.subr.mxu0 %v4271
  %4331 = vmatpush2.msra.mxu0 %v4270
  %4332 = vmatprep.subr.mxu0 %v4267
  %4333 = vmatpush2.msra.mxu0 %v4266
  %4334 = vmatprep.subr.mxu0 %v4263
  %4335 = vmatpush2.msra.mxu0 %v4262
  %4336 = vmatprep.subr.mxu0 %v4259
  %4337 = vmatpush2.msra.mxu0 %v4258
  %4338 = vmatprep.subr.mxu0 %v4255
  %4339 = vmatpush2.msra.mxu0 %v4254
  %4340 = vmatprep.subr.mxu0 %v4251
  %4341 = vmatpush2.msra.mxu0 %v4250
  %4342 = vmatprep.subr.mxu0 %v4247
  %4343 = vmatpush2.msra.mxu0 %v4246
  %4344 = vmatprep.subr.mxu0 %v4243
  %4345 = vmatpush2.msra.mxu0 %v4242
  %4346 = vmatprep.subr.mxu0 %v4239
  %4347 = vmatpush2.msra.mxu0 %v4238
  %4348 = vmatprep.subr.mxu0 %v4235
  %4349 = vmatpush2.msra.mxu0 %v4234
  %4350 = vmatprep.subr.mxu0 %v4231
  %4351 = vmatpush2.msra.mxu0 %v4230
  %4352 = vmatprep.subr.mxu0 %v4227
  %4353 = vmatpush2.msra.mxu0 %v4226
  %4354 = vmatprep.mubr.f32.mxu0 %v4158
  %4355 = vmatmul.mubr.f32.gmra.mxu0 %v4157
  %v4356 = vpop.f32.mrf.mxu0
  %v4357 = vadd.f32 0.0, %v4356
  %v4358 = vpop.f32.mrf.mxu0
  %v4359 = vadd.f32 0.0, %v4358
  %4360 = vmatprep.mubr.f32.mxu0 %v4160
  %4361 = vmatmul.mubr.f32.gmra.mxu0 %v4159
  %v4362 = vpop.f32.mrf.mxu0
  %v4363 = vadd.f32 0.0, %v4362
  %v4364 = vpop.f32.mrf.mxu0
  %v4365 = vadd.f32 0.0, %v4364
  %4366 = vdwg.mxu0
  %4367 = vmatprep.subr.mxu0 %v4225
  %4368 = vmatpush1.msra.mxu0 %v4224
  %4369 = vmatprep.subr.mxu0 %v4221
  %4370 = vmatpush1.msra.mxu0 %v4220
  %4371 = vmatprep.subr.mxu0 %v4217
  %4372 = vmatpush1.msra.mxu0 %v4216
  %4373 = vmatprep.subr.mxu0 %v4213
  %4374 = vmatpush1.msra.mxu0 %v4212
  %4375 = vmatprep.subr.mxu0 %v4209
  %4376 = vmatpush1.msra.mxu0 %v4208
  %4377 = vmatprep.subr.mxu0 %v4205
  %4378 = vmatpush1.msra.mxu0 %v4204
  %4379 = vmatprep.subr.mxu0 %v4201
  %4380 = vmatpush1.msra.mxu0 %v4200
  %4381 = vmatprep.subr.mxu0 %v4197
  %4382 = vmatpush1.msra.mxu0 %v4196
  %4383 = vmatprep.subr.mxu0 %v4193
  %4384 = vmatpush1.msra.mxu0 %v4192
  %4385 = vmatprep.subr.mxu0 %v4189
  %4386 = vmatpush1.msra.mxu0 %v4188
  %4387 = vmatprep.subr.mxu0 %v4185
  %4388 = vmatpush1.msra.mxu0 %v4184
  %4389 = vmatprep.subr.mxu0 %v4181
  %4390 = vmatpush1.msra.mxu0 %v4180
  %4391 = vmatprep.subr.mxu0 %v4177
  %4392 = vmatpush1.msra.mxu0 %v4176
  %4393 = vmatprep.subr.mxu0 %v4173
  %4394 = vmatpush1.msra.mxu0 %v4172
  %4395 = vmatprep.subr.mxu0 %v4169
  %4396 = vmatpush1.msra.mxu0 %v4168
  %4397 = vmatprep.subr.mxu0 %v4165
  %4398 = vmatpush1.msra.mxu0 %v4164
  %4399 = vmatprep.subr.mxu0 %v4289
  %4400 = vmatpush2.msra.mxu0 %v4288
  %4401 = vmatprep.subr.mxu0 %v4285
  %4402 = vmatpush2.msra.mxu0 %v4284
  %4403 = vmatprep.subr.mxu0 %v4281
  %4404 = vmatpush2.msra.mxu0 %v4280
  %4405 = vmatprep.subr.mxu0 %v4277
  %4406 = vmatpush2.msra.mxu0 %v4276
  %4407 = vmatprep.subr.mxu0 %v4273
  %4408 = vmatpush2.msra.mxu0 %v4272
  %4409 = vmatprep.subr.mxu0 %v4269
  %4410 = vmatpush2.msra.mxu0 %v4268
  %4411 = vmatprep.subr.mxu0 %v4265
  %4412 = vmatpush2.msra.mxu0 %v4264
  %4413 = vmatprep.subr.mxu0 %v4261
  %4414 = vmatpush2.msra.mxu0 %v4260
  %4415 = vmatprep.subr.mxu0 %v4257
  %4416 = vmatpush2.msra.mxu0 %v4256
  %4417 = vmatprep.subr.mxu0 %v4253
  %4418 = vmatpush2.msra.mxu0 %v4252
  %4419 = vmatprep.subr.mxu0 %v4249
  %4420 = vmatpush2.msra.mxu0 %v4248
  %4421 = vmatprep.subr.mxu0 %v4245
  %4422 = vmatpush2.msra.mxu0 %v4244
  %4423 = vmatprep.subr.mxu0 %v4241
  %4424 = vmatpush2.msra.mxu0 %v4240
  %4425 = vmatprep.subr.mxu0 %v4237
  %4426 = vmatpush2.msra.mxu0 %v4236
  %4427 = vmatprep.subr.mxu0 %v4233
  %4428 = vmatpush2.msra.mxu0 %v4232
  %4429 = vmatprep.subr.mxu0 %v4229
  %4430 = vmatpush2.msra.mxu0 %v4228
  %4431 = vmatprep.mubr.f32.mxu0 %v4158
  %4432 = vmatmul.mubr.f32.gmra.mxu0 %v4157
  %v4433 = vpop.f32.mrf.mxu0
  %v4434 = vadd.f32 0.0, %v4433
  %v4435 = vpop.f32.mrf.mxu0
  %v4436 = vadd.f32 0.0, %v4435
  %4437 = vmatprep.mubr.f32.mxu0 %v4160
  %4438 = vmatmul.mubr.f32.gmra.mxu0 %v4159
  %v4439 = vpop.f32.mrf.mxu0
  %v4440 = vadd.f32 0.0, %v4439
  %v4441 = vpop.f32.mrf.mxu0
  %v4442 = vadd.f32 0.0, %v4441
  %4443 = vdwg.mxu0
  %4444 = vmatprep.subr.mxu0 %v4078
  %4445 = vmatpush1.msra.mxu0 %v4077
  %4446 = vmatprep.subr.mxu0 %v4074
  %4447 = vmatpush1.msra.mxu0 %v4073
  %4448 = vmatprep.subr.mxu0 %v4070
  %4449 = vmatpush1.msra.mxu0 %v4069
  %4450 = vmatprep.subr.mxu0 %v4066
  %4451 = vmatpush1.msra.mxu0 %v4065
  %4452 = vmatprep.subr.mxu0 %v4062
  %4453 = vmatpush1.msra.mxu0 %v4061
  %4454 = vmatprep.subr.mxu0 %v4058
  %4455 = vmatpush1.msra.mxu0 %v4057
  %4456 = vmatprep.subr.mxu0 %v4054
  %4457 = vmatpush1.msra.mxu0 %v4053
  %4458 = vmatprep.subr.mxu0 %v4050
  %4459 = vmatpush1.msra.mxu0 %v4049
  %4460 = vmatprep.subr.mxu0 %v4046
  %4461 = vmatpush1.msra.mxu0 %v4045
  %4462 = vmatprep.subr.mxu0 %v4042
  %4463 = vmatpush1.msra.mxu0 %v4041
  %4464 = vmatprep.subr.mxu0 %v4038
  %4465 = vmatpush1.msra.mxu0 %v4037
  %4466 = vmatprep.subr.mxu0 %v4034
  %4467 = vmatpush1.msra.mxu0 %v4033
  %4468 = vmatprep.subr.mxu0 %v4030
  %4469 = vmatpush1.msra.mxu0 %v4029
  %4470 = vmatprep.subr.mxu0 %v4026
  %4471 = vmatpush1.msra.mxu0 %v4025
  %4472 = vmatprep.subr.mxu0 %v4022
  %4473 = vmatpush1.msra.mxu0 %v4021
  %4474 = vmatprep.subr.mxu0 %v4018
  %4475 = vmatpush1.msra.mxu0 %v4017
  %4476 = vmatprep.subr.mxu0 %v4142
  %4477 = vmatpush2.msra.mxu0 %v4141
  %4478 = vmatprep.subr.mxu0 %v4138
  %4479 = vmatpush2.msra.mxu0 %v4137
  %4480 = vmatprep.subr.mxu0 %v4134
  %4481 = vmatpush2.msra.mxu0 %v4133
  %4482 = vmatprep.subr.mxu0 %v4130
  %4483 = vmatpush2.msra.mxu0 %v4129
  %4484 = vmatprep.subr.mxu0 %v4126
  %4485 = vmatpush2.msra.mxu0 %v4125
  %4486 = vmatprep.subr.mxu0 %v4122
  %4487 = vmatpush2.msra.mxu0 %v4121
  %4488 = vmatprep.subr.mxu0 %v4118
  %4489 = vmatpush2.msra.mxu0 %v4117
  %4490 = vmatprep.subr.mxu0 %v4114
  %4491 = vmatpush2.msra.mxu0 %v4113
  %4492 = vmatprep.subr.mxu0 %v4110
  %4493 = vmatpush2.msra.mxu0 %v4109
  %4494 = vmatprep.subr.mxu0 %v4106
  %4495 = vmatpush2.msra.mxu0 %v4105
  %4496 = vmatprep.subr.mxu0 %v4102
  %4497 = vmatpush2.msra.mxu0 %v4101
  %4498 = vmatprep.subr.mxu0 %v4098
  %4499 = vmatpush2.msra.mxu0 %v4097
  %4500 = vmatprep.subr.mxu0 %v4094
  %4501 = vmatpush2.msra.mxu0 %v4093
  %4502 = vmatprep.subr.mxu0 %v4090
  %4503 = vmatpush2.msra.mxu0 %v4089
  %4504 = vmatprep.subr.mxu0 %v4086
  %4505 = vmatpush2.msra.mxu0 %v4085
  %4506 = vmatprep.subr.mxu0 %v4082
  %4507 = vmatpush2.msra.mxu0 %v4081
  %4508 = vmatprep.mubr.f32.mxu0 %v4014
  %4509 = vmatmul.mubr.f32.gmra.mxu0 %v4013
  %v4510 = vpop.f32.mrf.mxu0
  %v4511 = vadd.f32 %v4357, %v4510
  %v4512 = vpop.f32.mrf.mxu0
  %v4513 = vadd.f32 %v4359, %v4512
  %4514 = vmatprep.mubr.f32.mxu0 %v4016
  %4515 = vmatmul.mubr.f32.gmra.mxu0 %v4015
  %v4516 = vpop.f32.mrf.mxu0
  %v4517 = vadd.f32 %v4363, %v4516
  %v4518 = vpop.f32.mrf.mxu0
  %v4519 = vadd.f32 %v4365, %v4518
  %4520 = vdwg.mxu0
  %4521 = vmatprep.subr.mxu0 %v4080
  %4522 = vmatpush1.msra.mxu0 %v4079
  %4523 = vmatprep.subr.mxu0 %v4076
  %4524 = vmatpush1.msra.mxu0 %v4075
  %4525 = vmatprep.subr.mxu0 %v4072
  %4526 = vmatpush1.msra.mxu0 %v4071
  %4527 = vmatprep.subr.mxu0 %v4068
  %4528 = vmatpush1.msra.mxu0 %v4067
  %4529 = vmatprep.subr.mxu0 %v4064
  %4530 = vmatpush1.msra.mxu0 %v4063
  %4531 = vmatprep.subr.mxu0 %v4060
  %4532 = vmatpush1.msra.mxu0 %v4059
  %4533 = vmatprep.subr.mxu0 %v4056
  %4534 = vmatpush1.msra.mxu0 %v4055
  %4535 = vmatprep.subr.mxu0 %v4052
  %4536 = vmatpush1.msra.mxu0 %v4051
  %4537 = vmatprep.subr.mxu0 %v4048
  %4538 = vmatpush1.msra.mxu0 %v4047
  %4539 = vmatprep.subr.mxu0 %v4044
  %4540 = vmatpush1.msra.mxu0 %v4043
  %4541 = vmatprep.subr.mxu0 %v4040
  %4542 = vmatpush1.msra.mxu0 %v4039
  %4543 = vmatprep.subr.mxu0 %v4036
  %4544 = vmatpush1.msra.mxu0 %v4035
  %4545 = vmatprep.subr.mxu0 %v4032
  %4546 = vmatpush1.msra.mxu0 %v4031
  %4547 = vmatprep.subr.mxu0 %v4028
  %4548 = vmatpush1.msra.mxu0 %v4027
  %4549 = vmatprep.subr.mxu0 %v4024
  %4550 = vmatpush1.msra.mxu0 %v4023
  %4551 = vmatprep.subr.mxu0 %v4020
  %4552 = vmatpush1.msra.mxu0 %v4019
  %4553 = vmatprep.subr.mxu0 %v4144
  %4554 = vmatpush2.msra.mxu0 %v4143
  %4555 = vmatprep.subr.mxu0 %v4140
  %4556 = vmatpush2.msra.mxu0 %v4139
  %4557 = vmatprep.subr.mxu0 %v4136
  %4558 = vmatpush2.msra.mxu0 %v4135
  %4559 = vmatprep.subr.mxu0 %v4132
  %4560 = vmatpush2.msra.mxu0 %v4131
  %4561 = vmatprep.subr.mxu0 %v4128
  %4562 = vmatpush2.msra.mxu0 %v4127
  %4563 = vmatprep.subr.mxu0 %v4124
  %4564 = vmatpush2.msra.mxu0 %v4123
  %4565 = vmatprep.subr.mxu0 %v4120
  %4566 = vmatpush2.msra.mxu0 %v4119
  %4567 = vmatprep.subr.mxu0 %v4116
  %4568 = vmatpush2.msra.mxu0 %v4115
  %4569 = vmatprep.subr.mxu0 %v4112
  %4570 = vmatpush2.msra.mxu0 %v4111
  %4571 = vmatprep.subr.mxu0 %v4108
  %4572 = vmatpush2.msra.mxu0 %v4107
  %4573 = vmatprep.subr.mxu0 %v4104
  %4574 = vmatpush2.msra.mxu0 %v4103
  %4575 = vmatprep.subr.mxu0 %v4100
  %4576 = vmatpush2.msra.mxu0 %v4099
  %4577 = vmatprep.subr.mxu0 %v4096
  %4578 = vmatpush2.msra.mxu0 %v4095
  %4579 = vmatprep.subr.mxu0 %v4092
  %4580 = vmatpush2.msra.mxu0 %v4091
  %4581 = vmatprep.subr.mxu0 %v4088
  %4582 = vmatpush2.msra.mxu0 %v4087
  %4583 = vmatprep.subr.mxu0 %v4084
  %4584 = vmatpush2.msra.mxu0 %v4083
  %4585 = vmatprep.mubr.f32.mxu0 %v4014
  %4586 = vmatmul.mubr.f32.gmra.mxu0 %v4013
  %v4587 = vpop.f32.mrf.mxu0
  %v4588 = vadd.f32 %v4434, %v4587
  %v4589 = vpop.f32.mrf.mxu0
  %v4590 = vadd.f32 %v4436, %v4589
  %4591 = vmatprep.mubr.f32.mxu0 %v4016
  %4592 = vmatmul.mubr.f32.gmra.mxu0 %v4015
  %v4593 = vpop.f32.mrf.mxu0
  %v4594 = vadd.f32 %v4440, %v4593
  %v4595 = vpop.f32.mrf.mxu0
  %v4596 = vadd.f32 %v4442, %v4595
  %4597 = vdwg.mxu0
  %v4598 = vadd.f32 %v3761, %v3765
  %v4599 = vadd.f32 %v3762, %v3766
  %v4600 = vadd.f32 %v3763, %v3767
  %v4601 = vadd.f32 %v3764, %v3768
  %v4602 = vadd.f32 %v4598, %v3793
  %v4603 = vadd.f32 %v4599, %v3794
  %v4604 = vadd.f32 %v4600, %v3795
  %v4605 = vadd.f32 %v4601, %v3796
  %v4606 = vadd.f32 %v4602, %v3797
  %v4607 = vadd.f32 %v4603, %v3798
  %v4608 = vadd.f32 %v4604, %v3799
  %v4609 = vadd.f32 %v4605, %v3800
  %v4610 = vmul.f32 %v4606, 0.25
  %v4611 = vmul.f32 %v4607, 0.25
  %v4612 = vmul.f32 %v4608, 0.25
  %v4613 = vmul.f32 %v4609, 0.25
  %s4614 = scalar_lea.vmem %s7, 2048
  %v4615 = vld [vmem:[%s4614] sm:$0xff]
  %v4616 = vld [vmem:[%s4614 + $0x8] sm:$0xff]
  %v4617 = vld [vmem:[%s4614 + $0x10] sm:$0xff]
  %v4618 = vld [vmem:[%s4614 + $0x18] sm:$0xff]
  %v4619 = vld [vmem:[%s4614 + $0x20] sm:$0xff]
  %v4620 = vld [vmem:[%s4614 + $0x28] sm:$0xff]
  %v4621 = vld [vmem:[%s4614 + $0x30] sm:$0xff]
  %v4622 = vld [vmem:[%s4614 + $0x38] sm:$0xff]
  %v4623 = vld [vmem:[%s4614 + $0x40] sm:$0xff]
  %v4624 = vld [vmem:[%s4614 + $0x48] sm:$0xff]
  %v4625 = vld [vmem:[%s4614 + $0x50] sm:$0xff]
  %v4626 = vld [vmem:[%s4614 + $0x58] sm:$0xff]
  %v4627 = vld [vmem:[%s4614 + $0x60] sm:$0xff]
  %v4628 = vld [vmem:[%s4614 + $0x68] sm:$0xff]
  %v4629 = vld [vmem:[%s4614 + $0x70] sm:$0xff]
  %v4630 = vld [vmem:[%s4614 + $0x78] sm:$0xff]
  %v4631 = vld [vmem:[%s4614 + $0x80] sm:$0xff]
  %v4632 = vld [vmem:[%s4614 + $0x88] sm:$0xff]
  %v4633 = vld [vmem:[%s4614 + $0x90] sm:$0xff]
  %v4634 = vld [vmem:[%s4614 + $0x98] sm:$0xff]
  %v4635 = vld [vmem:[%s4614 + $0xa0] sm:$0xff]
  %v4636 = vld [vmem:[%s4614 + $0xa8] sm:$0xff]
  %v4637 = vld [vmem:[%s4614 + $0xb0] sm:$0xff]
  %v4638 = vld [vmem:[%s4614 + $0xb8] sm:$0xff]
  %v4639 = vld [vmem:[%s4614 + $0xc0] sm:$0xff]
  %v4640 = vld [vmem:[%s4614 + $0xc8] sm:$0xff]
  %v4641 = vld [vmem:[%s4614 + $0xd0] sm:$0xff]
  %v4642 = vld [vmem:[%s4614 + $0xd8] sm:$0xff]
  %v4643 = vld [vmem:[%s4614 + $0xe0] sm:$0xff]
  %v4644 = vld [vmem:[%s4614 + $0xe8] sm:$0xff]
  %v4645 = vld [vmem:[%s4614 + $0xf0] sm:$0xff]
  %v4646 = vld [vmem:[%s4614 + $0xf8] sm:$0xff]
  %v4647 = vld [vmem:[%s4614 + $0x100] sm:$0xff]
  %v4648 = vld [vmem:[%s4614 + $0x108] sm:$0xff]
  %v4649 = vld [vmem:[%s4614 + $0x110] sm:$0xff]
  %v4650 = vld [vmem:[%s4614 + $0x118] sm:$0xff]
  %v4651 = vld [vmem:[%s4614 + $0x120] sm:$0xff]
  %v4652 = vld [vmem:[%s4614 + $0x128] sm:$0xff]
  %v4653 = vld [vmem:[%s4614 + $0x130] sm:$0xff]
  %v4654 = vld [vmem:[%s4614 + $0x138] sm:$0xff]
  %v4655 = vld [vmem:[%s4614 + $0x140] sm:$0xff]
  %v4656 = vld [vmem:[%s4614 + $0x148] sm:$0xff]
  %v4657 = vld [vmem:[%s4614 + $0x150] sm:$0xff]
  %v4658 = vld [vmem:[%s4614 + $0x158] sm:$0xff]
  %v4659 = vld [vmem:[%s4614 + $0x160] sm:$0xff]
  %v4660 = vld [vmem:[%s4614 + $0x168] sm:$0xff]
  %v4661 = vld [vmem:[%s4614 + $0x170] sm:$0xff]
  %v4662 = vld [vmem:[%s4614 + $0x178] sm:$0xff]
  %v4663 = vld [vmem:[%s4614 + $0x180] sm:$0xff]
  %v4664 = vld [vmem:[%s4614 + $0x188] sm:$0xff]
  %v4665 = vld [vmem:[%s4614 + $0x190] sm:$0xff]
  %v4666 = vld [vmem:[%s4614 + $0x198] sm:$0xff]
  %v4667 = vld [vmem:[%s4614 + $0x1a0] sm:$0xff]
  %v4668 = vld [vmem:[%s4614 + $0x1a8] sm:$0xff]
  %v4669 = vld [vmem:[%s4614 + $0x1b0] sm:$0xff]
  %v4670 = vld [vmem:[%s4614 + $0x1b8] sm:$0xff]
  %v4671 = vld [vmem:[%s4614 + $0x1c0] sm:$0xff]
  %v4672 = vld [vmem:[%s4614 + $0x1c8] sm:$0xff]
  %v4673 = vld [vmem:[%s4614 + $0x1d0] sm:$0xff]
  %v4674 = vld [vmem:[%s4614 + $0x1d8] sm:$0xff]
  %v4675 = vld [vmem:[%s4614 + $0x1e0] sm:$0xff]
  %v4676 = vld [vmem:[%s4614 + $0x1e8] sm:$0xff]
  %v4677 = vld [vmem:[%s4614 + $0x1f0] sm:$0xff]
  %v4678 = vld [vmem:[%s4614 + $0x1f8] sm:$0xff]
  %v4679 = vld [vmem:[%s4614 + $0x200] sm:$0xff]
  %v4680 = vld [vmem:[%s4614 + $0x208] sm:$0xff]
  %v4681 = vld [vmem:[%s4614 + $0x210] sm:$0xff]
  %v4682 = vld [vmem:[%s4614 + $0x218] sm:$0xff]
  %v4683 = vld [vmem:[%s4614 + $0x220] sm:$0xff]
  %v4684 = vld [vmem:[%s4614 + $0x228] sm:$0xff]
  %v4685 = vld [vmem:[%s4614 + $0x230] sm:$0xff]
  %v4686 = vld [vmem:[%s4614 + $0x238] sm:$0xff]
  %v4687 = vld [vmem:[%s4614 + $0x240] sm:$0xff]
  %v4688 = vld [vmem:[%s4614 + $0x248] sm:$0xff]
  %v4689 = vld [vmem:[%s4614 + $0x250] sm:$0xff]
  %v4690 = vld [vmem:[%s4614 + $0x258] sm:$0xff]
  %v4691 = vld [vmem:[%s4614 + $0x260] sm:$0xff]
  %v4692 = vld [vmem:[%s4614 + $0x268] sm:$0xff]
  %v4693 = vld [vmem:[%s4614 + $0x270] sm:$0xff]
  %v4694 = vld [vmem:[%s4614 + $0x278] sm:$0xff]
  %v4695 = vld [vmem:[%s4614 + $0x280] sm:$0xff]
  %v4696 = vld [vmem:[%s4614 + $0x288] sm:$0xff]
  %v4697 = vld [vmem:[%s4614 + $0x290] sm:$0xff]
  %v4698 = vld [vmem:[%s4614 + $0x298] sm:$0xff]
  %v4699 = vld [vmem:[%s4614 + $0x2a0] sm:$0xff]
  %v4700 = vld [vmem:[%s4614 + $0x2a8] sm:$0xff]
  %v4701 = vld [vmem:[%s4614 + $0x2b0] sm:$0xff]
  %v4702 = vld [vmem:[%s4614 + $0x2b8] sm:$0xff]
  %v4703 = vld [vmem:[%s4614 + $0x2c0] sm:$0xff]
  %v4704 = vld [vmem:[%s4614 + $0x2c8] sm:$0xff]
  %v4705 = vld [vmem:[%s4614 + $0x2d0] sm:$0xff]
  %v4706 = vld [vmem:[%s4614 + $0x2d8] sm:$0xff]
  %v4707 = vld [vmem:[%s4614 + $0x2e0] sm:$0xff]
  %v4708 = vld [vmem:[%s4614 + $0x2e8] sm:$0xff]
  %v4709 = vld [vmem:[%s4614 + $0x2f0] sm:$0xff]
  %v4710 = vld [vmem:[%s4614 + $0x2f8] sm:$0xff]
  %v4711 = vld [vmem:[%s4614 + $0x300] sm:$0xff]
  %v4712 = vld [vmem:[%s4614 + $0x308] sm:$0xff]
  %v4713 = vld [vmem:[%s4614 + $0x310] sm:$0xff]
  %v4714 = vld [vmem:[%s4614 + $0x318] sm:$0xff]
  %v4715 = vld [vmem:[%s4614 + $0x320] sm:$0xff]
  %v4716 = vld [vmem:[%s4614 + $0x328] sm:$0xff]
  %v4717 = vld [vmem:[%s4614 + $0x330] sm:$0xff]
  %v4718 = vld [vmem:[%s4614 + $0x338] sm:$0xff]
  %v4719 = vld [vmem:[%s4614 + $0x340] sm:$0xff]
  %v4720 = vld [vmem:[%s4614 + $0x348] sm:$0xff]
  %v4721 = vld [vmem:[%s4614 + $0x350] sm:$0xff]
  %v4722 = vld [vmem:[%s4614 + $0x358] sm:$0xff]
  %v4723 = vld [vmem:[%s4614 + $0x360] sm:$0xff]
  %v4724 = vld [vmem:[%s4614 + $0x368] sm:$0xff]
  %v4725 = vld [vmem:[%s4614 + $0x370] sm:$0xff]
  %v4726 = vld [vmem:[%s4614 + $0x378] sm:$0xff]
  %v4727 = vld [vmem:[%s4614 + $0x380] sm:$0xff]
  %v4728 = vld [vmem:[%s4614 + $0x388] sm:$0xff]
  %v4729 = vld [vmem:[%s4614 + $0x390] sm:$0xff]
  %v4730 = vld [vmem:[%s4614 + $0x398] sm:$0xff]
  %v4731 = vld [vmem:[%s4614 + $0x3a0] sm:$0xff]
  %v4732 = vld [vmem:[%s4614 + $0x3a8] sm:$0xff]
  %v4733 = vld [vmem:[%s4614 + $0x3b0] sm:$0xff]
  %v4734 = vld [vmem:[%s4614 + $0x3b8] sm:$0xff]
  %v4735 = vld [vmem:[%s4614 + $0x3c0] sm:$0xff]
  %v4736 = vld [vmem:[%s4614 + $0x3c8] sm:$0xff]
  %v4737 = vld [vmem:[%s4614 + $0x3d0] sm:$0xff]
  %v4738 = vld [vmem:[%s4614 + $0x3d8] sm:$0xff]
  %v4739 = vld [vmem:[%s4614 + $0x3e0] sm:$0xff]
  %v4740 = vld [vmem:[%s4614 + $0x3e8] sm:$0xff]
  %v4741 = vld [vmem:[%s4614 + $0x3f0] sm:$0xff]
  %v4742 = vld [vmem:[%s4614 + $0x3f8] sm:$0xff]
  %4743 = vmatprep.subr.mxu0 %v4676
  %4744 = vmatpush1.msra.mxu0 %v4675
  %4745 = vmatprep.subr.mxu0 %v4672
  %4746 = vmatpush1.msra.mxu0 %v4671
  %4747 = vmatprep.subr.mxu0 %v4668
  %4748 = vmatpush1.msra.mxu0 %v4667
  %4749 = vmatprep.subr.mxu0 %v4664
  %4750 = vmatpush1.msra.mxu0 %v4663
  %4751 = vmatprep.subr.mxu0 %v4660
  %4752 = vmatpush1.msra.mxu0 %v4659
  %4753 = vmatprep.subr.mxu0 %v4656
  %4754 = vmatpush1.msra.mxu0 %v4655
  %4755 = vmatprep.subr.mxu0 %v4652
  %4756 = vmatpush1.msra.mxu0 %v4651
  %4757 = vmatprep.subr.mxu0 %v4648
  %4758 = vmatpush1.msra.mxu0 %v4647
  %4759 = vmatprep.subr.mxu0 %v4644
  %4760 = vmatpush1.msra.mxu0 %v4643
  %4761 = vmatprep.subr.mxu0 %v4640
  %4762 = vmatpush1.msra.mxu0 %v4639
  %4763 = vmatprep.subr.mxu0 %v4636
  %4764 = vmatpush1.msra.mxu0 %v4635
  %4765 = vmatprep.subr.mxu0 %v4632
  %4766 = vmatpush1.msra.mxu0 %v4631
  %4767 = vmatprep.subr.mxu0 %v4628
  %4768 = vmatpush1.msra.mxu0 %v4627
  %4769 = vmatprep.subr.mxu0 %v4624
  %4770 = vmatpush1.msra.mxu0 %v4623
  %4771 = vmatprep.subr.mxu0 %v4620
  %4772 = vmatpush1.msra.mxu0 %v4619
  %4773 = vmatprep.subr.mxu0 %v4616
  %4774 = vmatpush1.msra.mxu0 %v4615
  %4775 = vmatprep.subr.mxu0 %v4740
  %4776 = vmatpush2.msra.mxu0 %v4739
  %4777 = vmatprep.subr.mxu0 %v4736
  %4778 = vmatpush2.msra.mxu0 %v4735
  %4779 = vmatprep.subr.mxu0 %v4732
  %4780 = vmatpush2.msra.mxu0 %v4731
  %4781 = vmatprep.subr.mxu0 %v4728
  %4782 = vmatpush2.msra.mxu0 %v4727
  %4783 = vmatprep.subr.mxu0 %v4724
  %4784 = vmatpush2.msra.mxu0 %v4723
  %4785 = vmatprep.subr.mxu0 %v4720
  %4786 = vmatpush2.msra.mxu0 %v4719
  %4787 = vmatprep.subr.mxu0 %v4716
  %4788 = vmatpush2.msra.mxu0 %v4715
  %4789 = vmatprep.subr.mxu0 %v4712
  %4790 = vmatpush2.msra.mxu0 %v4711
  %4791 = vmatprep.subr.mxu0 %v4708
  %4792 = vmatpush2.msra.mxu0 %v4707
  %4793 = vmatprep.subr.mxu0 %v4704
  %4794 = vmatpush2.msra.mxu0 %v4703
  %4795 = vmatprep.subr.mxu0 %v4700
  %4796 = vmatpush2.msra.mxu0 %v4699
  %4797 = vmatprep.subr.mxu0 %v4696
  %4798 = vmatpush2.msra.mxu0 %v4695
  %4799 = vmatprep.subr.mxu0 %v4692
  %4800 = vmatpush2.msra.mxu0 %v4691
  %4801 = vmatprep.subr.mxu0 %v4688
  %4802 = vmatpush2.msra.mxu0 %v4687
  %4803 = vmatprep.subr.mxu0 %v4684
  %4804 = vmatpush2.msra.mxu0 %v4683
  %4805 = vmatprep.subr.mxu0 %v4680
  %4806 = vmatpush2.msra.mxu0 %v4679
  %4807 = vmatprep.mubr.f32.mxu0 %v4611
  %4808 = vmatmul.mubr.f32.gmra.mxu0 %v4610
  %v4809 = vpop.f32.mrf.mxu0
  %v4810 = vadd.f32 0.0, %v4809
  %v4811 = vpop.f32.mrf.mxu0
  %v4812 = vadd.f32 0.0, %v4811
  %4813 = vmatprep.mubr.f32.mxu0 %v4613
  %4814 = vmatmul.mubr.f32.gmra.mxu0 %v4612
  %v4815 = vpop.f32.mrf.mxu0
  %v4816 = vadd.f32 0.0, %v4815
  %v4817 = vpop.f32.mrf.mxu0
  %v4818 = vadd.f32 0.0, %v4817
  %4819 = vdwg.mxu0
  %4820 = vmatprep.subr.mxu0 %v4678
  %4821 = vmatpush1.msra.mxu0 %v4677
  %4822 = vmatprep.subr.mxu0 %v4674
  %4823 = vmatpush1.msra.mxu0 %v4673
  %4824 = vmatprep.subr.mxu0 %v4670
  %4825 = vmatpush1.msra.mxu0 %v4669
  %4826 = vmatprep.subr.mxu0 %v4666
  %4827 = vmatpush1.msra.mxu0 %v4665
  %4828 = vmatprep.subr.mxu0 %v4662
  %4829 = vmatpush1.msra.mxu0 %v4661
  %4830 = vmatprep.subr.mxu0 %v4658
  %4831 = vmatpush1.msra.mxu0 %v4657
  %4832 = vmatprep.subr.mxu0 %v4654
  %4833 = vmatpush1.msra.mxu0 %v4653
  %4834 = vmatprep.subr.mxu0 %v4650
  %4835 = vmatpush1.msra.mxu0 %v4649
  %4836 = vmatprep.subr.mxu0 %v4646
  %4837 = vmatpush1.msra.mxu0 %v4645
  %4838 = vmatprep.subr.mxu0 %v4642
  %4839 = vmatpush1.msra.mxu0 %v4641
  %4840 = vmatprep.subr.mxu0 %v4638
  %4841 = vmatpush1.msra.mxu0 %v4637
  %4842 = vmatprep.subr.mxu0 %v4634
  %4843 = vmatpush1.msra.mxu0 %v4633
  %4844 = vmatprep.subr.mxu0 %v4630
  %4845 = vmatpush1.msra.mxu0 %v4629
  %4846 = vmatprep.subr.mxu0 %v4626
  %4847 = vmatpush1.msra.mxu0 %v4625
  %4848 = vmatprep.subr.mxu0 %v4622
  %4849 = vmatpush1.msra.mxu0 %v4621
  %4850 = vmatprep.subr.mxu0 %v4618
  %4851 = vmatpush1.msra.mxu0 %v4617
  %4852 = vmatprep.subr.mxu0 %v4742
  %4853 = vmatpush2.msra.mxu0 %v4741
  %4854 = vmatprep.subr.mxu0 %v4738
  %4855 = vmatpush2.msra.mxu0 %v4737
  %4856 = vmatprep.subr.mxu0 %v4734
  %4857 = vmatpush2.msra.mxu0 %v4733
  %4858 = vmatprep.subr.mxu0 %v4730
  %4859 = vmatpush2.msra.mxu0 %v4729
  %4860 = vmatprep.subr.mxu0 %v4726
  %4861 = vmatpush2.msra.mxu0 %v4725
  %4862 = vmatprep.subr.mxu0 %v4722
  %4863 = vmatpush2.msra.mxu0 %v4721
  %4864 = vmatprep.subr.mxu0 %v4718
  %4865 = vmatpush2.msra.mxu0 %v4717
  %4866 = vmatprep.subr.mxu0 %v4714
  %4867 = vmatpush2.msra.mxu0 %v4713
  %4868 = vmatprep.subr.mxu0 %v4710
  %4869 = vmatpush2.msra.mxu0 %v4709
  %4870 = vmatprep.subr.mxu0 %v4706
  %4871 = vmatpush2.msra.mxu0 %v4705
  %4872 = vmatprep.subr.mxu0 %v4702
  %4873 = vmatpush2.msra.mxu0 %v4701
  %4874 = vmatprep.subr.mxu0 %v4698
  %4875 = vmatpush2.msra.mxu0 %v4697
  %4876 = vmatprep.subr.mxu0 %v4694
  %4877 = vmatpush2.msra.mxu0 %v4693
  %4878 = vmatprep.subr.mxu0 %v4690
  %4879 = vmatpush2.msra.mxu0 %v4689
  %4880 = vmatprep.subr.mxu0 %v4686
  %4881 = vmatpush2.msra.mxu0 %v4685
  %4882 = vmatprep.subr.mxu0 %v4682
  %4883 = vmatpush2.msra.mxu0 %v4681
  %4884 = vmatprep.mubr.f32.mxu0 %v4611
  %4885 = vmatmul.mubr.f32.gmra.mxu0 %v4610
  %v4886 = vpop.f32.mrf.mxu0
  %v4887 = vadd.f32 0.0, %v4886
  %v4888 = vpop.f32.mrf.mxu0
  %v4889 = vadd.f32 0.0, %v4888
  %4890 = vmatprep.mubr.f32.mxu0 %v4613
  %4891 = vmatmul.mubr.f32.gmra.mxu0 %v4612
  %v4892 = vpop.f32.mrf.mxu0
  %v4893 = vadd.f32 0.0, %v4892
  %v4894 = vpop.f32.mrf.mxu0
  %v4895 = vadd.f32 0.0, %v4894
  %4896 = vdwg.mxu0
  %v4897 = vadd.f32 %v4511, %v4810
  %v4898 = vadd.f32 %v4513, %v4812
  %v4899 = vadd.f32 %v4588, %v4887
  %v4900 = vadd.f32 %v4590, %v4889
  %v4901 = vadd.f32 %v4517, %v4816
  %v4902 = vadd.f32 %v4519, %v4818
  %v4903 = vadd.f32 %v4594, %v4893
  %v4904 = vadd.f32 %v4596, %v4895
  %v4905 = vadd.f32 %v3769, %v3773
  %v4906 = vadd.f32 %v3770, %v3774
  %v4907 = vadd.f32 %v3771, %v3775
  %v4908 = vadd.f32 %v3772, %v3776
  %v4909 = vadd.f32 %v4905, %v3801
  %v4910 = vadd.f32 %v4906, %v3802
  %v4911 = vadd.f32 %v4907, %v3803
  %v4912 = vadd.f32 %v4908, %v3804
  %v4913 = vadd.f32 %v4909, %v3805
  %v4914 = vadd.f32 %v4910, %v3806
  %v4915 = vadd.f32 %v4911, %v3807
  %v4916 = vadd.f32 %v4912, %v3808
  %v4917 = vmul.f32 %v4913, 0.25
  %v4918 = vmul.f32 %v4914, 0.25
  %v4919 = vmul.f32 %v4915, 0.25
  %v4920 = vmul.f32 %v4916, 0.25
  %s4921 = scalar_lea.vmem %s7, 3072
  %v4922 = vld [vmem:[%s4921] sm:$0xff]
  %v4923 = vld [vmem:[%s4921 + $0x8] sm:$0xff]
  %v4924 = vld [vmem:[%s4921 + $0x10] sm:$0xff]
  %v4925 = vld [vmem:[%s4921 + $0x18] sm:$0xff]
  %v4926 = vld [vmem:[%s4921 + $0x20] sm:$0xff]
  %v4927 = vld [vmem:[%s4921 + $0x28] sm:$0xff]
  %v4928 = vld [vmem:[%s4921 + $0x30] sm:$0xff]
  %v4929 = vld [vmem:[%s4921 + $0x38] sm:$0xff]
  %v4930 = vld [vmem:[%s4921 + $0x40] sm:$0xff]
  %v4931 = vld [vmem:[%s4921 + $0x48] sm:$0xff]
  %v4932 = vld [vmem:[%s4921 + $0x50] sm:$0xff]
  %v4933 = vld [vmem:[%s4921 + $0x58] sm:$0xff]
  %v4934 = vld [vmem:[%s4921 + $0x60] sm:$0xff]
  %v4935 = vld [vmem:[%s4921 + $0x68] sm:$0xff]
  %v4936 = vld [vmem:[%s4921 + $0x70] sm:$0xff]
  %v4937 = vld [vmem:[%s4921 + $0x78] sm:$0xff]
  %v4938 = vld [vmem:[%s4921 + $0x80] sm:$0xff]
  %v4939 = vld [vmem:[%s4921 + $0x88] sm:$0xff]
  %v4940 = vld [vmem:[%s4921 + $0x90] sm:$0xff]
  %v4941 = vld [vmem:[%s4921 + $0x98] sm:$0xff]
  %v4942 = vld [vmem:[%s4921 + $0xa0] sm:$0xff]
  %v4943 = vld [vmem:[%s4921 + $0xa8] sm:$0xff]
  %v4944 = vld [vmem:[%s4921 + $0xb0] sm:$0xff]
  %v4945 = vld [vmem:[%s4921 + $0xb8] sm:$0xff]
  %v4946 = vld [vmem:[%s4921 + $0xc0] sm:$0xff]
  %v4947 = vld [vmem:[%s4921 + $0xc8] sm:$0xff]
  %v4948 = vld [vmem:[%s4921 + $0xd0] sm:$0xff]
  %v4949 = vld [vmem:[%s4921 + $0xd8] sm:$0xff]
  %v4950 = vld [vmem:[%s4921 + $0xe0] sm:$0xff]
  %v4951 = vld [vmem:[%s4921 + $0xe8] sm:$0xff]
  %v4952 = vld [vmem:[%s4921 + $0xf0] sm:$0xff]
  %v4953 = vld [vmem:[%s4921 + $0xf8] sm:$0xff]
  %v4954 = vld [vmem:[%s4921 + $0x100] sm:$0xff]
  %v4955 = vld [vmem:[%s4921 + $0x108] sm:$0xff]
  %v4956 = vld [vmem:[%s4921 + $0x110] sm:$0xff]
  %v4957 = vld [vmem:[%s4921 + $0x118] sm:$0xff]
  %v4958 = vld [vmem:[%s4921 + $0x120] sm:$0xff]
  %v4959 = vld [vmem:[%s4921 + $0x128] sm:$0xff]
  %v4960 = vld [vmem:[%s4921 + $0x130] sm:$0xff]
  %v4961 = vld [vmem:[%s4921 + $0x138] sm:$0xff]
  %v4962 = vld [vmem:[%s4921 + $0x140] sm:$0xff]
  %v4963 = vld [vmem:[%s4921 + $0x148] sm:$0xff]
  %v4964 = vld [vmem:[%s4921 + $0x150] sm:$0xff]
  %v4965 = vld [vmem:[%s4921 + $0x158] sm:$0xff]
  %v4966 = vld [vmem:[%s4921 + $0x160] sm:$0xff]
  %v4967 = vld [vmem:[%s4921 + $0x168] sm:$0xff]
  %v4968 = vld [vmem:[%s4921 + $0x170] sm:$0xff]
  %v4969 = vld [vmem:[%s4921 + $0x178] sm:$0xff]
  %v4970 = vld [vmem:[%s4921 + $0x180] sm:$0xff]
  %v4971 = vld [vmem:[%s4921 + $0x188] sm:$0xff]
  %v4972 = vld [vmem:[%s4921 + $0x190] sm:$0xff]
  %v4973 = vld [vmem:[%s4921 + $0x198] sm:$0xff]
  %v4974 = vld [vmem:[%s4921 + $0x1a0] sm:$0xff]
  %v4975 = vld [vmem:[%s4921 + $0x1a8] sm:$0xff]
  %v4976 = vld [vmem:[%s4921 + $0x1b0] sm:$0xff]
  %v4977 = vld [vmem:[%s4921 + $0x1b8] sm:$0xff]
  %v4978 = vld [vmem:[%s4921 + $0x1c0] sm:$0xff]
  %v4979 = vld [vmem:[%s4921 + $0x1c8] sm:$0xff]
  %v4980 = vld [vmem:[%s4921 + $0x1d0] sm:$0xff]
  %v4981 = vld [vmem:[%s4921 + $0x1d8] sm:$0xff]
  %v4982 = vld [vmem:[%s4921 + $0x1e0] sm:$0xff]
  %v4983 = vld [vmem:[%s4921 + $0x1e8] sm:$0xff]
  %v4984 = vld [vmem:[%s4921 + $0x1f0] sm:$0xff]
  %v4985 = vld [vmem:[%s4921 + $0x1f8] sm:$0xff]
  %v4986 = vld [vmem:[%s4921 + $0x200] sm:$0xff]
  %v4987 = vld [vmem:[%s4921 + $0x208] sm:$0xff]
  %v4988 = vld [vmem:[%s4921 + $0x210] sm:$0xff]
  %v4989 = vld [vmem:[%s4921 + $0x218] sm:$0xff]
  %v4990 = vld [vmem:[%s4921 + $0x220] sm:$0xff]
  %v4991 = vld [vmem:[%s4921 + $0x228] sm:$0xff]
  %v4992 = vld [vmem:[%s4921 + $0x230] sm:$0xff]
  %v4993 = vld [vmem:[%s4921 + $0x238] sm:$0xff]
  %v4994 = vld [vmem:[%s4921 + $0x240] sm:$0xff]
  %v4995 = vld [vmem:[%s4921 + $0x248] sm:$0xff]
  %v4996 = vld [vmem:[%s4921 + $0x250] sm:$0xff]
  %v4997 = vld [vmem:[%s4921 + $0x258] sm:$0xff]
  %v4998 = vld [vmem:[%s4921 + $0x260] sm:$0xff]
  %v4999 = vld [vmem:[%s4921 + $0x268] sm:$0xff]
  %v5000 = vld [vmem:[%s4921 + $0x270] sm:$0xff]
  %v5001 = vld [vmem:[%s4921 + $0x278] sm:$0xff]
  %v5002 = vld [vmem:[%s4921 + $0x280] sm:$0xff]
  %v5003 = vld [vmem:[%s4921 + $0x288] sm:$0xff]
  %v5004 = vld [vmem:[%s4921 + $0x290] sm:$0xff]
  %v5005 = vld [vmem:[%s4921 + $0x298] sm:$0xff]
  %v5006 = vld [vmem:[%s4921 + $0x2a0] sm:$0xff]
  %v5007 = vld [vmem:[%s4921 + $0x2a8] sm:$0xff]
  %v5008 = vld [vmem:[%s4921 + $0x2b0] sm:$0xff]
  %v5009 = vld [vmem:[%s4921 + $0x2b8] sm:$0xff]
  %v5010 = vld [vmem:[%s4921 + $0x2c0] sm:$0xff]
  %v5011 = vld [vmem:[%s4921 + $0x2c8] sm:$0xff]
  %v5012 = vld [vmem:[%s4921 + $0x2d0] sm:$0xff]
  %v5013 = vld [vmem:[%s4921 + $0x2d8] sm:$0xff]
  %v5014 = vld [vmem:[%s4921 + $0x2e0] sm:$0xff]
  %v5015 = vld [vmem:[%s4921 + $0x2e8] sm:$0xff]
  %v5016 = vld [vmem:[%s4921 + $0x2f0] sm:$0xff]
  %v5017 = vld [vmem:[%s4921 + $0x2f8] sm:$0xff]
  %v5018 = vld [vmem:[%s4921 + $0x300] sm:$0xff]
  %v5019 = vld [vmem:[%s4921 + $0x308] sm:$0xff]
  %v5020 = vld [vmem:[%s4921 + $0x310] sm:$0xff]
  %v5021 = vld [vmem:[%s4921 + $0x318] sm:$0xff]
  %v5022 = vld [vmem:[%s4921 + $0x320] sm:$0xff]
  %v5023 = vld [vmem:[%s4921 + $0x328] sm:$0xff]
  %v5024 = vld [vmem:[%s4921 + $0x330] sm:$0xff]
  %v5025 = vld [vmem:[%s4921 + $0x338] sm:$0xff]
  %v5026 = vld [vmem:[%s4921 + $0x340] sm:$0xff]
  %v5027 = vld [vmem:[%s4921 + $0x348] sm:$0xff]
  %v5028 = vld [vmem:[%s4921 + $0x350] sm:$0xff]
  %v5029 = vld [vmem:[%s4921 + $0x358] sm:$0xff]
  %v5030 = vld [vmem:[%s4921 + $0x360] sm:$0xff]
  %v5031 = vld [vmem:[%s4921 + $0x368] sm:$0xff]
  %v5032 = vld [vmem:[%s4921 + $0x370] sm:$0xff]
  %v5033 = vld [vmem:[%s4921 + $0x378] sm:$0xff]
  %v5034 = vld [vmem:[%s4921 + $0x380] sm:$0xff]
  %v5035 = vld [vmem:[%s4921 + $0x388] sm:$0xff]
  %v5036 = vld [vmem:[%s4921 + $0x390] sm:$0xff]
  %v5037 = vld [vmem:[%s4921 + $0x398] sm:$0xff]
  %v5038 = vld [vmem:[%s4921 + $0x3a0] sm:$0xff]
  %v5039 = vld [vmem:[%s4921 + $0x3a8] sm:$0xff]
  %v5040 = vld [vmem:[%s4921 + $0x3b0] sm:$0xff]
  %v5041 = vld [vmem:[%s4921 + $0x3b8] sm:$0xff]
  %v5042 = vld [vmem:[%s4921 + $0x3c0] sm:$0xff]
  %v5043 = vld [vmem:[%s4921 + $0x3c8] sm:$0xff]
  %v5044 = vld [vmem:[%s4921 + $0x3d0] sm:$0xff]
  %v5045 = vld [vmem:[%s4921 + $0x3d8] sm:$0xff]
  %v5046 = vld [vmem:[%s4921 + $0x3e0] sm:$0xff]
  %v5047 = vld [vmem:[%s4921 + $0x3e8] sm:$0xff]
  %v5048 = vld [vmem:[%s4921 + $0x3f0] sm:$0xff]
  %v5049 = vld [vmem:[%s4921 + $0x3f8] sm:$0xff]
  %5050 = vmatprep.subr.mxu0 %v4983
  %5051 = vmatpush1.msra.mxu0 %v4982
  %5052 = vmatprep.subr.mxu0 %v4979
  %5053 = vmatpush1.msra.mxu0 %v4978
  %5054 = vmatprep.subr.mxu0 %v4975
  %5055 = vmatpush1.msra.mxu0 %v4974
  %5056 = vmatprep.subr.mxu0 %v4971
  %5057 = vmatpush1.msra.mxu0 %v4970
  %5058 = vmatprep.subr.mxu0 %v4967
  %5059 = vmatpush1.msra.mxu0 %v4966
  %5060 = vmatprep.subr.mxu0 %v4963
  %5061 = vmatpush1.msra.mxu0 %v4962
  %5062 = vmatprep.subr.mxu0 %v4959
  %5063 = vmatpush1.msra.mxu0 %v4958
  %5064 = vmatprep.subr.mxu0 %v4955
  %5065 = vmatpush1.msra.mxu0 %v4954
  %5066 = vmatprep.subr.mxu0 %v4951
  %5067 = vmatpush1.msra.mxu0 %v4950
  %5068 = vmatprep.subr.mxu0 %v4947
  %5069 = vmatpush1.msra.mxu0 %v4946
  %5070 = vmatprep.subr.mxu0 %v4943
  %5071 = vmatpush1.msra.mxu0 %v4942
  %5072 = vmatprep.subr.mxu0 %v4939
  %5073 = vmatpush1.msra.mxu0 %v4938
  %5074 = vmatprep.subr.mxu0 %v4935
  %5075 = vmatpush1.msra.mxu0 %v4934
  %5076 = vmatprep.subr.mxu0 %v4931
  %5077 = vmatpush1.msra.mxu0 %v4930
  %5078 = vmatprep.subr.mxu0 %v4927
  %5079 = vmatpush1.msra.mxu0 %v4926
  %5080 = vmatprep.subr.mxu0 %v4923
  %5081 = vmatpush1.msra.mxu0 %v4922
  %5082 = vmatprep.subr.mxu0 %v5047
  %5083 = vmatpush2.msra.mxu0 %v5046
  %5084 = vmatprep.subr.mxu0 %v5043
  %5085 = vmatpush2.msra.mxu0 %v5042
  %5086 = vmatprep.subr.mxu0 %v5039
  %5087 = vmatpush2.msra.mxu0 %v5038
  %5088 = vmatprep.subr.mxu0 %v5035
  %5089 = vmatpush2.msra.mxu0 %v5034
  %5090 = vmatprep.subr.mxu0 %v5031
  %5091 = vmatpush2.msra.mxu0 %v5030
  %5092 = vmatprep.subr.mxu0 %v5027
  %5093 = vmatpush2.msra.mxu0 %v5026
  %5094 = vmatprep.subr.mxu0 %v5023
  %5095 = vmatpush2.msra.mxu0 %v5022
  %5096 = vmatprep.subr.mxu0 %v5019
  %5097 = vmatpush2.msra.mxu0 %v5018
  %5098 = vmatprep.subr.mxu0 %v5015
  %5099 = vmatpush2.msra.mxu0 %v5014
  %5100 = vmatprep.subr.mxu0 %v5011
  %5101 = vmatpush2.msra.mxu0 %v5010
  %5102 = vmatprep.subr.mxu0 %v5007
  %5103 = vmatpush2.msra.mxu0 %v5006
  %5104 = vmatprep.subr.mxu0 %v5003
  %5105 = vmatpush2.msra.mxu0 %v5002
  %5106 = vmatprep.subr.mxu0 %v4999
  %5107 = vmatpush2.msra.mxu0 %v4998
  %5108 = vmatprep.subr.mxu0 %v4995
  %5109 = vmatpush2.msra.mxu0 %v4994
  %5110 = vmatprep.subr.mxu0 %v4991
  %5111 = vmatpush2.msra.mxu0 %v4990
  %5112 = vmatprep.subr.mxu0 %v4987
  %5113 = vmatpush2.msra.mxu0 %v4986
  %5114 = vmatprep.mubr.f32.mxu0 %v4918
  %5115 = vmatmul.mubr.f32.gmra.mxu0 %v4917
  %v5116 = vpop.f32.mrf.mxu0
  %v5117 = vadd.f32 0.0, %v5116
  %v5118 = vpop.f32.mrf.mxu0
  %v5119 = vadd.f32 0.0, %v5118
  %5120 = vmatprep.mubr.f32.mxu0 %v4920
  %5121 = vmatmul.mubr.f32.gmra.mxu0 %v4919
  %v5122 = vpop.f32.mrf.mxu0
  %v5123 = vadd.f32 0.0, %v5122
  %v5124 = vpop.f32.mrf.mxu0
  %v5125 = vadd.f32 0.0, %v5124
  %5126 = vdwg.mxu0
  %5127 = vmatprep.subr.mxu0 %v4985
  %5128 = vmatpush1.msra.mxu0 %v4984
  %5129 = vmatprep.subr.mxu0 %v4981
  %5130 = vmatpush1.msra.mxu0 %v4980
  %5131 = vmatprep.subr.mxu0 %v4977
  %5132 = vmatpush1.msra.mxu0 %v4976
  %5133 = vmatprep.subr.mxu0 %v4973
  %5134 = vmatpush1.msra.mxu0 %v4972
  %5135 = vmatprep.subr.mxu0 %v4969
  %5136 = vmatpush1.msra.mxu0 %v4968
  %5137 = vmatprep.subr.mxu0 %v4965
  %5138 = vmatpush1.msra.mxu0 %v4964
  %5139 = vmatprep.subr.mxu0 %v4961
  %5140 = vmatpush1.msra.mxu0 %v4960
  %5141 = vmatprep.subr.mxu0 %v4957
  %5142 = vmatpush1.msra.mxu0 %v4956
  %5143 = vmatprep.subr.mxu0 %v4953
  %5144 = vmatpush1.msra.mxu0 %v4952
  %5145 = vmatprep.subr.mxu0 %v4949
  %5146 = vmatpush1.msra.mxu0 %v4948
  %5147 = vmatprep.subr.mxu0 %v4945
  %5148 = vmatpush1.msra.mxu0 %v4944
  %5149 = vmatprep.subr.mxu0 %v4941
  %5150 = vmatpush1.msra.mxu0 %v4940
  %5151 = vmatprep.subr.mxu0 %v4937
  %5152 = vmatpush1.msra.mxu0 %v4936
  %5153 = vmatprep.subr.mxu0 %v4933
  %5154 = vmatpush1.msra.mxu0 %v4932
  %5155 = vmatprep.subr.mxu0 %v4929
  %5156 = vmatpush1.msra.mxu0 %v4928
  %5157 = vmatprep.subr.mxu0 %v4925
  %5158 = vmatpush1.msra.mxu0 %v4924
  %5159 = vmatprep.subr.mxu0 %v5049
  %5160 = vmatpush2.msra.mxu0 %v5048
  %5161 = vmatprep.subr.mxu0 %v5045
  %5162 = vmatpush2.msra.mxu0 %v5044
  %5163 = vmatprep.subr.mxu0 %v5041
  %5164 = vmatpush2.msra.mxu0 %v5040
  %5165 = vmatprep.subr.mxu0 %v5037
  %5166 = vmatpush2.msra.mxu0 %v5036
  %5167 = vmatprep.subr.mxu0 %v5033
  %5168 = vmatpush2.msra.mxu0 %v5032
  %5169 = vmatprep.subr.mxu0 %v5029
  %5170 = vmatpush2.msra.mxu0 %v5028
  %5171 = vmatprep.subr.mxu0 %v5025
  %5172 = vmatpush2.msra.mxu0 %v5024
  %5173 = vmatprep.subr.mxu0 %v5021
  %5174 = vmatpush2.msra.mxu0 %v5020
  %5175 = vmatprep.subr.mxu0 %v5017
  %5176 = vmatpush2.msra.mxu0 %v5016
  %5177 = vmatprep.subr.mxu0 %v5013
  %5178 = vmatpush2.msra.mxu0 %v5012
  %5179 = vmatprep.subr.mxu0 %v5009
  %5180 = vmatpush2.msra.mxu0 %v5008
  %5181 = vmatprep.subr.mxu0 %v5005
  %5182 = vmatpush2.msra.mxu0 %v5004
  %5183 = vmatprep.subr.mxu0 %v5001
  %5184 = vmatpush2.msra.mxu0 %v5000
  %5185 = vmatprep.subr.mxu0 %v4997
  %5186 = vmatpush2.msra.mxu0 %v4996
  %5187 = vmatprep.subr.mxu0 %v4993
  %5188 = vmatpush2.msra.mxu0 %v4992
  %5189 = vmatprep.subr.mxu0 %v4989
  %5190 = vmatpush2.msra.mxu0 %v4988
  %5191 = vmatprep.mubr.f32.mxu0 %v4918
  %5192 = vmatmul.mubr.f32.gmra.mxu0 %v4917
  %v5193 = vpop.f32.mrf.mxu0
  %v5194 = vadd.f32 0.0, %v5193
  %v5195 = vpop.f32.mrf.mxu0
  %v5196 = vadd.f32 0.0, %v5195
  %5197 = vmatprep.mubr.f32.mxu0 %v4920
  %5198 = vmatmul.mubr.f32.gmra.mxu0 %v4919
  %v5199 = vpop.f32.mrf.mxu0
  %v5200 = vadd.f32 0.0, %v5199
  %v5201 = vpop.f32.mrf.mxu0
  %v5202 = vadd.f32 0.0, %v5201
  %5203 = vdwg.mxu0
  %v5204 = vadd.f32 %v4897, %v5117
  %v5205 = vadd.f32 %v4898, %v5119
  %v5206 = vadd.f32 %v4899, %v5194
  %v5207 = vadd.f32 %v4900, %v5196
  %v5208 = vadd.f32 %v4901, %v5123
  %v5209 = vadd.f32 %v4902, %v5125
  %v5210 = vadd.f32 %v4903, %v5200
  %v5211 = vadd.f32 %v4904, %v5202
  %v5212 = vadd.f32 %v3809, %v3813
  %v5213 = vadd.f32 %v3810, %v3814
  %v5214 = vadd.f32 %v3811, %v3815
  %v5215 = vadd.f32 %v3812, %v3816
  %v5216 = vadd.f32 %v5212, %v3841
  %v5217 = vadd.f32 %v5213, %v3842
  %v5218 = vadd.f32 %v5214, %v3843
  %v5219 = vadd.f32 %v5215, %v3844
  %v5220 = vadd.f32 %v5216, %v3845
  %v5221 = vadd.f32 %v5217, %v3846
  %v5222 = vadd.f32 %v5218, %v3847
  %v5223 = vadd.f32 %v5219, %v3848
  %v5224 = vmul.f32 %v5220, 0.25
  %v5225 = vmul.f32 %v5221, 0.25
  %v5226 = vmul.f32 %v5222, 0.25
  %v5227 = vmul.f32 %v5223, 0.25
  %s5228 = scalar_lea.vmem %s7, 4096
  %v5229 = vld [vmem:[%s5228] sm:$0xff]
  %v5230 = vld [vmem:[%s5228 + $0x8] sm:$0xff]
  %v5231 = vld [vmem:[%s5228 + $0x10] sm:$0xff]
  %v5232 = vld [vmem:[%s5228 + $0x18] sm:$0xff]
  %v5233 = vld [vmem:[%s5228 + $0x20] sm:$0xff]
  %v5234 = vld [vmem:[%s5228 + $0x28] sm:$0xff]
  %v5235 = vld [vmem:[%s5228 + $0x30] sm:$0xff]
  %v5236 = vld [vmem:[%s5228 + $0x38] sm:$0xff]
  %v5237 = vld [vmem:[%s5228 + $0x40] sm:$0xff]
  %v5238 = vld [vmem:[%s5228 + $0x48] sm:$0xff]
  %v5239 = vld [vmem:[%s5228 + $0x50] sm:$0xff]
  %v5240 = vld [vmem:[%s5228 + $0x58] sm:$0xff]
  %v5241 = vld [vmem:[%s5228 + $0x60] sm:$0xff]
  %v5242 = vld [vmem:[%s5228 + $0x68] sm:$0xff]
  %v5243 = vld [vmem:[%s5228 + $0x70] sm:$0xff]
  %v5244 = vld [vmem:[%s5228 + $0x78] sm:$0xff]
  %v5245 = vld [vmem:[%s5228 + $0x80] sm:$0xff]
  %v5246 = vld [vmem:[%s5228 + $0x88] sm:$0xff]
  %v5247 = vld [vmem:[%s5228 + $0x90] sm:$0xff]
  %v5248 = vld [vmem:[%s5228 + $0x98] sm:$0xff]
  %v5249 = vld [vmem:[%s5228 + $0xa0] sm:$0xff]
  %v5250 = vld [vmem:[%s5228 + $0xa8] sm:$0xff]
  %v5251 = vld [vmem:[%s5228 + $0xb0] sm:$0xff]
  %v5252 = vld [vmem:[%s5228 + $0xb8] sm:$0xff]
  %v5253 = vld [vmem:[%s5228 + $0xc0] sm:$0xff]
  %v5254 = vld [vmem:[%s5228 + $0xc8] sm:$0xff]
  %v5255 = vld [vmem:[%s5228 + $0xd0] sm:$0xff]
  %v5256 = vld [vmem:[%s5228 + $0xd8] sm:$0xff]
  %v5257 = vld [vmem:[%s5228 + $0xe0] sm:$0xff]
  %v5258 = vld [vmem:[%s5228 + $0xe8] sm:$0xff]
  %v5259 = vld [vmem:[%s5228 + $0xf0] sm:$0xff]
  %v5260 = vld [vmem:[%s5228 + $0xf8] sm:$0xff]
  %v5261 = vld [vmem:[%s5228 + $0x100] sm:$0xff]
  %v5262 = vld [vmem:[%s5228 + $0x108] sm:$0xff]
  %v5263 = vld [vmem:[%s5228 + $0x110] sm:$0xff]
  %v5264 = vld [vmem:[%s5228 + $0x118] sm:$0xff]
  %v5265 = vld [vmem:[%s5228 + $0x120] sm:$0xff]
  %v5266 = vld [vmem:[%s5228 + $0x128] sm:$0xff]
  %v5267 = vld [vmem:[%s5228 + $0x130] sm:$0xff]
  %v5268 = vld [vmem:[%s5228 + $0x138] sm:$0xff]
  %v5269 = vld [vmem:[%s5228 + $0x140] sm:$0xff]
  %v5270 = vld [vmem:[%s5228 + $0x148] sm:$0xff]
  %v5271 = vld [vmem:[%s5228 + $0x150] sm:$0xff]
  %v5272 = vld [vmem:[%s5228 + $0x158] sm:$0xff]
  %v5273 = vld [vmem:[%s5228 + $0x160] sm:$0xff]
  %v5274 = vld [vmem:[%s5228 + $0x168] sm:$0xff]
  %v5275 = vld [vmem:[%s5228 + $0x170] sm:$0xff]
  %v5276 = vld [vmem:[%s5228 + $0x178] sm:$0xff]
  %v5277 = vld [vmem:[%s5228 + $0x180] sm:$0xff]
  %v5278 = vld [vmem:[%s5228 + $0x188] sm:$0xff]
  %v5279 = vld [vmem:[%s5228 + $0x190] sm:$0xff]
  %v5280 = vld [vmem:[%s5228 + $0x198] sm:$0xff]
  %v5281 = vld [vmem:[%s5228 + $0x1a0] sm:$0xff]
  %v5282 = vld [vmem:[%s5228 + $0x1a8] sm:$0xff]
  %v5283 = vld [vmem:[%s5228 + $0x1b0] sm:$0xff]
  %v5284 = vld [vmem:[%s5228 + $0x1b8] sm:$0xff]
  %v5285 = vld [vmem:[%s5228 + $0x1c0] sm:$0xff]
  %v5286 = vld [vmem:[%s5228 + $0x1c8] sm:$0xff]
  %v5287 = vld [vmem:[%s5228 + $0x1d0] sm:$0xff]
  %v5288 = vld [vmem:[%s5228 + $0x1d8] sm:$0xff]
  %v5289 = vld [vmem:[%s5228 + $0x1e0] sm:$0xff]
  %v5290 = vld [vmem:[%s5228 + $0x1e8] sm:$0xff]
  %v5291 = vld [vmem:[%s5228 + $0x1f0] sm:$0xff]
  %v5292 = vld [vmem:[%s5228 + $0x1f8] sm:$0xff]
  %v5293 = vld [vmem:[%s5228 + $0x200] sm:$0xff]
  %v5294 = vld [vmem:[%s5228 + $0x208] sm:$0xff]
  %v5295 = vld [vmem:[%s5228 + $0x210] sm:$0xff]
  %v5296 = vld [vmem:[%s5228 + $0x218] sm:$0xff]
  %v5297 = vld [vmem:[%s5228 + $0x220] sm:$0xff]
  %v5298 = vld [vmem:[%s5228 + $0x228] sm:$0xff]
  %v5299 = vld [vmem:[%s5228 + $0x230] sm:$0xff]
  %v5300 = vld [vmem:[%s5228 + $0x238] sm:$0xff]
  %v5301 = vld [vmem:[%s5228 + $0x240] sm:$0xff]
  %v5302 = vld [vmem:[%s5228 + $0x248] sm:$0xff]
  %v5303 = vld [vmem:[%s5228 + $0x250] sm:$0xff]
  %v5304 = vld [vmem:[%s5228 + $0x258] sm:$0xff]
  %v5305 = vld [vmem:[%s5228 + $0x260] sm:$0xff]
  %v5306 = vld [vmem:[%s5228 + $0x268] sm:$0xff]
  %v5307 = vld [vmem:[%s5228 + $0x270] sm:$0xff]
  %v5308 = vld [vmem:[%s5228 + $0x278] sm:$0xff]
  %v5309 = vld [vmem:[%s5228 + $0x280] sm:$0xff]
  %v5310 = vld [vmem:[%s5228 + $0x288] sm:$0xff]
  %v5311 = vld [vmem:[%s5228 + $0x290] sm:$0xff]
  %v5312 = vld [vmem:[%s5228 + $0x298] sm:$0xff]
  %v5313 = vld [vmem:[%s5228 + $0x2a0] sm:$0xff]
  %v5314 = vld [vmem:[%s5228 + $0x2a8] sm:$0xff]
  %v5315 = vld [vmem:[%s5228 + $0x2b0] sm:$0xff]
  %v5316 = vld [vmem:[%s5228 + $0x2b8] sm:$0xff]
  %v5317 = vld [vmem:[%s5228 + $0x2c0] sm:$0xff]
  %v5318 = vld [vmem:[%s5228 + $0x2c8] sm:$0xff]
  %v5319 = vld [vmem:[%s5228 + $0x2d0] sm:$0xff]
  %v5320 = vld [vmem:[%s5228 + $0x2d8] sm:$0xff]
  %v5321 = vld [vmem:[%s5228 + $0x2e0] sm:$0xff]
  %v5322 = vld [vmem:[%s5228 + $0x2e8] sm:$0xff]
  %v5323 = vld [vmem:[%s5228 + $0x2f0] sm:$0xff]
  %v5324 = vld [vmem:[%s5228 + $0x2f8] sm:$0xff]
  %v5325 = vld [vmem:[%s5228 + $0x300] sm:$0xff]
  %v5326 = vld [vmem:[%s5228 + $0x308] sm:$0xff]
  %v5327 = vld [vmem:[%s5228 + $0x310] sm:$0xff]
  %v5328 = vld [vmem:[%s5228 + $0x318] sm:$0xff]
  %v5329 = vld [vmem:[%s5228 + $0x320] sm:$0xff]
  %v5330 = vld [vmem:[%s5228 + $0x328] sm:$0xff]
  %v5331 = vld [vmem:[%s5228 + $0x330] sm:$0xff]
  %v5332 = vld [vmem:[%s5228 + $0x338] sm:$0xff]
  %v5333 = vld [vmem:[%s5228 + $0x340] sm:$0xff]
  %v5334 = vld [vmem:[%s5228 + $0x348] sm:$0xff]
  %v5335 = vld [vmem:[%s5228 + $0x350] sm:$0xff]
  %v5336 = vld [vmem:[%s5228 + $0x358] sm:$0xff]
  %v5337 = vld [vmem:[%s5228 + $0x360] sm:$0xff]
  %v5338 = vld [vmem:[%s5228 + $0x368] sm:$0xff]
  %v5339 = vld [vmem:[%s5228 + $0x370] sm:$0xff]
  %v5340 = vld [vmem:[%s5228 + $0x378] sm:$0xff]
  %v5341 = vld [vmem:[%s5228 + $0x380] sm:$0xff]
  %v5342 = vld [vmem:[%s5228 + $0x388] sm:$0xff]
  %v5343 = vld [vmem:[%s5228 + $0x390] sm:$0xff]
  %v5344 = vld [vmem:[%s5228 + $0x398] sm:$0xff]
  %v5345 = vld [vmem:[%s5228 + $0x3a0] sm:$0xff]
  %v5346 = vld [vmem:[%s5228 + $0x3a8] sm:$0xff]
  %v5347 = vld [vmem:[%s5228 + $0x3b0] sm:$0xff]
  %v5348 = vld [vmem:[%s5228 + $0x3b8] sm:$0xff]
  %v5349 = vld [vmem:[%s5228 + $0x3c0] sm:$0xff]
  %v5350 = vld [vmem:[%s5228 + $0x3c8] sm:$0xff]
  %v5351 = vld [vmem:[%s5228 + $0x3d0] sm:$0xff]
  %v5352 = vld [vmem:[%s5228 + $0x3d8] sm:$0xff]
  %v5353 = vld [vmem:[%s5228 + $0x3e0] sm:$0xff]
  %v5354 = vld [vmem:[%s5228 + $0x3e8] sm:$0xff]
  %v5355 = vld [vmem:[%s5228 + $0x3f0] sm:$0xff]
  %v5356 = vld [vmem:[%s5228 + $0x3f8] sm:$0xff]
  %5357 = vmatprep.subr.mxu0 %v5290
  %5358 = vmatpush1.msra.mxu0 %v5289
  %5359 = vmatprep.subr.mxu0 %v5286
  %5360 = vmatpush1.msra.mxu0 %v5285
  %5361 = vmatprep.subr.mxu0 %v5282
  %5362 = vmatpush1.msra.mxu0 %v5281
  %5363 = vmatprep.subr.mxu0 %v5278
  %5364 = vmatpush1.msra.mxu0 %v5277
  %5365 = vmatprep.subr.mxu0 %v5274
  %5366 = vmatpush1.msra.mxu0 %v5273
  %5367 = vmatprep.subr.mxu0 %v5270
  %5368 = vmatpush1.msra.mxu0 %v5269
  %5369 = vmatprep.subr.mxu0 %v5266
  %5370 = vmatpush1.msra.mxu0 %v5265
  %5371 = vmatprep.subr.mxu0 %v5262
  %5372 = vmatpush1.msra.mxu0 %v5261
  %5373 = vmatprep.subr.mxu0 %v5258
  %5374 = vmatpush1.msra.mxu0 %v5257
  %5375 = vmatprep.subr.mxu0 %v5254
  %5376 = vmatpush1.msra.mxu0 %v5253
  %5377 = vmatprep.subr.mxu0 %v5250
  %5378 = vmatpush1.msra.mxu0 %v5249
  %5379 = vmatprep.subr.mxu0 %v5246
  %5380 = vmatpush1.msra.mxu0 %v5245
  %5381 = vmatprep.subr.mxu0 %v5242
  %5382 = vmatpush1.msra.mxu0 %v5241
  %5383 = vmatprep.subr.mxu0 %v5238
  %5384 = vmatpush1.msra.mxu0 %v5237
  %5385 = vmatprep.subr.mxu0 %v5234
  %5386 = vmatpush1.msra.mxu0 %v5233
  %5387 = vmatprep.subr.mxu0 %v5230
  %5388 = vmatpush1.msra.mxu0 %v5229
  %5389 = vmatprep.subr.mxu0 %v5354
  %5390 = vmatpush2.msra.mxu0 %v5353
  %5391 = vmatprep.subr.mxu0 %v5350
  %5392 = vmatpush2.msra.mxu0 %v5349
  %5393 = vmatprep.subr.mxu0 %v5346
  %5394 = vmatpush2.msra.mxu0 %v5345
  %5395 = vmatprep.subr.mxu0 %v5342
  %5396 = vmatpush2.msra.mxu0 %v5341
  %5397 = vmatprep.subr.mxu0 %v5338
  %5398 = vmatpush2.msra.mxu0 %v5337
  %5399 = vmatprep.subr.mxu0 %v5334
  %5400 = vmatpush2.msra.mxu0 %v5333
  %5401 = vmatprep.subr.mxu0 %v5330
  %5402 = vmatpush2.msra.mxu0 %v5329
  %5403 = vmatprep.subr.mxu0 %v5326
  %5404 = vmatpush2.msra.mxu0 %v5325
  %5405 = vmatprep.subr.mxu0 %v5322
  %5406 = vmatpush2.msra.mxu0 %v5321
  %5407 = vmatprep.subr.mxu0 %v5318
  %5408 = vmatpush2.msra.mxu0 %v5317
  %5409 = vmatprep.subr.mxu0 %v5314
  %5410 = vmatpush2.msra.mxu0 %v5313
  %5411 = vmatprep.subr.mxu0 %v5310
  %5412 = vmatpush2.msra.mxu0 %v5309
  %5413 = vmatprep.subr.mxu0 %v5306
  %5414 = vmatpush2.msra.mxu0 %v5305
  %5415 = vmatprep.subr.mxu0 %v5302
  %5416 = vmatpush2.msra.mxu0 %v5301
  %5417 = vmatprep.subr.mxu0 %v5298
  %5418 = vmatpush2.msra.mxu0 %v5297
  %5419 = vmatprep.subr.mxu0 %v5294
  %5420 = vmatpush2.msra.mxu0 %v5293
  %5421 = vmatprep.mubr.f32.mxu0 %v5225
  %5422 = vmatmul.mubr.f32.gmra.mxu0 %v5224
  %v5423 = vpop.f32.mrf.mxu0
  %v5424 = vadd.f32 0.0, %v5423
  %v5425 = vpop.f32.mrf.mxu0
  %v5426 = vadd.f32 0.0, %v5425
  %5427 = vmatprep.mubr.f32.mxu0 %v5227
  %5428 = vmatmul.mubr.f32.gmra.mxu0 %v5226
  %v5429 = vpop.f32.mrf.mxu0
  %v5430 = vadd.f32 0.0, %v5429
  %v5431 = vpop.f32.mrf.mxu0
  %v5432 = vadd.f32 0.0, %v5431
  %5433 = vdwg.mxu0
  %5434 = vmatprep.subr.mxu0 %v5292
  %5435 = vmatpush1.msra.mxu0 %v5291
  %5436 = vmatprep.subr.mxu0 %v5288
  %5437 = vmatpush1.msra.mxu0 %v5287
  %5438 = vmatprep.subr.mxu0 %v5284
  %5439 = vmatpush1.msra.mxu0 %v5283
  %5440 = vmatprep.subr.mxu0 %v5280
  %5441 = vmatpush1.msra.mxu0 %v5279
  %5442 = vmatprep.subr.mxu0 %v5276
  %5443 = vmatpush1.msra.mxu0 %v5275
  %5444 = vmatprep.subr.mxu0 %v5272
  %5445 = vmatpush1.msra.mxu0 %v5271
  %5446 = vmatprep.subr.mxu0 %v5268
  %5447 = vmatpush1.msra.mxu0 %v5267
  %5448 = vmatprep.subr.mxu0 %v5264
  %5449 = vmatpush1.msra.mxu0 %v5263
  %5450 = vmatprep.subr.mxu0 %v5260
  %5451 = vmatpush1.msra.mxu0 %v5259
  %5452 = vmatprep.subr.mxu0 %v5256
  %5453 = vmatpush1.msra.mxu0 %v5255
  %5454 = vmatprep.subr.mxu0 %v5252
  %5455 = vmatpush1.msra.mxu0 %v5251
  %5456 = vmatprep.subr.mxu0 %v5248
  %5457 = vmatpush1.msra.mxu0 %v5247
  %5458 = vmatprep.subr.mxu0 %v5244
  %5459 = vmatpush1.msra.mxu0 %v5243
  %5460 = vmatprep.subr.mxu0 %v5240
  %5461 = vmatpush1.msra.mxu0 %v5239
  %5462 = vmatprep.subr.mxu0 %v5236
  %5463 = vmatpush1.msra.mxu0 %v5235
  %5464 = vmatprep.subr.mxu0 %v5232
  %5465 = vmatpush1.msra.mxu0 %v5231
  %5466 = vmatprep.subr.mxu0 %v5356
  %5467 = vmatpush2.msra.mxu0 %v5355
  %5468 = vmatprep.subr.mxu0 %v5352
  %5469 = vmatpush2.msra.mxu0 %v5351
  %5470 = vmatprep.subr.mxu0 %v5348
  %5471 = vmatpush2.msra.mxu0 %v5347
  %5472 = vmatprep.subr.mxu0 %v5344
  %5473 = vmatpush2.msra.mxu0 %v5343
  %5474 = vmatprep.subr.mxu0 %v5340
  %5475 = vmatpush2.msra.mxu0 %v5339
  %5476 = vmatprep.subr.mxu0 %v5336
  %5477 = vmatpush2.msra.mxu0 %v5335
  %5478 = vmatprep.subr.mxu0 %v5332
  %5479 = vmatpush2.msra.mxu0 %v5331
  %5480 = vmatprep.subr.mxu0 %v5328
  %5481 = vmatpush2.msra.mxu0 %v5327
  %5482 = vmatprep.subr.mxu0 %v5324
  %5483 = vmatpush2.msra.mxu0 %v5323
  %5484 = vmatprep.subr.mxu0 %v5320
  %5485 = vmatpush2.msra.mxu0 %v5319
  %5486 = vmatprep.subr.mxu0 %v5316
  %5487 = vmatpush2.msra.mxu0 %v5315
  %5488 = vmatprep.subr.mxu0 %v5312
  %5489 = vmatpush2.msra.mxu0 %v5311
  %5490 = vmatprep.subr.mxu0 %v5308
  %5491 = vmatpush2.msra.mxu0 %v5307
  %5492 = vmatprep.subr.mxu0 %v5304
  %5493 = vmatpush2.msra.mxu0 %v5303
  %5494 = vmatprep.subr.mxu0 %v5300
  %5495 = vmatpush2.msra.mxu0 %v5299
  %5496 = vmatprep.subr.mxu0 %v5296
  %5497 = vmatpush2.msra.mxu0 %v5295
  %5498 = vmatprep.mubr.f32.mxu0 %v5225
  %5499 = vmatmul.mubr.f32.gmra.mxu0 %v5224
  %v5500 = vpop.f32.mrf.mxu0
  %v5501 = vadd.f32 0.0, %v5500
  %v5502 = vpop.f32.mrf.mxu0
  %v5503 = vadd.f32 0.0, %v5502
  %5504 = vmatprep.mubr.f32.mxu0 %v5227
  %5505 = vmatmul.mubr.f32.gmra.mxu0 %v5226
  %v5506 = vpop.f32.mrf.mxu0
  %v5507 = vadd.f32 0.0, %v5506
  %v5508 = vpop.f32.mrf.mxu0
  %v5509 = vadd.f32 0.0, %v5508
  %5510 = vdwg.mxu0
  %v5511 = vadd.f32 %v5204, %v5424
  %v5512 = vadd.f32 %v5205, %v5426
  %v5513 = vadd.f32 %v5206, %v5501
  %v5514 = vadd.f32 %v5207, %v5503
  %v5515 = vadd.f32 %v5208, %v5430
  %v5516 = vadd.f32 %v5209, %v5432
  %v5517 = vadd.f32 %v5210, %v5507
  %v5518 = vadd.f32 %v5211, %v5509
  %v5519 = vadd.f32 %v3817, %v3821
  %v5520 = vadd.f32 %v3818, %v3822
  %v5521 = vadd.f32 %v3819, %v3823
  %v5522 = vadd.f32 %v3820, %v3824
  %v5523 = vadd.f32 %v5519, %v3849
  %v5524 = vadd.f32 %v5520, %v3850
  %v5525 = vadd.f32 %v5521, %v3851
  %v5526 = vadd.f32 %v5522, %v3852
  %v5527 = vadd.f32 %v5523, %v3853
  %v5528 = vadd.f32 %v5524, %v3854
  %v5529 = vadd.f32 %v5525, %v3855
  %v5530 = vadd.f32 %v5526, %v3856
  %v5531 = vmul.f32 %v5527, 0.25
  %v5532 = vmul.f32 %v5528, 0.25
  %v5533 = vmul.f32 %v5529, 0.25
  %v5534 = vmul.f32 %v5530, 0.25
  %s5535 = scalar_lea.vmem %s7, 5120
  %v5536 = vld [vmem:[%s5535] sm:$0xff]
  %v5537 = vld [vmem:[%s5535 + $0x8] sm:$0xff]
  %v5538 = vld [vmem:[%s5535 + $0x10] sm:$0xff]
  %v5539 = vld [vmem:[%s5535 + $0x18] sm:$0xff]
  %v5540 = vld [vmem:[%s5535 + $0x20] sm:$0xff]
  %v5541 = vld [vmem:[%s5535 + $0x28] sm:$0xff]
  %v5542 = vld [vmem:[%s5535 + $0x30] sm:$0xff]
  %v5543 = vld [vmem:[%s5535 + $0x38] sm:$0xff]
  %v5544 = vld [vmem:[%s5535 + $0x40] sm:$0xff]
  %v5545 = vld [vmem:[%s5535 + $0x48] sm:$0xff]
  %v5546 = vld [vmem:[%s5535 + $0x50] sm:$0xff]
  %v5547 = vld [vmem:[%s5535 + $0x58] sm:$0xff]
  %v5548 = vld [vmem:[%s5535 + $0x60] sm:$0xff]
  %v5549 = vld [vmem:[%s5535 + $0x68] sm:$0xff]
  %v5550 = vld [vmem:[%s5535 + $0x70] sm:$0xff]
  %v5551 = vld [vmem:[%s5535 + $0x78] sm:$0xff]
  %v5552 = vld [vmem:[%s5535 + $0x80] sm:$0xff]
  %v5553 = vld [vmem:[%s5535 + $0x88] sm:$0xff]
  %v5554 = vld [vmem:[%s5535 + $0x90] sm:$0xff]
  %v5555 = vld [vmem:[%s5535 + $0x98] sm:$0xff]
  %v5556 = vld [vmem:[%s5535 + $0xa0] sm:$0xff]
  %v5557 = vld [vmem:[%s5535 + $0xa8] sm:$0xff]
  %v5558 = vld [vmem:[%s5535 + $0xb0] sm:$0xff]
  %v5559 = vld [vmem:[%s5535 + $0xb8] sm:$0xff]
  %v5560 = vld [vmem:[%s5535 + $0xc0] sm:$0xff]
  %v5561 = vld [vmem:[%s5535 + $0xc8] sm:$0xff]
  %v5562 = vld [vmem:[%s5535 + $0xd0] sm:$0xff]
  %v5563 = vld [vmem:[%s5535 + $0xd8] sm:$0xff]
  %v5564 = vld [vmem:[%s5535 + $0xe0] sm:$0xff]
  %v5565 = vld [vmem:[%s5535 + $0xe8] sm:$0xff]
  %v5566 = vld [vmem:[%s5535 + $0xf0] sm:$0xff]
  %v5567 = vld [vmem:[%s5535 + $0xf8] sm:$0xff]
  %v5568 = vld [vmem:[%s5535 + $0x100] sm:$0xff]
  %v5569 = vld [vmem:[%s5535 + $0x108] sm:$0xff]
  %v5570 = vld [vmem:[%s5535 + $0x110] sm:$0xff]
  %v5571 = vld [vmem:[%s5535 + $0x118] sm:$0xff]
  %v5572 = vld [vmem:[%s5535 + $0x120] sm:$0xff]
  %v5573 = vld [vmem:[%s5535 + $0x128] sm:$0xff]
  %v5574 = vld [vmem:[%s5535 + $0x130] sm:$0xff]
  %v5575 = vld [vmem:[%s5535 + $0x138] sm:$0xff]
  %v5576 = vld [vmem:[%s5535 + $0x140] sm:$0xff]
  %v5577 = vld [vmem:[%s5535 + $0x148] sm:$0xff]
  %v5578 = vld [vmem:[%s5535 + $0x150] sm:$0xff]
  %v5579 = vld [vmem:[%s5535 + $0x158] sm:$0xff]
  %v5580 = vld [vmem:[%s5535 + $0x160] sm:$0xff]
  %v5581 = vld [vmem:[%s5535 + $0x168] sm:$0xff]
  %v5582 = vld [vmem:[%s5535 + $0x170] sm:$0xff]
  %v5583 = vld [vmem:[%s5535 + $0x178] sm:$0xff]
  %v5584 = vld [vmem:[%s5535 + $0x180] sm:$0xff]
  %v5585 = vld [vmem:[%s5535 + $0x188] sm:$0xff]
  %v5586 = vld [vmem:[%s5535 + $0x190] sm:$0xff]
  %v5587 = vld [vmem:[%s5535 + $0x198] sm:$0xff]
  %v5588 = vld [vmem:[%s5535 + $0x1a0] sm:$0xff]
  %v5589 = vld [vmem:[%s5535 + $0x1a8] sm:$0xff]
  %v5590 = vld [vmem:[%s5535 + $0x1b0] sm:$0xff]
  %v5591 = vld [vmem:[%s5535 + $0x1b8] sm:$0xff]
  %v5592 = vld [vmem:[%s5535 + $0x1c0] sm:$0xff]
  %v5593 = vld [vmem:[%s5535 + $0x1c8] sm:$0xff]
  %v5594 = vld [vmem:[%s5535 + $0x1d0] sm:$0xff]
  %v5595 = vld [vmem:[%s5535 + $0x1d8] sm:$0xff]
  %v5596 = vld [vmem:[%s5535 + $0x1e0] sm:$0xff]
  %v5597 = vld [vmem:[%s5535 + $0x1e8] sm:$0xff]
  %v5598 = vld [vmem:[%s5535 + $0x1f0] sm:$0xff]
  %v5599 = vld [vmem:[%s5535 + $0x1f8] sm:$0xff]
  %v5600 = vld [vmem:[%s5535 + $0x200] sm:$0xff]
  %v5601 = vld [vmem:[%s5535 + $0x208] sm:$0xff]
  %v5602 = vld [vmem:[%s5535 + $0x210] sm:$0xff]
  %v5603 = vld [vmem:[%s5535 + $0x218] sm:$0xff]
  %v5604 = vld [vmem:[%s5535 + $0x220] sm:$0xff]
  %v5605 = vld [vmem:[%s5535 + $0x228] sm:$0xff]
  %v5606 = vld [vmem:[%s5535 + $0x230] sm:$0xff]
  %v5607 = vld [vmem:[%s5535 + $0x238] sm:$0xff]
  %v5608 = vld [vmem:[%s5535 + $0x240] sm:$0xff]
  %v5609 = vld [vmem:[%s5535 + $0x248] sm:$0xff]
  %v5610 = vld [vmem:[%s5535 + $0x250] sm:$0xff]
  %v5611 = vld [vmem:[%s5535 + $0x258] sm:$0xff]
  %v5612 = vld [vmem:[%s5535 + $0x260] sm:$0xff]
  %v5613 = vld [vmem:[%s5535 + $0x268] sm:$0xff]
  %v5614 = vld [vmem:[%s5535 + $0x270] sm:$0xff]
  %v5615 = vld [vmem:[%s5535 + $0x278] sm:$0xff]
  %v5616 = vld [vmem:[%s5535 + $0x280] sm:$0xff]
  %v5617 = vld [vmem:[%s5535 + $0x288] sm:$0xff]
  %v5618 = vld [vmem:[%s5535 + $0x290] sm:$0xff]
  %v5619 = vld [vmem:[%s5535 + $0x298] sm:$0xff]
  %v5620 = vld [vmem:[%s5535 + $0x2a0] sm:$0xff]
  %v5621 = vld [vmem:[%s5535 + $0x2a8] sm:$0xff]
  %v5622 = vld [vmem:[%s5535 + $0x2b0] sm:$0xff]
  %v5623 = vld [vmem:[%s5535 + $0x2b8] sm:$0xff]
  %v5624 = vld [vmem:[%s5535 + $0x2c0] sm:$0xff]
  %v5625 = vld [vmem:[%s5535 + $0x2c8] sm:$0xff]
  %v5626 = vld [vmem:[%s5535 + $0x2d0] sm:$0xff]
  %v5627 = vld [vmem:[%s5535 + $0x2d8] sm:$0xff]
  %v5628 = vld [vmem:[%s5535 + $0x2e0] sm:$0xff]
  %v5629 = vld [vmem:[%s5535 + $0x2e8] sm:$0xff]
  %v5630 = vld [vmem:[%s5535 + $0x2f0] sm:$0xff]
  %v5631 = vld [vmem:[%s5535 + $0x2f8] sm:$0xff]
  %v5632 = vld [vmem:[%s5535 + $0x300] sm:$0xff]
  %v5633 = vld [vmem:[%s5535 + $0x308] sm:$0xff]
  %v5634 = vld [vmem:[%s5535 + $0x310] sm:$0xff]
  %v5635 = vld [vmem:[%s5535 + $0x318] sm:$0xff]
  %v5636 = vld [vmem:[%s5535 + $0x320] sm:$0xff]
  %v5637 = vld [vmem:[%s5535 + $0x328] sm:$0xff]
  %v5638 = vld [vmem:[%s5535 + $0x330] sm:$0xff]
  %v5639 = vld [vmem:[%s5535 + $0x338] sm:$0xff]
  %v5640 = vld [vmem:[%s5535 + $0x340] sm:$0xff]
  %v5641 = vld [vmem:[%s5535 + $0x348] sm:$0xff]
  %v5642 = vld [vmem:[%s5535 + $0x350] sm:$0xff]
  %v5643 = vld [vmem:[%s5535 + $0x358] sm:$0xff]
  %v5644 = vld [vmem:[%s5535 + $0x360] sm:$0xff]
  %v5645 = vld [vmem:[%s5535 + $0x368] sm:$0xff]
  %v5646 = vld [vmem:[%s5535 + $0x370] sm:$0xff]
  %v5647 = vld [vmem:[%s5535 + $0x378] sm:$0xff]
  %v5648 = vld [vmem:[%s5535 + $0x380] sm:$0xff]
  %v5649 = vld [vmem:[%s5535 + $0x388] sm:$0xff]
  %v5650 = vld [vmem:[%s5535 + $0x390] sm:$0xff]
  %v5651 = vld [vmem:[%s5535 + $0x398] sm:$0xff]
  %v5652 = vld [vmem:[%s5535 + $0x3a0] sm:$0xff]
  %v5653 = vld [vmem:[%s5535 + $0x3a8] sm:$0xff]
  %v5654 = vld [vmem:[%s5535 + $0x3b0] sm:$0xff]
  %v5655 = vld [vmem:[%s5535 + $0x3b8] sm:$0xff]
  %v5656 = vld [vmem:[%s5535 + $0x3c0] sm:$0xff]
  %v5657 = vld [vmem:[%s5535 + $0x3c8] sm:$0xff]
  %v5658 = vld [vmem:[%s5535 + $0x3d0] sm:$0xff]
  %v5659 = vld [vmem:[%s5535 + $0x3d8] sm:$0xff]
  %v5660 = vld [vmem:[%s5535 + $0x3e0] sm:$0xff]
  %v5661 = vld [vmem:[%s5535 + $0x3e8] sm:$0xff]
  %v5662 = vld [vmem:[%s5535 + $0x3f0] sm:$0xff]
  %v5663 = vld [vmem:[%s5535 + $0x3f8] sm:$0xff]
  %5664 = vmatprep.subr.mxu0 %v5597
  %5665 = vmatpush1.msra.mxu0 %v5596
  %5666 = vmatprep.subr.mxu0 %v5593
  %5667 = vmatpush1.msra.mxu0 %v5592
  %5668 = vmatprep.subr.mxu0 %v5589
  %5669 = vmatpush1.msra.mxu0 %v5588
  %5670 = vmatprep.subr.mxu0 %v5585
  %5671 = vmatpush1.msra.mxu0 %v5584
  %5672 = vmatprep.subr.mxu0 %v5581
  %5673 = vmatpush1.msra.mxu0 %v5580
  %5674 = vmatprep.subr.mxu0 %v5577
  %5675 = vmatpush1.msra.mxu0 %v5576
  %5676 = vmatprep.subr.mxu0 %v5573
  %5677 = vmatpush1.msra.mxu0 %v5572
  %5678 = vmatprep.subr.mxu0 %v5569
  %5679 = vmatpush1.msra.mxu0 %v5568
  %5680 = vmatprep.subr.mxu0 %v5565
  %5681 = vmatpush1.msra.mxu0 %v5564
  %5682 = vmatprep.subr.mxu0 %v5561
  %5683 = vmatpush1.msra.mxu0 %v5560
  %5684 = vmatprep.subr.mxu0 %v5557
  %5685 = vmatpush1.msra.mxu0 %v5556
  %5686 = vmatprep.subr.mxu0 %v5553
  %5687 = vmatpush1.msra.mxu0 %v5552
  %5688 = vmatprep.subr.mxu0 %v5549
  %5689 = vmatpush1.msra.mxu0 %v5548
  %5690 = vmatprep.subr.mxu0 %v5545
  %5691 = vmatpush1.msra.mxu0 %v5544
  %5692 = vmatprep.subr.mxu0 %v5541
  %5693 = vmatpush1.msra.mxu0 %v5540
  %5694 = vmatprep.subr.mxu0 %v5537
  %5695 = vmatpush1.msra.mxu0 %v5536
  %5696 = vmatprep.subr.mxu0 %v5661
  %5697 = vmatpush2.msra.mxu0 %v5660
  %5698 = vmatprep.subr.mxu0 %v5657
  %5699 = vmatpush2.msra.mxu0 %v5656
  %5700 = vmatprep.subr.mxu0 %v5653
  %5701 = vmatpush2.msra.mxu0 %v5652
  %5702 = vmatprep.subr.mxu0 %v5649
  %5703 = vmatpush2.msra.mxu0 %v5648
  %5704 = vmatprep.subr.mxu0 %v5645
  %5705 = vmatpush2.msra.mxu0 %v5644
  %5706 = vmatprep.subr.mxu0 %v5641
  %5707 = vmatpush2.msra.mxu0 %v5640
  %5708 = vmatprep.subr.mxu0 %v5637
  %5709 = vmatpush2.msra.mxu0 %v5636
  %5710 = vmatprep.subr.mxu0 %v5633
  %5711 = vmatpush2.msra.mxu0 %v5632
  %5712 = vmatprep.subr.mxu0 %v5629
  %5713 = vmatpush2.msra.mxu0 %v5628
  %5714 = vmatprep.subr.mxu0 %v5625
  %5715 = vmatpush2.msra.mxu0 %v5624
  %5716 = vmatprep.subr.mxu0 %v5621
  %5717 = vmatpush2.msra.mxu0 %v5620
  %5718 = vmatprep.subr.mxu0 %v5617
  %5719 = vmatpush2.msra.mxu0 %v5616
  %5720 = vmatprep.subr.mxu0 %v5613
  %5721 = vmatpush2.msra.mxu0 %v5612
  %5722 = vmatprep.subr.mxu0 %v5609
  %5723 = vmatpush2.msra.mxu0 %v5608
  %5724 = vmatprep.subr.mxu0 %v5605
  %5725 = vmatpush2.msra.mxu0 %v5604
  %5726 = vmatprep.subr.mxu0 %v5601
  %5727 = vmatpush2.msra.mxu0 %v5600
  %5728 = vmatprep.mubr.f32.mxu0 %v5532
  %5729 = vmatmul.mubr.f32.gmra.mxu0 %v5531
  %v5730 = vpop.f32.mrf.mxu0
  %v5731 = vadd.f32 0.0, %v5730
  %v5732 = vpop.f32.mrf.mxu0
  %v5733 = vadd.f32 0.0, %v5732
  %5734 = vmatprep.mubr.f32.mxu0 %v5534
  %5735 = vmatmul.mubr.f32.gmra.mxu0 %v5533
  %v5736 = vpop.f32.mrf.mxu0
  %v5737 = vadd.f32 0.0, %v5736
  %v5738 = vpop.f32.mrf.mxu0
  %v5739 = vadd.f32 0.0, %v5738
  %5740 = vdwg.mxu0
  %5741 = vmatprep.subr.mxu0 %v5599
  %5742 = vmatpush1.msra.mxu0 %v5598
  %5743 = vmatprep.subr.mxu0 %v5595
  %5744 = vmatpush1.msra.mxu0 %v5594
  %5745 = vmatprep.subr.mxu0 %v5591
  %5746 = vmatpush1.msra.mxu0 %v5590
  %5747 = vmatprep.subr.mxu0 %v5587
  %5748 = vmatpush1.msra.mxu0 %v5586
  %5749 = vmatprep.subr.mxu0 %v5583
  %5750 = vmatpush1.msra.mxu0 %v5582
  %5751 = vmatprep.subr.mxu0 %v5579
  %5752 = vmatpush1.msra.mxu0 %v5578
  %5753 = vmatprep.subr.mxu0 %v5575
  %5754 = vmatpush1.msra.mxu0 %v5574
  %5755 = vmatprep.subr.mxu0 %v5571
  %5756 = vmatpush1.msra.mxu0 %v5570
  %5757 = vmatprep.subr.mxu0 %v5567
  %5758 = vmatpush1.msra.mxu0 %v5566
  %5759 = vmatprep.subr.mxu0 %v5563
  %5760 = vmatpush1.msra.mxu0 %v5562
  %5761 = vmatprep.subr.mxu0 %v5559
  %5762 = vmatpush1.msra.mxu0 %v5558
  %5763 = vmatprep.subr.mxu0 %v5555
  %5764 = vmatpush1.msra.mxu0 %v5554
  %5765 = vmatprep.subr.mxu0 %v5551
  %5766 = vmatpush1.msra.mxu0 %v5550
  %5767 = vmatprep.subr.mxu0 %v5547
  %5768 = vmatpush1.msra.mxu0 %v5546
  %5769 = vmatprep.subr.mxu0 %v5543
  %5770 = vmatpush1.msra.mxu0 %v5542
  %5771 = vmatprep.subr.mxu0 %v5539
  %5772 = vmatpush1.msra.mxu0 %v5538
  %5773 = vmatprep.subr.mxu0 %v5663
  %5774 = vmatpush2.msra.mxu0 %v5662
  %5775 = vmatprep.subr.mxu0 %v5659
  %5776 = vmatpush2.msra.mxu0 %v5658
  %5777 = vmatprep.subr.mxu0 %v5655
  %5778 = vmatpush2.msra.mxu0 %v5654
  %5779 = vmatprep.subr.mxu0 %v5651
  %5780 = vmatpush2.msra.mxu0 %v5650
  %5781 = vmatprep.subr.mxu0 %v5647
  %5782 = vmatpush2.msra.mxu0 %v5646
  %5783 = vmatprep.subr.mxu0 %v5643
  %5784 = vmatpush2.msra.mxu0 %v5642
  %5785 = vmatprep.subr.mxu0 %v5639
  %5786 = vmatpush2.msra.mxu0 %v5638
  %5787 = vmatprep.subr.mxu0 %v5635
  %5788 = vmatpush2.msra.mxu0 %v5634
  %5789 = vmatprep.subr.mxu0 %v5631
  %5790 = vmatpush2.msra.mxu0 %v5630
  %5791 = vmatprep.subr.mxu0 %v5627
  %5792 = vmatpush2.msra.mxu0 %v5626
  %5793 = vmatprep.subr.mxu0 %v5623
  %5794 = vmatpush2.msra.mxu0 %v5622
  %5795 = vmatprep.subr.mxu0 %v5619
  %5796 = vmatpush2.msra.mxu0 %v5618
  %5797 = vmatprep.subr.mxu0 %v5615
  %5798 = vmatpush2.msra.mxu0 %v5614
  %5799 = vmatprep.subr.mxu0 %v5611
  %5800 = vmatpush2.msra.mxu0 %v5610
  %5801 = vmatprep.subr.mxu0 %v5607
  %5802 = vmatpush2.msra.mxu0 %v5606
  %5803 = vmatprep.subr.mxu0 %v5603
  %5804 = vmatpush2.msra.mxu0 %v5602
  %5805 = vmatprep.mubr.f32.mxu0 %v5532
  %5806 = vmatmul.mubr.f32.gmra.mxu0 %v5531
  %v5807 = vpop.f32.mrf.mxu0
  %v5808 = vadd.f32 0.0, %v5807
  %v5809 = vpop.f32.mrf.mxu0
  %v5810 = vadd.f32 0.0, %v5809
  %5811 = vmatprep.mubr.f32.mxu0 %v5534
  %5812 = vmatmul.mubr.f32.gmra.mxu0 %v5533
  %v5813 = vpop.f32.mrf.mxu0
  %v5814 = vadd.f32 0.0, %v5813
  %v5815 = vpop.f32.mrf.mxu0
  %v5816 = vadd.f32 0.0, %v5815
  %5817 = vdwg.mxu0
  %v5818 = vadd.f32 %v5511, %v5731
  %v5819 = vadd.f32 %v5512, %v5733
  %v5820 = vadd.f32 %v5513, %v5808
  %v5821 = vadd.f32 %v5514, %v5810
  %v5822 = vadd.f32 %v5515, %v5737
  %v5823 = vadd.f32 %v5516, %v5739
  %v5824 = vadd.f32 %v5517, %v5814
  %v5825 = vadd.f32 %v5518, %v5816
  %v5826 = vadd.f32 %v3825, %v3829
  %v5827 = vadd.f32 %v3826, %v3830
  %v5828 = vadd.f32 %v3827, %v3831
  %v5829 = vadd.f32 %v3828, %v3832
  %v5830 = vadd.f32 %v5826, %v3857
  %v5831 = vadd.f32 %v5827, %v3858
  %v5832 = vadd.f32 %v5828, %v3859
  %v5833 = vadd.f32 %v5829, %v3860
  %v5834 = vadd.f32 %v5830, %v3861
  %v5835 = vadd.f32 %v5831, %v3862
  %v5836 = vadd.f32 %v5832, %v3863
  %v5837 = vadd.f32 %v5833, %v3864
  %v5838 = vmul.f32 %v5834, 0.25
  %v5839 = vmul.f32 %v5835, 0.25
  %v5840 = vmul.f32 %v5836, 0.25
  %v5841 = vmul.f32 %v5837, 0.25
  %s5842 = scalar_lea.vmem %s7, 6144
  %v5843 = vld [vmem:[%s5842] sm:$0xff]
  %v5844 = vld [vmem:[%s5842 + $0x8] sm:$0xff]
  %v5845 = vld [vmem:[%s5842 + $0x10] sm:$0xff]
  %v5846 = vld [vmem:[%s5842 + $0x18] sm:$0xff]
  %v5847 = vld [vmem:[%s5842 + $0x20] sm:$0xff]
  %v5848 = vld [vmem:[%s5842 + $0x28] sm:$0xff]
  %v5849 = vld [vmem:[%s5842 + $0x30] sm:$0xff]
  %v5850 = vld [vmem:[%s5842 + $0x38] sm:$0xff]
  %v5851 = vld [vmem:[%s5842 + $0x40] sm:$0xff]
  %v5852 = vld [vmem:[%s5842 + $0x48] sm:$0xff]
  %v5853 = vld [vmem:[%s5842 + $0x50] sm:$0xff]
  %v5854 = vld [vmem:[%s5842 + $0x58] sm:$0xff]
  %v5855 = vld [vmem:[%s5842 + $0x60] sm:$0xff]
  %v5856 = vld [vmem:[%s5842 + $0x68] sm:$0xff]
  %v5857 = vld [vmem:[%s5842 + $0x70] sm:$0xff]
  %v5858 = vld [vmem:[%s5842 + $0x78] sm:$0xff]
  %v5859 = vld [vmem:[%s5842 + $0x80] sm:$0xff]
  %v5860 = vld [vmem:[%s5842 + $0x88] sm:$0xff]
  %v5861 = vld [vmem:[%s5842 + $0x90] sm:$0xff]
  %v5862 = vld [vmem:[%s5842 + $0x98] sm:$0xff]
  %v5863 = vld [vmem:[%s5842 + $0xa0] sm:$0xff]
  %v5864 = vld [vmem:[%s5842 + $0xa8] sm:$0xff]
  %v5865 = vld [vmem:[%s5842 + $0xb0] sm:$0xff]
  %v5866 = vld [vmem:[%s5842 + $0xb8] sm:$0xff]
  %v5867 = vld [vmem:[%s5842 + $0xc0] sm:$0xff]
  %v5868 = vld [vmem:[%s5842 + $0xc8] sm:$0xff]
  %v5869 = vld [vmem:[%s5842 + $0xd0] sm:$0xff]
  %v5870 = vld [vmem:[%s5842 + $0xd8] sm:$0xff]
  %v5871 = vld [vmem:[%s5842 + $0xe0] sm:$0xff]
  %v5872 = vld [vmem:[%s5842 + $0xe8] sm:$0xff]
  %v5873 = vld [vmem:[%s5842 + $0xf0] sm:$0xff]
  %v5874 = vld [vmem:[%s5842 + $0xf8] sm:$0xff]
  %v5875 = vld [vmem:[%s5842 + $0x100] sm:$0xff]
  %v5876 = vld [vmem:[%s5842 + $0x108] sm:$0xff]
  %v5877 = vld [vmem:[%s5842 + $0x110] sm:$0xff]
  %v5878 = vld [vmem:[%s5842 + $0x118] sm:$0xff]
  %v5879 = vld [vmem:[%s5842 + $0x120] sm:$0xff]
  %v5880 = vld [vmem:[%s5842 + $0x128] sm:$0xff]
  %v5881 = vld [vmem:[%s5842 + $0x130] sm:$0xff]
  %v5882 = vld [vmem:[%s5842 + $0x138] sm:$0xff]
  %v5883 = vld [vmem:[%s5842 + $0x140] sm:$0xff]
  %v5884 = vld [vmem:[%s5842 + $0x148] sm:$0xff]
  %v5885 = vld [vmem:[%s5842 + $0x150] sm:$0xff]
  %v5886 = vld [vmem:[%s5842 + $0x158] sm:$0xff]
  %v5887 = vld [vmem:[%s5842 + $0x160] sm:$0xff]
  %v5888 = vld [vmem:[%s5842 + $0x168] sm:$0xff]
  %v5889 = vld [vmem:[%s5842 + $0x170] sm:$0xff]
  %v5890 = vld [vmem:[%s5842 + $0x178] sm:$0xff]
  %v5891 = vld [vmem:[%s5842 + $0x180] sm:$0xff]
  %v5892 = vld [vmem:[%s5842 + $0x188] sm:$0xff]
  %v5893 = vld [vmem:[%s5842 + $0x190] sm:$0xff]
  %v5894 = vld [vmem:[%s5842 + $0x198] sm:$0xff]
  %v5895 = vld [vmem:[%s5842 + $0x1a0] sm:$0xff]
  %v5896 = vld [vmem:[%s5842 + $0x1a8] sm:$0xff]
  %v5897 = vld [vmem:[%s5842 + $0x1b0] sm:$0xff]
  %v5898 = vld [vmem:[%s5842 + $0x1b8] sm:$0xff]
  %v5899 = vld [vmem:[%s5842 + $0x1c0] sm:$0xff]
  %v5900 = vld [vmem:[%s5842 + $0x1c8] sm:$0xff]
  %v5901 = vld [vmem:[%s5842 + $0x1d0] sm:$0xff]
  %v5902 = vld [vmem:[%s5842 + $0x1d8] sm:$0xff]
  %v5903 = vld [vmem:[%s5842 + $0x1e0] sm:$0xff]
  %v5904 = vld [vmem:[%s5842 + $0x1e8] sm:$0xff]
  %v5905 = vld [vmem:[%s5842 + $0x1f0] sm:$0xff]
  %v5906 = vld [vmem:[%s5842 + $0x1f8] sm:$0xff]
  %v5907 = vld [vmem:[%s5842 + $0x200] sm:$0xff]
  %v5908 = vld [vmem:[%s5842 + $0x208] sm:$0xff]
  %v5909 = vld [vmem:[%s5842 + $0x210] sm:$0xff]
  %v5910 = vld [vmem:[%s5842 + $0x218] sm:$0xff]
  %v5911 = vld [vmem:[%s5842 + $0x220] sm:$0xff]
  %v5912 = vld [vmem:[%s5842 + $0x228] sm:$0xff]
  %v5913 = vld [vmem:[%s5842 + $0x230] sm:$0xff]
  %v5914 = vld [vmem:[%s5842 + $0x238] sm:$0xff]
  %v5915 = vld [vmem:[%s5842 + $0x240] sm:$0xff]
  %v5916 = vld [vmem:[%s5842 + $0x248] sm:$0xff]
  %v5917 = vld [vmem:[%s5842 + $0x250] sm:$0xff]
  %v5918 = vld [vmem:[%s5842 + $0x258] sm:$0xff]
  %v5919 = vld [vmem:[%s5842 + $0x260] sm:$0xff]
  %v5920 = vld [vmem:[%s5842 + $0x268] sm:$0xff]
  %v5921 = vld [vmem:[%s5842 + $0x270] sm:$0xff]
  %v5922 = vld [vmem:[%s5842 + $0x278] sm:$0xff]
  %v5923 = vld [vmem:[%s5842 + $0x280] sm:$0xff]
  %v5924 = vld [vmem:[%s5842 + $0x288] sm:$0xff]
  %v5925 = vld [vmem:[%s5842 + $0x290] sm:$0xff]
  %v5926 = vld [vmem:[%s5842 + $0x298] sm:$0xff]
  %v5927 = vld [vmem:[%s5842 + $0x2a0] sm:$0xff]
  %v5928 = vld [vmem:[%s5842 + $0x2a8] sm:$0xff]
  %v5929 = vld [vmem:[%s5842 + $0x2b0] sm:$0xff]
  %v5930 = vld [vmem:[%s5842 + $0x2b8] sm:$0xff]
  %v5931 = vld [vmem:[%s5842 + $0x2c0] sm:$0xff]
  %v5932 = vld [vmem:[%s5842 + $0x2c8] sm:$0xff]
  %v5933 = vld [vmem:[%s5842 + $0x2d0] sm:$0xff]
  %v5934 = vld [vmem:[%s5842 + $0x2d8] sm:$0xff]
  %v5935 = vld [vmem:[%s5842 + $0x2e0] sm:$0xff]
  %v5936 = vld [vmem:[%s5842 + $0x2e8] sm:$0xff]
  %v5937 = vld [vmem:[%s5842 + $0x2f0] sm:$0xff]
  %v5938 = vld [vmem:[%s5842 + $0x2f8] sm:$0xff]
  %v5939 = vld [vmem:[%s5842 + $0x300] sm:$0xff]
  %v5940 = vld [vmem:[%s5842 + $0x308] sm:$0xff]
  %v5941 = vld [vmem:[%s5842 + $0x310] sm:$0xff]
  %v5942 = vld [vmem:[%s5842 + $0x318] sm:$0xff]
  %v5943 = vld [vmem:[%s5842 + $0x320] sm:$0xff]
  %v5944 = vld [vmem:[%s5842 + $0x328] sm:$0xff]
  %v5945 = vld [vmem:[%s5842 + $0x330] sm:$0xff]
  %v5946 = vld [vmem:[%s5842 + $0x338] sm:$0xff]
  %v5947 = vld [vmem:[%s5842 + $0x340] sm:$0xff]
  %v5948 = vld [vmem:[%s5842 + $0x348] sm:$0xff]
  %v5949 = vld [vmem:[%s5842 + $0x350] sm:$0xff]
  %v5950 = vld [vmem:[%s5842 + $0x358] sm:$0xff]
  %v5951 = vld [vmem:[%s5842 + $0x360] sm:$0xff]
  %v5952 = vld [vmem:[%s5842 + $0x368] sm:$0xff]
  %v5953 = vld [vmem:[%s5842 + $0x370] sm:$0xff]
  %v5954 = vld [vmem:[%s5842 + $0x378] sm:$0xff]
  %v5955 = vld [vmem:[%s5842 + $0x380] sm:$0xff]
  %v5956 = vld [vmem:[%s5842 + $0x388] sm:$0xff]
  %v5957 = vld [vmem:[%s5842 + $0x390] sm:$0xff]
  %v5958 = vld [vmem:[%s5842 + $0x398] sm:$0xff]
  %v5959 = vld [vmem:[%s5842 + $0x3a0] sm:$0xff]
  %v5960 = vld [vmem:[%s5842 + $0x3a8] sm:$0xff]
  %v5961 = vld [vmem:[%s5842 + $0x3b0] sm:$0xff]
  %v5962 = vld [vmem:[%s5842 + $0x3b8] sm:$0xff]
  %v5963 = vld [vmem:[%s5842 + $0x3c0] sm:$0xff]
  %v5964 = vld [vmem:[%s5842 + $0x3c8] sm:$0xff]
  %v5965 = vld [vmem:[%s5842 + $0x3d0] sm:$0xff]
  %v5966 = vld [vmem:[%s5842 + $0x3d8] sm:$0xff]
  %v5967 = vld [vmem:[%s5842 + $0x3e0] sm:$0xff]
  %v5968 = vld [vmem:[%s5842 + $0x3e8] sm:$0xff]
  %v5969 = vld [vmem:[%s5842 + $0x3f0] sm:$0xff]
  %v5970 = vld [vmem:[%s5842 + $0x3f8] sm:$0xff]
  %5971 = vmatprep.subr.mxu0 %v5904
  %5972 = vmatpush1.msra.mxu0 %v5903
  %5973 = vmatprep.subr.mxu0 %v5900
  %5974 = vmatpush1.msra.mxu0 %v5899
  %5975 = vmatprep.subr.mxu0 %v5896
  %5976 = vmatpush1.msra.mxu0 %v5895
  %5977 = vmatprep.subr.mxu0 %v5892
  %5978 = vmatpush1.msra.mxu0 %v5891
  %5979 = vmatprep.subr.mxu0 %v5888
  %5980 = vmatpush1.msra.mxu0 %v5887
  %5981 = vmatprep.subr.mxu0 %v5884
  %5982 = vmatpush1.msra.mxu0 %v5883
  %5983 = vmatprep.subr.mxu0 %v5880
  %5984 = vmatpush1.msra.mxu0 %v5879
  %5985 = vmatprep.subr.mxu0 %v5876
  %5986 = vmatpush1.msra.mxu0 %v5875
  %5987 = vmatprep.subr.mxu0 %v5872
  %5988 = vmatpush1.msra.mxu0 %v5871
  %5989 = vmatprep.subr.mxu0 %v5868
  %5990 = vmatpush1.msra.mxu0 %v5867
  %5991 = vmatprep.subr.mxu0 %v5864
  %5992 = vmatpush1.msra.mxu0 %v5863
  %5993 = vmatprep.subr.mxu0 %v5860
  %5994 = vmatpush1.msra.mxu0 %v5859
  %5995 = vmatprep.subr.mxu0 %v5856
  %5996 = vmatpush1.msra.mxu0 %v5855
  %5997 = vmatprep.subr.mxu0 %v5852
  %5998 = vmatpush1.msra.mxu0 %v5851
  %5999 = vmatprep.subr.mxu0 %v5848
  %6000 = vmatpush1.msra.mxu0 %v5847
  %6001 = vmatprep.subr.mxu0 %v5844
  %6002 = vmatpush1.msra.mxu0 %v5843
  %6003 = vmatprep.subr.mxu0 %v5968
  %6004 = vmatpush2.msra.mxu0 %v5967
  %6005 = vmatprep.subr.mxu0 %v5964
  %6006 = vmatpush2.msra.mxu0 %v5963
  %6007 = vmatprep.subr.mxu0 %v5960
  %6008 = vmatpush2.msra.mxu0 %v5959
  %6009 = vmatprep.subr.mxu0 %v5956
  %6010 = vmatpush2.msra.mxu0 %v5955
  %6011 = vmatprep.subr.mxu0 %v5952
  %6012 = vmatpush2.msra.mxu0 %v5951
  %6013 = vmatprep.subr.mxu0 %v5948
  %6014 = vmatpush2.msra.mxu0 %v5947
  %6015 = vmatprep.subr.mxu0 %v5944
  %6016 = vmatpush2.msra.mxu0 %v5943
  %6017 = vmatprep.subr.mxu0 %v5940
  %6018 = vmatpush2.msra.mxu0 %v5939
  %6019 = vmatprep.subr.mxu0 %v5936
  %6020 = vmatpush2.msra.mxu0 %v5935
  %6021 = vmatprep.subr.mxu0 %v5932
  %6022 = vmatpush2.msra.mxu0 %v5931
  %6023 = vmatprep.subr.mxu0 %v5928
  %6024 = vmatpush2.msra.mxu0 %v5927
  %6025 = vmatprep.subr.mxu0 %v5924
  %6026 = vmatpush2.msra.mxu0 %v5923
  %6027 = vmatprep.subr.mxu0 %v5920
  %6028 = vmatpush2.msra.mxu0 %v5919
  %6029 = vmatprep.subr.mxu0 %v5916
  %6030 = vmatpush2.msra.mxu0 %v5915
  %6031 = vmatprep.subr.mxu0 %v5912
  %6032 = vmatpush2.msra.mxu0 %v5911
  %6033 = vmatprep.subr.mxu0 %v5908
  %6034 = vmatpush2.msra.mxu0 %v5907
  %6035 = vmatprep.mubr.f32.mxu0 %v5839
  %6036 = vmatmul.mubr.f32.gmra.mxu0 %v5838
  %v6037 = vpop.f32.mrf.mxu0
  %v6038 = vadd.f32 0.0, %v6037
  %v6039 = vpop.f32.mrf.mxu0
  %v6040 = vadd.f32 0.0, %v6039
  %6041 = vmatprep.mubr.f32.mxu0 %v5841
  %6042 = vmatmul.mubr.f32.gmra.mxu0 %v5840
  %v6043 = vpop.f32.mrf.mxu0
  %v6044 = vadd.f32 0.0, %v6043
  %v6045 = vpop.f32.mrf.mxu0
  %v6046 = vadd.f32 0.0, %v6045
  %6047 = vdwg.mxu0
  %6048 = vmatprep.subr.mxu0 %v5906
  %6049 = vmatpush1.msra.mxu0 %v5905
  %6050 = vmatprep.subr.mxu0 %v5902
  %6051 = vmatpush1.msra.mxu0 %v5901
  %6052 = vmatprep.subr.mxu0 %v5898
  %6053 = vmatpush1.msra.mxu0 %v5897
  %6054 = vmatprep.subr.mxu0 %v5894
  %6055 = vmatpush1.msra.mxu0 %v5893
  %6056 = vmatprep.subr.mxu0 %v5890
  %6057 = vmatpush1.msra.mxu0 %v5889
  %6058 = vmatprep.subr.mxu0 %v5886
  %6059 = vmatpush1.msra.mxu0 %v5885
  %6060 = vmatprep.subr.mxu0 %v5882
  %6061 = vmatpush1.msra.mxu0 %v5881
  %6062 = vmatprep.subr.mxu0 %v5878
  %6063 = vmatpush1.msra.mxu0 %v5877
  %6064 = vmatprep.subr.mxu0 %v5874
  %6065 = vmatpush1.msra.mxu0 %v5873
  %6066 = vmatprep.subr.mxu0 %v5870
  %6067 = vmatpush1.msra.mxu0 %v5869
  %6068 = vmatprep.subr.mxu0 %v5866
  %6069 = vmatpush1.msra.mxu0 %v5865
  %6070 = vmatprep.subr.mxu0 %v5862
  %6071 = vmatpush1.msra.mxu0 %v5861
  %6072 = vmatprep.subr.mxu0 %v5858
  %6073 = vmatpush1.msra.mxu0 %v5857
  %6074 = vmatprep.subr.mxu0 %v5854
  %6075 = vmatpush1.msra.mxu0 %v5853
  %6076 = vmatprep.subr.mxu0 %v5850
  %6077 = vmatpush1.msra.mxu0 %v5849
  %6078 = vmatprep.subr.mxu0 %v5846
  %6079 = vmatpush1.msra.mxu0 %v5845
  %6080 = vmatprep.subr.mxu0 %v5970
  %6081 = vmatpush2.msra.mxu0 %v5969
  %6082 = vmatprep.subr.mxu0 %v5966
  %6083 = vmatpush2.msra.mxu0 %v5965
  %6084 = vmatprep.subr.mxu0 %v5962
  %6085 = vmatpush2.msra.mxu0 %v5961
  %6086 = vmatprep.subr.mxu0 %v5958
  %6087 = vmatpush2.msra.mxu0 %v5957
  %6088 = vmatprep.subr.mxu0 %v5954
  %6089 = vmatpush2.msra.mxu0 %v5953
  %6090 = vmatprep.subr.mxu0 %v5950
  %6091 = vmatpush2.msra.mxu0 %v5949
  %6092 = vmatprep.subr.mxu0 %v5946
  %6093 = vmatpush2.msra.mxu0 %v5945
  %6094 = vmatprep.subr.mxu0 %v5942
  %6095 = vmatpush2.msra.mxu0 %v5941
  %6096 = vmatprep.subr.mxu0 %v5938
  %6097 = vmatpush2.msra.mxu0 %v5937
  %6098 = vmatprep.subr.mxu0 %v5934
  %6099 = vmatpush2.msra.mxu0 %v5933
  %6100 = vmatprep.subr.mxu0 %v5930
  %6101 = vmatpush2.msra.mxu0 %v5929
  %6102 = vmatprep.subr.mxu0 %v5926
  %6103 = vmatpush2.msra.mxu0 %v5925
  %6104 = vmatprep.subr.mxu0 %v5922
  %6105 = vmatpush2.msra.mxu0 %v5921
  %6106 = vmatprep.subr.mxu0 %v5918
  %6107 = vmatpush2.msra.mxu0 %v5917
  %6108 = vmatprep.subr.mxu0 %v5914
  %6109 = vmatpush2.msra.mxu0 %v5913
  %6110 = vmatprep.subr.mxu0 %v5910
  %6111 = vmatpush2.msra.mxu0 %v5909
  %6112 = vmatprep.mubr.f32.mxu0 %v5839
  %6113 = vmatmul.mubr.f32.gmra.mxu0 %v5838
  %v6114 = vpop.f32.mrf.mxu0
  %v6115 = vadd.f32 0.0, %v6114
  %v6116 = vpop.f32.mrf.mxu0
  %v6117 = vadd.f32 0.0, %v6116
  %6118 = vmatprep.mubr.f32.mxu0 %v5841
  %6119 = vmatmul.mubr.f32.gmra.mxu0 %v5840
  %v6120 = vpop.f32.mrf.mxu0
  %v6121 = vadd.f32 0.0, %v6120
  %v6122 = vpop.f32.mrf.mxu0
  %v6123 = vadd.f32 0.0, %v6122
  %6124 = vdwg.mxu0
  %v6125 = vadd.f32 %v5818, %v6038
  %v6126 = vadd.f32 %v5819, %v6040
  %v6127 = vadd.f32 %v5820, %v6115
  %v6128 = vadd.f32 %v5821, %v6117
  %v6129 = vadd.f32 %v5822, %v6044
  %v6130 = vadd.f32 %v5823, %v6046
  %v6131 = vadd.f32 %v5824, %v6121
  %v6132 = vadd.f32 %v5825, %v6123
  %v6133 = vadd.f32 %v3833, %v3837
  %v6134 = vadd.f32 %v3834, %v3838
  %v6135 = vadd.f32 %v3835, %v3839
  %v6136 = vadd.f32 %v3836, %v3840
  %v6137 = vadd.f32 %v6133, %v3865
  %v6138 = vadd.f32 %v6134, %v3866
  %v6139 = vadd.f32 %v6135, %v3867
  %v6140 = vadd.f32 %v6136, %v3868
  %v6141 = vadd.f32 %v6137, %v3869
  %v6142 = vadd.f32 %v6138, %v3870
  %v6143 = vadd.f32 %v6139, %v3871
  %v6144 = vadd.f32 %v6140, %v3872
  %v6145 = vmul.f32 %v6141, 0.25
  %v6146 = vmul.f32 %v6142, 0.25
  %v6147 = vmul.f32 %v6143, 0.25
  %v6148 = vmul.f32 %v6144, 0.25
  %s6149 = scalar_lea.vmem %s7, 7168
  %v6150 = vld [vmem:[%s6149] sm:$0xff]
  %v6151 = vld [vmem:[%s6149 + $0x8] sm:$0xff]
  %v6152 = vld [vmem:[%s6149 + $0x10] sm:$0xff]
  %v6153 = vld [vmem:[%s6149 + $0x18] sm:$0xff]
  %v6154 = vld [vmem:[%s6149 + $0x20] sm:$0xff]
  %v6155 = vld [vmem:[%s6149 + $0x28] sm:$0xff]
  %v6156 = vld [vmem:[%s6149 + $0x30] sm:$0xff]
  %v6157 = vld [vmem:[%s6149 + $0x38] sm:$0xff]
  %v6158 = vld [vmem:[%s6149 + $0x40] sm:$0xff]
  %v6159 = vld [vmem:[%s6149 + $0x48] sm:$0xff]
  %v6160 = vld [vmem:[%s6149 + $0x50] sm:$0xff]
  %v6161 = vld [vmem:[%s6149 + $0x58] sm:$0xff]
  %v6162 = vld [vmem:[%s6149 + $0x60] sm:$0xff]
  %v6163 = vld [vmem:[%s6149 + $0x68] sm:$0xff]
  %v6164 = vld [vmem:[%s6149 + $0x70] sm:$0xff]
  %v6165 = vld [vmem:[%s6149 + $0x78] sm:$0xff]
  %v6166 = vld [vmem:[%s6149 + $0x80] sm:$0xff]
  %v6167 = vld [vmem:[%s6149 + $0x88] sm:$0xff]
  %v6168 = vld [vmem:[%s6149 + $0x90] sm:$0xff]
  %v6169 = vld [vmem:[%s6149 + $0x98] sm:$0xff]
  %v6170 = vld [vmem:[%s6149 + $0xa0] sm:$0xff]
  %v6171 = vld [vmem:[%s6149 + $0xa8] sm:$0xff]
  %v6172 = vld [vmem:[%s6149 + $0xb0] sm:$0xff]
  %v6173 = vld [vmem:[%s6149 + $0xb8] sm:$0xff]
  %v6174 = vld [vmem:[%s6149 + $0xc0] sm:$0xff]
  %v6175 = vld [vmem:[%s6149 + $0xc8] sm:$0xff]
  %v6176 = vld [vmem:[%s6149 + $0xd0] sm:$0xff]
  %v6177 = vld [vmem:[%s6149 + $0xd8] sm:$0xff]
  %v6178 = vld [vmem:[%s6149 + $0xe0] sm:$0xff]
  %v6179 = vld [vmem:[%s6149 + $0xe8] sm:$0xff]
  %v6180 = vld [vmem:[%s6149 + $0xf0] sm:$0xff]
  %v6181 = vld [vmem:[%s6149 + $0xf8] sm:$0xff]
  %v6182 = vld [vmem:[%s6149 + $0x100] sm:$0xff]
  %v6183 = vld [vmem:[%s6149 + $0x108] sm:$0xff]
  %v6184 = vld [vmem:[%s6149 + $0x110] sm:$0xff]
  %v6185 = vld [vmem:[%s6149 + $0x118] sm:$0xff]
  %v6186 = vld [vmem:[%s6149 + $0x120] sm:$0xff]
  %v6187 = vld [vmem:[%s6149 + $0x128] sm:$0xff]
  %v6188 = vld [vmem:[%s6149 + $0x130] sm:$0xff]
  %v6189 = vld [vmem:[%s6149 + $0x138] sm:$0xff]
  %v6190 = vld [vmem:[%s6149 + $0x140] sm:$0xff]
  %v6191 = vld [vmem:[%s6149 + $0x148] sm:$0xff]
  %v6192 = vld [vmem:[%s6149 + $0x150] sm:$0xff]
  %v6193 = vld [vmem:[%s6149 + $0x158] sm:$0xff]
  %v6194 = vld [vmem:[%s6149 + $0x160] sm:$0xff]
  %v6195 = vld [vmem:[%s6149 + $0x168] sm:$0xff]
  %v6196 = vld [vmem:[%s6149 + $0x170] sm:$0xff]
  %v6197 = vld [vmem:[%s6149 + $0x178] sm:$0xff]
  %v6198 = vld [vmem:[%s6149 + $0x180] sm:$0xff]
  %v6199 = vld [vmem:[%s6149 + $0x188] sm:$0xff]
  %v6200 = vld [vmem:[%s6149 + $0x190] sm:$0xff]
  %v6201 = vld [vmem:[%s6149 + $0x198] sm:$0xff]
  %v6202 = vld [vmem:[%s6149 + $0x1a0] sm:$0xff]
  %v6203 = vld [vmem:[%s6149 + $0x1a8] sm:$0xff]
  %v6204 = vld [vmem:[%s6149 + $0x1b0] sm:$0xff]
  %v6205 = vld [vmem:[%s6149 + $0x1b8] sm:$0xff]
  %v6206 = vld [vmem:[%s6149 + $0x1c0] sm:$0xff]
  %v6207 = vld [vmem:[%s6149 + $0x1c8] sm:$0xff]
  %v6208 = vld [vmem:[%s6149 + $0x1d0] sm:$0xff]
  %v6209 = vld [vmem:[%s6149 + $0x1d8] sm:$0xff]
  %v6210 = vld [vmem:[%s6149 + $0x1e0] sm:$0xff]
  %v6211 = vld [vmem:[%s6149 + $0x1e8] sm:$0xff]
  %v6212 = vld [vmem:[%s6149 + $0x1f0] sm:$0xff]
  %v6213 = vld [vmem:[%s6149 + $0x1f8] sm:$0xff]
  %v6214 = vld [vmem:[%s6149 + $0x200] sm:$0xff]
  %v6215 = vld [vmem:[%s6149 + $0x208] sm:$0xff]
  %v6216 = vld [vmem:[%s6149 + $0x210] sm:$0xff]
  %v6217 = vld [vmem:[%s6149 + $0x218] sm:$0xff]
  %v6218 = vld [vmem:[%s6149 + $0x220] sm:$0xff]
  %v6219 = vld [vmem:[%s6149 + $0x228] sm:$0xff]
  %v6220 = vld [vmem:[%s6149 + $0x230] sm:$0xff]
  %v6221 = vld [vmem:[%s6149 + $0x238] sm:$0xff]
  %v6222 = vld [vmem:[%s6149 + $0x240] sm:$0xff]
  %v6223 = vld [vmem:[%s6149 + $0x248] sm:$0xff]
  %v6224 = vld [vmem:[%s6149 + $0x250] sm:$0xff]
  %v6225 = vld [vmem:[%s6149 + $0x258] sm:$0xff]
  %v6226 = vld [vmem:[%s6149 + $0x260] sm:$0xff]
  %v6227 = vld [vmem:[%s6149 + $0x268] sm:$0xff]
  %v6228 = vld [vmem:[%s6149 + $0x270] sm:$0xff]
  %v6229 = vld [vmem:[%s6149 + $0x278] sm:$0xff]
  %v6230 = vld [vmem:[%s6149 + $0x280] sm:$0xff]
  %v6231 = vld [vmem:[%s6149 + $0x288] sm:$0xff]
  %v6232 = vld [vmem:[%s6149 + $0x290] sm:$0xff]
  %v6233 = vld [vmem:[%s6149 + $0x298] sm:$0xff]
  %v6234 = vld [vmem:[%s6149 + $0x2a0] sm:$0xff]
  %v6235 = vld [vmem:[%s6149 + $0x2a8] sm:$0xff]
  %v6236 = vld [vmem:[%s6149 + $0x2b0] sm:$0xff]
  %v6237 = vld [vmem:[%s6149 + $0x2b8] sm:$0xff]
  %v6238 = vld [vmem:[%s6149 + $0x2c0] sm:$0xff]
  %v6239 = vld [vmem:[%s6149 + $0x2c8] sm:$0xff]
  %v6240 = vld [vmem:[%s6149 + $0x2d0] sm:$0xff]
  %v6241 = vld [vmem:[%s6149 + $0x2d8] sm:$0xff]
  %v6242 = vld [vmem:[%s6149 + $0x2e0] sm:$0xff]
  %v6243 = vld [vmem:[%s6149 + $0x2e8] sm:$0xff]
  %v6244 = vld [vmem:[%s6149 + $0x2f0] sm:$0xff]
  %v6245 = vld [vmem:[%s6149 + $0x2f8] sm:$0xff]
  %v6246 = vld [vmem:[%s6149 + $0x300] sm:$0xff]
  %v6247 = vld [vmem:[%s6149 + $0x308] sm:$0xff]
  %v6248 = vld [vmem:[%s6149 + $0x310] sm:$0xff]
  %v6249 = vld [vmem:[%s6149 + $0x318] sm:$0xff]
  %v6250 = vld [vmem:[%s6149 + $0x320] sm:$0xff]
  %v6251 = vld [vmem:[%s6149 + $0x328] sm:$0xff]
  %v6252 = vld [vmem:[%s6149 + $0x330] sm:$0xff]
  %v6253 = vld [vmem:[%s6149 + $0x338] sm:$0xff]
  %v6254 = vld [vmem:[%s6149 + $0x340] sm:$0xff]
  %v6255 = vld [vmem:[%s6149 + $0x348] sm:$0xff]
  %v6256 = vld [vmem:[%s6149 + $0x350] sm:$0xff]
  %v6257 = vld [vmem:[%s6149 + $0x358] sm:$0xff]
  %v6258 = vld [vmem:[%s6149 + $0x360] sm:$0xff]
  %v6259 = vld [vmem:[%s6149 + $0x368] sm:$0xff]
  %v6260 = vld [vmem:[%s6149 + $0x370] sm:$0xff]
  %v6261 = vld [vmem:[%s6149 + $0x378] sm:$0xff]
  %v6262 = vld [vmem:[%s6149 + $0x380] sm:$0xff]
  %v6263 = vld [vmem:[%s6149 + $0x388] sm:$0xff]
  %v6264 = vld [vmem:[%s6149 + $0x390] sm:$0xff]
  %v6265 = vld [vmem:[%s6149 + $0x398] sm:$0xff]
  %v6266 = vld [vmem:[%s6149 + $0x3a0] sm:$0xff]
  %v6267 = vld [vmem:[%s6149 + $0x3a8] sm:$0xff]
  %v6268 = vld [vmem:[%s6149 + $0x3b0] sm:$0xff]
  %v6269 = vld [vmem:[%s6149 + $0x3b8] sm:$0xff]
  %v6270 = vld [vmem:[%s6149 + $0x3c0] sm:$0xff]
  %v6271 = vld [vmem:[%s6149 + $0x3c8] sm:$0xff]
  %v6272 = vld [vmem:[%s6149 + $0x3d0] sm:$0xff]
  %v6273 = vld [vmem:[%s6149 + $0x3d8] sm:$0xff]
  %v6274 = vld [vmem:[%s6149 + $0x3e0] sm:$0xff]
  %v6275 = vld [vmem:[%s6149 + $0x3e8] sm:$0xff]
  %v6276 = vld [vmem:[%s6149 + $0x3f0] sm:$0xff]
  %v6277 = vld [vmem:[%s6149 + $0x3f8] sm:$0xff]
  %6278 = vmatprep.subr.mxu0 %v6211
  %6279 = vmatpush1.msra.mxu0 %v6210
  %6280 = vmatprep.subr.mxu0 %v6207
  %6281 = vmatpush1.msra.mxu0 %v6206
  %6282 = vmatprep.subr.mxu0 %v6203
  %6283 = vmatpush1.msra.mxu0 %v6202
  %6284 = vmatprep.subr.mxu0 %v6199
  %6285 = vmatpush1.msra.mxu0 %v6198
  %6286 = vmatprep.subr.mxu0 %v6195
  %6287 = vmatpush1.msra.mxu0 %v6194
  %6288 = vmatprep.subr.mxu0 %v6191
  %6289 = vmatpush1.msra.mxu0 %v6190
  %6290 = vmatprep.subr.mxu0 %v6187
  %6291 = vmatpush1.msra.mxu0 %v6186
  %6292 = vmatprep.subr.mxu0 %v6183
  %6293 = vmatpush1.msra.mxu0 %v6182
  %6294 = vmatprep.subr.mxu0 %v6179
  %6295 = vmatpush1.msra.mxu0 %v6178
  %6296 = vmatprep.subr.mxu0 %v6175
  %6297 = vmatpush1.msra.mxu0 %v6174
  %6298 = vmatprep.subr.mxu0 %v6171
  %6299 = vmatpush1.msra.mxu0 %v6170
  %6300 = vmatprep.subr.mxu0 %v6167
  %6301 = vmatpush1.msra.mxu0 %v6166
  %6302 = vmatprep.subr.mxu0 %v6163
  %6303 = vmatpush1.msra.mxu0 %v6162
  %6304 = vmatprep.subr.mxu0 %v6159
  %6305 = vmatpush1.msra.mxu0 %v6158
  %6306 = vmatprep.subr.mxu0 %v6155
  %6307 = vmatpush1.msra.mxu0 %v6154
  %6308 = vmatprep.subr.mxu0 %v6151
  %6309 = vmatpush1.msra.mxu0 %v6150
  %6310 = vmatprep.subr.mxu0 %v6275
  %6311 = vmatpush2.msra.mxu0 %v6274
  %6312 = vmatprep.subr.mxu0 %v6271
  %6313 = vmatpush2.msra.mxu0 %v6270
  %6314 = vmatprep.subr.mxu0 %v6267
  %6315 = vmatpush2.msra.mxu0 %v6266
  %6316 = vmatprep.subr.mxu0 %v6263
  %6317 = vmatpush2.msra.mxu0 %v6262
  %6318 = vmatprep.subr.mxu0 %v6259
  %6319 = vmatpush2.msra.mxu0 %v6258
  %6320 = vmatprep.subr.mxu0 %v6255
  %6321 = vmatpush2.msra.mxu0 %v6254
  %6322 = vmatprep.subr.mxu0 %v6251
  %6323 = vmatpush2.msra.mxu0 %v6250
  %6324 = vmatprep.subr.mxu0 %v6247
  %6325 = vmatpush2.msra.mxu0 %v6246
  %6326 = vmatprep.subr.mxu0 %v6243
  %6327 = vmatpush2.msra.mxu0 %v6242
  %6328 = vmatprep.subr.mxu0 %v6239
  %6329 = vmatpush2.msra.mxu0 %v6238
  %6330 = vmatprep.subr.mxu0 %v6235
  %6331 = vmatpush2.msra.mxu0 %v6234
  %6332 = vmatprep.subr.mxu0 %v6231
  %6333 = vmatpush2.msra.mxu0 %v6230
  %6334 = vmatprep.subr.mxu0 %v6227
  %6335 = vmatpush2.msra.mxu0 %v6226
  %6336 = vmatprep.subr.mxu0 %v6223
  %6337 = vmatpush2.msra.mxu0 %v6222
  %6338 = vmatprep.subr.mxu0 %v6219
  %6339 = vmatpush2.msra.mxu0 %v6218
  %6340 = vmatprep.subr.mxu0 %v6215
  %6341 = vmatpush2.msra.mxu0 %v6214
  %6342 = vmatprep.mubr.f32.mxu0 %v6146
  %6343 = vmatmul.mubr.f32.gmra.mxu0 %v6145
  %v6344 = vpop.f32.mrf.mxu0
  %v6345 = vadd.f32 0.0, %v6344
  %v6346 = vpop.f32.mrf.mxu0
  %v6347 = vadd.f32 0.0, %v6346
  %6348 = vmatprep.mubr.f32.mxu0 %v6148
  %6349 = vmatmul.mubr.f32.gmra.mxu0 %v6147
  %v6350 = vpop.f32.mrf.mxu0
  %v6351 = vadd.f32 0.0, %v6350
  %v6352 = vpop.f32.mrf.mxu0
  %v6353 = vadd.f32 0.0, %v6352
  %6354 = vdwg.mxu0
  %6355 = vmatprep.subr.mxu0 %v6213
  %6356 = vmatpush1.msra.mxu0 %v6212
  %6357 = vmatprep.subr.mxu0 %v6209
  %6358 = vmatpush1.msra.mxu0 %v6208
  %6359 = vmatprep.subr.mxu0 %v6205
  %6360 = vmatpush1.msra.mxu0 %v6204
  %6361 = vmatprep.subr.mxu0 %v6201
  %6362 = vmatpush1.msra.mxu0 %v6200
  %6363 = vmatprep.subr.mxu0 %v6197
  %6364 = vmatpush1.msra.mxu0 %v6196
  %6365 = vmatprep.subr.mxu0 %v6193
  %6366 = vmatpush1.msra.mxu0 %v6192
  %6367 = vmatprep.subr.mxu0 %v6189
  %6368 = vmatpush1.msra.mxu0 %v6188
  %6369 = vmatprep.subr.mxu0 %v6185
  %6370 = vmatpush1.msra.mxu0 %v6184
  %6371 = vmatprep.subr.mxu0 %v6181
  %6372 = vmatpush1.msra.mxu0 %v6180
  %6373 = vmatprep.subr.mxu0 %v6177
  %6374 = vmatpush1.msra.mxu0 %v6176
  %6375 = vmatprep.subr.mxu0 %v6173
  %6376 = vmatpush1.msra.mxu0 %v6172
  %6377 = vmatprep.subr.mxu0 %v6169
  %6378 = vmatpush1.msra.mxu0 %v6168
  %6379 = vmatprep.subr.mxu0 %v6165
  %6380 = vmatpush1.msra.mxu0 %v6164
  %6381 = vmatprep.subr.mxu0 %v6161
  %6382 = vmatpush1.msra.mxu0 %v6160
  %6383 = vmatprep.subr.mxu0 %v6157
  %6384 = vmatpush1.msra.mxu0 %v6156
  %6385 = vmatprep.subr.mxu0 %v6153
  %6386 = vmatpush1.msra.mxu0 %v6152
  %6387 = vmatprep.subr.mxu0 %v6277
  %6388 = vmatpush2.msra.mxu0 %v6276
  %6389 = vmatprep.subr.mxu0 %v6273
  %6390 = vmatpush2.msra.mxu0 %v6272
  %6391 = vmatprep.subr.mxu0 %v6269
  %6392 = vmatpush2.msra.mxu0 %v6268
  %6393 = vmatprep.subr.mxu0 %v6265
  %6394 = vmatpush2.msra.mxu0 %v6264
  %6395 = vmatprep.subr.mxu0 %v6261
  %6396 = vmatpush2.msra.mxu0 %v6260
  %6397 = vmatprep.subr.mxu0 %v6257
  %6398 = vmatpush2.msra.mxu0 %v6256
  %6399 = vmatprep.subr.mxu0 %v6253
  %6400 = vmatpush2.msra.mxu0 %v6252
  %6401 = vmatprep.subr.mxu0 %v6249
  %6402 = vmatpush2.msra.mxu0 %v6248
  %6403 = vmatprep.subr.mxu0 %v6245
  %6404 = vmatpush2.msra.mxu0 %v6244
  %6405 = vmatprep.subr.mxu0 %v6241
  %6406 = vmatpush2.msra.mxu0 %v6240
  %6407 = vmatprep.subr.mxu0 %v6237
  %6408 = vmatpush2.msra.mxu0 %v6236
  %6409 = vmatprep.subr.mxu0 %v6233
  %6410 = vmatpush2.msra.mxu0 %v6232
  %6411 = vmatprep.subr.mxu0 %v6229
  %6412 = vmatpush2.msra.mxu0 %v6228
  %6413 = vmatprep.subr.mxu0 %v6225
  %6414 = vmatpush2.msra.mxu0 %v6224
  %6415 = vmatprep.subr.mxu0 %v6221
  %6416 = vmatpush2.msra.mxu0 %v6220
  %6417 = vmatprep.subr.mxu0 %v6217
  %6418 = vmatpush2.msra.mxu0 %v6216
  %6419 = vmatprep.mubr.f32.mxu0 %v6146
  %6420 = vmatmul.mubr.f32.gmra.mxu0 %v6145
  %v6421 = vpop.f32.mrf.mxu0
  %v6422 = vadd.f32 0.0, %v6421
  %v6423 = vpop.f32.mrf.mxu0
  %v6424 = vadd.f32 0.0, %v6423
  %6425 = vmatprep.mubr.f32.mxu0 %v6148
  %6426 = vmatmul.mubr.f32.gmra.mxu0 %v6147
  %v6427 = vpop.f32.mrf.mxu0
  %v6428 = vadd.f32 0.0, %v6427
  %v6429 = vpop.f32.mrf.mxu0
  %v6430 = vadd.f32 0.0, %v6429
  %6431 = vdwg.mxu0
  %v6432 = vadd.f32 %v6125, %v6345
  %v6433 = vadd.f32 %v6126, %v6347
  %v6434 = vadd.f32 %v6127, %v6422
  %v6435 = vadd.f32 %v6128, %v6424
  %v6436 = vadd.f32 %v6129, %v6351
  %v6437 = vadd.f32 %v6130, %v6353
  %v6438 = vadd.f32 %v6131, %v6428
  %v6439 = vadd.f32 %v6132, %v6430
  %v6440 = vadd.f32 %v3873, %v3877
  %v6441 = vadd.f32 %v3874, %v3878
  %v6442 = vadd.f32 %v3875, %v3879
  %v6443 = vadd.f32 %v3876, %v3880
  %v6444 = vadd.f32 %v6440, %v3905
  %v6445 = vadd.f32 %v6441, %v3906
  %v6446 = vadd.f32 %v6442, %v3907
  %v6447 = vadd.f32 %v6443, %v3908
  %v6448 = vadd.f32 %v6444, %v3909
  %v6449 = vadd.f32 %v6445, %v3910
  %v6450 = vadd.f32 %v6446, %v3911
  %v6451 = vadd.f32 %v6447, %v3912
  %v6452 = vmul.f32 %v6448, 0.25
  %v6453 = vmul.f32 %v6449, 0.25
  %v6454 = vmul.f32 %v6450, 0.25
  %v6455 = vmul.f32 %v6451, 0.25
  %s6456 = scalar_lea.vmem %s7, 8192
  %v6457 = vld [vmem:[%s6456] sm:$0xff]
  %v6458 = vld [vmem:[%s6456 + $0x8] sm:$0xff]
  %v6459 = vld [vmem:[%s6456 + $0x10] sm:$0xff]
  %v6460 = vld [vmem:[%s6456 + $0x18] sm:$0xff]
  %v6461 = vld [vmem:[%s6456 + $0x20] sm:$0xff]
  %v6462 = vld [vmem:[%s6456 + $0x28] sm:$0xff]
  %v6463 = vld [vmem:[%s6456 + $0x30] sm:$0xff]
  %v6464 = vld [vmem:[%s6456 + $0x38] sm:$0xff]
  %v6465 = vld [vmem:[%s6456 + $0x40] sm:$0xff]
  %v6466 = vld [vmem:[%s6456 + $0x48] sm:$0xff]
  %v6467 = vld [vmem:[%s6456 + $0x50] sm:$0xff]
  %v6468 = vld [vmem:[%s6456 + $0x58] sm:$0xff]
  %v6469 = vld [vmem:[%s6456 + $0x60] sm:$0xff]
  %v6470 = vld [vmem:[%s6456 + $0x68] sm:$0xff]
  %v6471 = vld [vmem:[%s6456 + $0x70] sm:$0xff]
  %v6472 = vld [vmem:[%s6456 + $0x78] sm:$0xff]
  %v6473 = vld [vmem:[%s6456 + $0x80] sm:$0xff]
  %v6474 = vld [vmem:[%s6456 + $0x88] sm:$0xff]
  %v6475 = vld [vmem:[%s6456 + $0x90] sm:$0xff]
  %v6476 = vld [vmem:[%s6456 + $0x98] sm:$0xff]
  %v6477 = vld [vmem:[%s6456 + $0xa0] sm:$0xff]
  %v6478 = vld [vmem:[%s6456 + $0xa8] sm:$0xff]
  %v6479 = vld [vmem:[%s6456 + $0xb0] sm:$0xff]
  %v6480 = vld [vmem:[%s6456 + $0xb8] sm:$0xff]
  %v6481 = vld [vmem:[%s6456 + $0xc0] sm:$0xff]
  %v6482 = vld [vmem:[%s6456 + $0xc8] sm:$0xff]
  %v6483 = vld [vmem:[%s6456 + $0xd0] sm:$0xff]
  %v6484 = vld [vmem:[%s6456 + $0xd8] sm:$0xff]
  %v6485 = vld [vmem:[%s6456 + $0xe0] sm:$0xff]
  %v6486 = vld [vmem:[%s6456 + $0xe8] sm:$0xff]
  %v6487 = vld [vmem:[%s6456 + $0xf0] sm:$0xff]
  %v6488 = vld [vmem:[%s6456 + $0xf8] sm:$0xff]
  %v6489 = vld [vmem:[%s6456 + $0x100] sm:$0xff]
  %v6490 = vld [vmem:[%s6456 + $0x108] sm:$0xff]
  %v6491 = vld [vmem:[%s6456 + $0x110] sm:$0xff]
  %v6492 = vld [vmem:[%s6456 + $0x118] sm:$0xff]
  %v6493 = vld [vmem:[%s6456 + $0x120] sm:$0xff]
  %v6494 = vld [vmem:[%s6456 + $0x128] sm:$0xff]
  %v6495 = vld [vmem:[%s6456 + $0x130] sm:$0xff]
  %v6496 = vld [vmem:[%s6456 + $0x138] sm:$0xff]
  %v6497 = vld [vmem:[%s6456 + $0x140] sm:$0xff]
  %v6498 = vld [vmem:[%s6456 + $0x148] sm:$0xff]
  %v6499 = vld [vmem:[%s6456 + $0x150] sm:$0xff]
  %v6500 = vld [vmem:[%s6456 + $0x158] sm:$0xff]
  %v6501 = vld [vmem:[%s6456 + $0x160] sm:$0xff]
  %v6502 = vld [vmem:[%s6456 + $0x168] sm:$0xff]
  %v6503 = vld [vmem:[%s6456 + $0x170] sm:$0xff]
  %v6504 = vld [vmem:[%s6456 + $0x178] sm:$0xff]
  %v6505 = vld [vmem:[%s6456 + $0x180] sm:$0xff]
  %v6506 = vld [vmem:[%s6456 + $0x188] sm:$0xff]
  %v6507 = vld [vmem:[%s6456 + $0x190] sm:$0xff]
  %v6508 = vld [vmem:[%s6456 + $0x198] sm:$0xff]
  %v6509 = vld [vmem:[%s6456 + $0x1a0] sm:$0xff]
  %v6510 = vld [vmem:[%s6456 + $0x1a8] sm:$0xff]
  %v6511 = vld [vmem:[%s6456 + $0x1b0] sm:$0xff]
  %v6512 = vld [vmem:[%s6456 + $0x1b8] sm:$0xff]
  %v6513 = vld [vmem:[%s6456 + $0x1c0] sm:$0xff]
  %v6514 = vld [vmem:[%s6456 + $0x1c8] sm:$0xff]
  %v6515 = vld [vmem:[%s6456 + $0x1d0] sm:$0xff]
  %v6516 = vld [vmem:[%s6456 + $0x1d8] sm:$0xff]
  %v6517 = vld [vmem:[%s6456 + $0x1e0] sm:$0xff]
  %v6518 = vld [vmem:[%s6456 + $0x1e8] sm:$0xff]
  %v6519 = vld [vmem:[%s6456 + $0x1f0] sm:$0xff]
  %v6520 = vld [vmem:[%s6456 + $0x1f8] sm:$0xff]
  %v6521 = vld [vmem:[%s6456 + $0x200] sm:$0xff]
  %v6522 = vld [vmem:[%s6456 + $0x208] sm:$0xff]
  %v6523 = vld [vmem:[%s6456 + $0x210] sm:$0xff]
  %v6524 = vld [vmem:[%s6456 + $0x218] sm:$0xff]
  %v6525 = vld [vmem:[%s6456 + $0x220] sm:$0xff]
  %v6526 = vld [vmem:[%s6456 + $0x228] sm:$0xff]
  %v6527 = vld [vmem:[%s6456 + $0x230] sm:$0xff]
  %v6528 = vld [vmem:[%s6456 + $0x238] sm:$0xff]
  %v6529 = vld [vmem:[%s6456 + $0x240] sm:$0xff]
  %v6530 = vld [vmem:[%s6456 + $0x248] sm:$0xff]
  %v6531 = vld [vmem:[%s6456 + $0x250] sm:$0xff]
  %v6532 = vld [vmem:[%s6456 + $0x258] sm:$0xff]
  %v6533 = vld [vmem:[%s6456 + $0x260] sm:$0xff]
  %v6534 = vld [vmem:[%s6456 + $0x268] sm:$0xff]
  %v6535 = vld [vmem:[%s6456 + $0x270] sm:$0xff]
  %v6536 = vld [vmem:[%s6456 + $0x278] sm:$0xff]
  %v6537 = vld [vmem:[%s6456 + $0x280] sm:$0xff]
  %v6538 = vld [vmem:[%s6456 + $0x288] sm:$0xff]
  %v6539 = vld [vmem:[%s6456 + $0x290] sm:$0xff]
  %v6540 = vld [vmem:[%s6456 + $0x298] sm:$0xff]
  %v6541 = vld [vmem:[%s6456 + $0x2a0] sm:$0xff]
  %v6542 = vld [vmem:[%s6456 + $0x2a8] sm:$0xff]
  %v6543 = vld [vmem:[%s6456 + $0x2b0] sm:$0xff]
  %v6544 = vld [vmem:[%s6456 + $0x2b8] sm:$0xff]
  %v6545 = vld [vmem:[%s6456 + $0x2c0] sm:$0xff]
  %v6546 = vld [vmem:[%s6456 + $0x2c8] sm:$0xff]
  %v6547 = vld [vmem:[%s6456 + $0x2d0] sm:$0xff]
  %v6548 = vld [vmem:[%s6456 + $0x2d8] sm:$0xff]
  %v6549 = vld [vmem:[%s6456 + $0x2e0] sm:$0xff]
  %v6550 = vld [vmem:[%s6456 + $0x2e8] sm:$0xff]
  %v6551 = vld [vmem:[%s6456 + $0x2f0] sm:$0xff]
  %v6552 = vld [vmem:[%s6456 + $0x2f8] sm:$0xff]
  %v6553 = vld [vmem:[%s6456 + $0x300] sm:$0xff]
  %v6554 = vld [vmem:[%s6456 + $0x308] sm:$0xff]
  %v6555 = vld [vmem:[%s6456 + $0x310] sm:$0xff]
  %v6556 = vld [vmem:[%s6456 + $0x318] sm:$0xff]
  %v6557 = vld [vmem:[%s6456 + $0x320] sm:$0xff]
  %v6558 = vld [vmem:[%s6456 + $0x328] sm:$0xff]
  %v6559 = vld [vmem:[%s6456 + $0x330] sm:$0xff]
  %v6560 = vld [vmem:[%s6456 + $0x338] sm:$0xff]
  %v6561 = vld [vmem:[%s6456 + $0x340] sm:$0xff]
  %v6562 = vld [vmem:[%s6456 + $0x348] sm:$0xff]
  %v6563 = vld [vmem:[%s6456 + $0x350] sm:$0xff]
  %v6564 = vld [vmem:[%s6456 + $0x358] sm:$0xff]
  %v6565 = vld [vmem:[%s6456 + $0x360] sm:$0xff]
  %v6566 = vld [vmem:[%s6456 + $0x368] sm:$0xff]
  %v6567 = vld [vmem:[%s6456 + $0x370] sm:$0xff]
  %v6568 = vld [vmem:[%s6456 + $0x378] sm:$0xff]
  %v6569 = vld [vmem:[%s6456 + $0x380] sm:$0xff]
  %v6570 = vld [vmem:[%s6456 + $0x388] sm:$0xff]
  %v6571 = vld [vmem:[%s6456 + $0x390] sm:$0xff]
  %v6572 = vld [vmem:[%s6456 + $0x398] sm:$0xff]
  %v6573 = vld [vmem:[%s6456 + $0x3a0] sm:$0xff]
  %v6574 = vld [vmem:[%s6456 + $0x3a8] sm:$0xff]
  %v6575 = vld [vmem:[%s6456 + $0x3b0] sm:$0xff]
  %v6576 = vld [vmem:[%s6456 + $0x3b8] sm:$0xff]
  %v6577 = vld [vmem:[%s6456 + $0x3c0] sm:$0xff]
  %v6578 = vld [vmem:[%s6456 + $0x3c8] sm:$0xff]
  %v6579 = vld [vmem:[%s6456 + $0x3d0] sm:$0xff]
  %v6580 = vld [vmem:[%s6456 + $0x3d8] sm:$0xff]
  %v6581 = vld [vmem:[%s6456 + $0x3e0] sm:$0xff]
  %v6582 = vld [vmem:[%s6456 + $0x3e8] sm:$0xff]
  %v6583 = vld [vmem:[%s6456 + $0x3f0] sm:$0xff]
  %v6584 = vld [vmem:[%s6456 + $0x3f8] sm:$0xff]
  %6585 = vmatprep.subr.mxu0 %v6518
  %6586 = vmatpush1.msra.mxu0 %v6517
  %6587 = vmatprep.subr.mxu0 %v6514
  %6588 = vmatpush1.msra.mxu0 %v6513
  %6589 = vmatprep.subr.mxu0 %v6510
  %6590 = vmatpush1.msra.mxu0 %v6509
  %6591 = vmatprep.subr.mxu0 %v6506
  %6592 = vmatpush1.msra.mxu0 %v6505
  %6593 = vmatprep.subr.mxu0 %v6502
  %6594 = vmatpush1.msra.mxu0 %v6501
  %6595 = vmatprep.subr.mxu0 %v6498
  %6596 = vmatpush1.msra.mxu0 %v6497
  %6597 = vmatprep.subr.mxu0 %v6494
  %6598 = vmatpush1.msra.mxu0 %v6493
  %6599 = vmatprep.subr.mxu0 %v6490
  %6600 = vmatpush1.msra.mxu0 %v6489
  %6601 = vmatprep.subr.mxu0 %v6486
  %6602 = vmatpush1.msra.mxu0 %v6485
  %6603 = vmatprep.subr.mxu0 %v6482
  %6604 = vmatpush1.msra.mxu0 %v6481
  %6605 = vmatprep.subr.mxu0 %v6478
  %6606 = vmatpush1.msra.mxu0 %v6477
  %6607 = vmatprep.subr.mxu0 %v6474
  %6608 = vmatpush1.msra.mxu0 %v6473
  %6609 = vmatprep.subr.mxu0 %v6470
  %6610 = vmatpush1.msra.mxu0 %v6469
  %6611 = vmatprep.subr.mxu0 %v6466
  %6612 = vmatpush1.msra.mxu0 %v6465
  %6613 = vmatprep.subr.mxu0 %v6462
  %6614 = vmatpush1.msra.mxu0 %v6461
  %6615 = vmatprep.subr.mxu0 %v6458
  %6616 = vmatpush1.msra.mxu0 %v6457
  %6617 = vmatprep.subr.mxu0 %v6582
  %6618 = vmatpush2.msra.mxu0 %v6581
  %6619 = vmatprep.subr.mxu0 %v6578
  %6620 = vmatpush2.msra.mxu0 %v6577
  %6621 = vmatprep.subr.mxu0 %v6574
  %6622 = vmatpush2.msra.mxu0 %v6573
  %6623 = vmatprep.subr.mxu0 %v6570
  %6624 = vmatpush2.msra.mxu0 %v6569
  %6625 = vmatprep.subr.mxu0 %v6566
  %6626 = vmatpush2.msra.mxu0 %v6565
  %6627 = vmatprep.subr.mxu0 %v6562
  %6628 = vmatpush2.msra.mxu0 %v6561
  %6629 = vmatprep.subr.mxu0 %v6558
  %6630 = vmatpush2.msra.mxu0 %v6557
  %6631 = vmatprep.subr.mxu0 %v6554
  %6632 = vmatpush2.msra.mxu0 %v6553
  %6633 = vmatprep.subr.mxu0 %v6550
  %6634 = vmatpush2.msra.mxu0 %v6549
  %6635 = vmatprep.subr.mxu0 %v6546
  %6636 = vmatpush2.msra.mxu0 %v6545
  %6637 = vmatprep.subr.mxu0 %v6542
  %6638 = vmatpush2.msra.mxu0 %v6541
  %6639 = vmatprep.subr.mxu0 %v6538
  %6640 = vmatpush2.msra.mxu0 %v6537
  %6641 = vmatprep.subr.mxu0 %v6534
  %6642 = vmatpush2.msra.mxu0 %v6533
  %6643 = vmatprep.subr.mxu0 %v6530
  %6644 = vmatpush2.msra.mxu0 %v6529
  %6645 = vmatprep.subr.mxu0 %v6526
  %6646 = vmatpush2.msra.mxu0 %v6525
  %6647 = vmatprep.subr.mxu0 %v6522
  %6648 = vmatpush2.msra.mxu0 %v6521
  %6649 = vmatprep.mubr.f32.mxu0 %v6453
  %6650 = vmatmul.mubr.f32.gmra.mxu0 %v6452
  %v6651 = vpop.f32.mrf.mxu0
  %v6652 = vadd.f32 0.0, %v6651
  %v6653 = vpop.f32.mrf.mxu0
  %v6654 = vadd.f32 0.0, %v6653
  %6655 = vmatprep.mubr.f32.mxu0 %v6455
  %6656 = vmatmul.mubr.f32.gmra.mxu0 %v6454
  %v6657 = vpop.f32.mrf.mxu0
  %v6658 = vadd.f32 0.0, %v6657
  %v6659 = vpop.f32.mrf.mxu0
  %v6660 = vadd.f32 0.0, %v6659
  %6661 = vdwg.mxu0
  %6662 = vmatprep.subr.mxu0 %v6520
  %6663 = vmatpush1.msra.mxu0 %v6519
  %6664 = vmatprep.subr.mxu0 %v6516
  %6665 = vmatpush1.msra.mxu0 %v6515
  %6666 = vmatprep.subr.mxu0 %v6512
  %6667 = vmatpush1.msra.mxu0 %v6511
  %6668 = vmatprep.subr.mxu0 %v6508
  %6669 = vmatpush1.msra.mxu0 %v6507
  %6670 = vmatprep.subr.mxu0 %v6504
  %6671 = vmatpush1.msra.mxu0 %v6503
  %6672 = vmatprep.subr.mxu0 %v6500
  %6673 = vmatpush1.msra.mxu0 %v6499
  %6674 = vmatprep.subr.mxu0 %v6496
  %6675 = vmatpush1.msra.mxu0 %v6495
  %6676 = vmatprep.subr.mxu0 %v6492
  %6677 = vmatpush1.msra.mxu0 %v6491
  %6678 = vmatprep.subr.mxu0 %v6488
  %6679 = vmatpush1.msra.mxu0 %v6487
  %6680 = vmatprep.subr.mxu0 %v6484
  %6681 = vmatpush1.msra.mxu0 %v6483
  %6682 = vmatprep.subr.mxu0 %v6480
  %6683 = vmatpush1.msra.mxu0 %v6479
  %6684 = vmatprep.subr.mxu0 %v6476
  %6685 = vmatpush1.msra.mxu0 %v6475
  %6686 = vmatprep.subr.mxu0 %v6472
  %6687 = vmatpush1.msra.mxu0 %v6471
  %6688 = vmatprep.subr.mxu0 %v6468
  %6689 = vmatpush1.msra.mxu0 %v6467
  %6690 = vmatprep.subr.mxu0 %v6464
  %6691 = vmatpush1.msra.mxu0 %v6463
  %6692 = vmatprep.subr.mxu0 %v6460
  %6693 = vmatpush1.msra.mxu0 %v6459
  %6694 = vmatprep.subr.mxu0 %v6584
  %6695 = vmatpush2.msra.mxu0 %v6583
  %6696 = vmatprep.subr.mxu0 %v6580
  %6697 = vmatpush2.msra.mxu0 %v6579
  %6698 = vmatprep.subr.mxu0 %v6576
  %6699 = vmatpush2.msra.mxu0 %v6575
  %6700 = vmatprep.subr.mxu0 %v6572
  %6701 = vmatpush2.msra.mxu0 %v6571
  %6702 = vmatprep.subr.mxu0 %v6568
  %6703 = vmatpush2.msra.mxu0 %v6567
  %6704 = vmatprep.subr.mxu0 %v6564
  %6705 = vmatpush2.msra.mxu0 %v6563
  %6706 = vmatprep.subr.mxu0 %v6560
  %6707 = vmatpush2.msra.mxu0 %v6559
  %6708 = vmatprep.subr.mxu0 %v6556
  %6709 = vmatpush2.msra.mxu0 %v6555
  %6710 = vmatprep.subr.mxu0 %v6552
  %6711 = vmatpush2.msra.mxu0 %v6551
  %6712 = vmatprep.subr.mxu0 %v6548
  %6713 = vmatpush2.msra.mxu0 %v6547
  %6714 = vmatprep.subr.mxu0 %v6544
  %6715 = vmatpush2.msra.mxu0 %v6543
  %6716 = vmatprep.subr.mxu0 %v6540
  %6717 = vmatpush2.msra.mxu0 %v6539
  %6718 = vmatprep.subr.mxu0 %v6536
  %6719 = vmatpush2.msra.mxu0 %v6535
  %6720 = vmatprep.subr.mxu0 %v6532
  %6721 = vmatpush2.msra.mxu0 %v6531
  %6722 = vmatprep.subr.mxu0 %v6528
  %6723 = vmatpush2.msra.mxu0 %v6527
  %6724 = vmatprep.subr.mxu0 %v6524
  %6725 = vmatpush2.msra.mxu0 %v6523
  %6726 = vmatprep.mubr.f32.mxu0 %v6453
  %6727 = vmatmul.mubr.f32.gmra.mxu0 %v6452
  %v6728 = vpop.f32.mrf.mxu0
  %v6729 = vadd.f32 0.0, %v6728
  %v6730 = vpop.f32.mrf.mxu0
  %v6731 = vadd.f32 0.0, %v6730
  %6732 = vmatprep.mubr.f32.mxu0 %v6455
  %6733 = vmatmul.mubr.f32.gmra.mxu0 %v6454
  %v6734 = vpop.f32.mrf.mxu0
  %v6735 = vadd.f32 0.0, %v6734
  %v6736 = vpop.f32.mrf.mxu0
  %v6737 = vadd.f32 0.0, %v6736
  %6738 = vdwg.mxu0
  %v6739 = vadd.f32 %v6432, %v6652
  %v6740 = vadd.f32 %v6433, %v6654
  %v6741 = vadd.f32 %v6434, %v6729
  %v6742 = vadd.f32 %v6435, %v6731
  %v6743 = vadd.f32 %v6436, %v6658
  %v6744 = vadd.f32 %v6437, %v6660
  %v6745 = vadd.f32 %v6438, %v6735
  %v6746 = vadd.f32 %v6439, %v6737
  %v6747 = vadd.f32 %v3881, %v3885
  %v6748 = vadd.f32 %v3882, %v3886
  %v6749 = vadd.f32 %v3883, %v3887
  %v6750 = vadd.f32 %v3884, %v3888
  %v6751 = vadd.f32 %v6747, %v3913
  %v6752 = vadd.f32 %v6748, %v3914
  %v6753 = vadd.f32 %v6749, %v3915
  %v6754 = vadd.f32 %v6750, %v3916
  %v6755 = vadd.f32 %v6751, %v3917
  %v6756 = vadd.f32 %v6752, %v3918
  %v6757 = vadd.f32 %v6753, %v3919
  %v6758 = vadd.f32 %v6754, %v3920
  %v6759 = vmul.f32 %v6755, 0.25
  %v6760 = vmul.f32 %v6756, 0.25
  %v6761 = vmul.f32 %v6757, 0.25
  %v6762 = vmul.f32 %v6758, 0.25
  %s6763 = scalar_lea.vmem %s7, 9216
  %v6764 = vld [vmem:[%s6763] sm:$0xff]
  %v6765 = vld [vmem:[%s6763 + $0x8] sm:$0xff]
  %v6766 = vld [vmem:[%s6763 + $0x10] sm:$0xff]
  %v6767 = vld [vmem:[%s6763 + $0x18] sm:$0xff]
  %v6768 = vld [vmem:[%s6763 + $0x20] sm:$0xff]
  %v6769 = vld [vmem:[%s6763 + $0x28] sm:$0xff]
  %v6770 = vld [vmem:[%s6763 + $0x30] sm:$0xff]
  %v6771 = vld [vmem:[%s6763 + $0x38] sm:$0xff]
  %v6772 = vld [vmem:[%s6763 + $0x40] sm:$0xff]
  %v6773 = vld [vmem:[%s6763 + $0x48] sm:$0xff]
  %v6774 = vld [vmem:[%s6763 + $0x50] sm:$0xff]
  %v6775 = vld [vmem:[%s6763 + $0x58] sm:$0xff]
  %v6776 = vld [vmem:[%s6763 + $0x60] sm:$0xff]
  %v6777 = vld [vmem:[%s6763 + $0x68] sm:$0xff]
  %v6778 = vld [vmem:[%s6763 + $0x70] sm:$0xff]
  %v6779 = vld [vmem:[%s6763 + $0x78] sm:$0xff]
  %v6780 = vld [vmem:[%s6763 + $0x80] sm:$0xff]
  %v6781 = vld [vmem:[%s6763 + $0x88] sm:$0xff]
  %v6782 = vld [vmem:[%s6763 + $0x90] sm:$0xff]
  %v6783 = vld [vmem:[%s6763 + $0x98] sm:$0xff]
  %v6784 = vld [vmem:[%s6763 + $0xa0] sm:$0xff]
  %v6785 = vld [vmem:[%s6763 + $0xa8] sm:$0xff]
  %v6786 = vld [vmem:[%s6763 + $0xb0] sm:$0xff]
  %v6787 = vld [vmem:[%s6763 + $0xb8] sm:$0xff]
  %v6788 = vld [vmem:[%s6763 + $0xc0] sm:$0xff]
  %v6789 = vld [vmem:[%s6763 + $0xc8] sm:$0xff]
  %v6790 = vld [vmem:[%s6763 + $0xd0] sm:$0xff]
  %v6791 = vld [vmem:[%s6763 + $0xd8] sm:$0xff]
  %v6792 = vld [vmem:[%s6763 + $0xe0] sm:$0xff]
  %v6793 = vld [vmem:[%s6763 + $0xe8] sm:$0xff]
  %v6794 = vld [vmem:[%s6763 + $0xf0] sm:$0xff]
  %v6795 = vld [vmem:[%s6763 + $0xf8] sm:$0xff]
  %v6796 = vld [vmem:[%s6763 + $0x100] sm:$0xff]
  %v6797 = vld [vmem:[%s6763 + $0x108] sm:$0xff]
  %v6798 = vld [vmem:[%s6763 + $0x110] sm:$0xff]
  %v6799 = vld [vmem:[%s6763 + $0x118] sm:$0xff]
  %v6800 = vld [vmem:[%s6763 + $0x120] sm:$0xff]
  %v6801 = vld [vmem:[%s6763 + $0x128] sm:$0xff]
  %v6802 = vld [vmem:[%s6763 + $0x130] sm:$0xff]
  %v6803 = vld [vmem:[%s6763 + $0x138] sm:$0xff]
  %v6804 = vld [vmem:[%s6763 + $0x140] sm:$0xff]
  %v6805 = vld [vmem:[%s6763 + $0x148] sm:$0xff]
  %v6806 = vld [vmem:[%s6763 + $0x150] sm:$0xff]
  %v6807 = vld [vmem:[%s6763 + $0x158] sm:$0xff]
  %v6808 = vld [vmem:[%s6763 + $0x160] sm:$0xff]
  %v6809 = vld [vmem:[%s6763 + $0x168] sm:$0xff]
  %v6810 = vld [vmem:[%s6763 + $0x170] sm:$0xff]
  %v6811 = vld [vmem:[%s6763 + $0x178] sm:$0xff]
  %v6812 = vld [vmem:[%s6763 + $0x180] sm:$0xff]
  %v6813 = vld [vmem:[%s6763 + $0x188] sm:$0xff]
  %v6814 = vld [vmem:[%s6763 + $0x190] sm:$0xff]
  %v6815 = vld [vmem:[%s6763 + $0x198] sm:$0xff]
  %v6816 = vld [vmem:[%s6763 + $0x1a0] sm:$0xff]
  %v6817 = vld [vmem:[%s6763 + $0x1a8] sm:$0xff]
  %v6818 = vld [vmem:[%s6763 + $0x1b0] sm:$0xff]
  %v6819 = vld [vmem:[%s6763 + $0x1b8] sm:$0xff]
  %v6820 = vld [vmem:[%s6763 + $0x1c0] sm:$0xff]
  %v6821 = vld [vmem:[%s6763 + $0x1c8] sm:$0xff]
  %v6822 = vld [vmem:[%s6763 + $0x1d0] sm:$0xff]
  %v6823 = vld [vmem:[%s6763 + $0x1d8] sm:$0xff]
  %v6824 = vld [vmem:[%s6763 + $0x1e0] sm:$0xff]
  %v6825 = vld [vmem:[%s6763 + $0x1e8] sm:$0xff]
  %v6826 = vld [vmem:[%s6763 + $0x1f0] sm:$0xff]
  %v6827 = vld [vmem:[%s6763 + $0x1f8] sm:$0xff]
  %v6828 = vld [vmem:[%s6763 + $0x200] sm:$0xff]
  %v6829 = vld [vmem:[%s6763 + $0x208] sm:$0xff]
  %v6830 = vld [vmem:[%s6763 + $0x210] sm:$0xff]
  %v6831 = vld [vmem:[%s6763 + $0x218] sm:$0xff]
  %v6832 = vld [vmem:[%s6763 + $0x220] sm:$0xff]
  %v6833 = vld [vmem:[%s6763 + $0x228] sm:$0xff]
  %v6834 = vld [vmem:[%s6763 + $0x230] sm:$0xff]
  %v6835 = vld [vmem:[%s6763 + $0x238] sm:$0xff]
  %v6836 = vld [vmem:[%s6763 + $0x240] sm:$0xff]
  %v6837 = vld [vmem:[%s6763 + $0x248] sm:$0xff]
  %v6838 = vld [vmem:[%s6763 + $0x250] sm:$0xff]
  %v6839 = vld [vmem:[%s6763 + $0x258] sm:$0xff]
  %v6840 = vld [vmem:[%s6763 + $0x260] sm:$0xff]
  %v6841 = vld [vmem:[%s6763 + $0x268] sm:$0xff]
  %v6842 = vld [vmem:[%s6763 + $0x270] sm:$0xff]
  %v6843 = vld [vmem:[%s6763 + $0x278] sm:$0xff]
  %v6844 = vld [vmem:[%s6763 + $0x280] sm:$0xff]
  %v6845 = vld [vmem:[%s6763 + $0x288] sm:$0xff]
  %v6846 = vld [vmem:[%s6763 + $0x290] sm:$0xff]
  %v6847 = vld [vmem:[%s6763 + $0x298] sm:$0xff]
  %v6848 = vld [vmem:[%s6763 + $0x2a0] sm:$0xff]
  %v6849 = vld [vmem:[%s6763 + $0x2a8] sm:$0xff]
  %v6850 = vld [vmem:[%s6763 + $0x2b0] sm:$0xff]
  %v6851 = vld [vmem:[%s6763 + $0x2b8] sm:$0xff]
  %v6852 = vld [vmem:[%s6763 + $0x2c0] sm:$0xff]
  %v6853 = vld [vmem:[%s6763 + $0x2c8] sm:$0xff]
  %v6854 = vld [vmem:[%s6763 + $0x2d0] sm:$0xff]
  %v6855 = vld [vmem:[%s6763 + $0x2d8] sm:$0xff]
  %v6856 = vld [vmem:[%s6763 + $0x2e0] sm:$0xff]
  %v6857 = vld [vmem:[%s6763 + $0x2e8] sm:$0xff]
  %v6858 = vld [vmem:[%s6763 + $0x2f0] sm:$0xff]
  %v6859 = vld [vmem:[%s6763 + $0x2f8] sm:$0xff]
  %v6860 = vld [vmem:[%s6763 + $0x300] sm:$0xff]
  %v6861 = vld [vmem:[%s6763 + $0x308] sm:$0xff]
  %v6862 = vld [vmem:[%s6763 + $0x310] sm:$0xff]
  %v6863 = vld [vmem:[%s6763 + $0x318] sm:$0xff]
  %v6864 = vld [vmem:[%s6763 + $0x320] sm:$0xff]
  %v6865 = vld [vmem:[%s6763 + $0x328] sm:$0xff]
  %v6866 = vld [vmem:[%s6763 + $0x330] sm:$0xff]
  %v6867 = vld [vmem:[%s6763 + $0x338] sm:$0xff]
  %v6868 = vld [vmem:[%s6763 + $0x340] sm:$0xff]
  %v6869 = vld [vmem:[%s6763 + $0x348] sm:$0xff]
  %v6870 = vld [vmem:[%s6763 + $0x350] sm:$0xff]
  %v6871 = vld [vmem:[%s6763 + $0x358] sm:$0xff]
  %v6872 = vld [vmem:[%s6763 + $0x360] sm:$0xff]
  %v6873 = vld [vmem:[%s6763 + $0x368] sm:$0xff]
  %v6874 = vld [vmem:[%s6763 + $0x370] sm:$0xff]
  %v6875 = vld [vmem:[%s6763 + $0x378] sm:$0xff]
  %v6876 = vld [vmem:[%s6763 + $0x380] sm:$0xff]
  %v6877 = vld [vmem:[%s6763 + $0x388] sm:$0xff]
  %v6878 = vld [vmem:[%s6763 + $0x390] sm:$0xff]
  %v6879 = vld [vmem:[%s6763 + $0x398] sm:$0xff]
  %v6880 = vld [vmem:[%s6763 + $0x3a0] sm:$0xff]
  %v6881 = vld [vmem:[%s6763 + $0x3a8] sm:$0xff]
  %v6882 = vld [vmem:[%s6763 + $0x3b0] sm:$0xff]
  %v6883 = vld [vmem:[%s6763 + $0x3b8] sm:$0xff]
  %v6884 = vld [vmem:[%s6763 + $0x3c0] sm:$0xff]
  %v6885 = vld [vmem:[%s6763 + $0x3c8] sm:$0xff]
  %v6886 = vld [vmem:[%s6763 + $0x3d0] sm:$0xff]
  %v6887 = vld [vmem:[%s6763 + $0x3d8] sm:$0xff]
  %v6888 = vld [vmem:[%s6763 + $0x3e0] sm:$0xff]
  %v6889 = vld [vmem:[%s6763 + $0x3e8] sm:$0xff]
  %v6890 = vld [vmem:[%s6763 + $0x3f0] sm:$0xff]
  %v6891 = vld [vmem:[%s6763 + $0x3f8] sm:$0xff]
  %6892 = vmatprep.subr.mxu0 %v6825
  %6893 = vmatpush1.msra.mxu0 %v6824
  %6894 = vmatprep.subr.mxu0 %v6821
  %6895 = vmatpush1.msra.mxu0 %v6820
  %6896 = vmatprep.subr.mxu0 %v6817
  %6897 = vmatpush1.msra.mxu0 %v6816
  %6898 = vmatprep.subr.mxu0 %v6813
  %6899 = vmatpush1.msra.mxu0 %v6812
  %6900 = vmatprep.subr.mxu0 %v6809
  %6901 = vmatpush1.msra.mxu0 %v6808
  %6902 = vmatprep.subr.mxu0 %v6805
  %6903 = vmatpush1.msra.mxu0 %v6804
  %6904 = vmatprep.subr.mxu0 %v6801
  %6905 = vmatpush1.msra.mxu0 %v6800
  %6906 = vmatprep.subr.mxu0 %v6797
  %6907 = vmatpush1.msra.mxu0 %v6796
  %6908 = vmatprep.subr.mxu0 %v6793
  %6909 = vmatpush1.msra.mxu0 %v6792
  %6910 = vmatprep.subr.mxu0 %v6789
  %6911 = vmatpush1.msra.mxu0 %v6788
  %6912 = vmatprep.subr.mxu0 %v6785
  %6913 = vmatpush1.msra.mxu0 %v6784
  %6914 = vmatprep.subr.mxu0 %v6781
  %6915 = vmatpush1.msra.mxu0 %v6780
  %6916 = vmatprep.subr.mxu0 %v6777
  %6917 = vmatpush1.msra.mxu0 %v6776
  %6918 = vmatprep.subr.mxu0 %v6773
  %6919 = vmatpush1.msra.mxu0 %v6772
  %6920 = vmatprep.subr.mxu0 %v6769
  %6921 = vmatpush1.msra.mxu0 %v6768
  %6922 = vmatprep.subr.mxu0 %v6765
  %6923 = vmatpush1.msra.mxu0 %v6764
  %6924 = vmatprep.subr.mxu0 %v6889
  %6925 = vmatpush2.msra.mxu0 %v6888
  %6926 = vmatprep.subr.mxu0 %v6885
  %6927 = vmatpush2.msra.mxu0 %v6884
  %6928 = vmatprep.subr.mxu0 %v6881
  %6929 = vmatpush2.msra.mxu0 %v6880
  %6930 = vmatprep.subr.mxu0 %v6877
  %6931 = vmatpush2.msra.mxu0 %v6876
  %6932 = vmatprep.subr.mxu0 %v6873
  %6933 = vmatpush2.msra.mxu0 %v6872
  %6934 = vmatprep.subr.mxu0 %v6869
  %6935 = vmatpush2.msra.mxu0 %v6868
  %6936 = vmatprep.subr.mxu0 %v6865
  %6937 = vmatpush2.msra.mxu0 %v6864
  %6938 = vmatprep.subr.mxu0 %v6861
  %6939 = vmatpush2.msra.mxu0 %v6860
  %6940 = vmatprep.subr.mxu0 %v6857
  %6941 = vmatpush2.msra.mxu0 %v6856
  %6942 = vmatprep.subr.mxu0 %v6853
  %6943 = vmatpush2.msra.mxu0 %v6852
  %6944 = vmatprep.subr.mxu0 %v6849
  %6945 = vmatpush2.msra.mxu0 %v6848
  %6946 = vmatprep.subr.mxu0 %v6845
  %6947 = vmatpush2.msra.mxu0 %v6844
  %6948 = vmatprep.subr.mxu0 %v6841
  %6949 = vmatpush2.msra.mxu0 %v6840
  %6950 = vmatprep.subr.mxu0 %v6837
  %6951 = vmatpush2.msra.mxu0 %v6836
  %6952 = vmatprep.subr.mxu0 %v6833
  %6953 = vmatpush2.msra.mxu0 %v6832
  %6954 = vmatprep.subr.mxu0 %v6829
  %6955 = vmatpush2.msra.mxu0 %v6828
  %6956 = vmatprep.mubr.f32.mxu0 %v6760
  %6957 = vmatmul.mubr.f32.gmra.mxu0 %v6759
  %v6958 = vpop.f32.mrf.mxu0
  %v6959 = vadd.f32 0.0, %v6958
  %v6960 = vpop.f32.mrf.mxu0
  %v6961 = vadd.f32 0.0, %v6960
  %6962 = vmatprep.mubr.f32.mxu0 %v6762
  %6963 = vmatmul.mubr.f32.gmra.mxu0 %v6761
  %v6964 = vpop.f32.mrf.mxu0
  %v6965 = vadd.f32 0.0, %v6964
  %v6966 = vpop.f32.mrf.mxu0
  %v6967 = vadd.f32 0.0, %v6966
  %6968 = vdwg.mxu0
  %6969 = vmatprep.subr.mxu0 %v6827
  %6970 = vmatpush1.msra.mxu0 %v6826
  %6971 = vmatprep.subr.mxu0 %v6823
  %6972 = vmatpush1.msra.mxu0 %v6822
  %6973 = vmatprep.subr.mxu0 %v6819
  %6974 = vmatpush1.msra.mxu0 %v6818
  %6975 = vmatprep.subr.mxu0 %v6815
  %6976 = vmatpush1.msra.mxu0 %v6814
  %6977 = vmatprep.subr.mxu0 %v6811
  %6978 = vmatpush1.msra.mxu0 %v6810
  %6979 = vmatprep.subr.mxu0 %v6807
  %6980 = vmatpush1.msra.mxu0 %v6806
  %6981 = vmatprep.subr.mxu0 %v6803
  %6982 = vmatpush1.msra.mxu0 %v6802
  %6983 = vmatprep.subr.mxu0 %v6799
  %6984 = vmatpush1.msra.mxu0 %v6798
  %6985 = vmatprep.subr.mxu0 %v6795
  %6986 = vmatpush1.msra.mxu0 %v6794
  %6987 = vmatprep.subr.mxu0 %v6791
  %6988 = vmatpush1.msra.mxu0 %v6790
  %6989 = vmatprep.subr.mxu0 %v6787
  %6990 = vmatpush1.msra.mxu0 %v6786
  %6991 = vmatprep.subr.mxu0 %v6783
  %6992 = vmatpush1.msra.mxu0 %v6782
  %6993 = vmatprep.subr.mxu0 %v6779
  %6994 = vmatpush1.msra.mxu0 %v6778
  %6995 = vmatprep.subr.mxu0 %v6775
  %6996 = vmatpush1.msra.mxu0 %v6774
  %6997 = vmatprep.subr.mxu0 %v6771
  %6998 = vmatpush1.msra.mxu0 %v6770
  %6999 = vmatprep.subr.mxu0 %v6767
  %7000 = vmatpush1.msra.mxu0 %v6766
  %7001 = vmatprep.subr.mxu0 %v6891
  %7002 = vmatpush2.msra.mxu0 %v6890
  %7003 = vmatprep.subr.mxu0 %v6887
  %7004 = vmatpush2.msra.mxu0 %v6886
  %7005 = vmatprep.subr.mxu0 %v6883
  %7006 = vmatpush2.msra.mxu0 %v6882
  %7007 = vmatprep.subr.mxu0 %v6879
  %7008 = vmatpush2.msra.mxu0 %v6878
  %7009 = vmatprep.subr.mxu0 %v6875
  %7010 = vmatpush2.msra.mxu0 %v6874
  %7011 = vmatprep.subr.mxu0 %v6871
  %7012 = vmatpush2.msra.mxu0 %v6870
  %7013 = vmatprep.subr.mxu0 %v6867
  %7014 = vmatpush2.msra.mxu0 %v6866
  %7015 = vmatprep.subr.mxu0 %v6863
  %7016 = vmatpush2.msra.mxu0 %v6862
  %7017 = vmatprep.subr.mxu0 %v6859
  %7018 = vmatpush2.msra.mxu0 %v6858
  %7019 = vmatprep.subr.mxu0 %v6855
  %7020 = vmatpush2.msra.mxu0 %v6854
  %7021 = vmatprep.subr.mxu0 %v6851
  %7022 = vmatpush2.msra.mxu0 %v6850
  %7023 = vmatprep.subr.mxu0 %v6847
  %7024 = vmatpush2.msra.mxu0 %v6846
  %7025 = vmatprep.subr.mxu0 %v6843
  %7026 = vmatpush2.msra.mxu0 %v6842
  %7027 = vmatprep.subr.mxu0 %v6839
  %7028 = vmatpush2.msra.mxu0 %v6838
  %7029 = vmatprep.subr.mxu0 %v6835
  %7030 = vmatpush2.msra.mxu0 %v6834
  %7031 = vmatprep.subr.mxu0 %v6831
  %7032 = vmatpush2.msra.mxu0 %v6830
  %7033 = vmatprep.mubr.f32.mxu0 %v6760
  %7034 = vmatmul.mubr.f32.gmra.mxu0 %v6759
  %v7035 = vpop.f32.mrf.mxu0
  %v7036 = vadd.f32 0.0, %v7035
  %v7037 = vpop.f32.mrf.mxu0
  %v7038 = vadd.f32 0.0, %v7037
  %7039 = vmatprep.mubr.f32.mxu0 %v6762
  %7040 = vmatmul.mubr.f32.gmra.mxu0 %v6761
  %v7041 = vpop.f32.mrf.mxu0
  %v7042 = vadd.f32 0.0, %v7041
  %v7043 = vpop.f32.mrf.mxu0
  %v7044 = vadd.f32 0.0, %v7043
  %7045 = vdwg.mxu0
  %v7046 = vadd.f32 %v6739, %v6959
  %v7047 = vadd.f32 %v6740, %v6961
  %v7048 = vadd.f32 %v6741, %v7036
  %v7049 = vadd.f32 %v6742, %v7038
  %v7050 = vadd.f32 %v6743, %v6965
  %v7051 = vadd.f32 %v6744, %v6967
  %v7052 = vadd.f32 %v6745, %v7042
  %v7053 = vadd.f32 %v6746, %v7044
  %v7054 = vadd.f32 %v3889, %v3893
  %v7055 = vadd.f32 %v3890, %v3894
  %v7056 = vadd.f32 %v3891, %v3895
  %v7057 = vadd.f32 %v3892, %v3896
  %v7058 = vadd.f32 %v7054, %v3921
  %v7059 = vadd.f32 %v7055, %v3922
  %v7060 = vadd.f32 %v7056, %v3923
  %v7061 = vadd.f32 %v7057, %v3924
  %v7062 = vadd.f32 %v7058, %v3925
  %v7063 = vadd.f32 %v7059, %v3926
  %v7064 = vadd.f32 %v7060, %v3927
  %v7065 = vadd.f32 %v7061, %v3928
  %v7066 = vmul.f32 %v7062, 0.25
  %v7067 = vmul.f32 %v7063, 0.25
  %v7068 = vmul.f32 %v7064, 0.25
  %v7069 = vmul.f32 %v7065, 0.25
  %s7070 = scalar_lea.vmem %s7, 10240
  %v7071 = vld [vmem:[%s7070] sm:$0xff]
  %v7072 = vld [vmem:[%s7070 + $0x8] sm:$0xff]
  %v7073 = vld [vmem:[%s7070 + $0x10] sm:$0xff]
  %v7074 = vld [vmem:[%s7070 + $0x18] sm:$0xff]
  %v7075 = vld [vmem:[%s7070 + $0x20] sm:$0xff]
  %v7076 = vld [vmem:[%s7070 + $0x28] sm:$0xff]
  %v7077 = vld [vmem:[%s7070 + $0x30] sm:$0xff]
  %v7078 = vld [vmem:[%s7070 + $0x38] sm:$0xff]
  %v7079 = vld [vmem:[%s7070 + $0x40] sm:$0xff]
  %v7080 = vld [vmem:[%s7070 + $0x48] sm:$0xff]
  %v7081 = vld [vmem:[%s7070 + $0x50] sm:$0xff]
  %v7082 = vld [vmem:[%s7070 + $0x58] sm:$0xff]
  %v7083 = vld [vmem:[%s7070 + $0x60] sm:$0xff]
  %v7084 = vld [vmem:[%s7070 + $0x68] sm:$0xff]
  %v7085 = vld [vmem:[%s7070 + $0x70] sm:$0xff]
  %v7086 = vld [vmem:[%s7070 + $0x78] sm:$0xff]
  %v7087 = vld [vmem:[%s7070 + $0x80] sm:$0xff]
  %v7088 = vld [vmem:[%s7070 + $0x88] sm:$0xff]
  %v7089 = vld [vmem:[%s7070 + $0x90] sm:$0xff]
  %v7090 = vld [vmem:[%s7070 + $0x98] sm:$0xff]
  %v7091 = vld [vmem:[%s7070 + $0xa0] sm:$0xff]
  %v7092 = vld [vmem:[%s7070 + $0xa8] sm:$0xff]
  %v7093 = vld [vmem:[%s7070 + $0xb0] sm:$0xff]
  %v7094 = vld [vmem:[%s7070 + $0xb8] sm:$0xff]
  %v7095 = vld [vmem:[%s7070 + $0xc0] sm:$0xff]
  %v7096 = vld [vmem:[%s7070 + $0xc8] sm:$0xff]
  %v7097 = vld [vmem:[%s7070 + $0xd0] sm:$0xff]
  %v7098 = vld [vmem:[%s7070 + $0xd8] sm:$0xff]
  %v7099 = vld [vmem:[%s7070 + $0xe0] sm:$0xff]
  %v7100 = vld [vmem:[%s7070 + $0xe8] sm:$0xff]
  %v7101 = vld [vmem:[%s7070 + $0xf0] sm:$0xff]
  %v7102 = vld [vmem:[%s7070 + $0xf8] sm:$0xff]
  %v7103 = vld [vmem:[%s7070 + $0x100] sm:$0xff]
  %v7104 = vld [vmem:[%s7070 + $0x108] sm:$0xff]
  %v7105 = vld [vmem:[%s7070 + $0x110] sm:$0xff]
  %v7106 = vld [vmem:[%s7070 + $0x118] sm:$0xff]
  %v7107 = vld [vmem:[%s7070 + $0x120] sm:$0xff]
  %v7108 = vld [vmem:[%s7070 + $0x128] sm:$0xff]
  %v7109 = vld [vmem:[%s7070 + $0x130] sm:$0xff]
  %v7110 = vld [vmem:[%s7070 + $0x138] sm:$0xff]
  %v7111 = vld [vmem:[%s7070 + $0x140] sm:$0xff]
  %v7112 = vld [vmem:[%s7070 + $0x148] sm:$0xff]
  %v7113 = vld [vmem:[%s7070 + $0x150] sm:$0xff]
  %v7114 = vld [vmem:[%s7070 + $0x158] sm:$0xff]
  %v7115 = vld [vmem:[%s7070 + $0x160] sm:$0xff]
  %v7116 = vld [vmem:[%s7070 + $0x168] sm:$0xff]
  %v7117 = vld [vmem:[%s7070 + $0x170] sm:$0xff]
  %v7118 = vld [vmem:[%s7070 + $0x178] sm:$0xff]
  %v7119 = vld [vmem:[%s7070 + $0x180] sm:$0xff]
  %v7120 = vld [vmem:[%s7070 + $0x188] sm:$0xff]
  %v7121 = vld [vmem:[%s7070 + $0x190] sm:$0xff]
  %v7122 = vld [vmem:[%s7070 + $0x198] sm:$0xff]
  %v7123 = vld [vmem:[%s7070 + $0x1a0] sm:$0xff]
  %v7124 = vld [vmem:[%s7070 + $0x1a8] sm:$0xff]
  %v7125 = vld [vmem:[%s7070 + $0x1b0] sm:$0xff]
  %v7126 = vld [vmem:[%s7070 + $0x1b8] sm:$0xff]
  %v7127 = vld [vmem:[%s7070 + $0x1c0] sm:$0xff]
  %v7128 = vld [vmem:[%s7070 + $0x1c8] sm:$0xff]
  %v7129 = vld [vmem:[%s7070 + $0x1d0] sm:$0xff]
  %v7130 = vld [vmem:[%s7070 + $0x1d8] sm:$0xff]
  %v7131 = vld [vmem:[%s7070 + $0x1e0] sm:$0xff]
  %v7132 = vld [vmem:[%s7070 + $0x1e8] sm:$0xff]
  %v7133 = vld [vmem:[%s7070 + $0x1f0] sm:$0xff]
  %v7134 = vld [vmem:[%s7070 + $0x1f8] sm:$0xff]
  %v7135 = vld [vmem:[%s7070 + $0x200] sm:$0xff]
  %v7136 = vld [vmem:[%s7070 + $0x208] sm:$0xff]
  %v7137 = vld [vmem:[%s7070 + $0x210] sm:$0xff]
  %v7138 = vld [vmem:[%s7070 + $0x218] sm:$0xff]
  %v7139 = vld [vmem:[%s7070 + $0x220] sm:$0xff]
  %v7140 = vld [vmem:[%s7070 + $0x228] sm:$0xff]
  %v7141 = vld [vmem:[%s7070 + $0x230] sm:$0xff]
  %v7142 = vld [vmem:[%s7070 + $0x238] sm:$0xff]
  %v7143 = vld [vmem:[%s7070 + $0x240] sm:$0xff]
  %v7144 = vld [vmem:[%s7070 + $0x248] sm:$0xff]
  %v7145 = vld [vmem:[%s7070 + $0x250] sm:$0xff]
  %v7146 = vld [vmem:[%s7070 + $0x258] sm:$0xff]
  %v7147 = vld [vmem:[%s7070 + $0x260] sm:$0xff]
  %v7148 = vld [vmem:[%s7070 + $0x268] sm:$0xff]
  %v7149 = vld [vmem:[%s7070 + $0x270] sm:$0xff]
  %v7150 = vld [vmem:[%s7070 + $0x278] sm:$0xff]
  %v7151 = vld [vmem:[%s7070 + $0x280] sm:$0xff]
  %v7152 = vld [vmem:[%s7070 + $0x288] sm:$0xff]
  %v7153 = vld [vmem:[%s7070 + $0x290] sm:$0xff]
  %v7154 = vld [vmem:[%s7070 + $0x298] sm:$0xff]
  %v7155 = vld [vmem:[%s7070 + $0x2a0] sm:$0xff]
  %v7156 = vld [vmem:[%s7070 + $0x2a8] sm:$0xff]
  %v7157 = vld [vmem:[%s7070 + $0x2b0] sm:$0xff]
  %v7158 = vld [vmem:[%s7070 + $0x2b8] sm:$0xff]
  %v7159 = vld [vmem:[%s7070 + $0x2c0] sm:$0xff]
  %v7160 = vld [vmem:[%s7070 + $0x2c8] sm:$0xff]
  %v7161 = vld [vmem:[%s7070 + $0x2d0] sm:$0xff]
  %v7162 = vld [vmem:[%s7070 + $0x2d8] sm:$0xff]
  %v7163 = vld [vmem:[%s7070 + $0x2e0] sm:$0xff]
  %v7164 = vld [vmem:[%s7070 + $0x2e8] sm:$0xff]
  %v7165 = vld [vmem:[%s7070 + $0x2f0] sm:$0xff]
  %v7166 = vld [vmem:[%s7070 + $0x2f8] sm:$0xff]
  %v7167 = vld [vmem:[%s7070 + $0x300] sm:$0xff]
  %v7168 = vld [vmem:[%s7070 + $0x308] sm:$0xff]
  %v7169 = vld [vmem:[%s7070 + $0x310] sm:$0xff]
  %v7170 = vld [vmem:[%s7070 + $0x318] sm:$0xff]
  %v7171 = vld [vmem:[%s7070 + $0x320] sm:$0xff]
  %v7172 = vld [vmem:[%s7070 + $0x328] sm:$0xff]
  %v7173 = vld [vmem:[%s7070 + $0x330] sm:$0xff]
  %v7174 = vld [vmem:[%s7070 + $0x338] sm:$0xff]
  %v7175 = vld [vmem:[%s7070 + $0x340] sm:$0xff]
  %v7176 = vld [vmem:[%s7070 + $0x348] sm:$0xff]
  %v7177 = vld [vmem:[%s7070 + $0x350] sm:$0xff]
  %v7178 = vld [vmem:[%s7070 + $0x358] sm:$0xff]
  %v7179 = vld [vmem:[%s7070 + $0x360] sm:$0xff]
  %v7180 = vld [vmem:[%s7070 + $0x368] sm:$0xff]
  %v7181 = vld [vmem:[%s7070 + $0x370] sm:$0xff]
  %v7182 = vld [vmem:[%s7070 + $0x378] sm:$0xff]
  %v7183 = vld [vmem:[%s7070 + $0x380] sm:$0xff]
  %v7184 = vld [vmem:[%s7070 + $0x388] sm:$0xff]
  %v7185 = vld [vmem:[%s7070 + $0x390] sm:$0xff]
  %v7186 = vld [vmem:[%s7070 + $0x398] sm:$0xff]
  %v7187 = vld [vmem:[%s7070 + $0x3a0] sm:$0xff]
  %v7188 = vld [vmem:[%s7070 + $0x3a8] sm:$0xff]
  %v7189 = vld [vmem:[%s7070 + $0x3b0] sm:$0xff]
  %v7190 = vld [vmem:[%s7070 + $0x3b8] sm:$0xff]
  %v7191 = vld [vmem:[%s7070 + $0x3c0] sm:$0xff]
  %v7192 = vld [vmem:[%s7070 + $0x3c8] sm:$0xff]
  %v7193 = vld [vmem:[%s7070 + $0x3d0] sm:$0xff]
  %v7194 = vld [vmem:[%s7070 + $0x3d8] sm:$0xff]
  %v7195 = vld [vmem:[%s7070 + $0x3e0] sm:$0xff]
  %v7196 = vld [vmem:[%s7070 + $0x3e8] sm:$0xff]
  %v7197 = vld [vmem:[%s7070 + $0x3f0] sm:$0xff]
  %v7198 = vld [vmem:[%s7070 + $0x3f8] sm:$0xff]
  %7199 = vmatprep.subr.mxu0 %v7132
  %7200 = vmatpush1.msra.mxu0 %v7131
  %7201 = vmatprep.subr.mxu0 %v7128
  %7202 = vmatpush1.msra.mxu0 %v7127
  %7203 = vmatprep.subr.mxu0 %v7124
  %7204 = vmatpush1.msra.mxu0 %v7123
  %7205 = vmatprep.subr.mxu0 %v7120
  %7206 = vmatpush1.msra.mxu0 %v7119
  %7207 = vmatprep.subr.mxu0 %v7116
  %7208 = vmatpush1.msra.mxu0 %v7115
  %7209 = vmatprep.subr.mxu0 %v7112
  %7210 = vmatpush1.msra.mxu0 %v7111
  %7211 = vmatprep.subr.mxu0 %v7108
  %7212 = vmatpush1.msra.mxu0 %v7107
  %7213 = vmatprep.subr.mxu0 %v7104
  %7214 = vmatpush1.msra.mxu0 %v7103
  %7215 = vmatprep.subr.mxu0 %v7100
  %7216 = vmatpush1.msra.mxu0 %v7099
  %7217 = vmatprep.subr.mxu0 %v7096
  %7218 = vmatpush1.msra.mxu0 %v7095
  %7219 = vmatprep.subr.mxu0 %v7092
  %7220 = vmatpush1.msra.mxu0 %v7091
  %7221 = vmatprep.subr.mxu0 %v7088
  %7222 = vmatpush1.msra.mxu0 %v7087
  %7223 = vmatprep.subr.mxu0 %v7084
  %7224 = vmatpush1.msra.mxu0 %v7083
  %7225 = vmatprep.subr.mxu0 %v7080
  %7226 = vmatpush1.msra.mxu0 %v7079
  %7227 = vmatprep.subr.mxu0 %v7076
  %7228 = vmatpush1.msra.mxu0 %v7075
  %7229 = vmatprep.subr.mxu0 %v7072
  %7230 = vmatpush1.msra.mxu0 %v7071
  %7231 = vmatprep.subr.mxu0 %v7196
  %7232 = vmatpush2.msra.mxu0 %v7195
  %7233 = vmatprep.subr.mxu0 %v7192
  %7234 = vmatpush2.msra.mxu0 %v7191
  %7235 = vmatprep.subr.mxu0 %v7188
  %7236 = vmatpush2.msra.mxu0 %v7187
  %7237 = vmatprep.subr.mxu0 %v7184
  %7238 = vmatpush2.msra.mxu0 %v7183
  %7239 = vmatprep.subr.mxu0 %v7180
  %7240 = vmatpush2.msra.mxu0 %v7179
  %7241 = vmatprep.subr.mxu0 %v7176
  %7242 = vmatpush2.msra.mxu0 %v7175
  %7243 = vmatprep.subr.mxu0 %v7172
  %7244 = vmatpush2.msra.mxu0 %v7171
  %7245 = vmatprep.subr.mxu0 %v7168
  %7246 = vmatpush2.msra.mxu0 %v7167
  %7247 = vmatprep.subr.mxu0 %v7164
  %7248 = vmatpush2.msra.mxu0 %v7163
  %7249 = vmatprep.subr.mxu0 %v7160
  %7250 = vmatpush2.msra.mxu0 %v7159
  %7251 = vmatprep.subr.mxu0 %v7156
  %7252 = vmatpush2.msra.mxu0 %v7155
  %7253 = vmatprep.subr.mxu0 %v7152
  %7254 = vmatpush2.msra.mxu0 %v7151
  %7255 = vmatprep.subr.mxu0 %v7148
  %7256 = vmatpush2.msra.mxu0 %v7147
  %7257 = vmatprep.subr.mxu0 %v7144
  %7258 = vmatpush2.msra.mxu0 %v7143
  %7259 = vmatprep.subr.mxu0 %v7140
  %7260 = vmatpush2.msra.mxu0 %v7139
  %7261 = vmatprep.subr.mxu0 %v7136
  %7262 = vmatpush2.msra.mxu0 %v7135
  %7263 = vmatprep.mubr.f32.mxu0 %v7067
  %7264 = vmatmul.mubr.f32.gmra.mxu0 %v7066
  %v7265 = vpop.f32.mrf.mxu0
  %v7266 = vadd.f32 0.0, %v7265
  %v7267 = vpop.f32.mrf.mxu0
  %v7268 = vadd.f32 0.0, %v7267
  %7269 = vmatprep.mubr.f32.mxu0 %v7069
  %7270 = vmatmul.mubr.f32.gmra.mxu0 %v7068
  %v7271 = vpop.f32.mrf.mxu0
  %v7272 = vadd.f32 0.0, %v7271
  %v7273 = vpop.f32.mrf.mxu0
  %v7274 = vadd.f32 0.0, %v7273
  %7275 = vdwg.mxu0
  %7276 = vmatprep.subr.mxu0 %v7134
  %7277 = vmatpush1.msra.mxu0 %v7133
  %7278 = vmatprep.subr.mxu0 %v7130
  %7279 = vmatpush1.msra.mxu0 %v7129
  %7280 = vmatprep.subr.mxu0 %v7126
  %7281 = vmatpush1.msra.mxu0 %v7125
  %7282 = vmatprep.subr.mxu0 %v7122
  %7283 = vmatpush1.msra.mxu0 %v7121
  %7284 = vmatprep.subr.mxu0 %v7118
  %7285 = vmatpush1.msra.mxu0 %v7117
  %7286 = vmatprep.subr.mxu0 %v7114
  %7287 = vmatpush1.msra.mxu0 %v7113
  %7288 = vmatprep.subr.mxu0 %v7110
  %7289 = vmatpush1.msra.mxu0 %v7109
  %7290 = vmatprep.subr.mxu0 %v7106
  %7291 = vmatpush1.msra.mxu0 %v7105
  %7292 = vmatprep.subr.mxu0 %v7102
  %7293 = vmatpush1.msra.mxu0 %v7101
  %7294 = vmatprep.subr.mxu0 %v7098
  %7295 = vmatpush1.msra.mxu0 %v7097
  %7296 = vmatprep.subr.mxu0 %v7094
  %7297 = vmatpush1.msra.mxu0 %v7093
  %7298 = vmatprep.subr.mxu0 %v7090
  %7299 = vmatpush1.msra.mxu0 %v7089
  %7300 = vmatprep.subr.mxu0 %v7086
  %7301 = vmatpush1.msra.mxu0 %v7085
  %7302 = vmatprep.subr.mxu0 %v7082
  %7303 = vmatpush1.msra.mxu0 %v7081
  %7304 = vmatprep.subr.mxu0 %v7078
  %7305 = vmatpush1.msra.mxu0 %v7077
  %7306 = vmatprep.subr.mxu0 %v7074
  %7307 = vmatpush1.msra.mxu0 %v7073
  %7308 = vmatprep.subr.mxu0 %v7198
  %7309 = vmatpush2.msra.mxu0 %v7197
  %7310 = vmatprep.subr.mxu0 %v7194
  %7311 = vmatpush2.msra.mxu0 %v7193
  %7312 = vmatprep.subr.mxu0 %v7190
  %7313 = vmatpush2.msra.mxu0 %v7189
  %7314 = vmatprep.subr.mxu0 %v7186
  %7315 = vmatpush2.msra.mxu0 %v7185
  %7316 = vmatprep.subr.mxu0 %v7182
  %7317 = vmatpush2.msra.mxu0 %v7181
  %7318 = vmatprep.subr.mxu0 %v7178
  %7319 = vmatpush2.msra.mxu0 %v7177
  %7320 = vmatprep.subr.mxu0 %v7174
  %7321 = vmatpush2.msra.mxu0 %v7173
  %7322 = vmatprep.subr.mxu0 %v7170
  %7323 = vmatpush2.msra.mxu0 %v7169
  %7324 = vmatprep.subr.mxu0 %v7166
  %7325 = vmatpush2.msra.mxu0 %v7165
  %7326 = vmatprep.subr.mxu0 %v7162
  %7327 = vmatpush2.msra.mxu0 %v7161
  %7328 = vmatprep.subr.mxu0 %v7158
  %7329 = vmatpush2.msra.mxu0 %v7157
  %7330 = vmatprep.subr.mxu0 %v7154
  %7331 = vmatpush2.msra.mxu0 %v7153
  %7332 = vmatprep.subr.mxu0 %v7150
  %7333 = vmatpush2.msra.mxu0 %v7149
  %7334 = vmatprep.subr.mxu0 %v7146
  %7335 = vmatpush2.msra.mxu0 %v7145
  %7336 = vmatprep.subr.mxu0 %v7142
  %7337 = vmatpush2.msra.mxu0 %v7141
  %7338 = vmatprep.subr.mxu0 %v7138
  %7339 = vmatpush2.msra.mxu0 %v7137
  %7340 = vmatprep.mubr.f32.mxu0 %v7067
  %7341 = vmatmul.mubr.f32.gmra.mxu0 %v7066
  %v7342 = vpop.f32.mrf.mxu0
  %v7343 = vadd.f32 0.0, %v7342
  %v7344 = vpop.f32.mrf.mxu0
  %v7345 = vadd.f32 0.0, %v7344
  %7346 = vmatprep.mubr.f32.mxu0 %v7069
  %7347 = vmatmul.mubr.f32.gmra.mxu0 %v7068
  %v7348 = vpop.f32.mrf.mxu0
  %v7349 = vadd.f32 0.0, %v7348
  %v7350 = vpop.f32.mrf.mxu0
  %v7351 = vadd.f32 0.0, %v7350
  %7352 = vdwg.mxu0
  %v7353 = vadd.f32 %v7046, %v7266
  %v7354 = vadd.f32 %v7047, %v7268
  %v7355 = vadd.f32 %v7048, %v7343
  %v7356 = vadd.f32 %v7049, %v7345
  %v7357 = vadd.f32 %v7050, %v7272
  %v7358 = vadd.f32 %v7051, %v7274
  %v7359 = vadd.f32 %v7052, %v7349
  %v7360 = vadd.f32 %v7053, %v7351
  %v7361 = vadd.f32 %v3897, %v3901
  %v7362 = vadd.f32 %v3898, %v3902
  %v7363 = vadd.f32 %v3899, %v3903
  %v7364 = vadd.f32 %v3900, %v3904
  %v7365 = vadd.f32 %v7361, %v3929
  %v7366 = vadd.f32 %v7362, %v3930
  %v7367 = vadd.f32 %v7363, %v3931
  %v7368 = vadd.f32 %v7364, %v3932
  %v7369 = vadd.f32 %v7365, %v3933
  %v7370 = vadd.f32 %v7366, %v3934
  %v7371 = vadd.f32 %v7367, %v3935
  %v7372 = vadd.f32 %v7368, %v3936
  %v7373 = vmul.f32 %v7369, 0.25
  %v7374 = vmul.f32 %v7370, 0.25
  %v7375 = vmul.f32 %v7371, 0.25
  %v7376 = vmul.f32 %v7372, 0.25
  %s7377 = scalar_lea.vmem %s7, 11264
  %v7378 = vld [vmem:[%s7377] sm:$0xff]
  %v7379 = vld [vmem:[%s7377 + $0x8] sm:$0xff]
  %v7380 = vld [vmem:[%s7377 + $0x10] sm:$0xff]
  %v7381 = vld [vmem:[%s7377 + $0x18] sm:$0xff]
  %v7382 = vld [vmem:[%s7377 + $0x20] sm:$0xff]
  %v7383 = vld [vmem:[%s7377 + $0x28] sm:$0xff]
  %v7384 = vld [vmem:[%s7377 + $0x30] sm:$0xff]
  %v7385 = vld [vmem:[%s7377 + $0x38] sm:$0xff]
  %v7386 = vld [vmem:[%s7377 + $0x40] sm:$0xff]
  %v7387 = vld [vmem:[%s7377 + $0x48] sm:$0xff]
  %v7388 = vld [vmem:[%s7377 + $0x50] sm:$0xff]
  %v7389 = vld [vmem:[%s7377 + $0x58] sm:$0xff]
  %v7390 = vld [vmem:[%s7377 + $0x60] sm:$0xff]
  %v7391 = vld [vmem:[%s7377 + $0x68] sm:$0xff]
  %v7392 = vld [vmem:[%s7377 + $0x70] sm:$0xff]
  %v7393 = vld [vmem:[%s7377 + $0x78] sm:$0xff]
  %v7394 = vld [vmem:[%s7377 + $0x80] sm:$0xff]
  %v7395 = vld [vmem:[%s7377 + $0x88] sm:$0xff]
  %v7396 = vld [vmem:[%s7377 + $0x90] sm:$0xff]
  %v7397 = vld [vmem:[%s7377 + $0x98] sm:$0xff]
  %v7398 = vld [vmem:[%s7377 + $0xa0] sm:$0xff]
  %v7399 = vld [vmem:[%s7377 + $0xa8] sm:$0xff]
  %v7400 = vld [vmem:[%s7377 + $0xb0] sm:$0xff]
  %v7401 = vld [vmem:[%s7377 + $0xb8] sm:$0xff]
  %v7402 = vld [vmem:[%s7377 + $0xc0] sm:$0xff]
  %v7403 = vld [vmem:[%s7377 + $0xc8] sm:$0xff]
  %v7404 = vld [vmem:[%s7377 + $0xd0] sm:$0xff]
  %v7405 = vld [vmem:[%s7377 + $0xd8] sm:$0xff]
  %v7406 = vld [vmem:[%s7377 + $0xe0] sm:$0xff]
  %v7407 = vld [vmem:[%s7377 + $0xe8] sm:$0xff]
  %v7408 = vld [vmem:[%s7377 + $0xf0] sm:$0xff]
  %v7409 = vld [vmem:[%s7377 + $0xf8] sm:$0xff]
  %v7410 = vld [vmem:[%s7377 + $0x100] sm:$0xff]
  %v7411 = vld [vmem:[%s7377 + $0x108] sm:$0xff]
  %v7412 = vld [vmem:[%s7377 + $0x110] sm:$0xff]
  %v7413 = vld [vmem:[%s7377 + $0x118] sm:$0xff]
  %v7414 = vld [vmem:[%s7377 + $0x120] sm:$0xff]
  %v7415 = vld [vmem:[%s7377 + $0x128] sm:$0xff]
  %v7416 = vld [vmem:[%s7377 + $0x130] sm:$0xff]
  %v7417 = vld [vmem:[%s7377 + $0x138] sm:$0xff]
  %v7418 = vld [vmem:[%s7377 + $0x140] sm:$0xff]
  %v7419 = vld [vmem:[%s7377 + $0x148] sm:$0xff]
  %v7420 = vld [vmem:[%s7377 + $0x150] sm:$0xff]
  %v7421 = vld [vmem:[%s7377 + $0x158] sm:$0xff]
  %v7422 = vld [vmem:[%s7377 + $0x160] sm:$0xff]
  %v7423 = vld [vmem:[%s7377 + $0x168] sm:$0xff]
  %v7424 = vld [vmem:[%s7377 + $0x170] sm:$0xff]
  %v7425 = vld [vmem:[%s7377 + $0x178] sm:$0xff]
  %v7426 = vld [vmem:[%s7377 + $0x180] sm:$0xff]
  %v7427 = vld [vmem:[%s7377 + $0x188] sm:$0xff]
  %v7428 = vld [vmem:[%s7377 + $0x190] sm:$0xff]
  %v7429 = vld [vmem:[%s7377 + $0x198] sm:$0xff]
  %v7430 = vld [vmem:[%s7377 + $0x1a0] sm:$0xff]
  %v7431 = vld [vmem:[%s7377 + $0x1a8] sm:$0xff]
  %v7432 = vld [vmem:[%s7377 + $0x1b0] sm:$0xff]
  %v7433 = vld [vmem:[%s7377 + $0x1b8] sm:$0xff]
  %v7434 = vld [vmem:[%s7377 + $0x1c0] sm:$0xff]
  %v7435 = vld [vmem:[%s7377 + $0x1c8] sm:$0xff]
  %v7436 = vld [vmem:[%s7377 + $0x1d0] sm:$0xff]
  %v7437 = vld [vmem:[%s7377 + $0x1d8] sm:$0xff]
  %v7438 = vld [vmem:[%s7377 + $0x1e0] sm:$0xff]
  %v7439 = vld [vmem:[%s7377 + $0x1e8] sm:$0xff]
  %v7440 = vld [vmem:[%s7377 + $0x1f0] sm:$0xff]
  %v7441 = vld [vmem:[%s7377 + $0x1f8] sm:$0xff]
  %v7442 = vld [vmem:[%s7377 + $0x200] sm:$0xff]
  %v7443 = vld [vmem:[%s7377 + $0x208] sm:$0xff]
  %v7444 = vld [vmem:[%s7377 + $0x210] sm:$0xff]
  %v7445 = vld [vmem:[%s7377 + $0x218] sm:$0xff]
  %v7446 = vld [vmem:[%s7377 + $0x220] sm:$0xff]
  %v7447 = vld [vmem:[%s7377 + $0x228] sm:$0xff]
  %v7448 = vld [vmem:[%s7377 + $0x230] sm:$0xff]
  %v7449 = vld [vmem:[%s7377 + $0x238] sm:$0xff]
  %v7450 = vld [vmem:[%s7377 + $0x240] sm:$0xff]
  %v7451 = vld [vmem:[%s7377 + $0x248] sm:$0xff]
  %v7452 = vld [vmem:[%s7377 + $0x250] sm:$0xff]
  %v7453 = vld [vmem:[%s7377 + $0x258] sm:$0xff]
  %v7454 = vld [vmem:[%s7377 + $0x260] sm:$0xff]
  %v7455 = vld [vmem:[%s7377 + $0x268] sm:$0xff]
  %v7456 = vld [vmem:[%s7377 + $0x270] sm:$0xff]
  %v7457 = vld [vmem:[%s7377 + $0x278] sm:$0xff]
  %v7458 = vld [vmem:[%s7377 + $0x280] sm:$0xff]
  %v7459 = vld [vmem:[%s7377 + $0x288] sm:$0xff]
  %v7460 = vld [vmem:[%s7377 + $0x290] sm:$0xff]
  %v7461 = vld [vmem:[%s7377 + $0x298] sm:$0xff]
  %v7462 = vld [vmem:[%s7377 + $0x2a0] sm:$0xff]
  %v7463 = vld [vmem:[%s7377 + $0x2a8] sm:$0xff]
  %v7464 = vld [vmem:[%s7377 + $0x2b0] sm:$0xff]
  %v7465 = vld [vmem:[%s7377 + $0x2b8] sm:$0xff]
  %v7466 = vld [vmem:[%s7377 + $0x2c0] sm:$0xff]
  %v7467 = vld [vmem:[%s7377 + $0x2c8] sm:$0xff]
  %v7468 = vld [vmem:[%s7377 + $0x2d0] sm:$0xff]
  %v7469 = vld [vmem:[%s7377 + $0x2d8] sm:$0xff]
  %v7470 = vld [vmem:[%s7377 + $0x2e0] sm:$0xff]
  %v7471 = vld [vmem:[%s7377 + $0x2e8] sm:$0xff]
  %v7472 = vld [vmem:[%s7377 + $0x2f0] sm:$0xff]
  %v7473 = vld [vmem:[%s7377 + $0x2f8] sm:$0xff]
  %v7474 = vld [vmem:[%s7377 + $0x300] sm:$0xff]
  %v7475 = vld [vmem:[%s7377 + $0x308] sm:$0xff]
  %v7476 = vld [vmem:[%s7377 + $0x310] sm:$0xff]
  %v7477 = vld [vmem:[%s7377 + $0x318] sm:$0xff]
  %v7478 = vld [vmem:[%s7377 + $0x320] sm:$0xff]
  %v7479 = vld [vmem:[%s7377 + $0x328] sm:$0xff]
  %v7480 = vld [vmem:[%s7377 + $0x330] sm:$0xff]
  %v7481 = vld [vmem:[%s7377 + $0x338] sm:$0xff]
  %v7482 = vld [vmem:[%s7377 + $0x340] sm:$0xff]
  %v7483 = vld [vmem:[%s7377 + $0x348] sm:$0xff]
  %v7484 = vld [vmem:[%s7377 + $0x350] sm:$0xff]
  %v7485 = vld [vmem:[%s7377 + $0x358] sm:$0xff]
  %v7486 = vld [vmem:[%s7377 + $0x360] sm:$0xff]
  %v7487 = vld [vmem:[%s7377 + $0x368] sm:$0xff]
  %v7488 = vld [vmem:[%s7377 + $0x370] sm:$0xff]
  %v7489 = vld [vmem:[%s7377 + $0x378] sm:$0xff]
  %v7490 = vld [vmem:[%s7377 + $0x380] sm:$0xff]
  %v7491 = vld [vmem:[%s7377 + $0x388] sm:$0xff]
  %v7492 = vld [vmem:[%s7377 + $0x390] sm:$0xff]
  %v7493 = vld [vmem:[%s7377 + $0x398] sm:$0xff]
  %v7494 = vld [vmem:[%s7377 + $0x3a0] sm:$0xff]
  %v7495 = vld [vmem:[%s7377 + $0x3a8] sm:$0xff]
  %v7496 = vld [vmem:[%s7377 + $0x3b0] sm:$0xff]
  %v7497 = vld [vmem:[%s7377 + $0x3b8] sm:$0xff]
  %v7498 = vld [vmem:[%s7377 + $0x3c0] sm:$0xff]
  %v7499 = vld [vmem:[%s7377 + $0x3c8] sm:$0xff]
  %v7500 = vld [vmem:[%s7377 + $0x3d0] sm:$0xff]
  %v7501 = vld [vmem:[%s7377 + $0x3d8] sm:$0xff]
  %v7502 = vld [vmem:[%s7377 + $0x3e0] sm:$0xff]
  %v7503 = vld [vmem:[%s7377 + $0x3e8] sm:$0xff]
  %v7504 = vld [vmem:[%s7377 + $0x3f0] sm:$0xff]
  %v7505 = vld [vmem:[%s7377 + $0x3f8] sm:$0xff]
  %7506 = vmatprep.subr.mxu0 %v7439
  %7507 = vmatpush1.msra.mxu0 %v7438
  %7508 = vmatprep.subr.mxu0 %v7435
  %7509 = vmatpush1.msra.mxu0 %v7434
  %7510 = vmatprep.subr.mxu0 %v7431
  %7511 = vmatpush1.msra.mxu0 %v7430
  %7512 = vmatprep.subr.mxu0 %v7427
  %7513 = vmatpush1.msra.mxu0 %v7426
  %7514 = vmatprep.subr.mxu0 %v7423
  %7515 = vmatpush1.msra.mxu0 %v7422
  %7516 = vmatprep.subr.mxu0 %v7419
  %7517 = vmatpush1.msra.mxu0 %v7418
  %7518 = vmatprep.subr.mxu0 %v7415
  %7519 = vmatpush1.msra.mxu0 %v7414
  %7520 = vmatprep.subr.mxu0 %v7411
  %7521 = vmatpush1.msra.mxu0 %v7410
  %7522 = vmatprep.subr.mxu0 %v7407
  %7523 = vmatpush1.msra.mxu0 %v7406
  %7524 = vmatprep.subr.mxu0 %v7403
  %7525 = vmatpush1.msra.mxu0 %v7402
  %7526 = vmatprep.subr.mxu0 %v7399
  %7527 = vmatpush1.msra.mxu0 %v7398
  %7528 = vmatprep.subr.mxu0 %v7395
  %7529 = vmatpush1.msra.mxu0 %v7394
  %7530 = vmatprep.subr.mxu0 %v7391
  %7531 = vmatpush1.msra.mxu0 %v7390
  %7532 = vmatprep.subr.mxu0 %v7387
  %7533 = vmatpush1.msra.mxu0 %v7386
  %7534 = vmatprep.subr.mxu0 %v7383
  %7535 = vmatpush1.msra.mxu0 %v7382
  %7536 = vmatprep.subr.mxu0 %v7379
  %7537 = vmatpush1.msra.mxu0 %v7378
  %7538 = vmatprep.subr.mxu0 %v7503
  %7539 = vmatpush2.msra.mxu0 %v7502
  %7540 = vmatprep.subr.mxu0 %v7499
  %7541 = vmatpush2.msra.mxu0 %v7498
  %7542 = vmatprep.subr.mxu0 %v7495
  %7543 = vmatpush2.msra.mxu0 %v7494
  %7544 = vmatprep.subr.mxu0 %v7491
  %7545 = vmatpush2.msra.mxu0 %v7490
  %7546 = vmatprep.subr.mxu0 %v7487
  %7547 = vmatpush2.msra.mxu0 %v7486
  %7548 = vmatprep.subr.mxu0 %v7483
  %7549 = vmatpush2.msra.mxu0 %v7482
  %7550 = vmatprep.subr.mxu0 %v7479
  %7551 = vmatpush2.msra.mxu0 %v7478
  %7552 = vmatprep.subr.mxu0 %v7475
  %7553 = vmatpush2.msra.mxu0 %v7474
  %7554 = vmatprep.subr.mxu0 %v7471
  %7555 = vmatpush2.msra.mxu0 %v7470
  %7556 = vmatprep.subr.mxu0 %v7467
  %7557 = vmatpush2.msra.mxu0 %v7466
  %7558 = vmatprep.subr.mxu0 %v7463
  %7559 = vmatpush2.msra.mxu0 %v7462
  %7560 = vmatprep.subr.mxu0 %v7459
  %7561 = vmatpush2.msra.mxu0 %v7458
  %7562 = vmatprep.subr.mxu0 %v7455
  %7563 = vmatpush2.msra.mxu0 %v7454
  %7564 = vmatprep.subr.mxu0 %v7451
  %7565 = vmatpush2.msra.mxu0 %v7450
  %7566 = vmatprep.subr.mxu0 %v7447
  %7567 = vmatpush2.msra.mxu0 %v7446
  %7568 = vmatprep.subr.mxu0 %v7443
  %7569 = vmatpush2.msra.mxu0 %v7442
  %7570 = vmatprep.mubr.f32.mxu0 %v7374
  %7571 = vmatmul.mubr.f32.gmra.mxu0 %v7373
  %v7572 = vpop.f32.mrf.mxu0
  %v7573 = vadd.f32 0.0, %v7572
  %v7574 = vpop.f32.mrf.mxu0
  %v7575 = vadd.f32 0.0, %v7574
  %7576 = vmatprep.mubr.f32.mxu0 %v7376
  %7577 = vmatmul.mubr.f32.gmra.mxu0 %v7375
  %v7578 = vpop.f32.mrf.mxu0
  %v7579 = vadd.f32 0.0, %v7578
  %v7580 = vpop.f32.mrf.mxu0
  %v7581 = vadd.f32 0.0, %v7580
  %7582 = vdwg.mxu0
  %7583 = vmatprep.subr.mxu0 %v7441
  %7584 = vmatpush1.msra.mxu0 %v7440
  %7585 = vmatprep.subr.mxu0 %v7437
  %7586 = vmatpush1.msra.mxu0 %v7436
  %7587 = vmatprep.subr.mxu0 %v7433
  %7588 = vmatpush1.msra.mxu0 %v7432
  %7589 = vmatprep.subr.mxu0 %v7429
  %7590 = vmatpush1.msra.mxu0 %v7428
  %7591 = vmatprep.subr.mxu0 %v7425
  %7592 = vmatpush1.msra.mxu0 %v7424
  %7593 = vmatprep.subr.mxu0 %v7421
  %7594 = vmatpush1.msra.mxu0 %v7420
  %7595 = vmatprep.subr.mxu0 %v7417
  %7596 = vmatpush1.msra.mxu0 %v7416
  %7597 = vmatprep.subr.mxu0 %v7413
  %7598 = vmatpush1.msra.mxu0 %v7412
  %7599 = vmatprep.subr.mxu0 %v7409
  %7600 = vmatpush1.msra.mxu0 %v7408
  %7601 = vmatprep.subr.mxu0 %v7405
  %7602 = vmatpush1.msra.mxu0 %v7404
  %7603 = vmatprep.subr.mxu0 %v7401
  %7604 = vmatpush1.msra.mxu0 %v7400
  %7605 = vmatprep.subr.mxu0 %v7397
  %7606 = vmatpush1.msra.mxu0 %v7396
  %7607 = vmatprep.subr.mxu0 %v7393
  %7608 = vmatpush1.msra.mxu0 %v7392
  %7609 = vmatprep.subr.mxu0 %v7389
  %7610 = vmatpush1.msra.mxu0 %v7388
  %7611 = vmatprep.subr.mxu0 %v7385
  %7612 = vmatpush1.msra.mxu0 %v7384
  %7613 = vmatprep.subr.mxu0 %v7381
  %7614 = vmatpush1.msra.mxu0 %v7380
  %7615 = vmatprep.subr.mxu0 %v7505
  %7616 = vmatpush2.msra.mxu0 %v7504
  %7617 = vmatprep.subr.mxu0 %v7501
  %7618 = vmatpush2.msra.mxu0 %v7500
  %7619 = vmatprep.subr.mxu0 %v7497
  %7620 = vmatpush2.msra.mxu0 %v7496
  %7621 = vmatprep.subr.mxu0 %v7493
  %7622 = vmatpush2.msra.mxu0 %v7492
  %7623 = vmatprep.subr.mxu0 %v7489
  %7624 = vmatpush2.msra.mxu0 %v7488
  %7625 = vmatprep.subr.mxu0 %v7485
  %7626 = vmatpush2.msra.mxu0 %v7484
  %7627 = vmatprep.subr.mxu0 %v7481
  %7628 = vmatpush2.msra.mxu0 %v7480
  %7629 = vmatprep.subr.mxu0 %v7477
  %7630 = vmatpush2.msra.mxu0 %v7476
  %7631 = vmatprep.subr.mxu0 %v7473
  %7632 = vmatpush2.msra.mxu0 %v7472
  %7633 = vmatprep.subr.mxu0 %v7469
  %7634 = vmatpush2.msra.mxu0 %v7468
  %7635 = vmatprep.subr.mxu0 %v7465
  %7636 = vmatpush2.msra.mxu0 %v7464
  %7637 = vmatprep.subr.mxu0 %v7461
  %7638 = vmatpush2.msra.mxu0 %v7460
  %7639 = vmatprep.subr.mxu0 %v7457
  %7640 = vmatpush2.msra.mxu0 %v7456
  %7641 = vmatprep.subr.mxu0 %v7453
  %7642 = vmatpush2.msra.mxu0 %v7452
  %7643 = vmatprep.subr.mxu0 %v7449
  %7644 = vmatpush2.msra.mxu0 %v7448
  %7645 = vmatprep.subr.mxu0 %v7445
  %7646 = vmatpush2.msra.mxu0 %v7444
  %7647 = vmatprep.mubr.f32.mxu0 %v7374
  %7648 = vmatmul.mubr.f32.gmra.mxu0 %v7373
  %v7649 = vpop.f32.mrf.mxu0
  %v7650 = vadd.f32 0.0, %v7649
  %v7651 = vpop.f32.mrf.mxu0
  %v7652 = vadd.f32 0.0, %v7651
  %7653 = vmatprep.mubr.f32.mxu0 %v7376
  %7654 = vmatmul.mubr.f32.gmra.mxu0 %v7375
  %v7655 = vpop.f32.mrf.mxu0
  %v7656 = vadd.f32 0.0, %v7655
  %v7657 = vpop.f32.mrf.mxu0
  %v7658 = vadd.f32 0.0, %v7657
  %7659 = vdwg.mxu0
  %v7660 = vadd.f32 %v7353, %v7573
  %v7661 = vadd.f32 %v7354, %v7575
  %v7662 = vadd.f32 %v7355, %v7650
  %v7663 = vadd.f32 %v7356, %v7652
  %v7664 = vadd.f32 %v7357, %v7579
  %v7665 = vadd.f32 %v7358, %v7581
  %v7666 = vadd.f32 %v7359, %v7656
  %v7667 = vadd.f32 %v7360, %v7658
  %v7668 = vadd.f32 %v3937, %v3941
  %v7669 = vadd.f32 %v3938, %v3942
  %v7670 = vadd.f32 %v3939, %v3943
  %v7671 = vadd.f32 %v3940, %v3944
  %v7672 = vadd.f32 %v7668, %v3969
  %v7673 = vadd.f32 %v7669, %v3970
  %v7674 = vadd.f32 %v7670, %v3971
  %v7675 = vadd.f32 %v7671, %v3972
  %v7676 = vadd.f32 %v7672, %v3973
  %v7677 = vadd.f32 %v7673, %v3974
  %v7678 = vadd.f32 %v7674, %v3975
  %v7679 = vadd.f32 %v7675, %v3976
  %v7680 = vmul.f32 %v7676, 0.25
  %v7681 = vmul.f32 %v7677, 0.25
  %v7682 = vmul.f32 %v7678, 0.25
  %v7683 = vmul.f32 %v7679, 0.25
  %s7684 = scalar_lea.vmem %s7, 12288
  %v7685 = vld [vmem:[%s7684] sm:$0xff]
  %v7686 = vld [vmem:[%s7684 + $0x8] sm:$0xff]
  %v7687 = vld [vmem:[%s7684 + $0x10] sm:$0xff]
  %v7688 = vld [vmem:[%s7684 + $0x18] sm:$0xff]
  %v7689 = vld [vmem:[%s7684 + $0x20] sm:$0xff]
  %v7690 = vld [vmem:[%s7684 + $0x28] sm:$0xff]
  %v7691 = vld [vmem:[%s7684 + $0x30] sm:$0xff]
  %v7692 = vld [vmem:[%s7684 + $0x38] sm:$0xff]
  %v7693 = vld [vmem:[%s7684 + $0x40] sm:$0xff]
  %v7694 = vld [vmem:[%s7684 + $0x48] sm:$0xff]
  %v7695 = vld [vmem:[%s7684 + $0x50] sm:$0xff]
  %v7696 = vld [vmem:[%s7684 + $0x58] sm:$0xff]
  %v7697 = vld [vmem:[%s7684 + $0x60] sm:$0xff]
  %v7698 = vld [vmem:[%s7684 + $0x68] sm:$0xff]
  %v7699 = vld [vmem:[%s7684 + $0x70] sm:$0xff]
  %v7700 = vld [vmem:[%s7684 + $0x78] sm:$0xff]
  %v7701 = vld [vmem:[%s7684 + $0x80] sm:$0xff]
  %v7702 = vld [vmem:[%s7684 + $0x88] sm:$0xff]
  %v7703 = vld [vmem:[%s7684 + $0x90] sm:$0xff]
  %v7704 = vld [vmem:[%s7684 + $0x98] sm:$0xff]
  %v7705 = vld [vmem:[%s7684 + $0xa0] sm:$0xff]
  %v7706 = vld [vmem:[%s7684 + $0xa8] sm:$0xff]
  %v7707 = vld [vmem:[%s7684 + $0xb0] sm:$0xff]
  %v7708 = vld [vmem:[%s7684 + $0xb8] sm:$0xff]
  %v7709 = vld [vmem:[%s7684 + $0xc0] sm:$0xff]
  %v7710 = vld [vmem:[%s7684 + $0xc8] sm:$0xff]
  %v7711 = vld [vmem:[%s7684 + $0xd0] sm:$0xff]
  %v7712 = vld [vmem:[%s7684 + $0xd8] sm:$0xff]
  %v7713 = vld [vmem:[%s7684 + $0xe0] sm:$0xff]
  %v7714 = vld [vmem:[%s7684 + $0xe8] sm:$0xff]
  %v7715 = vld [vmem:[%s7684 + $0xf0] sm:$0xff]
  %v7716 = vld [vmem:[%s7684 + $0xf8] sm:$0xff]
  %v7717 = vld [vmem:[%s7684 + $0x100] sm:$0xff]
  %v7718 = vld [vmem:[%s7684 + $0x108] sm:$0xff]
  %v7719 = vld [vmem:[%s7684 + $0x110] sm:$0xff]
  %v7720 = vld [vmem:[%s7684 + $0x118] sm:$0xff]
  %v7721 = vld [vmem:[%s7684 + $0x120] sm:$0xff]
  %v7722 = vld [vmem:[%s7684 + $0x128] sm:$0xff]
  %v7723 = vld [vmem:[%s7684 + $0x130] sm:$0xff]
  %v7724 = vld [vmem:[%s7684 + $0x138] sm:$0xff]
  %v7725 = vld [vmem:[%s7684 + $0x140] sm:$0xff]
  %v7726 = vld [vmem:[%s7684 + $0x148] sm:$0xff]
  %v7727 = vld [vmem:[%s7684 + $0x150] sm:$0xff]
  %v7728 = vld [vmem:[%s7684 + $0x158] sm:$0xff]
  %v7729 = vld [vmem:[%s7684 + $0x160] sm:$0xff]
  %v7730 = vld [vmem:[%s7684 + $0x168] sm:$0xff]
  %v7731 = vld [vmem:[%s7684 + $0x170] sm:$0xff]
  %v7732 = vld [vmem:[%s7684 + $0x178] sm:$0xff]
  %v7733 = vld [vmem:[%s7684 + $0x180] sm:$0xff]
  %v7734 = vld [vmem:[%s7684 + $0x188] sm:$0xff]
  %v7735 = vld [vmem:[%s7684 + $0x190] sm:$0xff]
  %v7736 = vld [vmem:[%s7684 + $0x198] sm:$0xff]
  %v7737 = vld [vmem:[%s7684 + $0x1a0] sm:$0xff]
  %v7738 = vld [vmem:[%s7684 + $0x1a8] sm:$0xff]
  %v7739 = vld [vmem:[%s7684 + $0x1b0] sm:$0xff]
  %v7740 = vld [vmem:[%s7684 + $0x1b8] sm:$0xff]
  %v7741 = vld [vmem:[%s7684 + $0x1c0] sm:$0xff]
  %v7742 = vld [vmem:[%s7684 + $0x1c8] sm:$0xff]
  %v7743 = vld [vmem:[%s7684 + $0x1d0] sm:$0xff]
  %v7744 = vld [vmem:[%s7684 + $0x1d8] sm:$0xff]
  %v7745 = vld [vmem:[%s7684 + $0x1e0] sm:$0xff]
  %v7746 = vld [vmem:[%s7684 + $0x1e8] sm:$0xff]
  %v7747 = vld [vmem:[%s7684 + $0x1f0] sm:$0xff]
  %v7748 = vld [vmem:[%s7684 + $0x1f8] sm:$0xff]
  %v7749 = vld [vmem:[%s7684 + $0x200] sm:$0xff]
  %v7750 = vld [vmem:[%s7684 + $0x208] sm:$0xff]
  %v7751 = vld [vmem:[%s7684 + $0x210] sm:$0xff]
  %v7752 = vld [vmem:[%s7684 + $0x218] sm:$0xff]
  %v7753 = vld [vmem:[%s7684 + $0x220] sm:$0xff]
  %v7754 = vld [vmem:[%s7684 + $0x228] sm:$0xff]
  %v7755 = vld [vmem:[%s7684 + $0x230] sm:$0xff]
  %v7756 = vld [vmem:[%s7684 + $0x238] sm:$0xff]
  %v7757 = vld [vmem:[%s7684 + $0x240] sm:$0xff]
  %v7758 = vld [vmem:[%s7684 + $0x248] sm:$0xff]
  %v7759 = vld [vmem:[%s7684 + $0x250] sm:$0xff]
  %v7760 = vld [vmem:[%s7684 + $0x258] sm:$0xff]
  %v7761 = vld [vmem:[%s7684 + $0x260] sm:$0xff]
  %v7762 = vld [vmem:[%s7684 + $0x268] sm:$0xff]
  %v7763 = vld [vmem:[%s7684 + $0x270] sm:$0xff]
  %v7764 = vld [vmem:[%s7684 + $0x278] sm:$0xff]
  %v7765 = vld [vmem:[%s7684 + $0x280] sm:$0xff]
  %v7766 = vld [vmem:[%s7684 + $0x288] sm:$0xff]
  %v7767 = vld [vmem:[%s7684 + $0x290] sm:$0xff]
  %v7768 = vld [vmem:[%s7684 + $0x298] sm:$0xff]
  %v7769 = vld [vmem:[%s7684 + $0x2a0] sm:$0xff]
  %v7770 = vld [vmem:[%s7684 + $0x2a8] sm:$0xff]
  %v7771 = vld [vmem:[%s7684 + $0x2b0] sm:$0xff]
  %v7772 = vld [vmem:[%s7684 + $0x2b8] sm:$0xff]
  %v7773 = vld [vmem:[%s7684 + $0x2c0] sm:$0xff]
  %v7774 = vld [vmem:[%s7684 + $0x2c8] sm:$0xff]
  %v7775 = vld [vmem:[%s7684 + $0x2d0] sm:$0xff]
  %v7776 = vld [vmem:[%s7684 + $0x2d8] sm:$0xff]
  %v7777 = vld [vmem:[%s7684 + $0x2e0] sm:$0xff]
  %v7778 = vld [vmem:[%s7684 + $0x2e8] sm:$0xff]
  %v7779 = vld [vmem:[%s7684 + $0x2f0] sm:$0xff]
  %v7780 = vld [vmem:[%s7684 + $0x2f8] sm:$0xff]
  %v7781 = vld [vmem:[%s7684 + $0x300] sm:$0xff]
  %v7782 = vld [vmem:[%s7684 + $0x308] sm:$0xff]
  %v7783 = vld [vmem:[%s7684 + $0x310] sm:$0xff]
  %v7784 = vld [vmem:[%s7684 + $0x318] sm:$0xff]
  %v7785 = vld [vmem:[%s7684 + $0x320] sm:$0xff]
  %v7786 = vld [vmem:[%s7684 + $0x328] sm:$0xff]
  %v7787 = vld [vmem:[%s7684 + $0x330] sm:$0xff]
  %v7788 = vld [vmem:[%s7684 + $0x338] sm:$0xff]
  %v7789 = vld [vmem:[%s7684 + $0x340] sm:$0xff]
  %v7790 = vld [vmem:[%s7684 + $0x348] sm:$0xff]
  %v7791 = vld [vmem:[%s7684 + $0x350] sm:$0xff]
  %v7792 = vld [vmem:[%s7684 + $0x358] sm:$0xff]
  %v7793 = vld [vmem:[%s7684 + $0x360] sm:$0xff]
  %v7794 = vld [vmem:[%s7684 + $0x368] sm:$0xff]
  %v7795 = vld [vmem:[%s7684 + $0x370] sm:$0xff]
  %v7796 = vld [vmem:[%s7684 + $0x378] sm:$0xff]
  %v7797 = vld [vmem:[%s7684 + $0x380] sm:$0xff]
  %v7798 = vld [vmem:[%s7684 + $0x388] sm:$0xff]
  %v7799 = vld [vmem:[%s7684 + $0x390] sm:$0xff]
  %v7800 = vld [vmem:[%s7684 + $0x398] sm:$0xff]
  %v7801 = vld [vmem:[%s7684 + $0x3a0] sm:$0xff]
  %v7802 = vld [vmem:[%s7684 + $0x3a8] sm:$0xff]
  %v7803 = vld [vmem:[%s7684 + $0x3b0] sm:$0xff]
  %v7804 = vld [vmem:[%s7684 + $0x3b8] sm:$0xff]
  %v7805 = vld [vmem:[%s7684 + $0x3c0] sm:$0xff]
  %v7806 = vld [vmem:[%s7684 + $0x3c8] sm:$0xff]
  %v7807 = vld [vmem:[%s7684 + $0x3d0] sm:$0xff]
  %v7808 = vld [vmem:[%s7684 + $0x3d8] sm:$0xff]
  %v7809 = vld [vmem:[%s7684 + $0x3e0] sm:$0xff]
  %v7810 = vld [vmem:[%s7684 + $0x3e8] sm:$0xff]
  %v7811 = vld [vmem:[%s7684 + $0x3f0] sm:$0xff]
  %v7812 = vld [vmem:[%s7684 + $0x3f8] sm:$0xff]
  %7813 = vmatprep.subr.mxu0 %v7746
  %7814 = vmatpush1.msra.mxu0 %v7745
  %7815 = vmatprep.subr.mxu0 %v7742
  %7816 = vmatpush1.msra.mxu0 %v7741
  %7817 = vmatprep.subr.mxu0 %v7738
  %7818 = vmatpush1.msra.mxu0 %v7737
  %7819 = vmatprep.subr.mxu0 %v7734
  %7820 = vmatpush1.msra.mxu0 %v7733
  %7821 = vmatprep.subr.mxu0 %v7730
  %7822 = vmatpush1.msra.mxu0 %v7729
  %7823 = vmatprep.subr.mxu0 %v7726
  %7824 = vmatpush1.msra.mxu0 %v7725
  %7825 = vmatprep.subr.mxu0 %v7722
  %7826 = vmatpush1.msra.mxu0 %v7721
  %7827 = vmatprep.subr.mxu0 %v7718
  %7828 = vmatpush1.msra.mxu0 %v7717
  %7829 = vmatprep.subr.mxu0 %v7714
  %7830 = vmatpush1.msra.mxu0 %v7713
  %7831 = vmatprep.subr.mxu0 %v7710
  %7832 = vmatpush1.msra.mxu0 %v7709
  %7833 = vmatprep.subr.mxu0 %v7706
  %7834 = vmatpush1.msra.mxu0 %v7705
  %7835 = vmatprep.subr.mxu0 %v7702
  %7836 = vmatpush1.msra.mxu0 %v7701
  %7837 = vmatprep.subr.mxu0 %v7698
  %7838 = vmatpush1.msra.mxu0 %v7697
  %7839 = vmatprep.subr.mxu0 %v7694
  %7840 = vmatpush1.msra.mxu0 %v7693
  %7841 = vmatprep.subr.mxu0 %v7690
  %7842 = vmatpush1.msra.mxu0 %v7689
  %7843 = vmatprep.subr.mxu0 %v7686
  %7844 = vmatpush1.msra.mxu0 %v7685
  %7845 = vmatprep.subr.mxu0 %v7810
  %7846 = vmatpush2.msra.mxu0 %v7809
  %7847 = vmatprep.subr.mxu0 %v7806
  %7848 = vmatpush2.msra.mxu0 %v7805
  %7849 = vmatprep.subr.mxu0 %v7802
  %7850 = vmatpush2.msra.mxu0 %v7801
  %7851 = vmatprep.subr.mxu0 %v7798
  %7852 = vmatpush2.msra.mxu0 %v7797
  %7853 = vmatprep.subr.mxu0 %v7794
  %7854 = vmatpush2.msra.mxu0 %v7793
  %7855 = vmatprep.subr.mxu0 %v7790
  %7856 = vmatpush2.msra.mxu0 %v7789
  %7857 = vmatprep.subr.mxu0 %v7786
  %7858 = vmatpush2.msra.mxu0 %v7785
  %7859 = vmatprep.subr.mxu0 %v7782
  %7860 = vmatpush2.msra.mxu0 %v7781
  %7861 = vmatprep.subr.mxu0 %v7778
  %7862 = vmatpush2.msra.mxu0 %v7777
  %7863 = vmatprep.subr.mxu0 %v7774
  %7864 = vmatpush2.msra.mxu0 %v7773
  %7865 = vmatprep.subr.mxu0 %v7770
  %7866 = vmatpush2.msra.mxu0 %v7769
  %7867 = vmatprep.subr.mxu0 %v7766
  %7868 = vmatpush2.msra.mxu0 %v7765
  %7869 = vmatprep.subr.mxu0 %v7762
  %7870 = vmatpush2.msra.mxu0 %v7761
  %7871 = vmatprep.subr.mxu0 %v7758
  %7872 = vmatpush2.msra.mxu0 %v7757
  %7873 = vmatprep.subr.mxu0 %v7754
  %7874 = vmatpush2.msra.mxu0 %v7753
  %7875 = vmatprep.subr.mxu0 %v7750
  %7876 = vmatpush2.msra.mxu0 %v7749
  %7877 = vmatprep.mubr.f32.mxu0 %v7681
  %7878 = vmatmul.mubr.f32.gmra.mxu0 %v7680
  %v7879 = vpop.f32.mrf.mxu0
  %v7880 = vadd.f32 0.0, %v7879
  %v7881 = vpop.f32.mrf.mxu0
  %v7882 = vadd.f32 0.0, %v7881
  %7883 = vmatprep.mubr.f32.mxu0 %v7683
  %7884 = vmatmul.mubr.f32.gmra.mxu0 %v7682
  %v7885 = vpop.f32.mrf.mxu0
  %v7886 = vadd.f32 0.0, %v7885
  %v7887 = vpop.f32.mrf.mxu0
  %v7888 = vadd.f32 0.0, %v7887
  %7889 = vdwg.mxu0
  %7890 = vmatprep.subr.mxu0 %v7748
  %7891 = vmatpush1.msra.mxu0 %v7747
  %7892 = vmatprep.subr.mxu0 %v7744
  %7893 = vmatpush1.msra.mxu0 %v7743
  %7894 = vmatprep.subr.mxu0 %v7740
  %7895 = vmatpush1.msra.mxu0 %v7739
  %7896 = vmatprep.subr.mxu0 %v7736
  %7897 = vmatpush1.msra.mxu0 %v7735
  %7898 = vmatprep.subr.mxu0 %v7732
  %7899 = vmatpush1.msra.mxu0 %v7731
  %7900 = vmatprep.subr.mxu0 %v7728
  %7901 = vmatpush1.msra.mxu0 %v7727
  %7902 = vmatprep.subr.mxu0 %v7724
  %7903 = vmatpush1.msra.mxu0 %v7723
  %7904 = vmatprep.subr.mxu0 %v7720
  %7905 = vmatpush1.msra.mxu0 %v7719
  %7906 = vmatprep.subr.mxu0 %v7716
  %7907 = vmatpush1.msra.mxu0 %v7715
  %7908 = vmatprep.subr.mxu0 %v7712
  %7909 = vmatpush1.msra.mxu0 %v7711
  %7910 = vmatprep.subr.mxu0 %v7708
  %7911 = vmatpush1.msra.mxu0 %v7707
  %7912 = vmatprep.subr.mxu0 %v7704
  %7913 = vmatpush1.msra.mxu0 %v7703
  %7914 = vmatprep.subr.mxu0 %v7700
  %7915 = vmatpush1.msra.mxu0 %v7699
  %7916 = vmatprep.subr.mxu0 %v7696
  %7917 = vmatpush1.msra.mxu0 %v7695
  %7918 = vmatprep.subr.mxu0 %v7692
  %7919 = vmatpush1.msra.mxu0 %v7691
  %7920 = vmatprep.subr.mxu0 %v7688
  %7921 = vmatpush1.msra.mxu0 %v7687
  %7922 = vmatprep.subr.mxu0 %v7812
  %7923 = vmatpush2.msra.mxu0 %v7811
  %7924 = vmatprep.subr.mxu0 %v7808
  %7925 = vmatpush2.msra.mxu0 %v7807
  %7926 = vmatprep.subr.mxu0 %v7804
  %7927 = vmatpush2.msra.mxu0 %v7803
  %7928 = vmatprep.subr.mxu0 %v7800
  %7929 = vmatpush2.msra.mxu0 %v7799
  %7930 = vmatprep.subr.mxu0 %v7796
  %7931 = vmatpush2.msra.mxu0 %v7795
  %7932 = vmatprep.subr.mxu0 %v7792
  %7933 = vmatpush2.msra.mxu0 %v7791
  %7934 = vmatprep.subr.mxu0 %v7788
  %7935 = vmatpush2.msra.mxu0 %v7787
  %7936 = vmatprep.subr.mxu0 %v7784
  %7937 = vmatpush2.msra.mxu0 %v7783
  %7938 = vmatprep.subr.mxu0 %v7780
  %7939 = vmatpush2.msra.mxu0 %v7779
  %7940 = vmatprep.subr.mxu0 %v7776
  %7941 = vmatpush2.msra.mxu0 %v7775
  %7942 = vmatprep.subr.mxu0 %v7772
  %7943 = vmatpush2.msra.mxu0 %v7771
  %7944 = vmatprep.subr.mxu0 %v7768
  %7945 = vmatpush2.msra.mxu0 %v7767
  %7946 = vmatprep.subr.mxu0 %v7764
  %7947 = vmatpush2.msra.mxu0 %v7763
  %7948 = vmatprep.subr.mxu0 %v7760
  %7949 = vmatpush2.msra.mxu0 %v7759
  %7950 = vmatprep.subr.mxu0 %v7756
  %7951 = vmatpush2.msra.mxu0 %v7755
  %7952 = vmatprep.subr.mxu0 %v7752
  %7953 = vmatpush2.msra.mxu0 %v7751
  %7954 = vmatprep.mubr.f32.mxu0 %v7681
  %7955 = vmatmul.mubr.f32.gmra.mxu0 %v7680
  %v7956 = vpop.f32.mrf.mxu0
  %v7957 = vadd.f32 0.0, %v7956
  %v7958 = vpop.f32.mrf.mxu0
  %v7959 = vadd.f32 0.0, %v7958
  %7960 = vmatprep.mubr.f32.mxu0 %v7683
  %7961 = vmatmul.mubr.f32.gmra.mxu0 %v7682
  %v7962 = vpop.f32.mrf.mxu0
  %v7963 = vadd.f32 0.0, %v7962
  %v7964 = vpop.f32.mrf.mxu0
  %v7965 = vadd.f32 0.0, %v7964
  %7966 = vdwg.mxu0
  %v7967 = vadd.f32 %v7660, %v7880
  %v7968 = vadd.f32 %v7661, %v7882
  %v7969 = vadd.f32 %v7662, %v7957
  %v7970 = vadd.f32 %v7663, %v7959
  %v7971 = vadd.f32 %v7664, %v7886
  %v7972 = vadd.f32 %v7665, %v7888
  %v7973 = vadd.f32 %v7666, %v7963
  %v7974 = vadd.f32 %v7667, %v7965
  %v7975 = vadd.f32 %v3945, %v3949
  %v7976 = vadd.f32 %v3946, %v3950
  %v7977 = vadd.f32 %v3947, %v3951
  %v7978 = vadd.f32 %v3948, %v3952
  %v7979 = vadd.f32 %v7975, %v3977
  %v7980 = vadd.f32 %v7976, %v3978
  %v7981 = vadd.f32 %v7977, %v3979
  %v7982 = vadd.f32 %v7978, %v3980
  %v7983 = vadd.f32 %v7979, %v3981
  %v7984 = vadd.f32 %v7980, %v3982
  %v7985 = vadd.f32 %v7981, %v3983
  %v7986 = vadd.f32 %v7982, %v3984
  %v7987 = vmul.f32 %v7983, 0.25
  %v7988 = vmul.f32 %v7984, 0.25
  %v7989 = vmul.f32 %v7985, 0.25
  %v7990 = vmul.f32 %v7986, 0.25
  %s7991 = scalar_lea.vmem %s7, 13312
  %v7992 = vld [vmem:[%s7991] sm:$0xff]
  %v7993 = vld [vmem:[%s7991 + $0x8] sm:$0xff]
  %v7994 = vld [vmem:[%s7991 + $0x10] sm:$0xff]
  %v7995 = vld [vmem:[%s7991 + $0x18] sm:$0xff]
  %v7996 = vld [vmem:[%s7991 + $0x20] sm:$0xff]
  %v7997 = vld [vmem:[%s7991 + $0x28] sm:$0xff]
  %v7998 = vld [vmem:[%s7991 + $0x30] sm:$0xff]
  %v7999 = vld [vmem:[%s7991 + $0x38] sm:$0xff]
  %v8000 = vld [vmem:[%s7991 + $0x40] sm:$0xff]
  %v8001 = vld [vmem:[%s7991 + $0x48] sm:$0xff]
  %v8002 = vld [vmem:[%s7991 + $0x50] sm:$0xff]
  %v8003 = vld [vmem:[%s7991 + $0x58] sm:$0xff]
  %v8004 = vld [vmem:[%s7991 + $0x60] sm:$0xff]
  %v8005 = vld [vmem:[%s7991 + $0x68] sm:$0xff]
  %v8006 = vld [vmem:[%s7991 + $0x70] sm:$0xff]
  %v8007 = vld [vmem:[%s7991 + $0x78] sm:$0xff]
  %v8008 = vld [vmem:[%s7991 + $0x80] sm:$0xff]
  %v8009 = vld [vmem:[%s7991 + $0x88] sm:$0xff]
  %v8010 = vld [vmem:[%s7991 + $0x90] sm:$0xff]
  %v8011 = vld [vmem:[%s7991 + $0x98] sm:$0xff]
  %v8012 = vld [vmem:[%s7991 + $0xa0] sm:$0xff]
  %v8013 = vld [vmem:[%s7991 + $0xa8] sm:$0xff]
  %v8014 = vld [vmem:[%s7991 + $0xb0] sm:$0xff]
  %v8015 = vld [vmem:[%s7991 + $0xb8] sm:$0xff]
  %v8016 = vld [vmem:[%s7991 + $0xc0] sm:$0xff]
  %v8017 = vld [vmem:[%s7991 + $0xc8] sm:$0xff]
  %v8018 = vld [vmem:[%s7991 + $0xd0] sm:$0xff]
  %v8019 = vld [vmem:[%s7991 + $0xd8] sm:$0xff]
  %v8020 = vld [vmem:[%s7991 + $0xe0] sm:$0xff]
  %v8021 = vld [vmem:[%s7991 + $0xe8] sm:$0xff]
  %v8022 = vld [vmem:[%s7991 + $0xf0] sm:$0xff]
  %v8023 = vld [vmem:[%s7991 + $0xf8] sm:$0xff]
  %v8024 = vld [vmem:[%s7991 + $0x100] sm:$0xff]
  %v8025 = vld [vmem:[%s7991 + $0x108] sm:$0xff]
  %v8026 = vld [vmem:[%s7991 + $0x110] sm:$0xff]
  %v8027 = vld [vmem:[%s7991 + $0x118] sm:$0xff]
  %v8028 = vld [vmem:[%s7991 + $0x120] sm:$0xff]
  %v8029 = vld [vmem:[%s7991 + $0x128] sm:$0xff]
  %v8030 = vld [vmem:[%s7991 + $0x130] sm:$0xff]
  %v8031 = vld [vmem:[%s7991 + $0x138] sm:$0xff]
  %v8032 = vld [vmem:[%s7991 + $0x140] sm:$0xff]
  %v8033 = vld [vmem:[%s7991 + $0x148] sm:$0xff]
  %v8034 = vld [vmem:[%s7991 + $0x150] sm:$0xff]
  %v8035 = vld [vmem:[%s7991 + $0x158] sm:$0xff]
  %v8036 = vld [vmem:[%s7991 + $0x160] sm:$0xff]
  %v8037 = vld [vmem:[%s7991 + $0x168] sm:$0xff]
  %v8038 = vld [vmem:[%s7991 + $0x170] sm:$0xff]
  %v8039 = vld [vmem:[%s7991 + $0x178] sm:$0xff]
  %v8040 = vld [vmem:[%s7991 + $0x180] sm:$0xff]
  %v8041 = vld [vmem:[%s7991 + $0x188] sm:$0xff]
  %v8042 = vld [vmem:[%s7991 + $0x190] sm:$0xff]
  %v8043 = vld [vmem:[%s7991 + $0x198] sm:$0xff]
  %v8044 = vld [vmem:[%s7991 + $0x1a0] sm:$0xff]
  %v8045 = vld [vmem:[%s7991 + $0x1a8] sm:$0xff]
  %v8046 = vld [vmem:[%s7991 + $0x1b0] sm:$0xff]
  %v8047 = vld [vmem:[%s7991 + $0x1b8] sm:$0xff]
  %v8048 = vld [vmem:[%s7991 + $0x1c0] sm:$0xff]
  %v8049 = vld [vmem:[%s7991 + $0x1c8] sm:$0xff]
  %v8050 = vld [vmem:[%s7991 + $0x1d0] sm:$0xff]
  %v8051 = vld [vmem:[%s7991 + $0x1d8] sm:$0xff]
  %v8052 = vld [vmem:[%s7991 + $0x1e0] sm:$0xff]
  %v8053 = vld [vmem:[%s7991 + $0x1e8] sm:$0xff]
  %v8054 = vld [vmem:[%s7991 + $0x1f0] sm:$0xff]
  %v8055 = vld [vmem:[%s7991 + $0x1f8] sm:$0xff]
  %v8056 = vld [vmem:[%s7991 + $0x200] sm:$0xff]
  %v8057 = vld [vmem:[%s7991 + $0x208] sm:$0xff]
  %v8058 = vld [vmem:[%s7991 + $0x210] sm:$0xff]
  %v8059 = vld [vmem:[%s7991 + $0x218] sm:$0xff]
  %v8060 = vld [vmem:[%s7991 + $0x220] sm:$0xff]
  %v8061 = vld [vmem:[%s7991 + $0x228] sm:$0xff]
  %v8062 = vld [vmem:[%s7991 + $0x230] sm:$0xff]
  %v8063 = vld [vmem:[%s7991 + $0x238] sm:$0xff]
  %v8064 = vld [vmem:[%s7991 + $0x240] sm:$0xff]
  %v8065 = vld [vmem:[%s7991 + $0x248] sm:$0xff]
  %v8066 = vld [vmem:[%s7991 + $0x250] sm:$0xff]
  %v8067 = vld [vmem:[%s7991 + $0x258] sm:$0xff]
  %v8068 = vld [vmem:[%s7991 + $0x260] sm:$0xff]
  %v8069 = vld [vmem:[%s7991 + $0x268] sm:$0xff]
  %v8070 = vld [vmem:[%s7991 + $0x270] sm:$0xff]
  %v8071 = vld [vmem:[%s7991 + $0x278] sm:$0xff]
  %v8072 = vld [vmem:[%s7991 + $0x280] sm:$0xff]
  %v8073 = vld [vmem:[%s7991 + $0x288] sm:$0xff]
  %v8074 = vld [vmem:[%s7991 + $0x290] sm:$0xff]
  %v8075 = vld [vmem:[%s7991 + $0x298] sm:$0xff]
  %v8076 = vld [vmem:[%s7991 + $0x2a0] sm:$0xff]
  %v8077 = vld [vmem:[%s7991 + $0x2a8] sm:$0xff]
  %v8078 = vld [vmem:[%s7991 + $0x2b0] sm:$0xff]
  %v8079 = vld [vmem:[%s7991 + $0x2b8] sm:$0xff]
  %v8080 = vld [vmem:[%s7991 + $0x2c0] sm:$0xff]
  %v8081 = vld [vmem:[%s7991 + $0x2c8] sm:$0xff]
  %v8082 = vld [vmem:[%s7991 + $0x2d0] sm:$0xff]
  %v8083 = vld [vmem:[%s7991 + $0x2d8] sm:$0xff]
  %v8084 = vld [vmem:[%s7991 + $0x2e0] sm:$0xff]
  %v8085 = vld [vmem:[%s7991 + $0x2e8] sm:$0xff]
  %v8086 = vld [vmem:[%s7991 + $0x2f0] sm:$0xff]
  %v8087 = vld [vmem:[%s7991 + $0x2f8] sm:$0xff]
  %v8088 = vld [vmem:[%s7991 + $0x300] sm:$0xff]
  %v8089 = vld [vmem:[%s7991 + $0x308] sm:$0xff]
  %v8090 = vld [vmem:[%s7991 + $0x310] sm:$0xff]
  %v8091 = vld [vmem:[%s7991 + $0x318] sm:$0xff]
  %v8092 = vld [vmem:[%s7991 + $0x320] sm:$0xff]
  %v8093 = vld [vmem:[%s7991 + $0x328] sm:$0xff]
  %v8094 = vld [vmem:[%s7991 + $0x330] sm:$0xff]
  %v8095 = vld [vmem:[%s7991 + $0x338] sm:$0xff]
  %v8096 = vld [vmem:[%s7991 + $0x340] sm:$0xff]
  %v8097 = vld [vmem:[%s7991 + $0x348] sm:$0xff]
  %v8098 = vld [vmem:[%s7991 + $0x350] sm:$0xff]
  %v8099 = vld [vmem:[%s7991 + $0x358] sm:$0xff]
  %v8100 = vld [vmem:[%s7991 + $0x360] sm:$0xff]
  %v8101 = vld [vmem:[%s7991 + $0x368] sm:$0xff]
  %v8102 = vld [vmem:[%s7991 + $0x370] sm:$0xff]
  %v8103 = vld [vmem:[%s7991 + $0x378] sm:$0xff]
  %v8104 = vld [vmem:[%s7991 + $0x380] sm:$0xff]
  %v8105 = vld [vmem:[%s7991 + $0x388] sm:$0xff]
  %v8106 = vld [vmem:[%s7991 + $0x390] sm:$0xff]
  %v8107 = vld [vmem:[%s7991 + $0x398] sm:$0xff]
  %v8108 = vld [vmem:[%s7991 + $0x3a0] sm:$0xff]
  %v8109 = vld [vmem:[%s7991 + $0x3a8] sm:$0xff]
  %v8110 = vld [vmem:[%s7991 + $0x3b0] sm:$0xff]
  %v8111 = vld [vmem:[%s7991 + $0x3b8] sm:$0xff]
  %v8112 = vld [vmem:[%s7991 + $0x3c0] sm:$0xff]
  %v8113 = vld [vmem:[%s7991 + $0x3c8] sm:$0xff]
  %v8114 = vld [vmem:[%s7991 + $0x3d0] sm:$0xff]
  %v8115 = vld [vmem:[%s7991 + $0x3d8] sm:$0xff]
  %v8116 = vld [vmem:[%s7991 + $0x3e0] sm:$0xff]
  %v8117 = vld [vmem:[%s7991 + $0x3e8] sm:$0xff]
  %v8118 = vld [vmem:[%s7991 + $0x3f0] sm:$0xff]
  %v8119 = vld [vmem:[%s7991 + $0x3f8] sm:$0xff]
  %8120 = vmatprep.subr.mxu0 %v8053
  %8121 = vmatpush1.msra.mxu0 %v8052
  %8122 = vmatprep.subr.mxu0 %v8049
  %8123 = vmatpush1.msra.mxu0 %v8048
  %8124 = vmatprep.subr.mxu0 %v8045
  %8125 = vmatpush1.msra.mxu0 %v8044
  %8126 = vmatprep.subr.mxu0 %v8041
  %8127 = vmatpush1.msra.mxu0 %v8040
  %8128 = vmatprep.subr.mxu0 %v8037
  %8129 = vmatpush1.msra.mxu0 %v8036
  %8130 = vmatprep.subr.mxu0 %v8033
  %8131 = vmatpush1.msra.mxu0 %v8032
  %8132 = vmatprep.subr.mxu0 %v8029
  %8133 = vmatpush1.msra.mxu0 %v8028
  %8134 = vmatprep.subr.mxu0 %v8025
  %8135 = vmatpush1.msra.mxu0 %v8024
  %8136 = vmatprep.subr.mxu0 %v8021
  %8137 = vmatpush1.msra.mxu0 %v8020
  %8138 = vmatprep.subr.mxu0 %v8017
  %8139 = vmatpush1.msra.mxu0 %v8016
  %8140 = vmatprep.subr.mxu0 %v8013
  %8141 = vmatpush1.msra.mxu0 %v8012
  %8142 = vmatprep.subr.mxu0 %v8009
  %8143 = vmatpush1.msra.mxu0 %v8008
  %8144 = vmatprep.subr.mxu0 %v8005
  %8145 = vmatpush1.msra.mxu0 %v8004
  %8146 = vmatprep.subr.mxu0 %v8001
  %8147 = vmatpush1.msra.mxu0 %v8000
  %8148 = vmatprep.subr.mxu0 %v7997
  %8149 = vmatpush1.msra.mxu0 %v7996
  %8150 = vmatprep.subr.mxu0 %v7993
  %8151 = vmatpush1.msra.mxu0 %v7992
  %8152 = vmatprep.subr.mxu0 %v8117
  %8153 = vmatpush2.msra.mxu0 %v8116
  %8154 = vmatprep.subr.mxu0 %v8113
  %8155 = vmatpush2.msra.mxu0 %v8112
  %8156 = vmatprep.subr.mxu0 %v8109
  %8157 = vmatpush2.msra.mxu0 %v8108
  %8158 = vmatprep.subr.mxu0 %v8105
  %8159 = vmatpush2.msra.mxu0 %v8104
  %8160 = vmatprep.subr.mxu0 %v8101
  %8161 = vmatpush2.msra.mxu0 %v8100
  %8162 = vmatprep.subr.mxu0 %v8097
  %8163 = vmatpush2.msra.mxu0 %v8096
  %8164 = vmatprep.subr.mxu0 %v8093
  %8165 = vmatpush2.msra.mxu0 %v8092
  %8166 = vmatprep.subr.mxu0 %v8089
  %8167 = vmatpush2.msra.mxu0 %v8088
  %8168 = vmatprep.subr.mxu0 %v8085
  %8169 = vmatpush2.msra.mxu0 %v8084
  %8170 = vmatprep.subr.mxu0 %v8081
  %8171 = vmatpush2.msra.mxu0 %v8080
  %8172 = vmatprep.subr.mxu0 %v8077
  %8173 = vmatpush2.msra.mxu0 %v8076
  %8174 = vmatprep.subr.mxu0 %v8073
  %8175 = vmatpush2.msra.mxu0 %v8072
  %8176 = vmatprep.subr.mxu0 %v8069
  %8177 = vmatpush2.msra.mxu0 %v8068
  %8178 = vmatprep.subr.mxu0 %v8065
  %8179 = vmatpush2.msra.mxu0 %v8064
  %8180 = vmatprep.subr.mxu0 %v8061
  %8181 = vmatpush2.msra.mxu0 %v8060
  %8182 = vmatprep.subr.mxu0 %v8057
  %8183 = vmatpush2.msra.mxu0 %v8056
  %8184 = vmatprep.mubr.f32.mxu0 %v7988
  %8185 = vmatmul.mubr.f32.gmra.mxu0 %v7987
  %v8186 = vpop.f32.mrf.mxu0
  %v8187 = vadd.f32 0.0, %v8186
  %v8188 = vpop.f32.mrf.mxu0
  %v8189 = vadd.f32 0.0, %v8188
  %8190 = vmatprep.mubr.f32.mxu0 %v7990
  %8191 = vmatmul.mubr.f32.gmra.mxu0 %v7989
  %v8192 = vpop.f32.mrf.mxu0
  %v8193 = vadd.f32 0.0, %v8192
  %v8194 = vpop.f32.mrf.mxu0
  %v8195 = vadd.f32 0.0, %v8194
  %8196 = vdwg.mxu0
  %8197 = vmatprep.subr.mxu0 %v8055
  %8198 = vmatpush1.msra.mxu0 %v8054
  %8199 = vmatprep.subr.mxu0 %v8051
  %8200 = vmatpush1.msra.mxu0 %v8050
  %8201 = vmatprep.subr.mxu0 %v8047
  %8202 = vmatpush1.msra.mxu0 %v8046
  %8203 = vmatprep.subr.mxu0 %v8043
  %8204 = vmatpush1.msra.mxu0 %v8042
  %8205 = vmatprep.subr.mxu0 %v8039
  %8206 = vmatpush1.msra.mxu0 %v8038
  %8207 = vmatprep.subr.mxu0 %v8035
  %8208 = vmatpush1.msra.mxu0 %v8034
  %8209 = vmatprep.subr.mxu0 %v8031
  %8210 = vmatpush1.msra.mxu0 %v8030
  %8211 = vmatprep.subr.mxu0 %v8027
  %8212 = vmatpush1.msra.mxu0 %v8026
  %8213 = vmatprep.subr.mxu0 %v8023
  %8214 = vmatpush1.msra.mxu0 %v8022
  %8215 = vmatprep.subr.mxu0 %v8019
  %8216 = vmatpush1.msra.mxu0 %v8018
  %8217 = vmatprep.subr.mxu0 %v8015
  %8218 = vmatpush1.msra.mxu0 %v8014
  %8219 = vmatprep.subr.mxu0 %v8011
  %8220 = vmatpush1.msra.mxu0 %v8010
  %8221 = vmatprep.subr.mxu0 %v8007
  %8222 = vmatpush1.msra.mxu0 %v8006
  %8223 = vmatprep.subr.mxu0 %v8003
  %8224 = vmatpush1.msra.mxu0 %v8002
  %8225 = vmatprep.subr.mxu0 %v7999
  %8226 = vmatpush1.msra.mxu0 %v7998
  %8227 = vmatprep.subr.mxu0 %v7995
  %8228 = vmatpush1.msra.mxu0 %v7994
  %8229 = vmatprep.subr.mxu0 %v8119
  %8230 = vmatpush2.msra.mxu0 %v8118
  %8231 = vmatprep.subr.mxu0 %v8115
  %8232 = vmatpush2.msra.mxu0 %v8114
  %8233 = vmatprep.subr.mxu0 %v8111
  %8234 = vmatpush2.msra.mxu0 %v8110
  %8235 = vmatprep.subr.mxu0 %v8107
  %8236 = vmatpush2.msra.mxu0 %v8106
  %8237 = vmatprep.subr.mxu0 %v8103
  %8238 = vmatpush2.msra.mxu0 %v8102
  %8239 = vmatprep.subr.mxu0 %v8099
  %8240 = vmatpush2.msra.mxu0 %v8098
  %8241 = vmatprep.subr.mxu0 %v8095
  %8242 = vmatpush2.msra.mxu0 %v8094
  %8243 = vmatprep.subr.mxu0 %v8091
  %8244 = vmatpush2.msra.mxu0 %v8090
  %8245 = vmatprep.subr.mxu0 %v8087
  %8246 = vmatpush2.msra.mxu0 %v8086
  %8247 = vmatprep.subr.mxu0 %v8083
  %8248 = vmatpush2.msra.mxu0 %v8082
  %8249 = vmatprep.subr.mxu0 %v8079
  %8250 = vmatpush2.msra.mxu0 %v8078
  %8251 = vmatprep.subr.mxu0 %v8075
  %8252 = vmatpush2.msra.mxu0 %v8074
  %8253 = vmatprep.subr.mxu0 %v8071
  %8254 = vmatpush2.msra.mxu0 %v8070
  %8255 = vmatprep.subr.mxu0 %v8067
  %8256 = vmatpush2.msra.mxu0 %v8066
  %8257 = vmatprep.subr.mxu0 %v8063
  %8258 = vmatpush2.msra.mxu0 %v8062
  %8259 = vmatprep.subr.mxu0 %v8059
  %8260 = vmatpush2.msra.mxu0 %v8058
  %8261 = vmatprep.mubr.f32.mxu0 %v7988
  %8262 = vmatmul.mubr.f32.gmra.mxu0 %v7987
  %v8263 = vpop.f32.mrf.mxu0
  %v8264 = vadd.f32 0.0, %v8263
  %v8265 = vpop.f32.mrf.mxu0
  %v8266 = vadd.f32 0.0, %v8265
  %8267 = vmatprep.mubr.f32.mxu0 %v7990
  %8268 = vmatmul.mubr.f32.gmra.mxu0 %v7989
  %v8269 = vpop.f32.mrf.mxu0
  %v8270 = vadd.f32 0.0, %v8269
  %v8271 = vpop.f32.mrf.mxu0
  %v8272 = vadd.f32 0.0, %v8271
  %8273 = vdwg.mxu0
  %v8274 = vadd.f32 %v7967, %v8187
  %v8275 = vadd.f32 %v7968, %v8189
  %v8276 = vadd.f32 %v7969, %v8264
  %v8277 = vadd.f32 %v7970, %v8266
  %v8278 = vadd.f32 %v7971, %v8193
  %v8279 = vadd.f32 %v7972, %v8195
  %v8280 = vadd.f32 %v7973, %v8270
  %v8281 = vadd.f32 %v7974, %v8272
  %v8282 = vadd.f32 %v3953, %v3957
  %v8283 = vadd.f32 %v3954, %v3958
  %v8284 = vadd.f32 %v3955, %v3959
  %v8285 = vadd.f32 %v3956, %v3960
  %v8286 = vadd.f32 %v8282, %v3985
  %v8287 = vadd.f32 %v8283, %v3986
  %v8288 = vadd.f32 %v8284, %v3987
  %v8289 = vadd.f32 %v8285, %v3988
  %v8290 = vadd.f32 %v8286, %v3989
  %v8291 = vadd.f32 %v8287, %v3990
  %v8292 = vadd.f32 %v8288, %v3991
  %v8293 = vadd.f32 %v8289, %v3992
  %v8294 = vmul.f32 %v8290, 0.25
  %v8295 = vmul.f32 %v8291, 0.25
  %v8296 = vmul.f32 %v8292, 0.25
  %v8297 = vmul.f32 %v8293, 0.25
  %s8298 = scalar_lea.vmem %s7, 14336
  %v8299 = vld [vmem:[%s8298] sm:$0xff]
  %v8300 = vld [vmem:[%s8298 + $0x8] sm:$0xff]
  %v8301 = vld [vmem:[%s8298 + $0x10] sm:$0xff]
  %v8302 = vld [vmem:[%s8298 + $0x18] sm:$0xff]
  %v8303 = vld [vmem:[%s8298 + $0x20] sm:$0xff]
  %v8304 = vld [vmem:[%s8298 + $0x28] sm:$0xff]
  %v8305 = vld [vmem:[%s8298 + $0x30] sm:$0xff]
  %v8306 = vld [vmem:[%s8298 + $0x38] sm:$0xff]
  %v8307 = vld [vmem:[%s8298 + $0x40] sm:$0xff]
  %v8308 = vld [vmem:[%s8298 + $0x48] sm:$0xff]
  %v8309 = vld [vmem:[%s8298 + $0x50] sm:$0xff]
  %v8310 = vld [vmem:[%s8298 + $0x58] sm:$0xff]
  %v8311 = vld [vmem:[%s8298 + $0x60] sm:$0xff]
  %v8312 = vld [vmem:[%s8298 + $0x68] sm:$0xff]
  %v8313 = vld [vmem:[%s8298 + $0x70] sm:$0xff]
  %v8314 = vld [vmem:[%s8298 + $0x78] sm:$0xff]
  %v8315 = vld [vmem:[%s8298 + $0x80] sm:$0xff]
  %v8316 = vld [vmem:[%s8298 + $0x88] sm:$0xff]
  %v8317 = vld [vmem:[%s8298 + $0x90] sm:$0xff]
  %v8318 = vld [vmem:[%s8298 + $0x98] sm:$0xff]
  %v8319 = vld [vmem:[%s8298 + $0xa0] sm:$0xff]
  %v8320 = vld [vmem:[%s8298 + $0xa8] sm:$0xff]
  %v8321 = vld [vmem:[%s8298 + $0xb0] sm:$0xff]
  %v8322 = vld [vmem:[%s8298 + $0xb8] sm:$0xff]
  %v8323 = vld [vmem:[%s8298 + $0xc0] sm:$0xff]
  %v8324 = vld [vmem:[%s8298 + $0xc8] sm:$0xff]
  %v8325 = vld [vmem:[%s8298 + $0xd0] sm:$0xff]
  %v8326 = vld [vmem:[%s8298 + $0xd8] sm:$0xff]
  %v8327 = vld [vmem:[%s8298 + $0xe0] sm:$0xff]
  %v8328 = vld [vmem:[%s8298 + $0xe8] sm:$0xff]
  %v8329 = vld [vmem:[%s8298 + $0xf0] sm:$0xff]
  %v8330 = vld [vmem:[%s8298 + $0xf8] sm:$0xff]
  %v8331 = vld [vmem:[%s8298 + $0x100] sm:$0xff]
  %v8332 = vld [vmem:[%s8298 + $0x108] sm:$0xff]
  %v8333 = vld [vmem:[%s8298 + $0x110] sm:$0xff]
  %v8334 = vld [vmem:[%s8298 + $0x118] sm:$0xff]
  %v8335 = vld [vmem:[%s8298 + $0x120] sm:$0xff]
  %v8336 = vld [vmem:[%s8298 + $0x128] sm:$0xff]
  %v8337 = vld [vmem:[%s8298 + $0x130] sm:$0xff]
  %v8338 = vld [vmem:[%s8298 + $0x138] sm:$0xff]
  %v8339 = vld [vmem:[%s8298 + $0x140] sm:$0xff]
  %v8340 = vld [vmem:[%s8298 + $0x148] sm:$0xff]
  %v8341 = vld [vmem:[%s8298 + $0x150] sm:$0xff]
  %v8342 = vld [vmem:[%s8298 + $0x158] sm:$0xff]
  %v8343 = vld [vmem:[%s8298 + $0x160] sm:$0xff]
  %v8344 = vld [vmem:[%s8298 + $0x168] sm:$0xff]
  %v8345 = vld [vmem:[%s8298 + $0x170] sm:$0xff]
  %v8346 = vld [vmem:[%s8298 + $0x178] sm:$0xff]
  %v8347 = vld [vmem:[%s8298 + $0x180] sm:$0xff]
  %v8348 = vld [vmem:[%s8298 + $0x188] sm:$0xff]
  %v8349 = vld [vmem:[%s8298 + $0x190] sm:$0xff]
  %v8350 = vld [vmem:[%s8298 + $0x198] sm:$0xff]
  %v8351 = vld [vmem:[%s8298 + $0x1a0] sm:$0xff]
  %v8352 = vld [vmem:[%s8298 + $0x1a8] sm:$0xff]
  %v8353 = vld [vmem:[%s8298 + $0x1b0] sm:$0xff]
  %v8354 = vld [vmem:[%s8298 + $0x1b8] sm:$0xff]
  %v8355 = vld [vmem:[%s8298 + $0x1c0] sm:$0xff]
  %v8356 = vld [vmem:[%s8298 + $0x1c8] sm:$0xff]
  %v8357 = vld [vmem:[%s8298 + $0x1d0] sm:$0xff]
  %v8358 = vld [vmem:[%s8298 + $0x1d8] sm:$0xff]
  %v8359 = vld [vmem:[%s8298 + $0x1e0] sm:$0xff]
  %v8360 = vld [vmem:[%s8298 + $0x1e8] sm:$0xff]
  %v8361 = vld [vmem:[%s8298 + $0x1f0] sm:$0xff]
  %v8362 = vld [vmem:[%s8298 + $0x1f8] sm:$0xff]
  %v8363 = vld [vmem:[%s8298 + $0x200] sm:$0xff]
  %v8364 = vld [vmem:[%s8298 + $0x208] sm:$0xff]
  %v8365 = vld [vmem:[%s8298 + $0x210] sm:$0xff]
  %v8366 = vld [vmem:[%s8298 + $0x218] sm:$0xff]
  %v8367 = vld [vmem:[%s8298 + $0x220] sm:$0xff]
  %v8368 = vld [vmem:[%s8298 + $0x228] sm:$0xff]
  %v8369 = vld [vmem:[%s8298 + $0x230] sm:$0xff]
  %v8370 = vld [vmem:[%s8298 + $0x238] sm:$0xff]
  %v8371 = vld [vmem:[%s8298 + $0x240] sm:$0xff]
  %v8372 = vld [vmem:[%s8298 + $0x248] sm:$0xff]
  %v8373 = vld [vmem:[%s8298 + $0x250] sm:$0xff]
  %v8374 = vld [vmem:[%s8298 + $0x258] sm:$0xff]
  %v8375 = vld [vmem:[%s8298 + $0x260] sm:$0xff]
  %v8376 = vld [vmem:[%s8298 + $0x268] sm:$0xff]
  %v8377 = vld [vmem:[%s8298 + $0x270] sm:$0xff]
  %v8378 = vld [vmem:[%s8298 + $0x278] sm:$0xff]
  %v8379 = vld [vmem:[%s8298 + $0x280] sm:$0xff]
  %v8380 = vld [vmem:[%s8298 + $0x288] sm:$0xff]
  %v8381 = vld [vmem:[%s8298 + $0x290] sm:$0xff]
  %v8382 = vld [vmem:[%s8298 + $0x298] sm:$0xff]
  %v8383 = vld [vmem:[%s8298 + $0x2a0] sm:$0xff]
  %v8384 = vld [vmem:[%s8298 + $0x2a8] sm:$0xff]
  %v8385 = vld [vmem:[%s8298 + $0x2b0] sm:$0xff]
  %v8386 = vld [vmem:[%s8298 + $0x2b8] sm:$0xff]
  %v8387 = vld [vmem:[%s8298 + $0x2c0] sm:$0xff]
  %v8388 = vld [vmem:[%s8298 + $0x2c8] sm:$0xff]
  %v8389 = vld [vmem:[%s8298 + $0x2d0] sm:$0xff]
  %v8390 = vld [vmem:[%s8298 + $0x2d8] sm:$0xff]
  %v8391 = vld [vmem:[%s8298 + $0x2e0] sm:$0xff]
  %v8392 = vld [vmem:[%s8298 + $0x2e8] sm:$0xff]
  %v8393 = vld [vmem:[%s8298 + $0x2f0] sm:$0xff]
  %v8394 = vld [vmem:[%s8298 + $0x2f8] sm:$0xff]
  %v8395 = vld [vmem:[%s8298 + $0x300] sm:$0xff]
  %v8396 = vld [vmem:[%s8298 + $0x308] sm:$0xff]
  %v8397 = vld [vmem:[%s8298 + $0x310] sm:$0xff]
  %v8398 = vld [vmem:[%s8298 + $0x318] sm:$0xff]
  %v8399 = vld [vmem:[%s8298 + $0x320] sm:$0xff]
  %v8400 = vld [vmem:[%s8298 + $0x328] sm:$0xff]
  %v8401 = vld [vmem:[%s8298 + $0x330] sm:$0xff]
  %v8402 = vld [vmem:[%s8298 + $0x338] sm:$0xff]
  %v8403 = vld [vmem:[%s8298 + $0x340] sm:$0xff]
  %v8404 = vld [vmem:[%s8298 + $0x348] sm:$0xff]
  %v8405 = vld [vmem:[%s8298 + $0x350] sm:$0xff]
  %v8406 = vld [vmem:[%s8298 + $0x358] sm:$0xff]
  %v8407 = vld [vmem:[%s8298 + $0x360] sm:$0xff]
  %v8408 = vld [vmem:[%s8298 + $0x368] sm:$0xff]
  %v8409 = vld [vmem:[%s8298 + $0x370] sm:$0xff]
  %v8410 = vld [vmem:[%s8298 + $0x378] sm:$0xff]
  %v8411 = vld [vmem:[%s8298 + $0x380] sm:$0xff]
  %v8412 = vld [vmem:[%s8298 + $0x388] sm:$0xff]
  %v8413 = vld [vmem:[%s8298 + $0x390] sm:$0xff]
  %v8414 = vld [vmem:[%s8298 + $0x398] sm:$0xff]
  %v8415 = vld [vmem:[%s8298 + $0x3a0] sm:$0xff]
  %v8416 = vld [vmem:[%s8298 + $0x3a8] sm:$0xff]
  %v8417 = vld [vmem:[%s8298 + $0x3b0] sm:$0xff]
  %v8418 = vld [vmem:[%s8298 + $0x3b8] sm:$0xff]
  %v8419 = vld [vmem:[%s8298 + $0x3c0] sm:$0xff]
  %v8420 = vld [vmem:[%s8298 + $0x3c8] sm:$0xff]
  %v8421 = vld [vmem:[%s8298 + $0x3d0] sm:$0xff]
  %v8422 = vld [vmem:[%s8298 + $0x3d8] sm:$0xff]
  %v8423 = vld [vmem:[%s8298 + $0x3e0] sm:$0xff]
  %v8424 = vld [vmem:[%s8298 + $0x3e8] sm:$0xff]
  %v8425 = vld [vmem:[%s8298 + $0x3f0] sm:$0xff]
  %v8426 = vld [vmem:[%s8298 + $0x3f8] sm:$0xff]
  %8427 = vmatprep.subr.mxu0 %v8360
  %8428 = vmatpush1.msra.mxu0 %v8359
  %8429 = vmatprep.subr.mxu0 %v8356
  %8430 = vmatpush1.msra.mxu0 %v8355
  %8431 = vmatprep.subr.mxu0 %v8352
  %8432 = vmatpush1.msra.mxu0 %v8351
  %8433 = vmatprep.subr.mxu0 %v8348
  %8434 = vmatpush1.msra.mxu0 %v8347
  %8435 = vmatprep.subr.mxu0 %v8344
  %8436 = vmatpush1.msra.mxu0 %v8343
  %8437 = vmatprep.subr.mxu0 %v8340
  %8438 = vmatpush1.msra.mxu0 %v8339
  %8439 = vmatprep.subr.mxu0 %v8336
  %8440 = vmatpush1.msra.mxu0 %v8335
  %8441 = vmatprep.subr.mxu0 %v8332
  %8442 = vmatpush1.msra.mxu0 %v8331
  %8443 = vmatprep.subr.mxu0 %v8328
  %8444 = vmatpush1.msra.mxu0 %v8327
  %8445 = vmatprep.subr.mxu0 %v8324
  %8446 = vmatpush1.msra.mxu0 %v8323
  %8447 = vmatprep.subr.mxu0 %v8320
  %8448 = vmatpush1.msra.mxu0 %v8319
  %8449 = vmatprep.subr.mxu0 %v8316
  %8450 = vmatpush1.msra.mxu0 %v8315
  %8451 = vmatprep.subr.mxu0 %v8312
  %8452 = vmatpush1.msra.mxu0 %v8311
  %8453 = vmatprep.subr.mxu0 %v8308
  %8454 = vmatpush1.msra.mxu0 %v8307
  %8455 = vmatprep.subr.mxu0 %v8304
  %8456 = vmatpush1.msra.mxu0 %v8303
  %8457 = vmatprep.subr.mxu0 %v8300
  %8458 = vmatpush1.msra.mxu0 %v8299
  %8459 = vmatprep.subr.mxu0 %v8424
  %8460 = vmatpush2.msra.mxu0 %v8423
  %8461 = vmatprep.subr.mxu0 %v8420
  %8462 = vmatpush2.msra.mxu0 %v8419
  %8463 = vmatprep.subr.mxu0 %v8416
  %8464 = vmatpush2.msra.mxu0 %v8415
  %8465 = vmatprep.subr.mxu0 %v8412
  %8466 = vmatpush2.msra.mxu0 %v8411
  %8467 = vmatprep.subr.mxu0 %v8408
  %8468 = vmatpush2.msra.mxu0 %v8407
  %8469 = vmatprep.subr.mxu0 %v8404
  %8470 = vmatpush2.msra.mxu0 %v8403
  %8471 = vmatprep.subr.mxu0 %v8400
  %8472 = vmatpush2.msra.mxu0 %v8399
  %8473 = vmatprep.subr.mxu0 %v8396
  %8474 = vmatpush2.msra.mxu0 %v8395
  %8475 = vmatprep.subr.mxu0 %v8392
  %8476 = vmatpush2.msra.mxu0 %v8391
  %8477 = vmatprep.subr.mxu0 %v8388
  %8478 = vmatpush2.msra.mxu0 %v8387
  %8479 = vmatprep.subr.mxu0 %v8384
  %8480 = vmatpush2.msra.mxu0 %v8383
  %8481 = vmatprep.subr.mxu0 %v8380
  %8482 = vmatpush2.msra.mxu0 %v8379
  %8483 = vmatprep.subr.mxu0 %v8376
  %8484 = vmatpush2.msra.mxu0 %v8375
  %8485 = vmatprep.subr.mxu0 %v8372
  %8486 = vmatpush2.msra.mxu0 %v8371
  %8487 = vmatprep.subr.mxu0 %v8368
  %8488 = vmatpush2.msra.mxu0 %v8367
  %8489 = vmatprep.subr.mxu0 %v8364
  %8490 = vmatpush2.msra.mxu0 %v8363
  %8491 = vmatprep.mubr.f32.mxu0 %v8295
  %8492 = vmatmul.mubr.f32.gmra.mxu0 %v8294
  %v8493 = vpop.f32.mrf.mxu0
  %v8494 = vadd.f32 0.0, %v8493
  %v8495 = vpop.f32.mrf.mxu0
  %v8496 = vadd.f32 0.0, %v8495
  %8497 = vmatprep.mubr.f32.mxu0 %v8297
  %8498 = vmatmul.mubr.f32.gmra.mxu0 %v8296
  %v8499 = vpop.f32.mrf.mxu0
  %v8500 = vadd.f32 0.0, %v8499
  %v8501 = vpop.f32.mrf.mxu0
  %v8502 = vadd.f32 0.0, %v8501
  %8503 = vdwg.mxu0
  %8504 = vmatprep.subr.mxu0 %v8362
  %8505 = vmatpush1.msra.mxu0 %v8361
  %8506 = vmatprep.subr.mxu0 %v8358
  %8507 = vmatpush1.msra.mxu0 %v8357
  %8508 = vmatprep.subr.mxu0 %v8354
  %8509 = vmatpush1.msra.mxu0 %v8353
  %8510 = vmatprep.subr.mxu0 %v8350
  %8511 = vmatpush1.msra.mxu0 %v8349
  %8512 = vmatprep.subr.mxu0 %v8346
  %8513 = vmatpush1.msra.mxu0 %v8345
  %8514 = vmatprep.subr.mxu0 %v8342
  %8515 = vmatpush1.msra.mxu0 %v8341
  %8516 = vmatprep.subr.mxu0 %v8338
  %8517 = vmatpush1.msra.mxu0 %v8337
  %8518 = vmatprep.subr.mxu0 %v8334
  %8519 = vmatpush1.msra.mxu0 %v8333
  %8520 = vmatprep.subr.mxu0 %v8330
  %8521 = vmatpush1.msra.mxu0 %v8329
  %8522 = vmatprep.subr.mxu0 %v8326
  %8523 = vmatpush1.msra.mxu0 %v8325
  %8524 = vmatprep.subr.mxu0 %v8322
  %8525 = vmatpush1.msra.mxu0 %v8321
  %8526 = vmatprep.subr.mxu0 %v8318
  %8527 = vmatpush1.msra.mxu0 %v8317
  %8528 = vmatprep.subr.mxu0 %v8314
  %8529 = vmatpush1.msra.mxu0 %v8313
  %8530 = vmatprep.subr.mxu0 %v8310
  %8531 = vmatpush1.msra.mxu0 %v8309
  %8532 = vmatprep.subr.mxu0 %v8306
  %8533 = vmatpush1.msra.mxu0 %v8305
  %8534 = vmatprep.subr.mxu0 %v8302
  %8535 = vmatpush1.msra.mxu0 %v8301
  %8536 = vmatprep.subr.mxu0 %v8426
  %8537 = vmatpush2.msra.mxu0 %v8425
  %8538 = vmatprep.subr.mxu0 %v8422
  %8539 = vmatpush2.msra.mxu0 %v8421
  %8540 = vmatprep.subr.mxu0 %v8418
  %8541 = vmatpush2.msra.mxu0 %v8417
  %8542 = vmatprep.subr.mxu0 %v8414
  %8543 = vmatpush2.msra.mxu0 %v8413
  %8544 = vmatprep.subr.mxu0 %v8410
  %8545 = vmatpush2.msra.mxu0 %v8409
  %8546 = vmatprep.subr.mxu0 %v8406
  %8547 = vmatpush2.msra.mxu0 %v8405
  %8548 = vmatprep.subr.mxu0 %v8402
  %8549 = vmatpush2.msra.mxu0 %v8401
  %8550 = vmatprep.subr.mxu0 %v8398
  %8551 = vmatpush2.msra.mxu0 %v8397
  %8552 = vmatprep.subr.mxu0 %v8394
  %8553 = vmatpush2.msra.mxu0 %v8393
  %8554 = vmatprep.subr.mxu0 %v8390
  %8555 = vmatpush2.msra.mxu0 %v8389
  %8556 = vmatprep.subr.mxu0 %v8386
  %8557 = vmatpush2.msra.mxu0 %v8385
  %8558 = vmatprep.subr.mxu0 %v8382
  %8559 = vmatpush2.msra.mxu0 %v8381
  %8560 = vmatprep.subr.mxu0 %v8378
  %8561 = vmatpush2.msra.mxu0 %v8377
  %8562 = vmatprep.subr.mxu0 %v8374
  %8563 = vmatpush2.msra.mxu0 %v8373
  %8564 = vmatprep.subr.mxu0 %v8370
  %8565 = vmatpush2.msra.mxu0 %v8369
  %8566 = vmatprep.subr.mxu0 %v8366
  %8567 = vmatpush2.msra.mxu0 %v8365
  %8568 = vmatprep.mubr.f32.mxu0 %v8295
  %8569 = vmatmul.mubr.f32.gmra.mxu0 %v8294
  %v8570 = vpop.f32.mrf.mxu0
  %v8571 = vadd.f32 0.0, %v8570
  %v8572 = vpop.f32.mrf.mxu0
  %v8573 = vadd.f32 0.0, %v8572
  %8574 = vmatprep.mubr.f32.mxu0 %v8297
  %8575 = vmatmul.mubr.f32.gmra.mxu0 %v8296
  %v8576 = vpop.f32.mrf.mxu0
  %v8577 = vadd.f32 0.0, %v8576
  %v8578 = vpop.f32.mrf.mxu0
  %v8579 = vadd.f32 0.0, %v8578
  %8580 = vdwg.mxu0
  %v8581 = vadd.f32 %v8274, %v8494
  %v8582 = vadd.f32 %v8275, %v8496
  %v8583 = vadd.f32 %v8276, %v8571
  %v8584 = vadd.f32 %v8277, %v8573
  %v8585 = vadd.f32 %v8278, %v8500
  %v8586 = vadd.f32 %v8279, %v8502
  %v8587 = vadd.f32 %v8280, %v8577
  %v8588 = vadd.f32 %v8281, %v8579
  %v8589 = vadd.f32 %v3961, %v3965
  %v8590 = vadd.f32 %v3962, %v3966
  %v8591 = vadd.f32 %v3963, %v3967
  %v8592 = vadd.f32 %v3964, %v3968
  %v8593 = vadd.f32 %v8589, %v3993
  %v8594 = vadd.f32 %v8590, %v3994
  %v8595 = vadd.f32 %v8591, %v3995
  %v8596 = vadd.f32 %v8592, %v3996
  %v8597 = vadd.f32 %v8593, %v3997
  %v8598 = vadd.f32 %v8594, %v3998
  %v8599 = vadd.f32 %v8595, %v3999
  %v8600 = vadd.f32 %v8596, %v4000
  %v8601 = vmul.f32 %v8597, 0.25
  %v8602 = vmul.f32 %v8598, 0.25
  %v8603 = vmul.f32 %v8599, 0.25
  %v8604 = vmul.f32 %v8600, 0.25
  %s8605 = scalar_lea.vmem %s7, 15360
  %v8606 = vld [vmem:[%s8605] sm:$0xff]
  %v8607 = vld [vmem:[%s8605 + $0x8] sm:$0xff]
  %v8608 = vld [vmem:[%s8605 + $0x10] sm:$0xff]
  %v8609 = vld [vmem:[%s8605 + $0x18] sm:$0xff]
  %v8610 = vld [vmem:[%s8605 + $0x20] sm:$0xff]
  %v8611 = vld [vmem:[%s8605 + $0x28] sm:$0xff]
  %v8612 = vld [vmem:[%s8605 + $0x30] sm:$0xff]
  %v8613 = vld [vmem:[%s8605 + $0x38] sm:$0xff]
  %v8614 = vld [vmem:[%s8605 + $0x40] sm:$0xff]
  %v8615 = vld [vmem:[%s8605 + $0x48] sm:$0xff]
  %v8616 = vld [vmem:[%s8605 + $0x50] sm:$0xff]
  %v8617 = vld [vmem:[%s8605 + $0x58] sm:$0xff]
  %v8618 = vld [vmem:[%s8605 + $0x60] sm:$0xff]
  %v8619 = vld [vmem:[%s8605 + $0x68] sm:$0xff]
  %v8620 = vld [vmem:[%s8605 + $0x70] sm:$0xff]
  %v8621 = vld [vmem:[%s8605 + $0x78] sm:$0xff]
  %v8622 = vld [vmem:[%s8605 + $0x80] sm:$0xff]
  %v8623 = vld [vmem:[%s8605 + $0x88] sm:$0xff]
  %v8624 = vld [vmem:[%s8605 + $0x90] sm:$0xff]
  %v8625 = vld [vmem:[%s8605 + $0x98] sm:$0xff]
  %v8626 = vld [vmem:[%s8605 + $0xa0] sm:$0xff]
  %v8627 = vld [vmem:[%s8605 + $0xa8] sm:$0xff]
  %v8628 = vld [vmem:[%s8605 + $0xb0] sm:$0xff]
  %v8629 = vld [vmem:[%s8605 + $0xb8] sm:$0xff]
  %v8630 = vld [vmem:[%s8605 + $0xc0] sm:$0xff]
  %v8631 = vld [vmem:[%s8605 + $0xc8] sm:$0xff]
  %v8632 = vld [vmem:[%s8605 + $0xd0] sm:$0xff]
  %v8633 = vld [vmem:[%s8605 + $0xd8] sm:$0xff]
  %v8634 = vld [vmem:[%s8605 + $0xe0] sm:$0xff]
  %v8635 = vld [vmem:[%s8605 + $0xe8] sm:$0xff]
  %v8636 = vld [vmem:[%s8605 + $0xf0] sm:$0xff]
  %v8637 = vld [vmem:[%s8605 + $0xf8] sm:$0xff]
  %v8638 = vld [vmem:[%s8605 + $0x100] sm:$0xff]
  %v8639 = vld [vmem:[%s8605 + $0x108] sm:$0xff]
  %v8640 = vld [vmem:[%s8605 + $0x110] sm:$0xff]
  %v8641 = vld [vmem:[%s8605 + $0x118] sm:$0xff]
  %v8642 = vld [vmem:[%s8605 + $0x120] sm:$0xff]
  %v8643 = vld [vmem:[%s8605 + $0x128] sm:$0xff]
  %v8644 = vld [vmem:[%s8605 + $0x130] sm:$0xff]
  %v8645 = vld [vmem:[%s8605 + $0x138] sm:$0xff]
  %v8646 = vld [vmem:[%s8605 + $0x140] sm:$0xff]
  %v8647 = vld [vmem:[%s8605 + $0x148] sm:$0xff]
  %v8648 = vld [vmem:[%s8605 + $0x150] sm:$0xff]
  %v8649 = vld [vmem:[%s8605 + $0x158] sm:$0xff]
  %v8650 = vld [vmem:[%s8605 + $0x160] sm:$0xff]
  %v8651 = vld [vmem:[%s8605 + $0x168] sm:$0xff]
  %v8652 = vld [vmem:[%s8605 + $0x170] sm:$0xff]
  %v8653 = vld [vmem:[%s8605 + $0x178] sm:$0xff]
  %v8654 = vld [vmem:[%s8605 + $0x180] sm:$0xff]
  %v8655 = vld [vmem:[%s8605 + $0x188] sm:$0xff]
  %v8656 = vld [vmem:[%s8605 + $0x190] sm:$0xff]
  %v8657 = vld [vmem:[%s8605 + $0x198] sm:$0xff]
  %v8658 = vld [vmem:[%s8605 + $0x1a0] sm:$0xff]
  %v8659 = vld [vmem:[%s8605 + $0x1a8] sm:$0xff]
  %v8660 = vld [vmem:[%s8605 + $0x1b0] sm:$0xff]
  %v8661 = vld [vmem:[%s8605 + $0x1b8] sm:$0xff]
  %v8662 = vld [vmem:[%s8605 + $0x1c0] sm:$0xff]
  %v8663 = vld [vmem:[%s8605 + $0x1c8] sm:$0xff]
  %v8664 = vld [vmem:[%s8605 + $0x1d0] sm:$0xff]
  %v8665 = vld [vmem:[%s8605 + $0x1d8] sm:$0xff]
  %v8666 = vld [vmem:[%s8605 + $0x1e0] sm:$0xff]
  %v8667 = vld [vmem:[%s8605 + $0x1e8] sm:$0xff]
  %v8668 = vld [vmem:[%s8605 + $0x1f0] sm:$0xff]
  %v8669 = vld [vmem:[%s8605 + $0x1f8] sm:$0xff]
  %v8670 = vld [vmem:[%s8605 + $0x200] sm:$0xff]
  %v8671 = vld [vmem:[%s8605 + $0x208] sm:$0xff]
  %v8672 = vld [vmem:[%s8605 + $0x210] sm:$0xff]
  %v8673 = vld [vmem:[%s8605 + $0x218] sm:$0xff]
  %v8674 = vld [vmem:[%s8605 + $0x220] sm:$0xff]
  %v8675 = vld [vmem:[%s8605 + $0x228] sm:$0xff]
  %v8676 = vld [vmem:[%s8605 + $0x230] sm:$0xff]
  %v8677 = vld [vmem:[%s8605 + $0x238] sm:$0xff]
  %v8678 = vld [vmem:[%s8605 + $0x240] sm:$0xff]
  %v8679 = vld [vmem:[%s8605 + $0x248] sm:$0xff]
  %v8680 = vld [vmem:[%s8605 + $0x250] sm:$0xff]
  %v8681 = vld [vmem:[%s8605 + $0x258] sm:$0xff]
  %v8682 = vld [vmem:[%s8605 + $0x260] sm:$0xff]
  %v8683 = vld [vmem:[%s8605 + $0x268] sm:$0xff]
  %v8684 = vld [vmem:[%s8605 + $0x270] sm:$0xff]
  %v8685 = vld [vmem:[%s8605 + $0x278] sm:$0xff]
  %v8686 = vld [vmem:[%s8605 + $0x280] sm:$0xff]
  %v8687 = vld [vmem:[%s8605 + $0x288] sm:$0xff]
  %v8688 = vld [vmem:[%s8605 + $0x290] sm:$0xff]
  %v8689 = vld [vmem:[%s8605 + $0x298] sm:$0xff]
  %v8690 = vld [vmem:[%s8605 + $0x2a0] sm:$0xff]
  %v8691 = vld [vmem:[%s8605 + $0x2a8] sm:$0xff]
  %v8692 = vld [vmem:[%s8605 + $0x2b0] sm:$0xff]
  %v8693 = vld [vmem:[%s8605 + $0x2b8] sm:$0xff]
  %v8694 = vld [vmem:[%s8605 + $0x2c0] sm:$0xff]
  %v8695 = vld [vmem:[%s8605 + $0x2c8] sm:$0xff]
  %v8696 = vld [vmem:[%s8605 + $0x2d0] sm:$0xff]
  %v8697 = vld [vmem:[%s8605 + $0x2d8] sm:$0xff]
  %v8698 = vld [vmem:[%s8605 + $0x2e0] sm:$0xff]
  %v8699 = vld [vmem:[%s8605 + $0x2e8] sm:$0xff]
  %v8700 = vld [vmem:[%s8605 + $0x2f0] sm:$0xff]
  %v8701 = vld [vmem:[%s8605 + $0x2f8] sm:$0xff]
  %v8702 = vld [vmem:[%s8605 + $0x300] sm:$0xff]
  %v8703 = vld [vmem:[%s8605 + $0x308] sm:$0xff]
  %v8704 = vld [vmem:[%s8605 + $0x310] sm:$0xff]
  %v8705 = vld [vmem:[%s8605 + $0x318] sm:$0xff]
  %v8706 = vld [vmem:[%s8605 + $0x320] sm:$0xff]
  %v8707 = vld [vmem:[%s8605 + $0x328] sm:$0xff]
  %v8708 = vld [vmem:[%s8605 + $0x330] sm:$0xff]
  %v8709 = vld [vmem:[%s8605 + $0x338] sm:$0xff]
  %v8710 = vld [vmem:[%s8605 + $0x340] sm:$0xff]
  %v8711 = vld [vmem:[%s8605 + $0x348] sm:$0xff]
  %v8712 = vld [vmem:[%s8605 + $0x350] sm:$0xff]
  %v8713 = vld [vmem:[%s8605 + $0x358] sm:$0xff]
  %v8714 = vld [vmem:[%s8605 + $0x360] sm:$0xff]
  %v8715 = vld [vmem:[%s8605 + $0x368] sm:$0xff]
  %v8716 = vld [vmem:[%s8605 + $0x370] sm:$0xff]
  %v8717 = vld [vmem:[%s8605 + $0x378] sm:$0xff]
  %v8718 = vld [vmem:[%s8605 + $0x380] sm:$0xff]
  %v8719 = vld [vmem:[%s8605 + $0x388] sm:$0xff]
  %v8720 = vld [vmem:[%s8605 + $0x390] sm:$0xff]
  %v8721 = vld [vmem:[%s8605 + $0x398] sm:$0xff]
  %v8722 = vld [vmem:[%s8605 + $0x3a0] sm:$0xff]
  %v8723 = vld [vmem:[%s8605 + $0x3a8] sm:$0xff]
  %v8724 = vld [vmem:[%s8605 + $0x3b0] sm:$0xff]
  %v8725 = vld [vmem:[%s8605 + $0x3b8] sm:$0xff]
  %v8726 = vld [vmem:[%s8605 + $0x3c0] sm:$0xff]
  %v8727 = vld [vmem:[%s8605 + $0x3c8] sm:$0xff]
  %v8728 = vld [vmem:[%s8605 + $0x3d0] sm:$0xff]
  %v8729 = vld [vmem:[%s8605 + $0x3d8] sm:$0xff]
  %v8730 = vld [vmem:[%s8605 + $0x3e0] sm:$0xff]
  %v8731 = vld [vmem:[%s8605 + $0x3e8] sm:$0xff]
  %v8732 = vld [vmem:[%s8605 + $0x3f0] sm:$0xff]
  %v8733 = vld [vmem:[%s8605 + $0x3f8] sm:$0xff]
  %8734 = vmatprep.subr.mxu0 %v8667
  %8735 = vmatpush1.msra.mxu0 %v8666
  %8736 = vmatprep.subr.mxu0 %v8663
  %8737 = vmatpush1.msra.mxu0 %v8662
  %8738 = vmatprep.subr.mxu0 %v8659
  %8739 = vmatpush1.msra.mxu0 %v8658
  %8740 = vmatprep.subr.mxu0 %v8655
  %8741 = vmatpush1.msra.mxu0 %v8654
  %8742 = vmatprep.subr.mxu0 %v8651
  %8743 = vmatpush1.msra.mxu0 %v8650
  %8744 = vmatprep.subr.mxu0 %v8647
  %8745 = vmatpush1.msra.mxu0 %v8646
  %8746 = vmatprep.subr.mxu0 %v8643
  %8747 = vmatpush1.msra.mxu0 %v8642
  %8748 = vmatprep.subr.mxu0 %v8639
  %8749 = vmatpush1.msra.mxu0 %v8638
  %8750 = vmatprep.subr.mxu0 %v8635
  %8751 = vmatpush1.msra.mxu0 %v8634
  %8752 = vmatprep.subr.mxu0 %v8631
  %8753 = vmatpush1.msra.mxu0 %v8630
  %8754 = vmatprep.subr.mxu0 %v8627
  %8755 = vmatpush1.msra.mxu0 %v8626
  %8756 = vmatprep.subr.mxu0 %v8623
  %8757 = vmatpush1.msra.mxu0 %v8622
  %8758 = vmatprep.subr.mxu0 %v8619
  %8759 = vmatpush1.msra.mxu0 %v8618
  %8760 = vmatprep.subr.mxu0 %v8615
  %8761 = vmatpush1.msra.mxu0 %v8614
  %8762 = vmatprep.subr.mxu0 %v8611
  %8763 = vmatpush1.msra.mxu0 %v8610
  %8764 = vmatprep.subr.mxu0 %v8607
  %8765 = vmatpush1.msra.mxu0 %v8606
  %8766 = vmatprep.subr.mxu0 %v8731
  %8767 = vmatpush2.msra.mxu0 %v8730
  %8768 = vmatprep.subr.mxu0 %v8727
  %8769 = vmatpush2.msra.mxu0 %v8726
  %8770 = vmatprep.subr.mxu0 %v8723
  %8771 = vmatpush2.msra.mxu0 %v8722
  %8772 = vmatprep.subr.mxu0 %v8719
  %8773 = vmatpush2.msra.mxu0 %v8718
  %8774 = vmatprep.subr.mxu0 %v8715
  %8775 = vmatpush2.msra.mxu0 %v8714
  %8776 = vmatprep.subr.mxu0 %v8711
  %8777 = vmatpush2.msra.mxu0 %v8710
  %8778 = vmatprep.subr.mxu0 %v8707
  %8779 = vmatpush2.msra.mxu0 %v8706
  %8780 = vmatprep.subr.mxu0 %v8703
  %8781 = vmatpush2.msra.mxu0 %v8702
  %8782 = vmatprep.subr.mxu0 %v8699
  %8783 = vmatpush2.msra.mxu0 %v8698
  %8784 = vmatprep.subr.mxu0 %v8695
  %8785 = vmatpush2.msra.mxu0 %v8694
  %8786 = vmatprep.subr.mxu0 %v8691
  %8787 = vmatpush2.msra.mxu0 %v8690
  %8788 = vmatprep.subr.mxu0 %v8687
  %8789 = vmatpush2.msra.mxu0 %v8686
  %8790 = vmatprep.subr.mxu0 %v8683
  %8791 = vmatpush2.msra.mxu0 %v8682
  %8792 = vmatprep.subr.mxu0 %v8679
  %8793 = vmatpush2.msra.mxu0 %v8678
  %8794 = vmatprep.subr.mxu0 %v8675
  %8795 = vmatpush2.msra.mxu0 %v8674
  %8796 = vmatprep.subr.mxu0 %v8671
  %8797 = vmatpush2.msra.mxu0 %v8670
  %8798 = vmatprep.mubr.f32.mxu0 %v8602
  %8799 = vmatmul.mubr.f32.gmra.mxu0 %v8601
  %v8800 = vpop.f32.mrf.mxu0
  %v8801 = vadd.f32 0.0, %v8800
  %v8802 = vpop.f32.mrf.mxu0
  %v8803 = vadd.f32 0.0, %v8802
  %8804 = vmatprep.mubr.f32.mxu0 %v8604
  %8805 = vmatmul.mubr.f32.gmra.mxu0 %v8603
  %v8806 = vpop.f32.mrf.mxu0
  %v8807 = vadd.f32 0.0, %v8806
  %v8808 = vpop.f32.mrf.mxu0
  %v8809 = vadd.f32 0.0, %v8808
  %8810 = vdwg.mxu0
  %8811 = vmatprep.subr.mxu0 %v8669
  %8812 = vmatpush1.msra.mxu0 %v8668
  %8813 = vmatprep.subr.mxu0 %v8665
  %8814 = vmatpush1.msra.mxu0 %v8664
  %8815 = vmatprep.subr.mxu0 %v8661
  %8816 = vmatpush1.msra.mxu0 %v8660
  %8817 = vmatprep.subr.mxu0 %v8657
  %8818 = vmatpush1.msra.mxu0 %v8656
  %8819 = vmatprep.subr.mxu0 %v8653
  %8820 = vmatpush1.msra.mxu0 %v8652
  %8821 = vmatprep.subr.mxu0 %v8649
  %8822 = vmatpush1.msra.mxu0 %v8648
  %8823 = vmatprep.subr.mxu0 %v8645
  %8824 = vmatpush1.msra.mxu0 %v8644
  %8825 = vmatprep.subr.mxu0 %v8641
  %8826 = vmatpush1.msra.mxu0 %v8640
  %8827 = vmatprep.subr.mxu0 %v8637
  %8828 = vmatpush1.msra.mxu0 %v8636
  %8829 = vmatprep.subr.mxu0 %v8633
  %8830 = vmatpush1.msra.mxu0 %v8632
  %8831 = vmatprep.subr.mxu0 %v8629
  %8832 = vmatpush1.msra.mxu0 %v8628
  %8833 = vmatprep.subr.mxu0 %v8625
  %8834 = vmatpush1.msra.mxu0 %v8624
  %8835 = vmatprep.subr.mxu0 %v8621
  %8836 = vmatpush1.msra.mxu0 %v8620
  %8837 = vmatprep.subr.mxu0 %v8617
  %8838 = vmatpush1.msra.mxu0 %v8616
  %8839 = vmatprep.subr.mxu0 %v8613
  %8840 = vmatpush1.msra.mxu0 %v8612
  %8841 = vmatprep.subr.mxu0 %v8609
  %8842 = vmatpush1.msra.mxu0 %v8608
  %8843 = vmatprep.subr.mxu0 %v8733
  %8844 = vmatpush2.msra.mxu0 %v8732
  %8845 = vmatprep.subr.mxu0 %v8729
  %8846 = vmatpush2.msra.mxu0 %v8728
  %8847 = vmatprep.subr.mxu0 %v8725
  %8848 = vmatpush2.msra.mxu0 %v8724
  %8849 = vmatprep.subr.mxu0 %v8721
  %8850 = vmatpush2.msra.mxu0 %v8720
  %8851 = vmatprep.subr.mxu0 %v8717
  %8852 = vmatpush2.msra.mxu0 %v8716
  %8853 = vmatprep.subr.mxu0 %v8713
  %8854 = vmatpush2.msra.mxu0 %v8712
  %8855 = vmatprep.subr.mxu0 %v8709
  %8856 = vmatpush2.msra.mxu0 %v8708
  %8857 = vmatprep.subr.mxu0 %v8705
  %8858 = vmatpush2.msra.mxu0 %v8704
  %8859 = vmatprep.subr.mxu0 %v8701
  %8860 = vmatpush2.msra.mxu0 %v8700
  %8861 = vmatprep.subr.mxu0 %v8697
  %8862 = vmatpush2.msra.mxu0 %v8696
  %8863 = vmatprep.subr.mxu0 %v8693
  %8864 = vmatpush2.msra.mxu0 %v8692
  %8865 = vmatprep.subr.mxu0 %v8689
  %8866 = vmatpush2.msra.mxu0 %v8688
  %8867 = vmatprep.subr.mxu0 %v8685
  %8868 = vmatpush2.msra.mxu0 %v8684
  %8869 = vmatprep.subr.mxu0 %v8681
  %8870 = vmatpush2.msra.mxu0 %v8680
  %8871 = vmatprep.subr.mxu0 %v8677
  %8872 = vmatpush2.msra.mxu0 %v8676
  %8873 = vmatprep.subr.mxu0 %v8673
  %8874 = vmatpush2.msra.mxu0 %v8672
  %8875 = vmatprep.mubr.f32.mxu0 %v8602
  %8876 = vmatmul.mubr.f32.gmra.mxu0 %v8601
  %v8877 = vpop.f32.mrf.mxu0
  %v8878 = vadd.f32 0.0, %v8877
  %v8879 = vpop.f32.mrf.mxu0
  %v8880 = vadd.f32 0.0, %v8879
  %8881 = vmatprep.mubr.f32.mxu0 %v8604
  %8882 = vmatmul.mubr.f32.gmra.mxu0 %v8603
  %v8883 = vpop.f32.mrf.mxu0
  %v8884 = vadd.f32 0.0, %v8883
  %v8885 = vpop.f32.mrf.mxu0
  %v8886 = vadd.f32 0.0, %v8885
  %8887 = vdwg.mxu0
  %v8888 = vadd.f32 %v8581, %v8801
  %v8889 = vadd.f32 %v8582, %v8803
  %v8890 = vadd.f32 %v8583, %v8878
  %v8891 = vadd.f32 %v8584, %v8880
  %v8892 = vadd.f32 %v8585, %v8807
  %v8893 = vadd.f32 %v8586, %v8809
  %v8894 = vadd.f32 %v8587, %v8884
  %v8895 = vadd.f32 %v8588, %v8886
  %v8896 = vld [vmem:[%s8] sm:$0xf]
  %v8898 = vlaneseq
  %v8899 = vshrl.u32 %v8898, 7
  %v8900 = vsub.s32 0, %v8899
  %v8901 = vrot.slane %v8896, %v8900
  %v8902 = vlaneseq
  %v8903 = vshrl.u32 %v8902, 7
  %v8904 = vsub.s32 1, %v8903
  %v8905 = vrot.slane %v8896, %v8904
  %v8906 = vlaneseq
  %v8907 = vshrl.u32 %v8906, 7
  %v8908 = vsub.s32 2, %v8907
  %v8909 = vrot.slane %v8896, %v8908
  %v8910 = vlaneseq
  %v8911 = vshrl.u32 %v8910, 7
  %v8912 = vsub.s32 3, %v8911
  %v8913 = vrot.slane %v8896, %v8912
  %v8918 = vadd.f32 %v8888, %v8901
  %v8919 = vadd.f32 %v8889, %v8905
  %v8920 = vadd.f32 %v8890, %v8909
  %v8921 = vadd.f32 %v8891, %v8913
  %v8922 = vadd.f32 %v8892, %v8901
  %v8923 = vadd.f32 %v8893, %v8905
  %v8924 = vadd.f32 %v8894, %v8909
  %v8925 = vadd.f32 %v8895, %v8913
  %v8926 = vmax.f32 %v8918, 0.0
  %v8927 = vmax.f32 %v8919, 0.0
  %v8928 = vmax.f32 %v8920, 0.0
  %v8929 = vmax.f32 %v8921, 0.0
  %v8930 = vmax.f32 %v8922, 0.0
  %v8931 = vmax.f32 %v8923, 0.0
  %v8932 = vmax.f32 %v8924, 0.0
  %v8933 = vmax.f32 %v8925, 0.0
  %v8934 = vld [vmem:[%s9] sm:$0xff]
  %v8935 = vld [vmem:[%s9 + $0x8] sm:$0xff]
  %v8936 = vld [vmem:[%s9 + $0x10] sm:$0xff]
  %v8937 = vld [vmem:[%s9 + $0x18] sm:$0xff]
  %v8938 = vld [vmem:[%s9 + $0x20] sm:$0xff]
  %v8939 = vld [vmem:[%s9 + $0x28] sm:$0xff]
  %v8940 = vld [vmem:[%s9 + $0x30] sm:$0xff]
  %v8941 = vld [vmem:[%s9 + $0x38] sm:$0xff]
  %v8942 = vld [vmem:[%s9 + $0x40] sm:$0xff]
  %v8943 = vld [vmem:[%s9 + $0x48] sm:$0xff]
  %v8944 = vld [vmem:[%s9 + $0x50] sm:$0xff]
  %v8945 = vld [vmem:[%s9 + $0x58] sm:$0xff]
  %v8946 = vld [vmem:[%s9 + $0x60] sm:$0xff]
  %v8947 = vld [vmem:[%s9 + $0x68] sm:$0xff]
  %v8948 = vld [vmem:[%s9 + $0x70] sm:$0xff]
  %v8949 = vld [vmem:[%s9 + $0x78] sm:$0xff]
  %v8950 = vld [vmem:[%s9 + $0x80] sm:$0xff]
  %v8951 = vld [vmem:[%s9 + $0x88] sm:$0xff]
  %v8952 = vld [vmem:[%s9 + $0x90] sm:$0xff]
  %v8953 = vld [vmem:[%s9 + $0x98] sm:$0xff]
  %v8954 = vld [vmem:[%s9 + $0xa0] sm:$0xff]
  %v8955 = vld [vmem:[%s9 + $0xa8] sm:$0xff]
  %v8956 = vld [vmem:[%s9 + $0xb0] sm:$0xff]
  %v8957 = vld [vmem:[%s9 + $0xb8] sm:$0xff]
  %v8958 = vld [vmem:[%s9 + $0xc0] sm:$0xff]
  %v8959 = vld [vmem:[%s9 + $0xc8] sm:$0xff]
  %v8960 = vld [vmem:[%s9 + $0xd0] sm:$0xff]
  %v8961 = vld [vmem:[%s9 + $0xd8] sm:$0xff]
  %v8962 = vld [vmem:[%s9 + $0xe0] sm:$0xff]
  %v8963 = vld [vmem:[%s9 + $0xe8] sm:$0xff]
  %v8964 = vld [vmem:[%s9 + $0xf0] sm:$0xff]
  %v8965 = vld [vmem:[%s9 + $0xf8] sm:$0xff]
  %v8966 = vld [vmem:[%s9 + $0x100] sm:$0xff]
  %v8967 = vld [vmem:[%s9 + $0x108] sm:$0xff]
  %v8968 = vld [vmem:[%s9 + $0x110] sm:$0xff]
  %v8969 = vld [vmem:[%s9 + $0x118] sm:$0xff]
  %v8970 = vld [vmem:[%s9 + $0x120] sm:$0xff]
  %v8971 = vld [vmem:[%s9 + $0x128] sm:$0xff]
  %v8972 = vld [vmem:[%s9 + $0x130] sm:$0xff]
  %v8973 = vld [vmem:[%s9 + $0x138] sm:$0xff]
  %v8974 = vld [vmem:[%s9 + $0x140] sm:$0xff]
  %v8975 = vld [vmem:[%s9 + $0x148] sm:$0xff]
  %v8976 = vld [vmem:[%s9 + $0x150] sm:$0xff]
  %v8977 = vld [vmem:[%s9 + $0x158] sm:$0xff]
  %v8978 = vld [vmem:[%s9 + $0x160] sm:$0xff]
  %v8979 = vld [vmem:[%s9 + $0x168] sm:$0xff]
  %v8980 = vld [vmem:[%s9 + $0x170] sm:$0xff]
  %v8981 = vld [vmem:[%s9 + $0x178] sm:$0xff]
  %v8982 = vld [vmem:[%s9 + $0x180] sm:$0xff]
  %v8983 = vld [vmem:[%s9 + $0x188] sm:$0xff]
  %v8984 = vld [vmem:[%s9 + $0x190] sm:$0xff]
  %v8985 = vld [vmem:[%s9 + $0x198] sm:$0xff]
  %v8986 = vld [vmem:[%s9 + $0x1a0] sm:$0xff]
  %v8987 = vld [vmem:[%s9 + $0x1a8] sm:$0xff]
  %v8988 = vld [vmem:[%s9 + $0x1b0] sm:$0xff]
  %v8989 = vld [vmem:[%s9 + $0x1b8] sm:$0xff]
  %v8990 = vld [vmem:[%s9 + $0x1c0] sm:$0xff]
  %v8991 = vld [vmem:[%s9 + $0x1c8] sm:$0xff]
  %v8992 = vld [vmem:[%s9 + $0x1d0] sm:$0xff]
  %v8993 = vld [vmem:[%s9 + $0x1d8] sm:$0xff]
  %v8994 = vld [vmem:[%s9 + $0x1e0] sm:$0xff]
  %v8995 = vld [vmem:[%s9 + $0x1e8] sm:$0xff]
  %v8996 = vld [vmem:[%s9 + $0x1f0] sm:$0xff]
  %v8997 = vld [vmem:[%s9 + $0x1f8] sm:$0xff]
  %v8998 = vld [vmem:[%s9 + $0x200] sm:$0xff]
  %v8999 = vld [vmem:[%s9 + $0x208] sm:$0xff]
  %v9000 = vld [vmem:[%s9 + $0x210] sm:$0xff]
  %v9001 = vld [vmem:[%s9 + $0x218] sm:$0xff]
  %v9002 = vld [vmem:[%s9 + $0x220] sm:$0xff]
  %v9003 = vld [vmem:[%s9 + $0x228] sm:$0xff]
  %v9004 = vld [vmem:[%s9 + $0x230] sm:$0xff]
  %v9005 = vld [vmem:[%s9 + $0x238] sm:$0xff]
  %v9006 = vld [vmem:[%s9 + $0x240] sm:$0xff]
  %v9007 = vld [vmem:[%s9 + $0x248] sm:$0xff]
  %v9008 = vld [vmem:[%s9 + $0x250] sm:$0xff]
  %v9009 = vld [vmem:[%s9 + $0x258] sm:$0xff]
  %v9010 = vld [vmem:[%s9 + $0x260] sm:$0xff]
  %v9011 = vld [vmem:[%s9 + $0x268] sm:$0xff]
  %v9012 = vld [vmem:[%s9 + $0x270] sm:$0xff]
  %v9013 = vld [vmem:[%s9 + $0x278] sm:$0xff]
  %v9014 = vld [vmem:[%s9 + $0x280] sm:$0xff]
  %v9015 = vld [vmem:[%s9 + $0x288] sm:$0xff]
  %v9016 = vld [vmem:[%s9 + $0x290] sm:$0xff]
  %v9017 = vld [vmem:[%s9 + $0x298] sm:$0xff]
  %v9018 = vld [vmem:[%s9 + $0x2a0] sm:$0xff]
  %v9019 = vld [vmem:[%s9 + $0x2a8] sm:$0xff]
  %v9020 = vld [vmem:[%s9 + $0x2b0] sm:$0xff]
  %v9021 = vld [vmem:[%s9 + $0x2b8] sm:$0xff]
  %v9022 = vld [vmem:[%s9 + $0x2c0] sm:$0xff]
  %v9023 = vld [vmem:[%s9 + $0x2c8] sm:$0xff]
  %v9024 = vld [vmem:[%s9 + $0x2d0] sm:$0xff]
  %v9025 = vld [vmem:[%s9 + $0x2d8] sm:$0xff]
  %v9026 = vld [vmem:[%s9 + $0x2e0] sm:$0xff]
  %v9027 = vld [vmem:[%s9 + $0x2e8] sm:$0xff]
  %v9028 = vld [vmem:[%s9 + $0x2f0] sm:$0xff]
  %v9029 = vld [vmem:[%s9 + $0x2f8] sm:$0xff]
  %v9030 = vld [vmem:[%s9 + $0x300] sm:$0xff]
  %v9031 = vld [vmem:[%s9 + $0x308] sm:$0xff]
  %v9032 = vld [vmem:[%s9 + $0x310] sm:$0xff]
  %v9033 = vld [vmem:[%s9 + $0x318] sm:$0xff]
  %v9034 = vld [vmem:[%s9 + $0x320] sm:$0xff]
  %v9035 = vld [vmem:[%s9 + $0x328] sm:$0xff]
  %v9036 = vld [vmem:[%s9 + $0x330] sm:$0xff]
  %v9037 = vld [vmem:[%s9 + $0x338] sm:$0xff]
  %v9038 = vld [vmem:[%s9 + $0x340] sm:$0xff]
  %v9039 = vld [vmem:[%s9 + $0x348] sm:$0xff]
  %v9040 = vld [vmem:[%s9 + $0x350] sm:$0xff]
  %v9041 = vld [vmem:[%s9 + $0x358] sm:$0xff]
  %v9042 = vld [vmem:[%s9 + $0x360] sm:$0xff]
  %v9043 = vld [vmem:[%s9 + $0x368] sm:$0xff]
  %v9044 = vld [vmem:[%s9 + $0x370] sm:$0xff]
  %v9045 = vld [vmem:[%s9 + $0x378] sm:$0xff]
  %v9046 = vld [vmem:[%s9 + $0x380] sm:$0xff]
  %v9047 = vld [vmem:[%s9 + $0x388] sm:$0xff]
  %v9048 = vld [vmem:[%s9 + $0x390] sm:$0xff]
  %v9049 = vld [vmem:[%s9 + $0x398] sm:$0xff]
  %v9050 = vld [vmem:[%s9 + $0x3a0] sm:$0xff]
  %v9051 = vld [vmem:[%s9 + $0x3a8] sm:$0xff]
  %v9052 = vld [vmem:[%s9 + $0x3b0] sm:$0xff]
  %v9053 = vld [vmem:[%s9 + $0x3b8] sm:$0xff]
  %v9054 = vld [vmem:[%s9 + $0x3c0] sm:$0xff]
  %v9055 = vld [vmem:[%s9 + $0x3c8] sm:$0xff]
  %v9056 = vld [vmem:[%s9 + $0x3d0] sm:$0xff]
  %v9057 = vld [vmem:[%s9 + $0x3d8] sm:$0xff]
  %v9058 = vld [vmem:[%s9 + $0x3e0] sm:$0xff]
  %v9059 = vld [vmem:[%s9 + $0x3e8] sm:$0xff]
  %v9060 = vld [vmem:[%s9 + $0x3f0] sm:$0xff]
  %v9061 = vld [vmem:[%s9 + $0x3f8] sm:$0xff]
  %v9062 = vld [vmem:[%s9 + $0x400] sm:$0xff]
  %v9063 = vld [vmem:[%s9 + $0x408] sm:$0xff]
  %v9064 = vld [vmem:[%s9 + $0x410] sm:$0xff]
  %v9065 = vld [vmem:[%s9 + $0x418] sm:$0xff]
  %v9066 = vld [vmem:[%s9 + $0x420] sm:$0xff]
  %v9067 = vld [vmem:[%s9 + $0x428] sm:$0xff]
  %v9068 = vld [vmem:[%s9 + $0x430] sm:$0xff]
  %v9069 = vld [vmem:[%s9 + $0x438] sm:$0xff]
  %v9070 = vld [vmem:[%s9 + $0x440] sm:$0xff]
  %v9071 = vld [vmem:[%s9 + $0x448] sm:$0xff]
  %v9072 = vld [vmem:[%s9 + $0x450] sm:$0xff]
  %v9073 = vld [vmem:[%s9 + $0x458] sm:$0xff]
  %v9074 = vld [vmem:[%s9 + $0x460] sm:$0xff]
  %v9075 = vld [vmem:[%s9 + $0x468] sm:$0xff]
  %v9076 = vld [vmem:[%s9 + $0x470] sm:$0xff]
  %v9077 = vld [vmem:[%s9 + $0x478] sm:$0xff]
  %v9078 = vld [vmem:[%s9 + $0x480] sm:$0xff]
  %v9079 = vld [vmem:[%s9 + $0x488] sm:$0xff]
  %v9080 = vld [vmem:[%s9 + $0x490] sm:$0xff]
  %v9081 = vld [vmem:[%s9 + $0x498] sm:$0xff]
  %v9082 = vld [vmem:[%s9 + $0x4a0] sm:$0xff]
  %v9083 = vld [vmem:[%s9 + $0x4a8] sm:$0xff]
  %v9084 = vld [vmem:[%s9 + $0x4b0] sm:$0xff]
  %v9085 = vld [vmem:[%s9 + $0x4b8] sm:$0xff]
  %v9086 = vld [vmem:[%s9 + $0x4c0] sm:$0xff]
  %v9087 = vld [vmem:[%s9 + $0x4c8] sm:$0xff]
  %v9088 = vld [vmem:[%s9 + $0x4d0] sm:$0xff]
  %v9089 = vld [vmem:[%s9 + $0x4d8] sm:$0xff]
  %v9090 = vld [vmem:[%s9 + $0x4e0] sm:$0xff]
  %v9091 = vld [vmem:[%s9 + $0x4e8] sm:$0xff]
  %v9092 = vld [vmem:[%s9 + $0x4f0] sm:$0xff]
  %v9093 = vld [vmem:[%s9 + $0x4f8] sm:$0xff]
  %v9094 = vld [vmem:[%s9 + $0x500] sm:$0xff]
  %v9095 = vld [vmem:[%s9 + $0x508] sm:$0xff]
  %v9096 = vld [vmem:[%s9 + $0x510] sm:$0xff]
  %v9097 = vld [vmem:[%s9 + $0x518] sm:$0xff]
  %v9098 = vld [vmem:[%s9 + $0x520] sm:$0xff]
  %v9099 = vld [vmem:[%s9 + $0x528] sm:$0xff]
  %v9100 = vld [vmem:[%s9 + $0x530] sm:$0xff]
  %v9101 = vld [vmem:[%s9 + $0x538] sm:$0xff]
  %v9102 = vld [vmem:[%s9 + $0x540] sm:$0xff]
  %v9103 = vld [vmem:[%s9 + $0x548] sm:$0xff]
  %v9104 = vld [vmem:[%s9 + $0x550] sm:$0xff]
  %v9105 = vld [vmem:[%s9 + $0x558] sm:$0xff]
  %v9106 = vld [vmem:[%s9 + $0x560] sm:$0xff]
  %v9107 = vld [vmem:[%s9 + $0x568] sm:$0xff]
  %v9108 = vld [vmem:[%s9 + $0x570] sm:$0xff]
  %v9109 = vld [vmem:[%s9 + $0x578] sm:$0xff]
  %v9110 = vld [vmem:[%s9 + $0x580] sm:$0xff]
  %v9111 = vld [vmem:[%s9 + $0x588] sm:$0xff]
  %v9112 = vld [vmem:[%s9 + $0x590] sm:$0xff]
  %v9113 = vld [vmem:[%s9 + $0x598] sm:$0xff]
  %v9114 = vld [vmem:[%s9 + $0x5a0] sm:$0xff]
  %v9115 = vld [vmem:[%s9 + $0x5a8] sm:$0xff]
  %v9116 = vld [vmem:[%s9 + $0x5b0] sm:$0xff]
  %v9117 = vld [vmem:[%s9 + $0x5b8] sm:$0xff]
  %v9118 = vld [vmem:[%s9 + $0x5c0] sm:$0xff]
  %v9119 = vld [vmem:[%s9 + $0x5c8] sm:$0xff]
  %v9120 = vld [vmem:[%s9 + $0x5d0] sm:$0xff]
  %v9121 = vld [vmem:[%s9 + $0x5d8] sm:$0xff]
  %v9122 = vld [vmem:[%s9 + $0x5e0] sm:$0xff]
  %v9123 = vld [vmem:[%s9 + $0x5e8] sm:$0xff]
  %v9124 = vld [vmem:[%s9 + $0x5f0] sm:$0xff]
  %v9125 = vld [vmem:[%s9 + $0x5f8] sm:$0xff]
  %v9126 = vld [vmem:[%s10] sm:$0x7]
  %v9128 = vlaneseq
  %v9129 = vshrl.u32 %v9128, 7
  %v9130 = vsub.s32 0, %v9129
  %v9131 = vrot.slane %v9126, %v9130
  %v9132 = vlaneseq
  %v9133 = vshrl.u32 %v9132, 7
  %v9134 = vsub.s32 1, %v9133
  %v9135 = vrot.slane %v9126, %v9134
  %v9136 = vlaneseq
  %v9137 = vshrl.u32 %v9136, 7
  %v9138 = vsub.s32 2, %v9137
  %v9139 = vrot.slane %v9126, %v9138
  %9143 = vmatprep.subr.mxu0 %v8980
  %9144 = vmatpush1.msra.mxu0 %v8979
  %9145 = vmatprep.subr.mxu0 %v8977
  %9146 = vmatpush1.msra.mxu0 %v8976
  %9147 = vmatprep.subr.mxu0 %v8974
  %9148 = vmatpush1.msra.mxu0 %v8973
  %9149 = vmatprep.subr.mxu0 %v8971
  %9150 = vmatpush1.msra.mxu0 %v8970
  %9151 = vmatprep.subr.mxu0 %v8968
  %9152 = vmatpush1.msra.mxu0 %v8967
  %9153 = vmatprep.subr.mxu0 %v8965
  %9154 = vmatpush1.msra.mxu0 %v8964
  %9155 = vmatprep.subr.mxu0 %v8962
  %9156 = vmatpush1.msra.mxu0 %v8961
  %9157 = vmatprep.subr.mxu0 %v8959
  %9158 = vmatpush1.msra.mxu0 %v8958
  %9159 = vmatprep.subr.mxu0 %v8956
  %9160 = vmatpush1.msra.mxu0 %v8955
  %9161 = vmatprep.subr.mxu0 %v8953
  %9162 = vmatpush1.msra.mxu0 %v8952
  %9163 = vmatprep.subr.mxu0 %v8950
  %9164 = vmatpush1.msra.mxu0 %v8949
  %9165 = vmatprep.subr.mxu0 %v8947
  %9166 = vmatpush1.msra.mxu0 %v8946
  %9167 = vmatprep.subr.mxu0 %v8944
  %9168 = vmatpush1.msra.mxu0 %v8943
  %9169 = vmatprep.subr.mxu0 %v8941
  %9170 = vmatpush1.msra.mxu0 %v8940
  %9171 = vmatprep.subr.mxu0 %v8938
  %9172 = vmatpush1.msra.mxu0 %v8937
  %9173 = vmatprep.subr.mxu0 %v8935
  %9174 = vmatpush1.msra.mxu0 %v8934
  %9175 = vmatprep.subr.mxu0 %v9028
  %9176 = vmatpush2.msra.mxu0 %v9027
  %9177 = vmatprep.subr.mxu0 %v9025
  %9178 = vmatpush2.msra.mxu0 %v9024
  %9179 = vmatprep.subr.mxu0 %v9022
  %9180 = vmatpush2.msra.mxu0 %v9021
  %9181 = vmatprep.subr.mxu0 %v9019
  %9182 = vmatpush2.msra.mxu0 %v9018
  %9183 = vmatprep.subr.mxu0 %v9016
  %9184 = vmatpush2.msra.mxu0 %v9015
  %9185 = vmatprep.subr.mxu0 %v9013
  %9186 = vmatpush2.msra.mxu0 %v9012
  %9187 = vmatprep.subr.mxu0 %v9010
  %9188 = vmatpush2.msra.mxu0 %v9009
  %9189 = vmatprep.subr.mxu0 %v9007
  %9190 = vmatpush2.msra.mxu0 %v9006
  %9191 = vmatprep.subr.mxu0 %v9004
  %9192 = vmatpush2.msra.mxu0 %v9003
  %9193 = vmatprep.subr.mxu0 %v9001
  %9194 = vmatpush2.msra.mxu0 %v9000
  %9195 = vmatprep.subr.mxu0 %v8998
  %9196 = vmatpush2.msra.mxu0 %v8997
  %9197 = vmatprep.subr.mxu0 %v8995
  %9198 = vmatpush2.msra.mxu0 %v8994
  %9199 = vmatprep.subr.mxu0 %v8992
  %9200 = vmatpush2.msra.mxu0 %v8991
  %9201 = vmatprep.subr.mxu0 %v8989
  %9202 = vmatpush2.msra.mxu0 %v8988
  %9203 = vmatprep.subr.mxu0 %v8986
  %9204 = vmatpush2.msra.mxu0 %v8985
  %9205 = vmatprep.subr.mxu0 %v8983
  %9206 = vmatpush2.msra.mxu0 %v8982
  %9207 = vmatprep.mubr.f32.mxu0 %v8927
  %9208 = vmatmul.mubr.f32.gmra.mxu0 %v8926
  %v9209 = vpop.f32.mrf.mxu0
  %v9210 = vadd.f32 %v9131, %v9209
  %v9211 = vpop.f32.mrf.mxu0
  %v9212 = vadd.f32 %v9135, %v9211
  %9213 = vmatprep.mubr.f32.mxu0 %v8931
  %9214 = vmatmul.mubr.f32.gmra.mxu0 %v8930
  %v9215 = vpop.f32.mrf.mxu0
  %v9216 = vadd.f32 %v9131, %v9215
  %v9217 = vpop.f32.mrf.mxu0
  %v9218 = vadd.f32 %v9135, %v9217
  %9219 = vdwg.mxu0
  %9220 = vmatprep.subr.mxu0 %v9076
  %9221 = vmatpush1.msra.mxu0 %v9075
  %9222 = vmatprep.subr.mxu0 %v9073
  %9223 = vmatpush1.msra.mxu0 %v9072
  %9224 = vmatprep.subr.mxu0 %v9070
  %9225 = vmatpush1.msra.mxu0 %v9069
  %9226 = vmatprep.subr.mxu0 %v9067
  %9227 = vmatpush1.msra.mxu0 %v9066
  %9228 = vmatprep.subr.mxu0 %v9064
  %9229 = vmatpush1.msra.mxu0 %v9063
  %9230 = vmatprep.subr.mxu0 %v9061
  %9231 = vmatpush1.msra.mxu0 %v9060
  %9232 = vmatprep.subr.mxu0 %v9058
  %9233 = vmatpush1.msra.mxu0 %v9057
  %9234 = vmatprep.subr.mxu0 %v9055
  %9235 = vmatpush1.msra.mxu0 %v9054
  %9236 = vmatprep.subr.mxu0 %v9052
  %9237 = vmatpush1.msra.mxu0 %v9051
  %9238 = vmatprep.subr.mxu0 %v9049
  %9239 = vmatpush1.msra.mxu0 %v9048
  %9240 = vmatprep.subr.mxu0 %v9046
  %9241 = vmatpush1.msra.mxu0 %v9045
  %9242 = vmatprep.subr.mxu0 %v9043
  %9243 = vmatpush1.msra.mxu0 %v9042
  %9244 = vmatprep.subr.mxu0 %v9040
  %9245 = vmatpush1.msra.mxu0 %v9039
  %9246 = vmatprep.subr.mxu0 %v9037
  %9247 = vmatpush1.msra.mxu0 %v9036
  %9248 = vmatprep.subr.mxu0 %v9034
  %9249 = vmatpush1.msra.mxu0 %v9033
  %9250 = vmatprep.subr.mxu0 %v9031
  %9251 = vmatpush1.msra.mxu0 %v9030
  %9252 = vmatprep.subr.mxu0 %v9124
  %9253 = vmatpush2.msra.mxu0 %v9123
  %9254 = vmatprep.subr.mxu0 %v9121
  %9255 = vmatpush2.msra.mxu0 %v9120
  %9256 = vmatprep.subr.mxu0 %v9118
  %9257 = vmatpush2.msra.mxu0 %v9117
  %9258 = vmatprep.subr.mxu0 %v9115
  %9259 = vmatpush2.msra.mxu0 %v9114
  %9260 = vmatprep.subr.mxu0 %v9112
  %9261 = vmatpush2.msra.mxu0 %v9111
  %9262 = vmatprep.subr.mxu0 %v9109
  %9263 = vmatpush2.msra.mxu0 %v9108
  %9264 = vmatprep.subr.mxu0 %v9106
  %9265 = vmatpush2.msra.mxu0 %v9105
  %9266 = vmatprep.subr.mxu0 %v9103
  %9267 = vmatpush2.msra.mxu0 %v9102
  %9268 = vmatprep.subr.mxu0 %v9100
  %9269 = vmatpush2.msra.mxu0 %v9099
  %9270 = vmatprep.subr.mxu0 %v9097
  %9271 = vmatpush2.msra.mxu0 %v9096
  %9272 = vmatprep.subr.mxu0 %v9094
  %9273 = vmatpush2.msra.mxu0 %v9093
  %9274 = vmatprep.subr.mxu0 %v9091
  %9275 = vmatpush2.msra.mxu0 %v9090
  %9276 = vmatprep.subr.mxu0 %v9088
  %9277 = vmatpush2.msra.mxu0 %v9087
  %9278 = vmatprep.subr.mxu0 %v9085
  %9279 = vmatpush2.msra.mxu0 %v9084
  %9280 = vmatprep.subr.mxu0 %v9082
  %9281 = vmatpush2.msra.mxu0 %v9081
  %9282 = vmatprep.subr.mxu0 %v9079
  %9283 = vmatpush2.msra.mxu0 %v9078
  %9284 = vmatprep.mubr.f32.mxu0 %v8929
  %9285 = vmatmul.mubr.f32.gmra.mxu0 %v8928
  %v9286 = vpop.f32.mrf.mxu0
  %v9287 = vadd.f32 %v9210, %v9286
  %v9288 = vpop.f32.mrf.mxu0
  %v9289 = vadd.f32 %v9212, %v9288
  %9290 = vmatprep.mubr.f32.mxu0 %v8933
  %9291 = vmatmul.mubr.f32.gmra.mxu0 %v8932
  %v9292 = vpop.f32.mrf.mxu0
  %v9293 = vadd.f32 %v9216, %v9292
  %v9294 = vpop.f32.mrf.mxu0
  %v9295 = vadd.f32 %v9218, %v9294
  %9296 = vdwg.mxu0
  %9297 = vmatprep.subr.mxu0 0.0
  %9298 = vmatpush1.msra.mxu0 %v8981
  %9299 = vmatprep.subr.mxu0 0.0
  %9300 = vmatpush1.msra.mxu0 %v8978
  %9301 = vmatprep.subr.mxu0 0.0
  %9302 = vmatpush1.msra.mxu0 %v8975
  %9303 = vmatprep.subr.mxu0 0.0
  %9304 = vmatpush1.msra.mxu0 %v8972
  %9305 = vmatprep.subr.mxu0 0.0
  %9306 = vmatpush1.msra.mxu0 %v8969
  %9307 = vmatprep.subr.mxu0 0.0
  %9308 = vmatpush1.msra.mxu0 %v8966
  %9309 = vmatprep.subr.mxu0 0.0
  %9310 = vmatpush1.msra.mxu0 %v8963
  %9311 = vmatprep.subr.mxu0 0.0
  %9312 = vmatpush1.msra.mxu0 %v8960
  %9313 = vmatprep.subr.mxu0 0.0
  %9314 = vmatpush1.msra.mxu0 %v8957
  %9315 = vmatprep.subr.mxu0 0.0
  %9316 = vmatpush1.msra.mxu0 %v8954
  %9317 = vmatprep.subr.mxu0 0.0
  %9318 = vmatpush1.msra.mxu0 %v8951
  %9319 = vmatprep.subr.mxu0 0.0
  %9320 = vmatpush1.msra.mxu0 %v8948
  %9321 = vmatprep.subr.mxu0 0.0
  %9322 = vmatpush1.msra.mxu0 %v8945
  %9323 = vmatprep.subr.mxu0 0.0
  %9324 = vmatpush1.msra.mxu0 %v8942
  %9325 = vmatprep.subr.mxu0 0.0
  %9326 = vmatpush1.msra.mxu0 %v8939
  %9327 = vmatprep.subr.mxu0 0.0
  %9328 = vmatpush1.msra.mxu0 %v8936
  %9329 = vmatprep.subr.mxu0 0.0
  %9330 = vmatpush2.msra.mxu0 %v9029
  %9331 = vmatprep.subr.mxu0 0.0
  %9332 = vmatpush2.msra.mxu0 %v9026
  %9333 = vmatprep.subr.mxu0 0.0
  %9334 = vmatpush2.msra.mxu0 %v9023
  %9335 = vmatprep.subr.mxu0 0.0
  %9336 = vmatpush2.msra.mxu0 %v9020
  %9337 = vmatprep.subr.mxu0 0.0
  %9338 = vmatpush2.msra.mxu0 %v9017
  %9339 = vmatprep.subr.mxu0 0.0
  %9340 = vmatpush2.msra.mxu0 %v9014
  %9341 = vmatprep.subr.mxu0 0.0
  %9342 = vmatpush2.msra.mxu0 %v9011
  %9343 = vmatprep.subr.mxu0 0.0
  %9344 = vmatpush2.msra.mxu0 %v9008
  %9345 = vmatprep.subr.mxu0 0.0
  %9346 = vmatpush2.msra.mxu0 %v9005
  %9347 = vmatprep.subr.mxu0 0.0
  %9348 = vmatpush2.msra.mxu0 %v9002
  %9349 = vmatprep.subr.mxu0 0.0
  %9350 = vmatpush2.msra.mxu0 %v8999
  %9351 = vmatprep.subr.mxu0 0.0
  %9352 = vmatpush2.msra.mxu0 %v8996
  %9353 = vmatprep.subr.mxu0 0.0
  %9354 = vmatpush2.msra.mxu0 %v8993
  %9355 = vmatprep.subr.mxu0 0.0
  %9356 = vmatpush2.msra.mxu0 %v8990
  %9357 = vmatprep.subr.mxu0 0.0
  %9358 = vmatpush2.msra.mxu0 %v8987
  %9359 = vmatprep.subr.mxu0 0.0
  %9360 = vmatpush2.msra.mxu0 %v8984
  %9361 = vmatprep.mubr.f32.mxu0 %v8927
  %9362 = vmatmul.mubr.f32.gmra.mxu0 %v8926
  %v9363 = vpop.f32.mrf.mxu0
  %v9364 = vadd.f32 %v9139, %v9363
  %v9365 = vpop.f32.mrf.mxu0
  %9366 = vmatprep.mubr.f32.mxu0 %v8931
  %9367 = vmatmul.mubr.f32.gmra.mxu0 %v8930
  %v9368 = vpop.f32.mrf.mxu0
  %v9369 = vadd.f32 %v9139, %v9368
  %v9370 = vpop.f32.mrf.mxu0
  %9371 = vdwg.mxu0
  %9372 = vmatprep.subr.mxu0 0.0
  %9373 = vmatpush1.msra.mxu0 %v9077
  %9374 = vmatprep.subr.mxu0 0.0
  %9375 = vmatpush1.msra.mxu0 %v9074
  %9376 = vmatprep.subr.mxu0 0.0
  %9377 = vmatpush1.msra.mxu0 %v9071
  %9378 = vmatprep.subr.mxu0 0.0
  %9379 = vmatpush1.msra.mxu0 %v9068
  %9380 = vmatprep.subr.mxu0 0.0
  %9381 = vmatpush1.msra.mxu0 %v9065
  %9382 = vmatprep.subr.mxu0 0.0
  %9383 = vmatpush1.msra.mxu0 %v9062
  %9384 = vmatprep.subr.mxu0 0.0
  %9385 = vmatpush1.msra.mxu0 %v9059
  %9386 = vmatprep.subr.mxu0 0.0
  %9387 = vmatpush1.msra.mxu0 %v9056
  %9388 = vmatprep.subr.mxu0 0.0
  %9389 = vmatpush1.msra.mxu0 %v9053
  %9390 = vmatprep.subr.mxu0 0.0
  %9391 = vmatpush1.msra.mxu0 %v9050
  %9392 = vmatprep.subr.mxu0 0.0
  %9393 = vmatpush1.msra.mxu0 %v9047
  %9394 = vmatprep.subr.mxu0 0.0
  %9395 = vmatpush1.msra.mxu0 %v9044
  %9396 = vmatprep.subr.mxu0 0.0
  %9397 = vmatpush1.msra.mxu0 %v9041
  %9398 = vmatprep.subr.mxu0 0.0
  %9399 = vmatpush1.msra.mxu0 %v9038
  %9400 = vmatprep.subr.mxu0 0.0
  %9401 = vmatpush1.msra.mxu0 %v9035
  %9402 = vmatprep.subr.mxu0 0.0
  %9403 = vmatpush1.msra.mxu0 %v9032
  %9404 = vmatprep.subr.mxu0 0.0
  %9405 = vmatpush2.msra.mxu0 %v9125
  %9406 = vmatprep.subr.mxu0 0.0
  %9407 = vmatpush2.msra.mxu0 %v9122
  %9408 = vmatprep.subr.mxu0 0.0
  %9409 = vmatpush2.msra.mxu0 %v9119
  %9410 = vmatprep.subr.mxu0 0.0
  %9411 = vmatpush2.msra.mxu0 %v9116
  %9412 = vmatprep.subr.mxu0 0.0
  %9413 = vmatpush2.msra.mxu0 %v9113
  %9414 = vmatprep.subr.mxu0 0.0
  %9415 = vmatpush2.msra.mxu0 %v9110
  %9416 = vmatprep.subr.mxu0 0.0
  %9417 = vmatpush2.msra.mxu0 %v9107
  %9418 = vmatprep.subr.mxu0 0.0
  %9419 = vmatpush2.msra.mxu0 %v9104
  %9420 = vmatprep.subr.mxu0 0.0
  %9421 = vmatpush2.msra.mxu0 %v9101
  %9422 = vmatprep.subr.mxu0 0.0
  %9423 = vmatpush2.msra.mxu0 %v9098
  %9424 = vmatprep.subr.mxu0 0.0
  %9425 = vmatpush2.msra.mxu0 %v9095
  %9426 = vmatprep.subr.mxu0 0.0
  %9427 = vmatpush2.msra.mxu0 %v9092
  %9428 = vmatprep.subr.mxu0 0.0
  %9429 = vmatpush2.msra.mxu0 %v9089
  %9430 = vmatprep.subr.mxu0 0.0
  %9431 = vmatpush2.msra.mxu0 %v9086
  %9432 = vmatprep.subr.mxu0 0.0
  %9433 = vmatpush2.msra.mxu0 %v9083
  %9434 = vmatprep.subr.mxu0 0.0
  %9435 = vmatpush2.msra.mxu0 %v9080
  %9436 = vmatprep.mubr.f32.mxu0 %v8929
  %9437 = vmatmul.mubr.f32.gmra.mxu0 %v8928
  %v9438 = vpop.f32.mrf.mxu0
  %v9439 = vadd.f32 %v9364, %v9438
  %v9440 = vpop.f32.mrf.mxu0
  %9441 = vmatprep.mubr.f32.mxu0 %v8933
  %9442 = vmatmul.mubr.f32.gmra.mxu0 %v8932
  %v9443 = vpop.f32.mrf.mxu0
  %v9444 = vadd.f32 %v9369, %v9443
  %v9445 = vpop.f32.mrf.mxu0
  %9446 = vdwg.mxu0
  %9447 = vmax.xlane.f32.xlu0 %v9287
  %v9448 = vpop.xlane.xlu0 %9447
  %9449 = vmax.xlane.f32.xlu0 %v9293
  %v9450 = vpop.xlane.xlu0 %9449
  %v9451 = vsub.f32 %v9287, %v9448
  %v9452 = vsub.f32 %v9293, %v9450
  %v9453 = vmul.f32 %v9451, 1.442695
  %v9454 = vpow.pop %v9453
  %v9455 = vmul.f32 %v9452, 1.442695
  %v9456 = vpow.pop %v9455
  %v9457 = vld [vmem:[%s11] sm:$0x1]
  %v9459 = vlaneseq
  %v9460 = vshrl.u32 %v9459, 7
  %v9461 = vsub.s32 0, %v9460
  %v9462 = vrot.slane %v9457, %v9461
  %v9464 = vmul.f32 %v9454, %v9462
  %v9465 = vmul.f32 %v9456, %v9462
  %9466 = vadd.xlane.f32.xlu0 %v9464
  %v9467 = vpop.xlane.xlu0 %9466
  %9468 = vadd.xlane.f32.xlu0 %v9465
  %v9469 = vpop.xlane.xlu0 %9468
  %9470 = vadd.xlane.f32.xlu0 %v9454
  %v9471 = vpop.xlane.xlu0 %9470
  %9472 = vadd.xlane.f32.xlu0 %v9456
  %v9473 = vpop.xlane.xlu0 %9472
  %v9474 = vrcp.pop %v9471
  %v9475 = vmul.f32 %v9467, %v9474
  %v9476 = vrcp.pop %v9473
  %v9477 = vmul.f32 %v9469, %v9476
  %9478 = vmax.xlane.f32.xlu0 %v9289
  %v9479 = vpop.xlane.xlu0 %9478
  %9480 = vmax.xlane.f32.xlu0 %v9295
  %v9481 = vpop.xlane.xlu0 %9480
  %v9482 = vsub.f32 %v9289, %v9479
  %v9483 = vsub.f32 %v9295, %v9481
  %v9484 = vmul.f32 %v9482, 1.442695
  %v9485 = vpow.pop %v9484
  %v9486 = vmul.f32 %v9483, 1.442695
  %v9487 = vpow.pop %v9486
  %v9488 = vld [vmem:[%s11 + $0x1] sm:$0x1]
  %v9490 = vlaneseq
  %v9491 = vshrl.u32 %v9490, 7
  %v9492 = vsub.s32 0, %v9491
  %v9493 = vrot.slane %v9488, %v9492
  %v9495 = vmul.f32 %v9485, %v9493
  %v9496 = vmul.f32 %v9487, %v9493
  %9497 = vadd.xlane.f32.xlu0 %v9495
  %v9498 = vpop.xlane.xlu0 %9497
  %9499 = vadd.xlane.f32.xlu0 %v9496
  %v9500 = vpop.xlane.xlu0 %9499
  %9501 = vadd.xlane.f32.xlu0 %v9485
  %v9502 = vpop.xlane.xlu0 %9501
  %9503 = vadd.xlane.f32.xlu0 %v9487
  %v9504 = vpop.xlane.xlu0 %9503
  %v9505 = vrcp.pop %v9502
  %v9506 = vmul.f32 %v9498, %v9505
  %v9507 = vrcp.pop %v9504
  %v9508 = vmul.f32 %v9500, %v9507
  %9509 = vmax.xlane.f32.xlu0 %v9439
  %v9510 = vpop.xlane.xlu0 %9509
  %9511 = vmax.xlane.f32.xlu0 %v9444
  %v9512 = vpop.xlane.xlu0 %9511
  %v9513 = vsub.f32 %v9439, %v9510
  %v9514 = vsub.f32 %v9444, %v9512
  %v9515 = vmul.f32 %v9513, 1.442695
  %v9516 = vpow.pop %v9515
  %v9517 = vmul.f32 %v9514, 1.442695
  %v9518 = vpow.pop %v9517
  %v9519 = vld [vmem:[%s11 + $0x2] sm:$0x1]
  %v9521 = vlaneseq
  %v9522 = vshrl.u32 %v9521, 7
  %v9523 = vsub.s32 0, %v9522
  %v9524 = vrot.slane %v9519, %v9523
  %v9526 = vmul.f32 %v9516, %v9524
  %v9527 = vmul.f32 %v9518, %v9524
  %9528 = vadd.xlane.f32.xlu0 %v9526
  %v9529 = vpop.xlane.xlu0 %9528
  %9530 = vadd.xlane.f32.xlu0 %v9527
  %v9531 = vpop.xlane.xlu0 %9530
  %9532 = vadd.xlane.f32.xlu0 %v9516
  %v9533 = vpop.xlane.xlu0 %9532
  %9534 = vadd.xlane.f32.xlu0 %v9518
  %v9535 = vpop.xlane.xlu0 %9534
  %v9536 = vrcp.pop %v9533
  %v9537 = vmul.f32 %v9529, %v9536
  %v9538 = vrcp.pop %v9535
  %v9539 = vmul.f32 %v9531, %v9538
  %vm9540 = vcmask 7168
  %v9541 = vsel %vm9540, %v9475, %v9506
  %v9542 = vsel %vm9540, %v9477, %v9508
  %vm9543 = vcmask 15360
  %v9544 = vsel %vm9543, %v9541, %v9537
  %v9545 = vsel %vm9543, %v9542, %v9539
  %vm9546 = vcmask 23552
  %v9547 = vsel %vm9546, %v9544, 0.0
  %v9548 = vsel %vm9546, %v9545, 0.0
  %vm9549 = vcmask 64512
  %9550 = vst.msk [vmem:[%s12] sm:$0xff] %vm9549, %v9547
  %9551 = vst.msk [vmem:[%s12 + $0x8] sm:$0xff] %vm9549, %v9548
  // Predicated region
  $region50: #{class_pose_decoder.1} parent=0 // pred_check
    _
  $region51: #{class_pose_decoder.1} parent=0 // pred_check_branch
    %9553 = sbr.rel (0) target = $region53
  $region52: #{class_pose_decoder.1} parent=0 // pred_region
    _
  $region53: #{class_pose_decoder.1} parent=0 // pred_fallthru
    _
  // Predicated region
  $region54: #{class_pose_decoder.1} parent=0 // pred_check
    _
  $region55: #{class_pose_decoder.1} parent=0 // pred_check_branch
    %9555 = sbr.rel (0) target = $region57
  $region56: #{class_pose_decoder.1} parent=0 // pred_region
    _
  $region57: #{class_pose_decoder.1} parent=0 // pred_fallthru
    _

</llo_original>
